<compile_context>
chip_gen: v5e
topology: v5e:2x2
jax: 0.10.0
libtpu: 0.0.40
codegen_flags: <defaults>
</compile_context>

<pallas_src>
import jax
import jax.numpy as jnp
from jax import lax
from jax.experimental import pallas as pl
from jax.experimental.pallas import tpu as pltpu

# Problem sizes (small, consistent with the module; reduction=16 needs C>=16).
N, C, H, W = 2, 32, 16, 16
P = H * W                      # 256 flattened pixels -> lane axis in kernel
REDUCTION = 16
CR = C // REDUCTION            # 2
BN_EPS = 1e-5

# Static tap offset tables (shared by wrapper and kernel, same ordering).
TAPS3 = [(dy - 1, dx - 1) for dy in range(3) for dx in range(3)]
TAPS7 = [(dy - 3, dx - 3) for dy in range(7) for dx in range(7)]

# SMEM packed scalars: [loc1_b, loc2_b, loc3_b, rw_w0, rw_w1, rw_w2, rw_b]
N_SMALL = 7


def _sigmoid(v):
    return 1.0 / (1.0 + jnp.exp(-v))


def _shift_for(oy, ox):
    # rolled[p] = src[(p + oy*W + ox) mod P]
    return (-(oy * W + ox)) % P


def _conv_via_im2col(src, w_ref, m9_ref, r_scr):
    """3x3 'same' conv in transposed (C, P) layout.

    src:    (C, P) float32 value.
    w_ref:  (C, 9*C) weight, columns ordered (tap-major, then c_in).
    m9_ref: (9, 1, P) border masks (zero-padding emulation).
    r_scr:  (9*C, P) VMEM scratch = im2col patch matrix.
    Returns (C, P) float32.
    """
    for t, (oy, ox) in enumerate(TAPS3):
        s = _shift_for(oy, ox)
        rolled = src if s == 0 else pltpu.roll(src, shift=s, axis=1)
        r_scr[t * C:(t + 1) * C, :] = rolled * m9_ref[t]
    return jnp.dot(w_ref[...], r_scr[...], preferred_element_type=jnp.float32)


def fcam_block_kernel(x_ref, w1_ref, w2_ref, bn_ref, wd_ref, wu_ref,
                      wsp_ref, m9_ref, m49_ref, sm_ref, o_ref, r_scr):
    x = x_ref[0]                                             # (C, P)

    # ---- conv1 -> bn1 (folded) -> relu -------------------------------------
    c1 = _conv_via_im2col(x, w1_ref, m9_ref, r_scr)
    out1 = jnp.maximum(c1 * bn_ref[0] + bn_ref[1], 0.0)      # (C, P)

    # ---- conv2 -> bn2 (folded) ---------------------------------------------
    c2 = _conv_via_im2col(out1, w2_ref, m9_ref, r_scr)
    out2 = c2 * bn_ref[2] + bn_ref[3]                        # (C, P)

    # ---- MulFCAM: channel attention ----------------------------------------
    # Both pools are AdaptiveAvgPool2d in the reference module (bug preserved),
    # so the two branches are identical -> sigmoid(up + up).
    pooled = jnp.mean(out2, axis=1, keepdims=True)           # (C, 1)
    hid = jnp.maximum(
        jnp.dot(wd_ref[...], pooled, preferred_element_type=jnp.float32), 0.0)
    up = jnp.dot(wu_ref[...], hid, preferred_element_type=jnp.float32)  # (C,1)
    gate_c = _sigmoid(up + up)                               # (C, 1)
    x1 = out2 * gate_c                                       # (C, P)

    # ---- MulFCAM: multi-scale spatial attention -----------------------------
    mean_map = jnp.mean(x1, axis=0, keepdims=True)           # (1, P)
    max_map = jnp.max(x1, axis=0, keepdims=True)             # (1, P)

    acc = jnp.zeros((3, P), jnp.float32)                     # 3 branch pre-acts
    for t, (oy, ox) in enumerate(TAPS7):
        s = _shift_for(oy, ox)
        if s == 0:
            rm, rx = mean_map, max_map
        else:
            rm = pltpu.roll(mean_map, shift=s, axis=1)
            rx = pltpu.roll(max_map, shift=s, axis=1)
        m = m49_ref[t]                                       # (1, P)
        wt = wsp_ref[t]                                      # (3, 2)
        acc = acc + wt[:, 0:1] * (rm * m) + wt[:, 1:2] * (rx * m)

    yb1 = jnp.maximum(acc[0:1, :] + sm_ref[0], 0.0)
    yb2 = jnp.maximum(acc[1:2, :] + sm_ref[1], 0.0)
    yb3 = jnp.maximum(acc[2:3, :] + sm_ref[2], 0.0)
    gate_s = _sigmoid(sm_ref[3] * yb1 + sm_ref[4] * yb2 + sm_ref[5] * yb3
                      + sm_ref[6])                           # (1, P)
    x2 = x1 * gate_s                                         # (C, P)

    # ---- residual add + relu ------------------------------------------------
    o_ref[0] = jnp.maximum(x2 + x, 0.0).astype(o_ref.dtype)


# ------------------------------- wrapper -------------------------------------

def _border_masks(offsets):
    """(T, 1, P) float 0/1 masks emulating zero padding for each tap offset."""
    yy = jnp.arange(H, dtype=jnp.int32).reshape(H, 1)
    xx = jnp.arange(W, dtype=jnp.int32).reshape(1, W)
    rows = []
    for oy, ox in offsets:
        ok = ((yy + oy >= 0) & (yy + oy < H) & (xx + ox >= 0) & (xx + ox < W))
        rows.append(ok.astype(jnp.float32).reshape(1, P))
    return jnp.stack(rows, axis=0)


def fcam_basic_block(x_nchw, p):
    """Folds BN, repacks weights/masks, launches the fused kernel."""
    s1 = p['bn1_gamma'] / jnp.sqrt(p['bn1_var'] + BN_EPS)
    b1 = p['bn1_beta'] - p['bn1_mean'] * s1
    s2 = p['bn2_gamma'] / jnp.sqrt(p['bn2_var'] + BN_EPS)
    b2 = p['bn2_beta'] - p['bn2_mean'] * s2
    bn = jnp.stack([s1, b1, s2, b2]).reshape(4, C, 1)

    # conv weights: OIHW -> (C_out, 9*C_in), columns tap-major then c_in.
    w1 = jnp.transpose(p['conv1_w'], (0, 2, 3, 1)).reshape(C, 9 * C)
    w2 = jnp.transpose(p['conv2_w'], (0, 2, 3, 1)).reshape(C, 9 * C)

    # Spatial 3/5/7 kernels zero-embedded in a common 7x7 footprint:
    # wsp[tap, branch, {mean,max}]
    l1 = jnp.pad(p['loc1_w'], ((0, 0), (0, 0), (2, 2), (2, 2)))
    l2 = jnp.pad(p['loc2_w'], ((0, 0), (0, 0), (1, 1), (1, 1)))
    l3 = p['loc3_w']
    wsp = jnp.transpose(jnp.stack([l1[0], l2[0], l3[0]], axis=0),
                        (2, 3, 0, 1)).reshape(49, 3, 2)

    masks9 = _border_masks(TAPS3)                            # (9, 1, P)
    masks49 = _border_masks(TAPS7)                           # (49, 1, P)
    smalls = jnp.concatenate([p['loc1_b'], p['loc2_b'], p['loc3_b'],
                              p['rw_w'], p['rw_b']]).astype(jnp.float32)
    assert smalls.shape == (N_SMALL,)

    x_flat = x_nchw.reshape(N, C, P)

    out = pl.pallas_call(
        fcam_block_kernel,
        out_shape=jax.ShapeDtypeStruct((N, C, P), jnp.float32),
        grid=(N,),
        in_specs=[
            pl.BlockSpec((1, C, P), lambda n: (n, 0, 0)),       # x (transposed)
            pl.BlockSpec((C, 9 * C), lambda n: (0, 0)),         # conv1 weight
            pl.BlockSpec((C, 9 * C), lambda n: (0, 0)),         # conv2 weight
            pl.BlockSpec((4, C, 1), lambda n: (0, 0, 0)),       # BN scale/bias
            pl.BlockSpec((CR, C), lambda n: (0, 0)),            # conv_down w
            pl.BlockSpec((C, CR), lambda n: (0, 0)),            # conv_up w
            pl.BlockSpec((49, 3, 2), lambda n: (0, 0, 0)),      # spatial weights
            pl.BlockSpec((9, 1, P), lambda n: (0, 0, 0)),       # conv border masks
            pl.BlockSpec((49, 1, P), lambda n: (0, 0, 0)),      # spatial masks
            pl.BlockSpec(memory_space=pltpu.MemorySpace.SMEM),  # packed scalars
        ],
        out_specs=pl.BlockSpec((1, C, P), lambda n: (n, 0, 0)),
        scratch_shapes=[pltpu.VMEM((9 * C, P), jnp.float32)],   # im2col matrix
        compiler_params=pltpu.CompilerParams(
            dimension_semantics=("parallel",)),
    )(x_flat, w1, w2, bn, p['cd_w'], p['cu_w'], wsp, masks9, masks49, smalls)

    return out.reshape(N, C, H, W)


# ---------------------------- parameters & reference -------------------------

def init_params(key):
    keys = jax.random.split(key, 32)
    it = iter(keys)

    def nrm(shape, scale=0.1):
        return scale * jax.random.normal(next(it), shape, jnp.float32)

    p = {}
    p['conv1_w'] = nrm((C, C, 3, 3))          # OIHW, bias=False
    p['conv2_w'] = nrm((C, C, 3, 3))
    for name in ('bn1', 'bn2'):
        p[name + '_gamma'] = 1.0 + nrm((C,))
        p[name + '_beta'] = nrm((C,))
        p[name + '_mean'] = nrm((C,))
        p[name + '_var'] = 0.5 + jax.random.uniform(next(it), (C,), jnp.float32)
    p['cd_w'] = nrm((CR, C), 0.3)             # conv_down (out, in), 1x1
    p['cu_w'] = nrm((C, CR), 0.3)             # conv_up   (out, in), 1x1
    p['loc1_w'] = nrm((1, 2, 3, 3), 0.2); p['loc1_b'] = nrm((1,))
    p['loc2_w'] = nrm((1, 2, 5, 5), 0.2); p['loc2_b'] = nrm((1,))
    p['loc3_w'] = nrm((1, 2, 7, 7), 0.2); p['loc3_b'] = nrm((1,))
    p['rw_w'] = nrm((3,), 0.5); p['rw_b'] = nrm((1,))
    return p


def _conv_nchw(x, w, bias=None):
    out = lax.conv_general_dilated(
        x, w, window_strides=(1, 1), padding='SAME',
        dimension_numbers=('NCHW', 'OIHW', 'NCHW'))
    if bias is not None:
        out = out + bias.reshape(1, -1, 1, 1)
    return out


def ref_forward(x, p):
    """Pure-JAX (NCHW) reference for correctness checking."""
    s1 = p['bn1_gamma'] / jnp.sqrt(p['bn1_var'] + BN_EPS)
    b1 = p['bn1_beta'] - p['bn1_mean'] * s1
    s2 = p['bn2_gamma'] / jnp.sqrt(p['bn2_var'] + BN_EPS)
    b2 = p['bn2_beta'] - p['bn2_mean'] * s2

    out = _conv_nchw(x, p['conv1_w'])
    out = jnp.maximum(out * s1.reshape(1, C, 1, 1) + b1.reshape(1, C, 1, 1), 0.0)
    out = _conv_nchw(out, p['conv2_w'])
    out = out * s2.reshape(1, C, 1, 1) + b2.reshape(1, C, 1, 1)

    pooled = jnp.mean(out, axis=(2, 3))                      # (N, C)

    def chan_branch(v):
        h = jnp.maximum(jnp.einsum('nc,jc->nj', v, p['cd_w']), 0.0)
        return jnp.einsum('nj,cj->nc', h, p['cu_w'])

    gate_c = jax.nn.sigmoid(chan_branch(pooled) + chan_branch(pooled))
    x1 = out * gate_c[:, :, None, None]

    chm = jnp.mean(x1, axis=1, keepdims=True)
    chx = jnp.max(x1, axis=1, keepdims=True)
    ycat = jnp.concatenate([chm, chx], axis=1)               # (N, 2, H, W)
    yb1 = jnp.maximum(_conv_nchw(ycat, p['loc1_w'], p['loc1_b']), 0.0)
    yb2 = jnp.maximum(_conv_nchw(ycat, p['loc2_w'], p['loc2_b']), 0.0)
    yb3 = jnp.maximum(_conv_nchw(ycat, p['loc3_w'], p['loc3_b']), 0.0)
    ycat2 = jnp.concatenate([yb1, yb2, yb3], axis=1)         # (N, 3, H, W)
    gate_s = jax.nn.sigmoid(
        jnp.einsum('nkhw,k->nhw', ycat2, p['rw_w'])[:, None] + p['rw_b'])
    x2 = x1 * gate_s
    return jnp.maximum(x2 + x, 0.0)


if __name__ == "__main__":
    key = jax.random.PRNGKey(0)
    kx, kp = jax.random.split(key)
    x = jax.random.normal(kx, (N, C, H, W), jnp.float32)
    params = init_params(kp)

    out = jax.block_until_ready(fcam_basic_block(x, params))
    assert out.shape == (N, C, H, W) and out.dtype == jnp.float32

    ref = ref_forward(x, params)
    err = float(jnp.max(jnp.abs(out - ref)))
    if not (err < 2e-3):
        raise AssertionError(f"kernel/reference mismatch: max abs err = {err}")
    print("KERNEL_OK")
</pallas_src>

<mosaic_0001>
module attributes {stable_mosaic.version = 11 : i64} {
  func.func @fcam_block_kernel(%arg0: i32, %arg1: memref<1x32x256xf32, #tpu.memory_space<vmem>>, %arg2: memref<32x288xf32, #tpu.memory_space<vmem>>, %arg3: memref<32x288xf32, #tpu.memory_space<vmem>>, %arg4: memref<4x32x1xf32, #tpu.memory_space<vmem>>, %arg5: memref<2x32xf32, #tpu.memory_space<vmem>>, %arg6: memref<32x2xf32, #tpu.memory_space<vmem>>, %arg7: memref<49x3x2xf32, #tpu.memory_space<vmem>>, %arg8: memref<9x1x256xf32, #tpu.memory_space<vmem>>, %arg9: memref<49x1x256xf32, #tpu.memory_space<vmem>>, %arg10: memref<7xf32, #tpu.memory_space<smem>>, %arg11: memref<1x32x256xf32, #tpu.memory_space<vmem>>, %arg12: memref<288x256xf32, #tpu.memory_space<vmem>>) attributes {dimension_semantics = [#tpu.dimension_semantics<parallel>], iteration_bounds = array<i64: 2>, scalar_prefetch = 0 : i64, scratch_operands = 1 : i64, tpu.core_type = #tpu.core_type<tc>, window_params = [{transform_indices = @transform_0, window_bounds = array<i64: 1, 32, 256>}, {pipeline_mode = #tpu.pipeline_mode<synchronous>, transform_indices = @transform_1, window_bounds = array<i64: 32, 288>}, {pipeline_mode = #tpu.pipeline_mode<synchronous>, transform_indices = @transform_2, window_bounds = array<i64: 32, 288>}, {pipeline_mode = #tpu.pipeline_mode<synchronous>, transform_indices = @transform_3, window_bounds = array<i64: 4, 32, 1>}, {pipeline_mode = #tpu.pipeline_mode<synchronous>, transform_indices = @transform_4, window_bounds = array<i64: 2, 32>}, {pipeline_mode = #tpu.pipeline_mode<synchronous>, transform_indices = @transform_5, window_bounds = array<i64: 32, 2>}, {pipeline_mode = #tpu.pipeline_mode<synchronous>, transform_indices = @transform_6, window_bounds = array<i64: 49, 3, 2>}, {pipeline_mode = #tpu.pipeline_mode<synchronous>, transform_indices = @transform_7, window_bounds = array<i64: 9, 1, 256>}, {pipeline_mode = #tpu.pipeline_mode<synchronous>, transform_indices = @transform_8, window_bounds = array<i64: 49, 1, 256>}, {transform_indices = @transform_9, window_bounds = array<i64: 7>}, {transform_indices = @transform_10, window_bounds = array<i64: 1, 32, 256>}]} {
    %c0 = arith.constant 0 : index
    %c0_0 = arith.constant 0 : index
    %c0_1 = arith.constant 0 : index
    %0 = vector.load %arg1[%c0, %c0_0, %c0_1] : memref<1x32x256xf32, #tpu.memory_space<vmem>>, vector<1x32x256xf32>
    %1 = vector.shape_cast %0 : vector<1x32x256xf32> to vector<32x256xf32>
    %c17_i32 = arith.constant 17 : i32
    %2 = tpu.dynamic_rotate %1 by %c17_i32 dim 1 : vector<32x256xf32>, i32 -> vector<32x256xf32>
    %c0_2 = arith.constant 0 : index
    %c0_3 = arith.constant 0 : index
    %c0_4 = arith.constant 0 : index
    %3 = vector.load %arg8[%c0_2, %c0_3, %c0_4] : memref<9x1x256xf32, #tpu.memory_space<vmem>>, vector<1x1x256xf32>
    %4 = vector.shape_cast %3 : vector<1x1x256xf32> to vector<1x256xf32>
    %5 = vector.broadcast %4 : vector<1x256xf32> to vector<32x256xf32>
    %6 = arith.mulf %2, %5 : vector<32x256xf32>
    %c0_5 = arith.constant 0 : index
    %c0_6 = arith.constant 0 : index
    %7 = vector.load %arg12[%c0_5, %c0_6] : memref<288x256xf32, #tpu.memory_space<vmem>>, vector<32x256xf32>
    tpu.vector_store %arg12[%c0_5, %c0_6], %6 {strides = array<i32>} : memref<288x256xf32, #tpu.memory_space<vmem>>, vector<32x256xf32>,
    %c16_i32 = arith.constant 16 : i32
    %8 = tpu.dynamic_rotate %1 by %c16_i32 dim 1 : vector<32x256xf32>, i32 -> vector<32x256xf32>
    %c1 = arith.constant 1 : index
    %c0_7 = arith.constant 0 : index
    %c0_8 = arith.constant 0 : index
    %9 = vector.load %arg8[%c1, %c0_7, %c0_8] : memref<9x1x256xf32, #tpu.memory_space<vmem>>, vector<1x1x256xf32>
    %10 = vector.shape_cast %9 : vector<1x1x256xf32> to vector<1x256xf32>
    %11 = vector.broadcast %10 : vector<1x256xf32> to vector<32x256xf32>
    %12 = arith.mulf %8, %11 : vector<32x256xf32>
    %c32 = arith.constant 32 : index
    %c0_9 = arith.constant 0 : index
    %13 = vector.load %arg12[%c32, %c0_9] : memref<288x256xf32, #tpu.memory_space<vmem>>, vector<32x256xf32>
    tpu.vector_store %arg12[%c32, %c0_9], %12 {strides = array<i32>} : memref<288x256xf32, #tpu.memory_space<vmem>>, vector<32x256xf32>,
    %c15_i32 = arith.constant 15 : i32
    %14 = tpu.dynamic_rotate %1 by %c15_i32 dim 1 : vector<32x256xf32>, i32 -> vector<32x256xf32>
    %c2 = arith.constant 2 : index
    %c0_10 = arith.constant 0 : index
    %c0_11 = arith.constant 0 : index
    %15 = vector.load %arg8[%c2, %c0_10, %c0_11] : memref<9x1x256xf32, #tpu.memory_space<vmem>>, vector<1x1x256xf32>
    %16 = vector.shape_cast %15 : vector<1x1x256xf32> to vector<1x256xf32>
    %17 = vector.broadcast %16 : vector<1x256xf32> to vector<32x256xf32>
    %18 = arith.mulf %14, %17 : vector<32x256xf32>
    %c64 = arith.constant 64 : index
    %c0_12 = arith.constant 0 : index
    %19 = vector.load %arg12[%c64, %c0_12] : memref<288x256xf32, #tpu.memory_space<vmem>>, vector<32x256xf32>
    tpu.vector_store %arg12[%c64, %c0_12], %18 {strides = array<i32>} : memref<288x256xf32, #tpu.memory_space<vmem>>, vector<32x256xf32>,
    %c1_i32 = arith.constant 1 : i32
    %20 = tpu.dynamic_rotate %1 by %c1_i32 dim 1 : vector<32x256xf32>, i32 -> vector<32x256xf32>
    %c3 = arith.constant 3 : index
    %c0_13 = arith.constant 0 : index
    %c0_14 = arith.constant 0 : index
    %21 = vector.load %arg8[%c3, %c0_13, %c0_14] : memref<9x1x256xf32, #tpu.memory_space<vmem>>, vector<1x1x256xf32>
    %22 = vector.shape_cast %21 : vector<1x1x256xf32> to vector<1x256xf32>
    %23 = vector.broadcast %22 : vector<1x256xf32> to vector<32x256xf32>
    %24 = arith.mulf %20, %23 : vector<32x256xf32>
    %c96 = arith.constant 96 : index
    %c0_15 = arith.constant 0 : index
    %25 = vector.load %arg12[%c96, %c0_15] : memref<288x256xf32, #tpu.memory_space<vmem>>, vector<32x256xf32>
    tpu.vector_store %arg12[%c96, %c0_15], %24 {strides = array<i32>} : memref<288x256xf32, #tpu.memory_space<vmem>>, vector<32x256xf32>,
    %c4 = arith.constant 4 : index
    %c0_16 = arith.constant 0 : index
    %c0_17 = arith.constant 0 : index
    %26 = vector.load %arg8[%c4, %c0_16, %c0_17] : memref<9x1x256xf32, #tpu.memory_space<vmem>>, vector<1x1x256xf32>
    %27 = vector.shape_cast %26 : vector<1x1x256xf32> to vector<1x256xf32>
    %28 = vector.broadcast %27 : vector<1x256xf32> to vector<32x256xf32>
    %29 = arith.mulf %1, %28 : vector<32x256xf32>
    %c128 = arith.constant 128 : index
    %c0_18 = arith.constant 0 : index
    %30 = vector.load %arg12[%c128, %c0_18] : memref<288x256xf32, #tpu.memory_space<vmem>>, vector<32x256xf32>
    tpu.vector_store %arg12[%c128, %c0_18], %29 {strides = array<i32>} : memref<288x256xf32, #tpu.memory_space<vmem>>, vector<32x256xf32>,
    %c255_i32 = arith.constant 255 : i32
    %31 = tpu.dynamic_rotate %1 by %c255_i32 dim 1 : vector<32x256xf32>, i32 -> vector<32x256xf32>
    %c5 = arith.constant 5 : index
    %c0_19 = arith.constant 0 : index
    %c0_20 = arith.constant 0 : index
    %32 = vector.load %arg8[%c5, %c0_19, %c0_20] : memref<9x1x256xf32, #tpu.memory_space<vmem>>, vector<1x1x256xf32>
    %33 = vector.shape_cast %32 : vector<1x1x256xf32> to vector<1x256xf32>
    %34 = vector.broadcast %33 : vector<1x256xf32> to vector<32x256xf32>
    %35 = arith.mulf %31, %34 : vector<32x256xf32>
    %c160 = arith.constant 160 : index
    %c0_21 = arith.constant 0 : index
    %36 = vector.load %arg12[%c160, %c0_21] : memref<288x256xf32, #tpu.memory_space<vmem>>, vector<32x256xf32>
    tpu.vector_store %arg12[%c160, %c0_21], %35 {strides = array<i32>} : memref<288x256xf32, #tpu.memory_space<vmem>>, vector<32x256xf32>,
    %c241_i32 = arith.constant 241 : i32
    %37 = tpu.dynamic_rotate %1 by %c241_i32 dim 1 : vector<32x256xf32>, i32 -> vector<32x256xf32>
    %c6 = arith.constant 6 : index
    %c0_22 = arith.constant 0 : index
    %c0_23 = arith.constant 0 : index
    %38 = vector.load %arg8[%c6, %c0_22, %c0_23] : memref<9x1x256xf32, #tpu.memory_space<vmem>>, vector<1x1x256xf32>
    %39 = vector.shape_cast %38 : vector<1x1x256xf32> to vector<1x256xf32>
    %40 = vector.broadcast %39 : vector<1x256xf32> to vector<32x256xf32>
    %41 = arith.mulf %37, %40 : vector<32x256xf32>
    %c192 = arith.constant 192 : index
    %c0_24 = arith.constant 0 : index
    %42 = vector.load %arg12[%c192, %c0_24] : memref<288x256xf32, #tpu.memory_space<vmem>>, vector<32x256xf32>
    tpu.vector_store %arg12[%c192, %c0_24], %41 {strides = array<i32>} : memref<288x256xf32, #tpu.memory_space<vmem>>, vector<32x256xf32>,
    %c240_i32 = arith.constant 240 : i32
    %43 = tpu.dynamic_rotate %1 by %c240_i32 dim 1 : vector<32x256xf32>, i32 -> vector<32x256xf32>
    %c7 = arith.constant 7 : index
    %c0_25 = arith.constant 0 : index
    %c0_26 = arith.constant 0 : index
    %44 = vector.load %arg8[%c7, %c0_25, %c0_26] : memref<9x1x256xf32, #tpu.memory_space<vmem>>, vector<1x1x256xf32>
    %45 = vector.shape_cast %44 : vector<1x1x256xf32> to vector<1x256xf32>
    %46 = vector.broadcast %45 : vector<1x256xf32> to vector<32x256xf32>
    %47 = arith.mulf %43, %46 : vector<32x256xf32>
    %c224 = arith.constant 224 : index
    %c0_27 = arith.constant 0 : index
    %48 = vector.load %arg12[%c224, %c0_27] : memref<288x256xf32, #tpu.memory_space<vmem>>, vector<32x256xf32>
    tpu.vector_store %arg12[%c224, %c0_27], %47 {strides = array<i32>} : memref<288x256xf32, #tpu.memory_space<vmem>>, vector<32x256xf32>,
    %c239_i32 = arith.constant 239 : i32
    %49 = tpu.dynamic_rotate %1 by %c239_i32 dim 1 : vector<32x256xf32>, i32 -> vector<32x256xf32>
    %c8 = arith.constant 8 : index
    %c0_28 = arith.constant 0 : index
    %c0_29 = arith.constant 0 : index
    %50 = vector.load %arg8[%c8, %c0_28, %c0_29] : memref<9x1x256xf32, #tpu.memory_space<vmem>>, vector<1x1x256xf32>
    %51 = vector.shape_cast %50 : vector<1x1x256xf32> to vector<1x256xf32>
    %52 = vector.broadcast %51 : vector<1x256xf32> to vector<32x256xf32>
    %53 = arith.mulf %49, %52 : vector<32x256xf32>
    %c256 = arith.constant 256 : index
    %c0_30 = arith.constant 0 : index
    %54 = vector.load %arg12[%c256, %c0_30] : memref<288x256xf32, #tpu.memory_space<vmem>>, vector<32x256xf32>
    tpu.vector_store %arg12[%c256, %c0_30], %53 {strides = array<i32>} : memref<288x256xf32, #tpu.memory_space<vmem>>, vector<32x256xf32>,
    %c0_31 = arith.constant 0 : index
    %c0_32 = arith.constant 0 : index
    %55 = vector.load %arg2[%c0_31, %c0_32] : memref<32x288xf32, #tpu.memory_space<vmem>>, vector<32x288xf32>
    %c0_33 = arith.constant 0 : index
    %c0_34 = arith.constant 0 : index
    %56 = vector.load %arg12[%c0_33, %c0_34] : memref<288x256xf32, #tpu.memory_space<vmem>>, vector<288x256xf32>
    %cst = arith.constant dense<0.000000e+00> : vector<32x256xf32>
    %57 = tpu.matmul %55, %56, %cst {dimension_numbers = #tpu.dot_dimension_numbers<[1], [0], [0], [1], [0, 0, 1, 1], [], []>} : vector<32x288xf32>, vector<288x256xf32>, vector<32x256xf32> -> vector<32x256xf32>
    %c0_35 = arith.constant 0 : index
    %c0_36 = arith.constant 0 : index
    %c0_37 = arith.constant 0 : index
    %58 = vector.load %arg4[%c0_35, %c0_36, %c0_37] : memref<4x32x1xf32, #tpu.memory_space<vmem>>, vector<1x32x1xf32>
    %59 = vector.shape_cast %58 : vector<1x32x1xf32> to vector<32x1xf32>
    %60 = vector.broadcast %59 : vector<32x1xf32> to vector<32x256xf32>
    %61 = arith.mulf %57, %60 : vector<32x256xf32>
    %c1_38 = arith.constant 1 : index
    %c0_39 = arith.constant 0 : index
    %c0_40 = arith.constant 0 : index
    %62 = vector.load %arg4[%c1_38, %c0_39, %c0_40] : memref<4x32x1xf32, #tpu.memory_space<vmem>>, vector<1x32x1xf32>
    %63 = vector.shape_cast %62 : vector<1x32x1xf32> to vector<32x1xf32>
    %64 = vector.broadcast %63 : vector<32x1xf32> to vector<32x256xf32>
    %65 = arith.addf %61, %64 : vector<32x256xf32>
    %cst_41 = arith.constant 0.000000e+00 : f32
    %66 = vector.broadcast %cst_41 : f32 to vector<32x256xf32>
    %67 = arith.maximumf %65, %66 : vector<32x256xf32>
    %c17_i32_42 = arith.constant 17 : i32
    %68 = tpu.dynamic_rotate %67 by %c17_i32_42 dim 1 : vector<32x256xf32>, i32 -> vector<32x256xf32>
    %c0_43 = arith.constant 0 : index
    %c0_44 = arith.constant 0 : index
    %c0_45 = arith.constant 0 : index
    %69 = vector.load %arg8[%c0_43, %c0_44, %c0_45] : memref<9x1x256xf32, #tpu.memory_space<vmem>>, vector<1x1x256xf32>
    %70 = vector.shape_cast %69 : vector<1x1x256xf32> to vector<1x256xf32>
    %71 = vector.broadcast %70 : vector<1x256xf32> to vector<32x256xf32>
    %72 = arith.mulf %68, %71 : vector<32x256xf32>
    %c0_46 = arith.constant 0 : index
    %c0_47 = arith.constant 0 : index
    %73 = vector.load %arg12[%c0_46, %c0_47] : memref<288x256xf32, #tpu.memory_space<vmem>>, vector<32x256xf32>
    tpu.vector_store %arg12[%c0_46, %c0_47], %72 {strides = array<i32>} : memref<288x256xf32, #tpu.memory_space<vmem>>, vector<32x256xf32>,
    %c16_i32_48 = arith.constant 16 : i32
    %74 = tpu.dynamic_rotate %67 by %c16_i32_48 dim 1 : vector<32x256xf32>, i32 -> vector<32x256xf32>
    %c1_49 = arith.constant 1 : index
    %c0_50 = arith.constant 0 : index
    %c0_51 = arith.constant 0 : index
    %75 = vector.load %arg8[%c1_49, %c0_50, %c0_51] : memref<9x1x256xf32, #tpu.memory_space<vmem>>, vector<1x1x256xf32>
    %76 = vector.shape_cast %75 : vector<1x1x256xf32> to vector<1x256xf32>
    %77 = vector.broadcast %76 : vector<1x256xf32> to vector<32x256xf32>
    %78 = arith.mulf %74, %77 : vector<32x256xf32>
    %c32_52 = arith.constant 32 : index
    %c0_53 = arith.constant 0 : index
    %79 = vector.load %arg12[%c32_52, %c0_53] : memref<288x256xf32, #tpu.memory_space<vmem>>, vector<32x256xf32>
    tpu.vector_store %arg12[%c32_52, %c0_53], %78 {strides = array<i32>} : memref<288x256xf32, #tpu.memory_space<vmem>>, vector<32x256xf32>,
    %c15_i32_54 = arith.constant 15 : i32
    %80 = tpu.dynamic_rotate %67 by %c15_i32_54 dim 1 : vector<32x256xf32>, i32 -> vector<32x256xf32>
    %c2_55 = arith.constant 2 : index
    %c0_56 = arith.constant 0 : index
    %c0_57 = arith.constant 0 : index
    %81 = vector.load %arg8[%c2_55, %c0_56, %c0_57] : memref<9x1x256xf32, #tpu.memory_space<vmem>>, vector<1x1x256xf32>
    %82 = vector.shape_cast %81 : vector<1x1x256xf32> to vector<1x256xf32>
    %83 = vector.broadcast %82 : vector<1x256xf32> to vector<32x256xf32>
    %84 = arith.mulf %80, %83 : vector<32x256xf32>
    %c64_58 = arith.constant 64 : index
    %c0_59 = arith.constant 0 : index
    %85 = vector.load %arg12[%c64_58, %c0_59] : memref<288x256xf32, #tpu.memory_space<vmem>>, vector<32x256xf32>
    tpu.vector_store %arg12[%c64_58, %c0_59], %84 {strides = array<i32>} : memref<288x256xf32, #tpu.memory_space<vmem>>, vector<32x256xf32>,
    %c1_i32_60 = arith.constant 1 : i32
    %86 = tpu.dynamic_rotate %67 by %c1_i32_60 dim 1 : vector<32x256xf32>, i32 -> vector<32x256xf32>
    %c3_61 = arith.constant 3 : index
    %c0_62 = arith.constant 0 : index
    %c0_63 = arith.constant 0 : index
    %87 = vector.load %arg8[%c3_61, %c0_62, %c0_63] : memref<9x1x256xf32, #tpu.memory_space<vmem>>, vector<1x1x256xf32>
    %88 = vector.shape_cast %87 : vector<1x1x256xf32> to vector<1x256xf32>
    %89 = vector.broadcast %88 : vector<1x256xf32> to vector<32x256xf32>
    %90 = arith.mulf %86, %89 : vector<32x256xf32>
    %c96_64 = arith.constant 96 : index
    %c0_65 = arith.constant 0 : index
    %91 = vector.load %arg12[%c96_64, %c0_65] : memref<288x256xf32, #tpu.memory_space<vmem>>, vector<32x256xf32>
    tpu.vector_store %arg12[%c96_64, %c0_65], %90 {strides = array<i32>} : memref<288x256xf32, #tpu.memory_space<vmem>>, vector<32x256xf32>,
    %c4_66 = arith.constant 4 : index
    %c0_67 = arith.constant 0 : index
    %c0_68 = arith.constant 0 : index
    %92 = vector.load %arg8[%c4_66, %c0_67, %c0_68] : memref<9x1x256xf32, #tpu.memory_space<vmem>>, vector<1x1x256xf32>
    %93 = vector.shape_cast %92 : vector<1x1x256xf32> to vector<1x256xf32>
    %94 = vector.broadcast %93 : vector<1x256xf32> to vector<32x256xf32>
    %95 = arith.mulf %67, %94 : vector<32x256xf32>
    %c128_69 = arith.constant 128 : index
    %c0_70 = arith.constant 0 : index
    %96 = vector.load %arg12[%c128_69, %c0_70] : memref<288x256xf32, #tpu.memory_space<vmem>>, vector<32x256xf32>
    tpu.vector_store %arg12[%c128_69, %c0_70], %95 {strides = array<i32>} : memref<288x256xf32, #tpu.memory_space<vmem>>, vector<32x256xf32>,
    %c255_i32_71 = arith.constant 255 : i32
    %97 = tpu.dynamic_rotate %67 by %c255_i32_71 dim 1 : vector<32x256xf32>, i32 -> vector<32x256xf32>
    %c5_72 = arith.constant 5 : index
    %c0_73 = arith.constant 0 : index
    %c0_74 = arith.constant 0 : index
    %98 = vector.load %arg8[%c5_72, %c0_73, %c0_74] : memref<9x1x256xf32, #tpu.memory_space<vmem>>, vector<1x1x256xf32>
    %99 = vector.shape_cast %98 : vector<1x1x256xf32> to vector<1x256xf32>
    %100 = vector.broadcast %99 : vector<1x256xf32> to vector<32x256xf32>
    %101 = arith.mulf %97, %100 : vector<32x256xf32>
    %c160_75 = arith.constant 160 : index
    %c0_76 = arith.constant 0 : index
    %102 = vector.load %arg12[%c160_75, %c0_76] : memref<288x256xf32, #tpu.memory_space<vmem>>, vector<32x256xf32>
    tpu.vector_store %arg12[%c160_75, %c0_76], %101 {strides = array<i32>} : memref<288x256xf32, #tpu.memory_space<vmem>>, vector<32x256xf32>,
    %c241_i32_77 = arith.constant 241 : i32
    %103 = tpu.dynamic_rotate %67 by %c241_i32_77 dim 1 : vector<32x256xf32>, i32 -> vector<32x256xf32>
    %c6_78 = arith.constant 6 : index
    %c0_79 = arith.constant 0 : index
    %c0_80 = arith.constant 0 : index
    %104 = vector.load %arg8[%c6_78, %c0_79, %c0_80] : memref<9x1x256xf32, #tpu.memory_space<vmem>>, vector<1x1x256xf32>
    %105 = vector.shape_cast %104 : vector<1x1x256xf32> to vector<1x256xf32>
    %106 = vector.broadcast %105 : vector<1x256xf32> to vector<32x256xf32>
    %107 = arith.mulf %103, %106 : vector<32x256xf32>
    %c192_81 = arith.constant 192 : index
    %c0_82 = arith.constant 0 : index
    %108 = vector.load %arg12[%c192_81, %c0_82] : memref<288x256xf32, #tpu.memory_space<vmem>>, vector<32x256xf32>
    tpu.vector_store %arg12[%c192_81, %c0_82], %107 {strides = array<i32>} : memref<288x256xf32, #tpu.memory_space<vmem>>, vector<32x256xf32>,
    %c240_i32_83 = arith.constant 240 : i32
    %109 = tpu.dynamic_rotate %67 by %c240_i32_83 dim 1 : vector<32x256xf32>, i32 -> vector<32x256xf32>
    %c7_84 = arith.constant 7 : index
    %c0_85 = arith.constant 0 : index
    %c0_86 = arith.constant 0 : index
    %110 = vector.load %arg8[%c7_84, %c0_85, %c0_86] : memref<9x1x256xf32, #tpu.memory_space<vmem>>, vector<1x1x256xf32>
    %111 = vector.shape_cast %110 : vector<1x1x256xf32> to vector<1x256xf32>
    %112 = vector.broadcast %111 : vector<1x256xf32> to vector<32x256xf32>
    %113 = arith.mulf %109, %112 : vector<32x256xf32>
    %c224_87 = arith.constant 224 : index
    %c0_88 = arith.constant 0 : index
    %114 = vector.load %arg12[%c224_87, %c0_88] : memref<288x256xf32, #tpu.memory_space<vmem>>, vector<32x256xf32>
    tpu.vector_store %arg12[%c224_87, %c0_88], %113 {strides = array<i32>} : memref<288x256xf32, #tpu.memory_space<vmem>>, vector<32x256xf32>,
    %c239_i32_89 = arith.constant 239 : i32
    %115 = tpu.dynamic_rotate %67 by %c239_i32_89 dim 1 : vector<32x256xf32>, i32 -> vector<32x256xf32>
    %c8_90 = arith.constant 8 : index
    %c0_91 = arith.constant 0 : index
    %c0_92 = arith.constant 0 : index
    %116 = vector.load %arg8[%c8_90, %c0_91, %c0_92] : memref<9x1x256xf32, #tpu.memory_space<vmem>>, vector<1x1x256xf32>
    %117 = vector.shape_cast %116 : vector<1x1x256xf32> to vector<1x256xf32>
    %118 = vector.broadcast %117 : vector<1x256xf32> to vector<32x256xf32>
    %119 = arith.mulf %115, %118 : vector<32x256xf32>
    %c256_93 = arith.constant 256 : index
    %c0_94 = arith.constant 0 : index
    %120 = vector.load %arg12[%c256_93, %c0_94] : memref<288x256xf32, #tpu.memory_space<vmem>>, vector<32x256xf32>
    tpu.vector_store %arg12[%c256_93, %c0_94], %119 {strides = array<i32>} : memref<288x256xf32, #tpu.memory_space<vmem>>, vector<32x256xf32>,
    %c0_95 = arith.constant 0 : index
    %c0_96 = arith.constant 0 : index
    %121 = vector.load %arg3[%c0_95, %c0_96] : memref<32x288xf32, #tpu.memory_space<vmem>>, vector<32x288xf32>
    %c0_97 = arith.constant 0 : index
    %c0_98 = arith.constant 0 : index
    %122 = vector.load %arg12[%c0_97, %c0_98] : memref<288x256xf32, #tpu.memory_space<vmem>>, vector<288x256xf32>
    %cst_99 = arith.constant dense<0.000000e+00> : vector<32x256xf32>
    %123 = tpu.matmul %121, %122, %cst_99 {dimension_numbers = #tpu.dot_dimension_numbers<[1], [0], [0], [1], [0, 0, 1, 1], [], []>} : vector<32x288xf32>, vector<288x256xf32>, vector<32x256xf32> -> vector<32x256xf32>
    %c2_100 = arith.constant 2 : index
    %c0_101 = arith.constant 0 : index
    %c0_102 = arith.constant 0 : index
    %124 = vector.load %arg4[%c2_100, %c0_101, %c0_102] : memref<4x32x1xf32, #tpu.memory_space<vmem>>, vector<1x32x1xf32>
    %125 = vector.shape_cast %124 : vector<1x32x1xf32> to vector<32x1xf32>
    %126 = vector.broadcast %125 : vector<32x1xf32> to vector<32x256xf32>
    %127 = arith.mulf %123, %126 : vector<32x256xf32>
    %c3_103 = arith.constant 3 : index
    %c0_104 = arith.constant 0 : index
    %c0_105 = arith.constant 0 : index
    %128 = vector.load %arg4[%c3_103, %c0_104, %c0_105] : memref<4x32x1xf32, #tpu.memory_space<vmem>>, vector<1x32x1xf32>
    %129 = vector.shape_cast %128 : vector<1x32x1xf32> to vector<32x1xf32>
    %130 = vector.broadcast %129 : vector<32x1xf32> to vector<32x256xf32>
    %131 = arith.addf %127, %130 : vector<32x256xf32>
    %cst_106 = arith.constant dense<0.000000e+00> : vector<32xf32>
    %132 = vector.multi_reduction <add>, %131, %cst_106 [1] : vector<32x256xf32> to vector<32xf32>
    %133 = vector.shape_cast %132 : vector<32xf32> to vector<32x1xf32>
    %cst_107 = arith.constant 2.560000e+02 : f32
    %134 = vector.broadcast %cst_107 : f32 to vector<32x1xf32>
    %135 = arith.divf %133, %134 : vector<32x1xf32>
    %c0_108 = arith.constant 0 : index
    %c0_109 = arith.constant 0 : index
    %136 = vector.load %arg5[%c0_108, %c0_109] : memref<2x32xf32, #tpu.memory_space<vmem>>, vector<2x32xf32>
    %cst_110 = arith.constant dense<0.000000e+00> : vector<2x1xf32>
    %137 = tpu.matmul %136, %135, %cst_110 {dimension_numbers = #tpu.dot_dimension_numbers<[1], [0], [0], [1], [0, 0, 1, 1], [], []>} : vector<2x32xf32>, vector<32x1xf32>, vector<2x1xf32> -> vector<2x1xf32>
    %cst_111 = arith.constant 0.000000e+00 : f32
    %138 = vector.broadcast %cst_111 : f32 to vector<2x1xf32>
    %139 = arith.maximumf %137, %138 : vector<2x1xf32>
    %c0_112 = arith.constant 0 : index
    %c0_113 = arith.constant 0 : index
    %140 = vector.load %arg6[%c0_112, %c0_113] : memref<32x2xf32, #tpu.memory_space<vmem>>, vector<32x2xf32>
    %cst_114 = arith.constant dense<0.000000e+00> : vector<32x1xf32>
    %141 = tpu.matmul %140, %139, %cst_114 {dimension_numbers = #tpu.dot_dimension_numbers<[1], [0], [0], [1], [0, 0, 1, 1], [], []>} : vector<32x2xf32>, vector<2x1xf32>, vector<32x1xf32> -> vector<32x1xf32>
    %142 = arith.addf %141, %141 : vector<32x1xf32>
    %cst_115 = arith.constant 0.000000e+00 : f32
    %143 = vector.broadcast %cst_115 : f32 to vector<32x1xf32>
    %144 = arith.subf %143, %142 : vector<32x1xf32>
    %145 = math.exp %144 : vector<32x1xf32>
    %cst_116 = arith.constant 1.000000e+00 : f32
    %146 = vector.broadcast %cst_116 : f32 to vector<32x1xf32>
    %147 = arith.addf %146, %145 : vector<32x1xf32>
    %cst_117 = arith.constant 1.000000e+00 : f32
    %148 = vector.broadcast %cst_117 : f32 to vector<32x1xf32>
    %149 = arith.divf %148, %147 : vector<32x1xf32>
    %150 = vector.broadcast %149 : vector<32x1xf32> to vector<32x256xf32>
    %151 = arith.mulf %131, %150 : vector<32x256xf32>
    %cst_118 = arith.constant dense<0.000000e+00> : vector<256xf32>
    %152 = vector.multi_reduction <add>, %151, %cst_118 [0] : vector<32x256xf32> to vector<256xf32>
    %153 = vector.shape_cast %152 : vector<256xf32> to vector<1x256xf32>
    %cst_119 = arith.constant 3.200000e+01 : f32
    %154 = vector.broadcast %cst_119 : f32 to vector<1x256xf32>
    %155 = arith.divf %153, %154 : vector<1x256xf32>
    %cst_120 = arith.constant dense<0xFF800000> : vector<256xf32>
    %156 = vector.multi_reduction <maximumf>, %151, %cst_120 [0] : vector<32x256xf32> to vector<256xf32>
    %157 = vector.shape_cast %156 : vector<256xf32> to vector<1x256xf32>
    %cst_121 = arith.constant 0.000000e+00 : f32
    %158 = vector.broadcast %cst_121 : f32 to vector<3x256xf32>
    %c51_i32 = arith.constant 51 : i32
    %159 = tpu.dynamic_rotate %155 by %c51_i32 dim 1 : vector<1x256xf32>, i32 -> vector<1x256xf32>
    %c51_i32_122 = arith.constant 51 : i32
    %160 = tpu.dynamic_rotate %157 by %c51_i32_122 dim 1 : vector<1x256xf32>, i32 -> vector<1x256xf32>
    %c0_123 = arith.constant 0 : index
    %c0_124 = arith.constant 0 : index
    %c0_125 = arith.constant 0 : index
    %161 = vector.load %arg9[%c0_123, %c0_124, %c0_125] : memref<49x1x256xf32, #tpu.memory_space<vmem>>, vector<1x1x256xf32>
    %162 = vector.shape_cast %161 : vector<1x1x256xf32> to vector<1x256xf32>
    %c0_126 = arith.constant 0 : index
    %c0_127 = arith.constant 0 : index
    %c0_128 = arith.constant 0 : index
    %163 = vector.load %arg7[%c0_126, %c0_127, %c0_128] : memref<49x3x2xf32, #tpu.memory_space<vmem>>, vector<1x3x2xf32>
    %164 = vector.shape_cast %163 : vector<1x3x2xf32> to vector<3x2xf32>
    %165 = vector.extract_strided_slice %164 {offsets = [0, 0], sizes = [3, 1], strides = [1, 1]} : vector<3x2xf32> to vector<3x1xf32>
    %166 = arith.mulf %159, %162 : vector<1x256xf32>
    %167 = vector.broadcast %165 : vector<3x1xf32> to vector<3x256xf32>
    %168 = vector.broadcast %166 : vector<1x256xf32> to vector<3x256xf32>
    %169 = arith.mulf %167, %168 : vector<3x256xf32>
    %170 = arith.addf %158, %169 : vector<3x256xf32>
    %171 = vector.extract_strided_slice %164 {offsets = [0, 1], sizes = [3, 1], strides = [1, 1]} : vector<3x2xf32> to vector<3x1xf32>
    %172 = arith.mulf %160, %162 : vector<1x256xf32>
    %173 = vector.broadcast %171 : vector<3x1xf32> to vector<3x256xf32>
    %174 = vector.broadcast %172 : vector<1x256xf32> to vector<3x256xf32>
    %175 = arith.mulf %173, %174 : vector<3x256xf32>
    %176 = arith.addf %170, %175 : vector<3x256xf32>
    %c50_i32 = arith.constant 50 : i32
    %177 = tpu.dynamic_rotate %155 by %c50_i32 dim 1 : vector<1x256xf32>, i32 -> vector<1x256xf32>
    %c50_i32_129 = arith.constant 50 : i32
    %178 = tpu.dynamic_rotate %157 by %c50_i32_129 dim 1 : vector<1x256xf32>, i32 -> vector<1x256xf32>
    %c1_130 = arith.constant 1 : index
    %c0_131 = arith.constant 0 : index
    %c0_132 = arith.constant 0 : index
    %179 = vector.load %arg9[%c1_130, %c0_131, %c0_132] : memref<49x1x256xf32, #tpu.memory_space<vmem>>, vector<1x1x256xf32>
    %180 = vector.shape_cast %179 : vector<1x1x256xf32> to vector<1x256xf32>
    %c1_133 = arith.constant 1 : index
    %c0_134 = arith.constant 0 : index
    %c0_135 = arith.constant 0 : index
    %181 = vector.load %arg7[%c1_133, %c0_134, %c0_135] : memref<49x3x2xf32, #tpu.memory_space<vmem>>, vector<1x3x2xf32>
    %182 = vector.shape_cast %181 : vector<1x3x2xf32> to vector<3x2xf32>
    %183 = vector.extract_strided_slice %182 {offsets = [0, 0], sizes = [3, 1], strides = [1, 1]} : vector<3x2xf32> to vector<3x1xf32>
    %184 = arith.mulf %177, %180 : vector<1x256xf32>
    %185 = vector.broadcast %183 : vector<3x1xf32> to vector<3x256xf32>
    %186 = vector.broadcast %184 : vector<1x256xf32> to vector<3x256xf32>
    %187 = arith.mulf %185, %186 : vector<3x256xf32>
    %188 = arith.addf %176, %187 : vector<3x256xf32>
    %189 = vector.extract_strided_slice %182 {offsets = [0, 1], sizes = [3, 1], strides = [1, 1]} : vector<3x2xf32> to vector<3x1xf32>
    %190 = arith.mulf %178, %180 : vector<1x256xf32>
    %191 = vector.broadcast %189 : vector<3x1xf32> to vector<3x256xf32>
    %192 = vector.broadcast %190 : vector<1x256xf32> to vector<3x256xf32>
    %193 = arith.mulf %191, %192 : vector<3x256xf32>
    %194 = arith.addf %188, %193 : vector<3x256xf32>
    %c49_i32 = arith.constant 49 : i32
    %195 = tpu.dynamic_rotate %155 by %c49_i32 dim 1 : vector<1x256xf32>, i32 -> vector<1x256xf32>
    %c49_i32_136 = arith.constant 49 : i32
    %196 = tpu.dynamic_rotate %157 by %c49_i32_136 dim 1 : vector<1x256xf32>, i32 -> vector<1x256xf32>
    %c2_137 = arith.constant 2 : index
    %c0_138 = arith.constant 0 : index
    %c0_139 = arith.constant 0 : index
    %197 = vector.load %arg9[%c2_137, %c0_138, %c0_139] : memref<49x1x256xf32, #tpu.memory_space<vmem>>, vector<1x1x256xf32>
    %198 = vector.shape_cast %197 : vector<1x1x256xf32> to vector<1x256xf32>
    %c2_140 = arith.constant 2 : index
    %c0_141 = arith.constant 0 : index
    %c0_142 = arith.constant 0 : index
    %199 = vector.load %arg7[%c2_140, %c0_141, %c0_142] : memref<49x3x2xf32, #tpu.memory_space<vmem>>, vector<1x3x2xf32>
    %200 = vector.shape_cast %199 : vector<1x3x2xf32> to vector<3x2xf32>
    %201 = vector.extract_strided_slice %200 {offsets = [0, 0], sizes = [3, 1], strides = [1, 1]} : vector<3x2xf32> to vector<3x1xf32>
    %202 = arith.mulf %195, %198 : vector<1x256xf32>
    %203 = vector.broadcast %201 : vector<3x1xf32> to vector<3x256xf32>
    %204 = vector.broadcast %202 : vector<1x256xf32> to vector<3x256xf32>
    %205 = arith.mulf %203, %204 : vector<3x256xf32>
    %206 = arith.addf %194, %205 : vector<3x256xf32>
    %207 = vector.extract_strided_slice %200 {offsets = [0, 1], sizes = [3, 1], strides = [1, 1]} : vector<3x2xf32> to vector<3x1xf32>
    %208 = arith.mulf %196, %198 : vector<1x256xf32>
    %209 = vector.broadcast %207 : vector<3x1xf32> to vector<3x256xf32>
    %210 = vector.broadcast %208 : vector<1x256xf32> to vector<3x256xf32>
    %211 = arith.mulf %209, %210 : vector<3x256xf32>
    %212 = arith.addf %206, %211 : vector<3x256xf32>
    %c48_i32 = arith.constant 48 : i32
    %213 = tpu.dynamic_rotate %155 by %c48_i32 dim 1 : vector<1x256xf32>, i32 -> vector<1x256xf32>
    %c48_i32_143 = arith.constant 48 : i32
    %214 = tpu.dynamic_rotate %157 by %c48_i32_143 dim 1 : vector<1x256xf32>, i32 -> vector<1x256xf32>
    %c3_144 = arith.constant 3 : index
    %c0_145 = arith.constant 0 : index
    %c0_146 = arith.constant 0 : index
    %215 = vector.load %arg9[%c3_144, %c0_145, %c0_146] : memref<49x1x256xf32, #tpu.memory_space<vmem>>, vector<1x1x256xf32>
    %216 = vector.shape_cast %215 : vector<1x1x256xf32> to vector<1x256xf32>
    %c3_147 = arith.constant 3 : index
    %c0_148 = arith.constant 0 : index
    %c0_149 = arith.constant 0 : index
    %217 = vector.load %arg7[%c3_147, %c0_148, %c0_149] : memref<49x3x2xf32, #tpu.memory_space<vmem>>, vector<1x3x2xf32>
    %218 = vector.shape_cast %217 : vector<1x3x2xf32> to vector<3x2xf32>
    %219 = vector.extract_strided_slice %218 {offsets = [0, 0], sizes = [3, 1], strides = [1, 1]} : vector<3x2xf32> to vector<3x1xf32>
    %220 = arith.mulf %213, %216 : vector<1x256xf32>
    %221 = vector.broadcast %219 : vector<3x1xf32> to vector<3x256xf32>
    %222 = vector.broadcast %220 : vector<1x256xf32> to vector<3x256xf32>
    %223 = arith.mulf %221, %222 : vector<3x256xf32>
    %224 = arith.addf %212, %223 : vector<3x256xf32>
    %225 = vector.extract_strided_slice %218 {offsets = [0, 1], sizes = [3, 1], strides = [1, 1]} : vector<3x2xf32> to vector<3x1xf32>
    %226 = arith.mulf %214, %216 : vector<1x256xf32>
    %227 = vector.broadcast %225 : vector<3x1xf32> to vector<3x256xf32>
    %228 = vector.broadcast %226 : vector<1x256xf32> to vector<3x256xf32>
    %229 = arith.mulf %227, %228 : vector<3x256xf32>
    %230 = arith.addf %224, %229 : vector<3x256xf32>
    %c47_i32 = arith.constant 47 : i32
    %231 = tpu.dynamic_rotate %155 by %c47_i32 dim 1 : vector<1x256xf32>, i32 -> vector<1x256xf32>
    %c47_i32_150 = arith.constant 47 : i32
    %232 = tpu.dynamic_rotate %157 by %c47_i32_150 dim 1 : vector<1x256xf32>, i32 -> vector<1x256xf32>
    %c4_151 = arith.constant 4 : index
    %c0_152 = arith.constant 0 : index
    %c0_153 = arith.constant 0 : index
    %233 = vector.load %arg9[%c4_151, %c0_152, %c0_153] : memref<49x1x256xf32, #tpu.memory_space<vmem>>, vector<1x1x256xf32>
    %234 = vector.shape_cast %233 : vector<1x1x256xf32> to vector<1x256xf32>
    %c4_154 = arith.constant 4 : index
    %c0_155 = arith.constant 0 : index
    %c0_156 = arith.constant 0 : index
    %235 = vector.load %arg7[%c4_154, %c0_155, %c0_156] : memref<49x3x2xf32, #tpu.memory_space<vmem>>, vector<1x3x2xf32>
    %236 = vector.shape_cast %235 : vector<1x3x2xf32> to vector<3x2xf32>
    %237 = vector.extract_strided_slice %236 {offsets = [0, 0], sizes = [3, 1], strides = [1, 1]} : vector<3x2xf32> to vector<3x1xf32>
    %238 = arith.mulf %231, %234 : vector<1x256xf32>
    %239 = vector.broadcast %237 : vector<3x1xf32> to vector<3x256xf32>
    %240 = vector.broadcast %238 : vector<1x256xf32> to vector<3x256xf32>
    %241 = arith.mulf %239, %240 : vector<3x256xf32>
    %242 = arith.addf %230, %241 : vector<3x256xf32>
    %243 = vector.extract_strided_slice %236 {offsets = [0, 1], sizes = [3, 1], strides = [1, 1]} : vector<3x2xf32> to vector<3x1xf32>
    %244 = arith.mulf %232, %234 : vector<1x256xf32>
    %245 = vector.broadcast %243 : vector<3x1xf32> to vector<3x256xf32>
    %246 = vector.broadcast %244 : vector<1x256xf32> to vector<3x256xf32>
    %247 = arith.mulf %245, %246 : vector<3x256xf32>
    %248 = arith.addf %242, %247 : vector<3x256xf32>
    %c46_i32 = arith.constant 46 : i32
    %249 = tpu.dynamic_rotate %155 by %c46_i32 dim 1 : vector<1x256xf32>, i32 -> vector<1x256xf32>
    %c46_i32_157 = arith.constant 46 : i32
    %250 = tpu.dynamic_rotate %157 by %c46_i32_157 dim 1 : vector<1x256xf32>, i32 -> vector<1x256xf32>
    %c5_158 = arith.constant 5 : index
    %c0_159 = arith.constant 0 : index
    %c0_160 = arith.constant 0 : index
    %251 = vector.load %arg9[%c5_158, %c0_159, %c0_160] : memref<49x1x256xf32, #tpu.memory_space<vmem>>, vector<1x1x256xf32>
    %252 = vector.shape_cast %251 : vector<1x1x256xf32> to vector<1x256xf32>
    %c5_161 = arith.constant 5 : index
    %c0_162 = arith.constant 0 : index
    %c0_163 = arith.constant 0 : index
    %253 = vector.load %arg7[%c5_161, %c0_162, %c0_163] : memref<49x3x2xf32, #tpu.memory_space<vmem>>, vector<1x3x2xf32>
    %254 = vector.shape_cast %253 : vector<1x3x2xf32> to vector<3x2xf32>
    %255 = vector.extract_strided_slice %254 {offsets = [0, 0], sizes = [3, 1], strides = [1, 1]} : vector<3x2xf32> to vector<3x1xf32>
    %256 = arith.mulf %249, %252 : vector<1x256xf32>
    %257 = vector.broadcast %255 : vector<3x1xf32> to vector<3x256xf32>
    %258 = vector.broadcast %256 : vector<1x256xf32> to vector<3x256xf32>
    %259 = arith.mulf %257, %258 : vector<3x256xf32>
    %260 = arith.addf %248, %259 : vector<3x256xf32>
    %261 = vector.extract_strided_slice %254 {offsets = [0, 1], sizes = [3, 1], strides = [1, 1]} : vector<3x2xf32> to vector<3x1xf32>
    %262 = arith.mulf %250, %252 : vector<1x256xf32>
    %263 = vector.broadcast %261 : vector<3x1xf32> to vector<3x256xf32>
    %264 = vector.broadcast %262 : vector<1x256xf32> to vector<3x256xf32>
    %265 = arith.mulf %263, %264 : vector<3x256xf32>
    %266 = arith.addf %260, %265 : vector<3x256xf32>
    %c45_i32 = arith.constant 45 : i32
    %267 = tpu.dynamic_rotate %155 by %c45_i32 dim 1 : vector<1x256xf32>, i32 -> vector<1x256xf32>
    %c45_i32_164 = arith.constant 45 : i32
    %268 = tpu.dynamic_rotate %157 by %c45_i32_164 dim 1 : vector<1x256xf32>, i32 -> vector<1x256xf32>
    %c6_165 = arith.constant 6 : index
    %c0_166 = arith.constant 0 : index
    %c0_167 = arith.constant 0 : index
    %269 = vector.load %arg9[%c6_165, %c0_166, %c0_167] : memref<49x1x256xf32, #tpu.memory_space<vmem>>, vector<1x1x256xf32>
    %270 = vector.shape_cast %269 : vector<1x1x256xf32> to vector<1x256xf32>
    %c6_168 = arith.constant 6 : index
    %c0_169 = arith.constant 0 : index
    %c0_170 = arith.constant 0 : index
    %271 = vector.load %arg7[%c6_168, %c0_169, %c0_170] : memref<49x3x2xf32, #tpu.memory_space<vmem>>, vector<1x3x2xf32>
    %272 = vector.shape_cast %271 : vector<1x3x2xf32> to vector<3x2xf32>
    %273 = vector.extract_strided_slice %272 {offsets = [0, 0], sizes = [3, 1], strides = [1, 1]} : vector<3x2xf32> to vector<3x1xf32>
    %274 = arith.mulf %267, %270 : vector<1x256xf32>
    %275 = vector.broadcast %273 : vector<3x1xf32> to vector<3x256xf32>
    %276 = vector.broadcast %274 : vector<1x256xf32> to vector<3x256xf32>
    %277 = arith.mulf %275, %276 : vector<3x256xf32>
    %278 = arith.addf %266, %277 : vector<3x256xf32>
    %279 = vector.extract_strided_slice %272 {offsets = [0, 1], sizes = [3, 1], strides = [1, 1]} : vector<3x2xf32> to vector<3x1xf32>
    %280 = arith.mulf %268, %270 : vector<1x256xf32>
    %281 = vector.broadcast %279 : vector<3x1xf32> to vector<3x256xf32>
    %282 = vector.broadcast %280 : vector<1x256xf32> to vector<3x256xf32>
    %283 = arith.mulf %281, %282 : vector<3x256xf32>
    %284 = arith.addf %278, %283 : vector<3x256xf32>
    %c35_i32 = arith.constant 35 : i32
    %285 = tpu.dynamic_rotate %155 by %c35_i32 dim 1 : vector<1x256xf32>, i32 -> vector<1x256xf32>
    %c35_i32_171 = arith.constant 35 : i32
    %286 = tpu.dynamic_rotate %157 by %c35_i32_171 dim 1 : vector<1x256xf32>, i32 -> vector<1x256xf32>
    %c7_172 = arith.constant 7 : index
    %c0_173 = arith.constant 0 : index
    %c0_174 = arith.constant 0 : index
    %287 = vector.load %arg9[%c7_172, %c0_173, %c0_174] : memref<49x1x256xf32, #tpu.memory_space<vmem>>, vector<1x1x256xf32>
    %288 = vector.shape_cast %287 : vector<1x1x256xf32> to vector<1x256xf32>
    %c7_175 = arith.constant 7 : index
    %c0_176 = arith.constant 0 : index
    %c0_177 = arith.constant 0 : index
    %289 = vector.load %arg7[%c7_175, %c0_176, %c0_177] : memref<49x3x2xf32, #tpu.memory_space<vmem>>, vector<1x3x2xf32>
    %290 = vector.shape_cast %289 : vector<1x3x2xf32> to vector<3x2xf32>
    %291 = vector.extract_strided_slice %290 {offsets = [0, 0], sizes = [3, 1], strides = [1, 1]} : vector<3x2xf32> to vector<3x1xf32>
    %292 = arith.mulf %285, %288 : vector<1x256xf32>
    %293 = vector.broadcast %291 : vector<3x1xf32> to vector<3x256xf32>
    %294 = vector.broadcast %292 : vector<1x256xf32> to vector<3x256xf32>
    %295 = arith.mulf %293, %294 : vector<3x256xf32>
    %296 = arith.addf %284, %295 : vector<3x256xf32>
    %297 = vector.extract_strided_slice %290 {offsets = [0, 1], sizes = [3, 1], strides = [1, 1]} : vector<3x2xf32> to vector<3x1xf32>
    %298 = arith.mulf %286, %288 : vector<1x256xf32>
    %299 = vector.broadcast %297 : vector<3x1xf32> to vector<3x256xf32>
    %300 = vector.broadcast %298 : vector<1x256xf32> to vector<3x256xf32>
    %301 = arith.mulf %299, %300 : vector<3x256xf32>
    %302 = arith.addf %296, %301 : vector<3x256xf32>
    %c34_i32 = arith.constant 34 : i32
    %303 = tpu.dynamic_rotate %155 by %c34_i32 dim 1 : vector<1x256xf32>, i32 -> vector<1x256xf32>
    %c34_i32_178 = arith.constant 34 : i32
    %304 = tpu.dynamic_rotate %157 by %c34_i32_178 dim 1 : vector<1x256xf32>, i32 -> vector<1x256xf32>
    %c8_179 = arith.constant 8 : index
    %c0_180 = arith.constant 0 : index
    %c0_181 = arith.constant 0 : index
    %305 = vector.load %arg9[%c8_179, %c0_180, %c0_181] : memref<49x1x256xf32, #tpu.memory_space<vmem>>, vector<1x1x256xf32>
    %306 = vector.shape_cast %305 : vector<1x1x256xf32> to vector<1x256xf32>
    %c8_182 = arith.constant 8 : index
    %c0_183 = arith.constant 0 : index
    %c0_184 = arith.constant 0 : index
    %307 = vector.load %arg7[%c8_182, %c0_183, %c0_184] : memref<49x3x2xf32, #tpu.memory_space<vmem>>, vector<1x3x2xf32>
    %308 = vector.shape_cast %307 : vector<1x3x2xf32> to vector<3x2xf32>
    %309 = vector.extract_strided_slice %308 {offsets = [0, 0], sizes = [3, 1], strides = [1, 1]} : vector<3x2xf32> to vector<3x1xf32>
    %310 = arith.mulf %303, %306 : vector<1x256xf32>
    %311 = vector.broadcast %309 : vector<3x1xf32> to vector<3x256xf32>
    %312 = vector.broadcast %310 : vector<1x256xf32> to vector<3x256xf32>
    %313 = arith.mulf %311, %312 : vector<3x256xf32>
    %314 = arith.addf %302, %313 : vector<3x256xf32>
    %315 = vector.extract_strided_slice %308 {offsets = [0, 1], sizes = [3, 1], strides = [1, 1]} : vector<3x2xf32> to vector<3x1xf32>
    %316 = arith.mulf %304, %306 : vector<1x256xf32>
    %317 = vector.broadcast %315 : vector<3x1xf32> to vector<3x256xf32>
    %318 = vector.broadcast %316 : vector<1x256xf32> to vector<3x256xf32>
    %319 = arith.mulf %317, %318 : vector<3x256xf32>
    %320 = arith.addf %314, %319 : vector<3x256xf32>
    %c33_i32 = arith.constant 33 : i32
    %321 = tpu.dynamic_rotate %155 by %c33_i32 dim 1 : vector<1x256xf32>, i32 -> vector<1x256xf32>
    %c33_i32_185 = arith.constant 33 : i32
    %322 = tpu.dynamic_rotate %157 by %c33_i32_185 dim 1 : vector<1x256xf32>, i32 -> vector<1x256xf32>
    %c9 = arith.constant 9 : index
    %c0_186 = arith.constant 0 : index
    %c0_187 = arith.constant 0 : index
    %323 = vector.load %arg9[%c9, %c0_186, %c0_187] : memref<49x1x256xf32, #tpu.memory_space<vmem>>, vector<1x1x256xf32>
    %324 = vector.shape_cast %323 : vector<1x1x256xf32> to vector<1x256xf32>
    %c9_188 = arith.constant 9 : index
    %c0_189 = arith.constant 0 : index
    %c0_190 = arith.constant 0 : index
    %325 = vector.load %arg7[%c9_188, %c0_189, %c0_190] : memref<49x3x2xf32, #tpu.memory_space<vmem>>, vector<1x3x2xf32>
    %326 = vector.shape_cast %325 : vector<1x3x2xf32> to vector<3x2xf32>
    %327 = vector.extract_strided_slice %326 {offsets = [0, 0], sizes = [3, 1], strides = [1, 1]} : vector<3x2xf32> to vector<3x1xf32>
    %328 = arith.mulf %321, %324 : vector<1x256xf32>
    %329 = vector.broadcast %327 : vector<3x1xf32> to vector<3x256xf32>
    %330 = vector.broadcast %328 : vector<1x256xf32> to vector<3x256xf32>
    %331 = arith.mulf %329, %330 : vector<3x256xf32>
    %332 = arith.addf %320, %331 : vector<3x256xf32>
    %333 = vector.extract_strided_slice %326 {offsets = [0, 1], sizes = [3, 1], strides = [1, 1]} : vector<3x2xf32> to vector<3x1xf32>
    %334 = arith.mulf %322, %324 : vector<1x256xf32>
    %335 = vector.broadcast %333 : vector<3x1xf32> to vector<3x256xf32>
    %336 = vector.broadcast %334 : vector<1x256xf32> to vector<3x256xf32>
    %337 = arith.mulf %335, %336 : vector<3x256xf32>
    %338 = arith.addf %332, %337 : vector<3x256xf32>
    %c32_i32 = arith.constant 32 : i32
    %339 = tpu.dynamic_rotate %155 by %c32_i32 dim 1 : vector<1x256xf32>, i32 -> vector<1x256xf32>
    %c32_i32_191 = arith.constant 32 : i32
    %340 = tpu.dynamic_rotate %157 by %c32_i32_191 dim 1 : vector<1x256xf32>, i32 -> vector<1x256xf32>
    %c10 = arith.constant 10 : index
    %c0_192 = arith.constant 0 : index
    %c0_193 = arith.constant 0 : index
    %341 = vector.load %arg9[%c10, %c0_192, %c0_193] : memref<49x1x256xf32, #tpu.memory_space<vmem>>, vector<1x1x256xf32>
    %342 = vector.shape_cast %341 : vector<1x1x256xf32> to vector<1x256xf32>
    %c10_194 = arith.constant 10 : index
    %c0_195 = arith.constant 0 : index
    %c0_196 = arith.constant 0 : index
    %343 = vector.load %arg7[%c10_194, %c0_195, %c0_196] : memref<49x3x2xf32, #tpu.memory_space<vmem>>, vector<1x3x2xf32>
    %344 = vector.shape_cast %343 : vector<1x3x2xf32> to vector<3x2xf32>
    %345 = vector.extract_strided_slice %344 {offsets = [0, 0], sizes = [3, 1], strides = [1, 1]} : vector<3x2xf32> to vector<3x1xf32>
    %346 = arith.mulf %339, %342 : vector<1x256xf32>
    %347 = vector.broadcast %345 : vector<3x1xf32> to vector<3x256xf32>
    %348 = vector.broadcast %346 : vector<1x256xf32> to vector<3x256xf32>
    %349 = arith.mulf %347, %348 : vector<3x256xf32>
    %350 = arith.addf %338, %349 : vector<3x256xf32>
    %351 = vector.extract_strided_slice %344 {offsets = [0, 1], sizes = [3, 1], strides = [1, 1]} : vector<3x2xf32> to vector<3x1xf32>
    %352 = arith.mulf %340, %342 : vector<1x256xf32>
    %353 = vector.broadcast %351 : vector<3x1xf32> to vector<3x256xf32>
    %354 = vector.broadcast %352 : vector<1x256xf32> to vector<3x256xf32>
    %355 = arith.mulf %353, %354 : vector<3x256xf32>
    %356 = arith.addf %350, %355 : vector<3x256xf32>
    %c31_i32 = arith.constant 31 : i32
    %357 = tpu.dynamic_rotate %155 by %c31_i32 dim 1 : vector<1x256xf32>, i32 -> vector<1x256xf32>
    %c31_i32_197 = arith.constant 31 : i32
    %358 = tpu.dynamic_rotate %157 by %c31_i32_197 dim 1 : vector<1x256xf32>, i32 -> vector<1x256xf32>
    %c11 = arith.constant 11 : index
    %c0_198 = arith.constant 0 : index
    %c0_199 = arith.constant 0 : index
    %359 = vector.load %arg9[%c11, %c0_198, %c0_199] : memref<49x1x256xf32, #tpu.memory_space<vmem>>, vector<1x1x256xf32>
    %360 = vector.shape_cast %359 : vector<1x1x256xf32> to vector<1x256xf32>
    %c11_200 = arith.constant 11 : index
    %c0_201 = arith.constant 0 : index
    %c0_202 = arith.constant 0 : index
    %361 = vector.load %arg7[%c11_200, %c0_201, %c0_202] : memref<49x3x2xf32, #tpu.memory_space<vmem>>, vector<1x3x2xf32>
    %362 = vector.shape_cast %361 : vector<1x3x2xf32> to vector<3x2xf32>
    %363 = vector.extract_strided_slice %362 {offsets = [0, 0], sizes = [3, 1], strides = [1, 1]} : vector<3x2xf32> to vector<3x1xf32>
    %364 = arith.mulf %357, %360 : vector<1x256xf32>
    %365 = vector.broadcast %363 : vector<3x1xf32> to vector<3x256xf32>
    %366 = vector.broadcast %364 : vector<1x256xf32> to vector<3x256xf32>
    %367 = arith.mulf %365, %366 : vector<3x256xf32>
    %368 = arith.addf %356, %367 : vector<3x256xf32>
    %369 = vector.extract_strided_slice %362 {offsets = [0, 1], sizes = [3, 1], strides = [1, 1]} : vector<3x2xf32> to vector<3x1xf32>
    %370 = arith.mulf %358, %360 : vector<1x256xf32>
    %371 = vector.broadcast %369 : vector<3x1xf32> to vector<3x256xf32>
    %372 = vector.broadcast %370 : vector<1x256xf32> to vector<3x256xf32>
    %373 = arith.mulf %371, %372 : vector<3x256xf32>
    %374 = arith.addf %368, %373 : vector<3x256xf32>
    %c30_i32 = arith.constant 30 : i32
    %375 = tpu.dynamic_rotate %155 by %c30_i32 dim 1 : vector<1x256xf32>, i32 -> vector<1x256xf32>
    %c30_i32_203 = arith.constant 30 : i32
    %376 = tpu.dynamic_rotate %157 by %c30_i32_203 dim 1 : vector<1x256xf32>, i32 -> vector<1x256xf32>
    %c12 = arith.constant 12 : index
    %c0_204 = arith.constant 0 : index
    %c0_205 = arith.constant 0 : index
    %377 = vector.load %arg9[%c12, %c0_204, %c0_205] : memref<49x1x256xf32, #tpu.memory_space<vmem>>, vector<1x1x256xf32>
    %378 = vector.shape_cast %377 : vector<1x1x256xf32> to vector<1x256xf32>
    %c12_206 = arith.constant 12 : index
    %c0_207 = arith.constant 0 : index
    %c0_208 = arith.constant 0 : index
    %379 = vector.load %arg7[%c12_206, %c0_207, %c0_208] : memref<49x3x2xf32, #tpu.memory_space<vmem>>, vector<1x3x2xf32>
    %380 = vector.shape_cast %379 : vector<1x3x2xf32> to vector<3x2xf32>
    %381 = vector.extract_strided_slice %380 {offsets = [0, 0], sizes = [3, 1], strides = [1, 1]} : vector<3x2xf32> to vector<3x1xf32>
    %382 = arith.mulf %375, %378 : vector<1x256xf32>
    %383 = vector.broadcast %381 : vector<3x1xf32> to vector<3x256xf32>
    %384 = vector.broadcast %382 : vector<1x256xf32> to vector<3x256xf32>
    %385 = arith.mulf %383, %384 : vector<3x256xf32>
    %386 = arith.addf %374, %385 : vector<3x256xf32>
    %387 = vector.extract_strided_slice %380 {offsets = [0, 1], sizes = [3, 1], strides = [1, 1]} : vector<3x2xf32> to vector<3x1xf32>
    %388 = arith.mulf %376, %378 : vector<1x256xf32>
    %389 = vector.broadcast %387 : vector<3x1xf32> to vector<3x256xf32>
    %390 = vector.broadcast %388 : vector<1x256xf32> to vector<3x256xf32>
    %391 = arith.mulf %389, %390 : vector<3x256xf32>
    %392 = arith.addf %386, %391 : vector<3x256xf32>
    %c29_i32 = arith.constant 29 : i32
    %393 = tpu.dynamic_rotate %155 by %c29_i32 dim 1 : vector<1x256xf32>, i32 -> vector<1x256xf32>
    %c29_i32_209 = arith.constant 29 : i32
    %394 = tpu.dynamic_rotate %157 by %c29_i32_209 dim 1 : vector<1x256xf32>, i32 -> vector<1x256xf32>
    %c13 = arith.constant 13 : index
    %c0_210 = arith.constant 0 : index
    %c0_211 = arith.constant 0 : index
    %395 = vector.load %arg9[%c13, %c0_210, %c0_211] : memref<49x1x256xf32, #tpu.memory_space<vmem>>, vector<1x1x256xf32>
    %396 = vector.shape_cast %395 : vector<1x1x256xf32> to vector<1x256xf32>
    %c13_212 = arith.constant 13 : index
    %c0_213 = arith.constant 0 : index
    %c0_214 = arith.constant 0 : index
    %397 = vector.load %arg7[%c13_212, %c0_213, %c0_214] : memref<49x3x2xf32, #tpu.memory_space<vmem>>, vector<1x3x2xf32>
    %398 = vector.shape_cast %397 : vector<1x3x2xf32> to vector<3x2xf32>
    %399 = vector.extract_strided_slice %398 {offsets = [0, 0], sizes = [3, 1], strides = [1, 1]} : vector<3x2xf32> to vector<3x1xf32>
    %400 = arith.mulf %393, %396 : vector<1x256xf32>
    %401 = vector.broadcast %399 : vector<3x1xf32> to vector<3x256xf32>
    %402 = vector.broadcast %400 : vector<1x256xf32> to vector<3x256xf32>
    %403 = arith.mulf %401, %402 : vector<3x256xf32>
    %404 = arith.addf %392, %403 : vector<3x256xf32>
    %405 = vector.extract_strided_slice %398 {offsets = [0, 1], sizes = [3, 1], strides = [1, 1]} : vector<3x2xf32> to vector<3x1xf32>
    %406 = arith.mulf %394, %396 : vector<1x256xf32>
    %407 = vector.broadcast %405 : vector<3x1xf32> to vector<3x256xf32>
    %408 = vector.broadcast %406 : vector<1x256xf32> to vector<3x256xf32>
    %409 = arith.mulf %407, %408 : vector<3x256xf32>
    %410 = arith.addf %404, %409 : vector<3x256xf32>
    %c19_i32 = arith.constant 19 : i32
    %411 = tpu.dynamic_rotate %155 by %c19_i32 dim 1 : vector<1x256xf32>, i32 -> vector<1x256xf32>
    %c19_i32_215 = arith.constant 19 : i32
    %412 = tpu.dynamic_rotate %157 by %c19_i32_215 dim 1 : vector<1x256xf32>, i32 -> vector<1x256xf32>
    %c14 = arith.constant 14 : index
    %c0_216 = arith.constant 0 : index
    %c0_217 = arith.constant 0 : index
    %413 = vector.load %arg9[%c14, %c0_216, %c0_217] : memref<49x1x256xf32, #tpu.memory_space<vmem>>, vector<1x1x256xf32>
    %414 = vector.shape_cast %413 : vector<1x1x256xf32> to vector<1x256xf32>
    %c14_218 = arith.constant 14 : index
    %c0_219 = arith.constant 0 : index
    %c0_220 = arith.constant 0 : index
    %415 = vector.load %arg7[%c14_218, %c0_219, %c0_220] : memref<49x3x2xf32, #tpu.memory_space<vmem>>, vector<1x3x2xf32>
    %416 = vector.shape_cast %415 : vector<1x3x2xf32> to vector<3x2xf32>
    %417 = vector.extract_strided_slice %416 {offsets = [0, 0], sizes = [3, 1], strides = [1, 1]} : vector<3x2xf32> to vector<3x1xf32>
    %418 = arith.mulf %411, %414 : vector<1x256xf32>
    %419 = vector.broadcast %417 : vector<3x1xf32> to vector<3x256xf32>
    %420 = vector.broadcast %418 : vector<1x256xf32> to vector<3x256xf32>
    %421 = arith.mulf %419, %420 : vector<3x256xf32>
    %422 = arith.addf %410, %421 : vector<3x256xf32>
    %423 = vector.extract_strided_slice %416 {offsets = [0, 1], sizes = [3, 1], strides = [1, 1]} : vector<3x2xf32> to vector<3x1xf32>
    %424 = arith.mulf %412, %414 : vector<1x256xf32>
    %425 = vector.broadcast %423 : vector<3x1xf32> to vector<3x256xf32>
    %426 = vector.broadcast %424 : vector<1x256xf32> to vector<3x256xf32>
    %427 = arith.mulf %425, %426 : vector<3x256xf32>
    %428 = arith.addf %422, %427 : vector<3x256xf32>
    %c18_i32 = arith.constant 18 : i32
    %429 = tpu.dynamic_rotate %155 by %c18_i32 dim 1 : vector<1x256xf32>, i32 -> vector<1x256xf32>
    %c18_i32_221 = arith.constant 18 : i32
    %430 = tpu.dynamic_rotate %157 by %c18_i32_221 dim 1 : vector<1x256xf32>, i32 -> vector<1x256xf32>
    %c15 = arith.constant 15 : index
    %c0_222 = arith.constant 0 : index
    %c0_223 = arith.constant 0 : index
    %431 = vector.load %arg9[%c15, %c0_222, %c0_223] : memref<49x1x256xf32, #tpu.memory_space<vmem>>, vector<1x1x256xf32>
    %432 = vector.shape_cast %431 : vector<1x1x256xf32> to vector<1x256xf32>
    %c15_224 = arith.constant 15 : index
    %c0_225 = arith.constant 0 : index
    %c0_226 = arith.constant 0 : index
    %433 = vector.load %arg7[%c15_224, %c0_225, %c0_226] : memref<49x3x2xf32, #tpu.memory_space<vmem>>, vector<1x3x2xf32>
    %434 = vector.shape_cast %433 : vector<1x3x2xf32> to vector<3x2xf32>
    %435 = vector.extract_strided_slice %434 {offsets = [0, 0], sizes = [3, 1], strides = [1, 1]} : vector<3x2xf32> to vector<3x1xf32>
    %436 = arith.mulf %429, %432 : vector<1x256xf32>
    %437 = vector.broadcast %435 : vector<3x1xf32> to vector<3x256xf32>
    %438 = vector.broadcast %436 : vector<1x256xf32> to vector<3x256xf32>
    %439 = arith.mulf %437, %438 : vector<3x256xf32>
    %440 = arith.addf %428, %439 : vector<3x256xf32>
    %441 = vector.extract_strided_slice %434 {offsets = [0, 1], sizes = [3, 1], strides = [1, 1]} : vector<3x2xf32> to vector<3x1xf32>
    %442 = arith.mulf %430, %432 : vector<1x256xf32>
    %443 = vector.broadcast %441 : vector<3x1xf32> to vector<3x256xf32>
    %444 = vector.broadcast %442 : vector<1x256xf32> to vector<3x256xf32>
    %445 = arith.mulf %443, %444 : vector<3x256xf32>
    %446 = arith.addf %440, %445 : vector<3x256xf32>
    %c17_i32_227 = arith.constant 17 : i32
    %447 = tpu.dynamic_rotate %155 by %c17_i32_227 dim 1 : vector<1x256xf32>, i32 -> vector<1x256xf32>
    %c17_i32_228 = arith.constant 17 : i32
    %448 = tpu.dynamic_rotate %157 by %c17_i32_228 dim 1 : vector<1x256xf32>, i32 -> vector<1x256xf32>
    %c16 = arith.constant 16 : index
    %c0_229 = arith.constant 0 : index
    %c0_230 = arith.constant 0 : index
    %449 = vector.load %arg9[%c16, %c0_229, %c0_230] : memref<49x1x256xf32, #tpu.memory_space<vmem>>, vector<1x1x256xf32>
    %450 = vector.shape_cast %449 : vector<1x1x256xf32> to vector<1x256xf32>
    %c16_231 = arith.constant 16 : index
    %c0_232 = arith.constant 0 : index
    %c0_233 = arith.constant 0 : index
    %451 = vector.load %arg7[%c16_231, %c0_232, %c0_233] : memref<49x3x2xf32, #tpu.memory_space<vmem>>, vector<1x3x2xf32>
    %452 = vector.shape_cast %451 : vector<1x3x2xf32> to vector<3x2xf32>
    %453 = vector.extract_strided_slice %452 {offsets = [0, 0], sizes = [3, 1], strides = [1, 1]} : vector<3x2xf32> to vector<3x1xf32>
    %454 = arith.mulf %447, %450 : vector<1x256xf32>
    %455 = vector.broadcast %453 : vector<3x1xf32> to vector<3x256xf32>
    %456 = vector.broadcast %454 : vector<1x256xf32> to vector<3x256xf32>
    %457 = arith.mulf %455, %456 : vector<3x256xf32>
    %458 = arith.addf %446, %457 : vector<3x256xf32>
    %459 = vector.extract_strided_slice %452 {offsets = [0, 1], sizes = [3, 1], strides = [1, 1]} : vector<3x2xf32> to vector<3x1xf32>
    %460 = arith.mulf %448, %450 : vector<1x256xf32>
    %461 = vector.broadcast %459 : vector<3x1xf32> to vector<3x256xf32>
    %462 = vector.broadcast %460 : vector<1x256xf32> to vector<3x256xf32>
    %463 = arith.mulf %461, %462 : vector<3x256xf32>
    %464 = arith.addf %458, %463 : vector<3x256xf32>
    %c16_i32_234 = arith.constant 16 : i32
    %465 = tpu.dynamic_rotate %155 by %c16_i32_234 dim 1 : vector<1x256xf32>, i32 -> vector<1x256xf32>
    %c16_i32_235 = arith.constant 16 : i32
    %466 = tpu.dynamic_rotate %157 by %c16_i32_235 dim 1 : vector<1x256xf32>, i32 -> vector<1x256xf32>
    %c17 = arith.constant 17 : index
    %c0_236 = arith.constant 0 : index
    %c0_237 = arith.constant 0 : index
    %467 = vector.load %arg9[%c17, %c0_236, %c0_237] : memref<49x1x256xf32, #tpu.memory_space<vmem>>, vector<1x1x256xf32>
    %468 = vector.shape_cast %467 : vector<1x1x256xf32> to vector<1x256xf32>
    %c17_238 = arith.constant 17 : index
    %c0_239 = arith.constant 0 : index
    %c0_240 = arith.constant 0 : index
    %469 = vector.load %arg7[%c17_238, %c0_239, %c0_240] : memref<49x3x2xf32, #tpu.memory_space<vmem>>, vector<1x3x2xf32>
    %470 = vector.shape_cast %469 : vector<1x3x2xf32> to vector<3x2xf32>
    %471 = vector.extract_strided_slice %470 {offsets = [0, 0], sizes = [3, 1], strides = [1, 1]} : vector<3x2xf32> to vector<3x1xf32>
    %472 = arith.mulf %465, %468 : vector<1x256xf32>
    %473 = vector.broadcast %471 : vector<3x1xf32> to vector<3x256xf32>
    %474 = vector.broadcast %472 : vector<1x256xf32> to vector<3x256xf32>
    %475 = arith.mulf %473, %474 : vector<3x256xf32>
    %476 = arith.addf %464, %475 : vector<3x256xf32>
    %477 = vector.extract_strided_slice %470 {offsets = [0, 1], sizes = [3, 1], strides = [1, 1]} : vector<3x2xf32> to vector<3x1xf32>
    %478 = arith.mulf %466, %468 : vector<1x256xf32>
    %479 = vector.broadcast %477 : vector<3x1xf32> to vector<3x256xf32>
    %480 = vector.broadcast %478 : vector<1x256xf32> to vector<3x256xf32>
    %481 = arith.mulf %479, %480 : vector<3x256xf32>
    %482 = arith.addf %476, %481 : vector<3x256xf32>
    %c15_i32_241 = arith.constant 15 : i32
    %483 = tpu.dynamic_rotate %155 by %c15_i32_241 dim 1 : vector<1x256xf32>, i32 -> vector<1x256xf32>
    %c15_i32_242 = arith.constant 15 : i32
    %484 = tpu.dynamic_rotate %157 by %c15_i32_242 dim 1 : vector<1x256xf32>, i32 -> vector<1x256xf32>
    %c18 = arith.constant 18 : index
    %c0_243 = arith.constant 0 : index
    %c0_244 = arith.constant 0 : index
    %485 = vector.load %arg9[%c18, %c0_243, %c0_244] : memref<49x1x256xf32, #tpu.memory_space<vmem>>, vector<1x1x256xf32>
    %486 = vector.shape_cast %485 : vector<1x1x256xf32> to vector<1x256xf32>
    %c18_245 = arith.constant 18 : index
    %c0_246 = arith.constant 0 : index
    %c0_247 = arith.constant 0 : index
    %487 = vector.load %arg7[%c18_245, %c0_246, %c0_247] : memref<49x3x2xf32, #tpu.memory_space<vmem>>, vector<1x3x2xf32>
    %488 = vector.shape_cast %487 : vector<1x3x2xf32> to vector<3x2xf32>
    %489 = vector.extract_strided_slice %488 {offsets = [0, 0], sizes = [3, 1], strides = [1, 1]} : vector<3x2xf32> to vector<3x1xf32>
    %490 = arith.mulf %483, %486 : vector<1x256xf32>
    %491 = vector.broadcast %489 : vector<3x1xf32> to vector<3x256xf32>
    %492 = vector.broadcast %490 : vector<1x256xf32> to vector<3x256xf32>
    %493 = arith.mulf %491, %492 : vector<3x256xf32>
    %494 = arith.addf %482, %493 : vector<3x256xf32>
    %495 = vector.extract_strided_slice %488 {offsets = [0, 1], sizes = [3, 1], strides = [1, 1]} : vector<3x2xf32> to vector<3x1xf32>
    %496 = arith.mulf %484, %486 : vector<1x256xf32>
    %497 = vector.broadcast %495 : vector<3x1xf32> to vector<3x256xf32>
    %498 = vector.broadcast %496 : vector<1x256xf32> to vector<3x256xf32>
    %499 = arith.mulf %497, %498 : vector<3x256xf32>
    %500 = arith.addf %494, %499 : vector<3x256xf32>
    %c14_i32 = arith.constant 14 : i32
    %501 = tpu.dynamic_rotate %155 by %c14_i32 dim 1 : vector<1x256xf32>, i32 -> vector<1x256xf32>
    %c14_i32_248 = arith.constant 14 : i32
    %502 = tpu.dynamic_rotate %157 by %c14_i32_248 dim 1 : vector<1x256xf32>, i32 -> vector<1x256xf32>
    %c19 = arith.constant 19 : index
    %c0_249 = arith.constant 0 : index
    %c0_250 = arith.constant 0 : index
    %503 = vector.load %arg9[%c19, %c0_249, %c0_250] : memref<49x1x256xf32, #tpu.memory_space<vmem>>, vector<1x1x256xf32>
    %504 = vector.shape_cast %503 : vector<1x1x256xf32> to vector<1x256xf32>
    %c19_251 = arith.constant 19 : index
    %c0_252 = arith.constant 0 : index
    %c0_253 = arith.constant 0 : index
    %505 = vector.load %arg7[%c19_251, %c0_252, %c0_253] : memref<49x3x2xf32, #tpu.memory_space<vmem>>, vector<1x3x2xf32>
    %506 = vector.shape_cast %505 : vector<1x3x2xf32> to vector<3x2xf32>
    %507 = vector.extract_strided_slice %506 {offsets = [0, 0], sizes = [3, 1], strides = [1, 1]} : vector<3x2xf32> to vector<3x1xf32>
    %508 = arith.mulf %501, %504 : vector<1x256xf32>
    %509 = vector.broadcast %507 : vector<3x1xf32> to vector<3x256xf32>
    %510 = vector.broadcast %508 : vector<1x256xf32> to vector<3x256xf32>
    %511 = arith.mulf %509, %510 : vector<3x256xf32>
    %512 = arith.addf %500, %511 : vector<3x256xf32>
    %513 = vector.extract_strided_slice %506 {offsets = [0, 1], sizes = [3, 1], strides = [1, 1]} : vector<3x2xf32> to vector<3x1xf32>
    %514 = arith.mulf %502, %504 : vector<1x256xf32>
    %515 = vector.broadcast %513 : vector<3x1xf32> to vector<3x256xf32>
    %516 = vector.broadcast %514 : vector<1x256xf32> to vector<3x256xf32>
    %517 = arith.mulf %515, %516 : vector<3x256xf32>
    %518 = arith.addf %512, %517 : vector<3x256xf32>
    %c13_i32 = arith.constant 13 : i32
    %519 = tpu.dynamic_rotate %155 by %c13_i32 dim 1 : vector<1x256xf32>, i32 -> vector<1x256xf32>
    %c13_i32_254 = arith.constant 13 : i32
    %520 = tpu.dynamic_rotate %157 by %c13_i32_254 dim 1 : vector<1x256xf32>, i32 -> vector<1x256xf32>
    %c20 = arith.constant 20 : index
    %c0_255 = arith.constant 0 : index
    %c0_256 = arith.constant 0 : index
    %521 = vector.load %arg9[%c20, %c0_255, %c0_256] : memref<49x1x256xf32, #tpu.memory_space<vmem>>, vector<1x1x256xf32>
    %522 = vector.shape_cast %521 : vector<1x1x256xf32> to vector<1x256xf32>
    %c20_257 = arith.constant 20 : index
    %c0_258 = arith.constant 0 : index
    %c0_259 = arith.constant 0 : index
    %523 = vector.load %arg7[%c20_257, %c0_258, %c0_259] : memref<49x3x2xf32, #tpu.memory_space<vmem>>, vector<1x3x2xf32>
    %524 = vector.shape_cast %523 : vector<1x3x2xf32> to vector<3x2xf32>
    %525 = vector.extract_strided_slice %524 {offsets = [0, 0], sizes = [3, 1], strides = [1, 1]} : vector<3x2xf32> to vector<3x1xf32>
    %526 = arith.mulf %519, %522 : vector<1x256xf32>
    %527 = vector.broadcast %525 : vector<3x1xf32> to vector<3x256xf32>
    %528 = vector.broadcast %526 : vector<1x256xf32> to vector<3x256xf32>
    %529 = arith.mulf %527, %528 : vector<3x256xf32>
    %530 = arith.addf %518, %529 : vector<3x256xf32>
    %531 = vector.extract_strided_slice %524 {offsets = [0, 1], sizes = [3, 1], strides = [1, 1]} : vector<3x2xf32> to vector<3x1xf32>
    %532 = arith.mulf %520, %522 : vector<1x256xf32>
    %533 = vector.broadcast %531 : vector<3x1xf32> to vector<3x256xf32>
    %534 = vector.broadcast %532 : vector<1x256xf32> to vector<3x256xf32>
    %535 = arith.mulf %533, %534 : vector<3x256xf32>
    %536 = arith.addf %530, %535 : vector<3x256xf32>
    %c3_i32 = arith.constant 3 : i32
    %537 = tpu.dynamic_rotate %155 by %c3_i32 dim 1 : vector<1x256xf32>, i32 -> vector<1x256xf32>
    %c3_i32_260 = arith.constant 3 : i32
    %538 = tpu.dynamic_rotate %157 by %c3_i32_260 dim 1 : vector<1x256xf32>, i32 -> vector<1x256xf32>
    %c21 = arith.constant 21 : index
    %c0_261 = arith.constant 0 : index
    %c0_262 = arith.constant 0 : index
    %539 = vector.load %arg9[%c21, %c0_261, %c0_262] : memref<49x1x256xf32, #tpu.memory_space<vmem>>, vector<1x1x256xf32>
    %540 = vector.shape_cast %539 : vector<1x1x256xf32> to vector<1x256xf32>
    %c21_263 = arith.constant 21 : index
    %c0_264 = arith.constant 0 : index
    %c0_265 = arith.constant 0 : index
    %541 = vector.load %arg7[%c21_263, %c0_264, %c0_265] : memref<49x3x2xf32, #tpu.memory_space<vmem>>, vector<1x3x2xf32>
    %542 = vector.shape_cast %541 : vector<1x3x2xf32> to vector<3x2xf32>
    %543 = vector.extract_strided_slice %542 {offsets = [0, 0], sizes = [3, 1], strides = [1, 1]} : vector<3x2xf32> to vector<3x1xf32>
    %544 = arith.mulf %537, %540 : vector<1x256xf32>
    %545 = vector.broadcast %543 : vector<3x1xf32> to vector<3x256xf32>
    %546 = vector.broadcast %544 : vector<1x256xf32> to vector<3x256xf32>
    %547 = arith.mulf %545, %546 : vector<3x256xf32>
    %548 = arith.addf %536, %547 : vector<3x256xf32>
    %549 = vector.extract_strided_slice %542 {offsets = [0, 1], sizes = [3, 1], strides = [1, 1]} : vector<3x2xf32> to vector<3x1xf32>
    %550 = arith.mulf %538, %540 : vector<1x256xf32>
    %551 = vector.broadcast %549 : vector<3x1xf32> to vector<3x256xf32>
    %552 = vector.broadcast %550 : vector<1x256xf32> to vector<3x256xf32>
    %553 = arith.mulf %551, %552 : vector<3x256xf32>
    %554 = arith.addf %548, %553 : vector<3x256xf32>
    %c2_i32 = arith.constant 2 : i32
    %555 = tpu.dynamic_rotate %155 by %c2_i32 dim 1 : vector<1x256xf32>, i32 -> vector<1x256xf32>
    %c2_i32_266 = arith.constant 2 : i32
    %556 = tpu.dynamic_rotate %157 by %c2_i32_266 dim 1 : vector<1x256xf32>, i32 -> vector<1x256xf32>
    %c22 = arith.constant 22 : index
    %c0_267 = arith.constant 0 : index
    %c0_268 = arith.constant 0 : index
    %557 = vector.load %arg9[%c22, %c0_267, %c0_268] : memref<49x1x256xf32, #tpu.memory_space<vmem>>, vector<1x1x256xf32>
    %558 = vector.shape_cast %557 : vector<1x1x256xf32> to vector<1x256xf32>
    %c22_269 = arith.constant 22 : index
    %c0_270 = arith.constant 0 : index
    %c0_271 = arith.constant 0 : index
    %559 = vector.load %arg7[%c22_269, %c0_270, %c0_271] : memref<49x3x2xf32, #tpu.memory_space<vmem>>, vector<1x3x2xf32>
    %560 = vector.shape_cast %559 : vector<1x3x2xf32> to vector<3x2xf32>
    %561 = vector.extract_strided_slice %560 {offsets = [0, 0], sizes = [3, 1], strides = [1, 1]} : vector<3x2xf32> to vector<3x1xf32>
    %562 = arith.mulf %555, %558 : vector<1x256xf32>
    %563 = vector.broadcast %561 : vector<3x1xf32> to vector<3x256xf32>
    %564 = vector.broadcast %562 : vector<1x256xf32> to vector<3x256xf32>
    %565 = arith.mulf %563, %564 : vector<3x256xf32>
    %566 = arith.addf %554, %565 : vector<3x256xf32>
    %567 = vector.extract_strided_slice %560 {offsets = [0, 1], sizes = [3, 1], strides = [1, 1]} : vector<3x2xf32> to vector<3x1xf32>
    %568 = arith.mulf %556, %558 : vector<1x256xf32>
    %569 = vector.broadcast %567 : vector<3x1xf32> to vector<3x256xf32>
    %570 = vector.broadcast %568 : vector<1x256xf32> to vector<3x256xf32>
    %571 = arith.mulf %569, %570 : vector<3x256xf32>
    %572 = arith.addf %566, %571 : vector<3x256xf32>
    %c1_i32_272 = arith.constant 1 : i32
    %573 = tpu.dynamic_rotate %155 by %c1_i32_272 dim 1 : vector<1x256xf32>, i32 -> vector<1x256xf32>
    %c1_i32_273 = arith.constant 1 : i32
    %574 = tpu.dynamic_rotate %157 by %c1_i32_273 dim 1 : vector<1x256xf32>, i32 -> vector<1x256xf32>
    %c23 = arith.constant 23 : index
    %c0_274 = arith.constant 0 : index
    %c0_275 = arith.constant 0 : index
    %575 = vector.load %arg9[%c23, %c0_274, %c0_275] : memref<49x1x256xf32, #tpu.memory_space<vmem>>, vector<1x1x256xf32>
    %576 = vector.shape_cast %575 : vector<1x1x256xf32> to vector<1x256xf32>
    %c23_276 = arith.constant 23 : index
    %c0_277 = arith.constant 0 : index
    %c0_278 = arith.constant 0 : index
    %577 = vector.load %arg7[%c23_276, %c0_277, %c0_278] : memref<49x3x2xf32, #tpu.memory_space<vmem>>, vector<1x3x2xf32>
    %578 = vector.shape_cast %577 : vector<1x3x2xf32> to vector<3x2xf32>
    %579 = vector.extract_strided_slice %578 {offsets = [0, 0], sizes = [3, 1], strides = [1, 1]} : vector<3x2xf32> to vector<3x1xf32>
    %580 = arith.mulf %573, %576 : vector<1x256xf32>
    %581 = vector.broadcast %579 : vector<3x1xf32> to vector<3x256xf32>
    %582 = vector.broadcast %580 : vector<1x256xf32> to vector<3x256xf32>
    %583 = arith.mulf %581, %582 : vector<3x256xf32>
    %584 = arith.addf %572, %583 : vector<3x256xf32>
    %585 = vector.extract_strided_slice %578 {offsets = [0, 1], sizes = [3, 1], strides = [1, 1]} : vector<3x2xf32> to vector<3x1xf32>
    %586 = arith.mulf %574, %576 : vector<1x256xf32>
    %587 = vector.broadcast %585 : vector<3x1xf32> to vector<3x256xf32>
    %588 = vector.broadcast %586 : vector<1x256xf32> to vector<3x256xf32>
    %589 = arith.mulf %587, %588 : vector<3x256xf32>
    %590 = arith.addf %584, %589 : vector<3x256xf32>
    %c24 = arith.constant 24 : index
    %c0_279 = arith.constant 0 : index
    %c0_280 = arith.constant 0 : index
    %591 = vector.load %arg9[%c24, %c0_279, %c0_280] : memref<49x1x256xf32, #tpu.memory_space<vmem>>, vector<1x1x256xf32>
    %592 = vector.shape_cast %591 : vector<1x1x256xf32> to vector<1x256xf32>
    %c24_281 = arith.constant 24 : index
    %c0_282 = arith.constant 0 : index
    %c0_283 = arith.constant 0 : index
    %593 = vector.load %arg7[%c24_281, %c0_282, %c0_283] : memref<49x3x2xf32, #tpu.memory_space<vmem>>, vector<1x3x2xf32>
    %594 = vector.shape_cast %593 : vector<1x3x2xf32> to vector<3x2xf32>
    %595 = vector.extract_strided_slice %594 {offsets = [0, 0], sizes = [3, 1], strides = [1, 1]} : vector<3x2xf32> to vector<3x1xf32>
    %596 = arith.mulf %155, %592 : vector<1x256xf32>
    %597 = vector.broadcast %595 : vector<3x1xf32> to vector<3x256xf32>
    %598 = vector.broadcast %596 : vector<1x256xf32> to vector<3x256xf32>
    %599 = arith.mulf %597, %598 : vector<3x256xf32>
    %600 = arith.addf %590, %599 : vector<3x256xf32>
    %601 = vector.extract_strided_slice %594 {offsets = [0, 1], sizes = [3, 1], strides = [1, 1]} : vector<3x2xf32> to vector<3x1xf32>
    %602 = arith.mulf %157, %592 : vector<1x256xf32>
    %603 = vector.broadcast %601 : vector<3x1xf32> to vector<3x256xf32>
    %604 = vector.broadcast %602 : vector<1x256xf32> to vector<3x256xf32>
    %605 = arith.mulf %603, %604 : vector<3x256xf32>
    %606 = arith.addf %600, %605 : vector<3x256xf32>
    %c255_i32_284 = arith.constant 255 : i32
    %607 = tpu.dynamic_rotate %155 by %c255_i32_284 dim 1 : vector<1x256xf32>, i32 -> vector<1x256xf32>
    %c255_i32_285 = arith.constant 255 : i32
    %608 = tpu.dynamic_rotate %157 by %c255_i32_285 dim 1 : vector<1x256xf32>, i32 -> vector<1x256xf32>
    %c25 = arith.constant 25 : index
    %c0_286 = arith.constant 0 : index
    %c0_287 = arith.constant 0 : index
    %609 = vector.load %arg9[%c25, %c0_286, %c0_287] : memref<49x1x256xf32, #tpu.memory_space<vmem>>, vector<1x1x256xf32>
    %610 = vector.shape_cast %609 : vector<1x1x256xf32> to vector<1x256xf32>
    %c25_288 = arith.constant 25 : index
    %c0_289 = arith.constant 0 : index
    %c0_290 = arith.constant 0 : index
    %611 = vector.load %arg7[%c25_288, %c0_289, %c0_290] : memref<49x3x2xf32, #tpu.memory_space<vmem>>, vector<1x3x2xf32>
    %612 = vector.shape_cast %611 : vector<1x3x2xf32> to vector<3x2xf32>
    %613 = vector.extract_strided_slice %612 {offsets = [0, 0], sizes = [3, 1], strides = [1, 1]} : vector<3x2xf32> to vector<3x1xf32>
    %614 = arith.mulf %607, %610 : vector<1x256xf32>
    %615 = vector.broadcast %613 : vector<3x1xf32> to vector<3x256xf32>
    %616 = vector.broadcast %614 : vector<1x256xf32> to vector<3x256xf32>
    %617 = arith.mulf %615, %616 : vector<3x256xf32>
    %618 = arith.addf %606, %617 : vector<3x256xf32>
    %619 = vector.extract_strided_slice %612 {offsets = [0, 1], sizes = [3, 1], strides = [1, 1]} : vector<3x2xf32> to vector<3x1xf32>
    %620 = arith.mulf %608, %610 : vector<1x256xf32>
    %621 = vector.broadcast %619 : vector<3x1xf32> to vector<3x256xf32>
    %622 = vector.broadcast %620 : vector<1x256xf32> to vector<3x256xf32>
    %623 = arith.mulf %621, %622 : vector<3x256xf32>
    %624 = arith.addf %618, %623 : vector<3x256xf32>
    %c254_i32 = arith.constant 254 : i32
    %625 = tpu.dynamic_rotate %155 by %c254_i32 dim 1 : vector<1x256xf32>, i32 -> vector<1x256xf32>
    %c254_i32_291 = arith.constant 254 : i32
    %626 = tpu.dynamic_rotate %157 by %c254_i32_291 dim 1 : vector<1x256xf32>, i32 -> vector<1x256xf32>
    %c26 = arith.constant 26 : index
    %c0_292 = arith.constant 0 : index
    %c0_293 = arith.constant 0 : index
    %627 = vector.load %arg9[%c26, %c0_292, %c0_293] : memref<49x1x256xf32, #tpu.memory_space<vmem>>, vector<1x1x256xf32>
    %628 = vector.shape_cast %627 : vector<1x1x256xf32> to vector<1x256xf32>
    %c26_294 = arith.constant 26 : index
    %c0_295 = arith.constant 0 : index
    %c0_296 = arith.constant 0 : index
    %629 = vector.load %arg7[%c26_294, %c0_295, %c0_296] : memref<49x3x2xf32, #tpu.memory_space<vmem>>, vector<1x3x2xf32>
    %630 = vector.shape_cast %629 : vector<1x3x2xf32> to vector<3x2xf32>
    %631 = vector.extract_strided_slice %630 {offsets = [0, 0], sizes = [3, 1], strides = [1, 1]} : vector<3x2xf32> to vector<3x1xf32>
    %632 = arith.mulf %625, %628 : vector<1x256xf32>
    %633 = vector.broadcast %631 : vector<3x1xf32> to vector<3x256xf32>
    %634 = vector.broadcast %632 : vector<1x256xf32> to vector<3x256xf32>
    %635 = arith.mulf %633, %634 : vector<3x256xf32>
    %636 = arith.addf %624, %635 : vector<3x256xf32>
    %637 = vector.extract_strided_slice %630 {offsets = [0, 1], sizes = [3, 1], strides = [1, 1]} : vector<3x2xf32> to vector<3x1xf32>
    %638 = arith.mulf %626, %628 : vector<1x256xf32>
    %639 = vector.broadcast %637 : vector<3x1xf32> to vector<3x256xf32>
    %640 = vector.broadcast %638 : vector<1x256xf32> to vector<3x256xf32>
    %641 = arith.mulf %639, %640 : vector<3x256xf32>
    %642 = arith.addf %636, %641 : vector<3x256xf32>
    %c253_i32 = arith.constant 253 : i32
    %643 = tpu.dynamic_rotate %155 by %c253_i32 dim 1 : vector<1x256xf32>, i32 -> vector<1x256xf32>
    %c253_i32_297 = arith.constant 253 : i32
    %644 = tpu.dynamic_rotate %157 by %c253_i32_297 dim 1 : vector<1x256xf32>, i32 -> vector<1x256xf32>
    %c27 = arith.constant 27 : index
    %c0_298 = arith.constant 0 : index
    %c0_299 = arith.constant 0 : index
    %645 = vector.load %arg9[%c27, %c0_298, %c0_299] : memref<49x1x256xf32, #tpu.memory_space<vmem>>, vector<1x1x256xf32>
    %646 = vector.shape_cast %645 : vector<1x1x256xf32> to vector<1x256xf32>
    %c27_300 = arith.constant 27 : index
    %c0_301 = arith.constant 0 : index
    %c0_302 = arith.constant 0 : index
    %647 = vector.load %arg7[%c27_300, %c0_301, %c0_302] : memref<49x3x2xf32, #tpu.memory_space<vmem>>, vector<1x3x2xf32>
    %648 = vector.shape_cast %647 : vector<1x3x2xf32> to vector<3x2xf32>
    %649 = vector.extract_strided_slice %648 {offsets = [0, 0], sizes = [3, 1], strides = [1, 1]} : vector<3x2xf32> to vector<3x1xf32>
    %650 = arith.mulf %643, %646 : vector<1x256xf32>
    %651 = vector.broadcast %649 : vector<3x1xf32> to vector<3x256xf32>
    %652 = vector.broadcast %650 : vector<1x256xf32> to vector<3x256xf32>
    %653 = arith.mulf %651, %652 : vector<3x256xf32>
    %654 = arith.addf %642, %653 : vector<3x256xf32>
    %655 = vector.extract_strided_slice %648 {offsets = [0, 1], sizes = [3, 1], strides = [1, 1]} : vector<3x2xf32> to vector<3x1xf32>
    %656 = arith.mulf %644, %646 : vector<1x256xf32>
    %657 = vector.broadcast %655 : vector<3x1xf32> to vector<3x256xf32>
    %658 = vector.broadcast %656 : vector<1x256xf32> to vector<3x256xf32>
    %659 = arith.mulf %657, %658 : vector<3x256xf32>
    %660 = arith.addf %654, %659 : vector<3x256xf32>
    %c243_i32 = arith.constant 243 : i32
    %661 = tpu.dynamic_rotate %155 by %c243_i32 dim 1 : vector<1x256xf32>, i32 -> vector<1x256xf32>
    %c243_i32_303 = arith.constant 243 : i32
    %662 = tpu.dynamic_rotate %157 by %c243_i32_303 dim 1 : vector<1x256xf32>, i32 -> vector<1x256xf32>
    %c28 = arith.constant 28 : index
    %c0_304 = arith.constant 0 : index
    %c0_305 = arith.constant 0 : index
    %663 = vector.load %arg9[%c28, %c0_304, %c0_305] : memref<49x1x256xf32, #tpu.memory_space<vmem>>, vector<1x1x256xf32>
    %664 = vector.shape_cast %663 : vector<1x1x256xf32> to vector<1x256xf32>
    %c28_306 = arith.constant 28 : index
    %c0_307 = arith.constant 0 : index
    %c0_308 = arith.constant 0 : index
    %665 = vector.load %arg7[%c28_306, %c0_307, %c0_308] : memref<49x3x2xf32, #tpu.memory_space<vmem>>, vector<1x3x2xf32>
    %666 = vector.shape_cast %665 : vector<1x3x2xf32> to vector<3x2xf32>
    %667 = vector.extract_strided_slice %666 {offsets = [0, 0], sizes = [3, 1], strides = [1, 1]} : vector<3x2xf32> to vector<3x1xf32>
    %668 = arith.mulf %661, %664 : vector<1x256xf32>
    %669 = vector.broadcast %667 : vector<3x1xf32> to vector<3x256xf32>
    %670 = vector.broadcast %668 : vector<1x256xf32> to vector<3x256xf32>
    %671 = arith.mulf %669, %670 : vector<3x256xf32>
    %672 = arith.addf %660, %671 : vector<3x256xf32>
    %673 = vector.extract_strided_slice %666 {offsets = [0, 1], sizes = [3, 1], strides = [1, 1]} : vector<3x2xf32> to vector<3x1xf32>
    %674 = arith.mulf %662, %664 : vector<1x256xf32>
    %675 = vector.broadcast %673 : vector<3x1xf32> to vector<3x256xf32>
    %676 = vector.broadcast %674 : vector<1x256xf32> to vector<3x256xf32>
    %677 = arith.mulf %675, %676 : vector<3x256xf32>
    %678 = arith.addf %672, %677 : vector<3x256xf32>
    %c242_i32 = arith.constant 242 : i32
    %679 = tpu.dynamic_rotate %155 by %c242_i32 dim 1 : vector<1x256xf32>, i32 -> vector<1x256xf32>
    %c242_i32_309 = arith.constant 242 : i32
    %680 = tpu.dynamic_rotate %157 by %c242_i32_309 dim 1 : vector<1x256xf32>, i32 -> vector<1x256xf32>
    %c29 = arith.constant 29 : index
    %c0_310 = arith.constant 0 : index
    %c0_311 = arith.constant 0 : index
    %681 = vector.load %arg9[%c29, %c0_310, %c0_311] : memref<49x1x256xf32, #tpu.memory_space<vmem>>, vector<1x1x256xf32>
    %682 = vector.shape_cast %681 : vector<1x1x256xf32> to vector<1x256xf32>
    %c29_312 = arith.constant 29 : index
    %c0_313 = arith.constant 0 : index
    %c0_314 = arith.constant 0 : index
    %683 = vector.load %arg7[%c29_312, %c0_313, %c0_314] : memref<49x3x2xf32, #tpu.memory_space<vmem>>, vector<1x3x2xf32>
    %684 = vector.shape_cast %683 : vector<1x3x2xf32> to vector<3x2xf32>
    %685 = vector.extract_strided_slice %684 {offsets = [0, 0], sizes = [3, 1], strides = [1, 1]} : vector<3x2xf32> to vector<3x1xf32>
    %686 = arith.mulf %679, %682 : vector<1x256xf32>
    %687 = vector.broadcast %685 : vector<3x1xf32> to vector<3x256xf32>
    %688 = vector.broadcast %686 : vector<1x256xf32> to vector<3x256xf32>
    %689 = arith.mulf %687, %688 : vector<3x256xf32>
    %690 = arith.addf %678, %689 : vector<3x256xf32>
    %691 = vector.extract_strided_slice %684 {offsets = [0, 1], sizes = [3, 1], strides = [1, 1]} : vector<3x2xf32> to vector<3x1xf32>
    %692 = arith.mulf %680, %682 : vector<1x256xf32>
    %693 = vector.broadcast %691 : vector<3x1xf32> to vector<3x256xf32>
    %694 = vector.broadcast %692 : vector<1x256xf32> to vector<3x256xf32>
    %695 = arith.mulf %693, %694 : vector<3x256xf32>
    %696 = arith.addf %690, %695 : vector<3x256xf32>
    %c241_i32_315 = arith.constant 241 : i32
    %697 = tpu.dynamic_rotate %155 by %c241_i32_315 dim 1 : vector<1x256xf32>, i32 -> vector<1x256xf32>
    %c241_i32_316 = arith.constant 241 : i32
    %698 = tpu.dynamic_rotate %157 by %c241_i32_316 dim 1 : vector<1x256xf32>, i32 -> vector<1x256xf32>
    %c30 = arith.constant 30 : index
    %c0_317 = arith.constant 0 : index
    %c0_318 = arith.constant 0 : index
    %699 = vector.load %arg9[%c30, %c0_317, %c0_318] : memref<49x1x256xf32, #tpu.memory_space<vmem>>, vector<1x1x256xf32>
    %700 = vector.shape_cast %699 : vector<1x1x256xf32> to vector<1x256xf32>
    %c30_319 = arith.constant 30 : index
    %c0_320 = arith.constant 0 : index
    %c0_321 = arith.constant 0 : index
    %701 = vector.load %arg7[%c30_319, %c0_320, %c0_321] : memref<49x3x2xf32, #tpu.memory_space<vmem>>, vector<1x3x2xf32>
    %702 = vector.shape_cast %701 : vector<1x3x2xf32> to vector<3x2xf32>
    %703 = vector.extract_strided_slice %702 {offsets = [0, 0], sizes = [3, 1], strides = [1, 1]} : vector<3x2xf32> to vector<3x1xf32>
    %704 = arith.mulf %697, %700 : vector<1x256xf32>
    %705 = vector.broadcast %703 : vector<3x1xf32> to vector<3x256xf32>
    %706 = vector.broadcast %704 : vector<1x256xf32> to vector<3x256xf32>
    %707 = arith.mulf %705, %706 : vector<3x256xf32>
    %708 = arith.addf %696, %707 : vector<3x256xf32>
    %709 = vector.extract_strided_slice %702 {offsets = [0, 1], sizes = [3, 1], strides = [1, 1]} : vector<3x2xf32> to vector<3x1xf32>
    %710 = arith.mulf %698, %700 : vector<1x256xf32>
    %711 = vector.broadcast %709 : vector<3x1xf32> to vector<3x256xf32>
    %712 = vector.broadcast %710 : vector<1x256xf32> to vector<3x256xf32>
    %713 = arith.mulf %711, %712 : vector<3x256xf32>
    %714 = arith.addf %708, %713 : vector<3x256xf32>
    %c240_i32_322 = arith.constant 240 : i32
    %715 = tpu.dynamic_rotate %155 by %c240_i32_322 dim 1 : vector<1x256xf32>, i32 -> vector<1x256xf32>
    %c240_i32_323 = arith.constant 240 : i32
    %716 = tpu.dynamic_rotate %157 by %c240_i32_323 dim 1 : vector<1x256xf32>, i32 -> vector<1x256xf32>
    %c31 = arith.constant 31 : index
    %c0_324 = arith.constant 0 : index
    %c0_325 = arith.constant 0 : index
    %717 = vector.load %arg9[%c31, %c0_324, %c0_325] : memref<49x1x256xf32, #tpu.memory_space<vmem>>, vector<1x1x256xf32>
    %718 = vector.shape_cast %717 : vector<1x1x256xf32> to vector<1x256xf32>
    %c31_326 = arith.constant 31 : index
    %c0_327 = arith.constant 0 : index
    %c0_328 = arith.constant 0 : index
    %719 = vector.load %arg7[%c31_326, %c0_327, %c0_328] : memref<49x3x2xf32, #tpu.memory_space<vmem>>, vector<1x3x2xf32>
    %720 = vector.shape_cast %719 : vector<1x3x2xf32> to vector<3x2xf32>
    %721 = vector.extract_strided_slice %720 {offsets = [0, 0], sizes = [3, 1], strides = [1, 1]} : vector<3x2xf32> to vector<3x1xf32>
    %722 = arith.mulf %715, %718 : vector<1x256xf32>
    %723 = vector.broadcast %721 : vector<3x1xf32> to vector<3x256xf32>
    %724 = vector.broadcast %722 : vector<1x256xf32> to vector<3x256xf32>
    %725 = arith.mulf %723, %724 : vector<3x256xf32>
    %726 = arith.addf %714, %725 : vector<3x256xf32>
    %727 = vector.extract_strided_slice %720 {offsets = [0, 1], sizes = [3, 1], strides = [1, 1]} : vector<3x2xf32> to vector<3x1xf32>
    %728 = arith.mulf %716, %718 : vector<1x256xf32>
    %729 = vector.broadcast %727 : vector<3x1xf32> to vector<3x256xf32>
    %730 = vector.broadcast %728 : vector<1x256xf32> to vector<3x256xf32>
    %731 = arith.mulf %729, %730 : vector<3x256xf32>
    %732 = arith.addf %726, %731 : vector<3x256xf32>
    %c239_i32_329 = arith.constant 239 : i32
    %733 = tpu.dynamic_rotate %155 by %c239_i32_329 dim 1 : vector<1x256xf32>, i32 -> vector<1x256xf32>
    %c239_i32_330 = arith.constant 239 : i32
    %734 = tpu.dynamic_rotate %157 by %c239_i32_330 dim 1 : vector<1x256xf32>, i32 -> vector<1x256xf32>
    %c32_331 = arith.constant 32 : index
    %c0_332 = arith.constant 0 : index
    %c0_333 = arith.constant 0 : index
    %735 = vector.load %arg9[%c32_331, %c0_332, %c0_333] : memref<49x1x256xf32, #tpu.memory_space<vmem>>, vector<1x1x256xf32>
    %736 = vector.shape_cast %735 : vector<1x1x256xf32> to vector<1x256xf32>
    %c32_334 = arith.constant 32 : index
    %c0_335 = arith.constant 0 : index
    %c0_336 = arith.constant 0 : index
    %737 = vector.load %arg7[%c32_334, %c0_335, %c0_336] : memref<49x3x2xf32, #tpu.memory_space<vmem>>, vector<1x3x2xf32>
    %738 = vector.shape_cast %737 : vector<1x3x2xf32> to vector<3x2xf32>
    %739 = vector.extract_strided_slice %738 {offsets = [0, 0], sizes = [3, 1], strides = [1, 1]} : vector<3x2xf32> to vector<3x1xf32>
    %740 = arith.mulf %733, %736 : vector<1x256xf32>
    %741 = vector.broadcast %739 : vector<3x1xf32> to vector<3x256xf32>
    %742 = vector.broadcast %740 : vector<1x256xf32> to vector<3x256xf32>
    %743 = arith.mulf %741, %742 : vector<3x256xf32>
    %744 = arith.addf %732, %743 : vector<3x256xf32>
    %745 = vector.extract_strided_slice %738 {offsets = [0, 1], sizes = [3, 1], strides = [1, 1]} : vector<3x2xf32> to vector<3x1xf32>
    %746 = arith.mulf %734, %736 : vector<1x256xf32>
    %747 = vector.broadcast %745 : vector<3x1xf32> to vector<3x256xf32>
    %748 = vector.broadcast %746 : vector<1x256xf32> to vector<3x256xf32>
    %749 = arith.mulf %747, %748 : vector<3x256xf32>
    %750 = arith.addf %744, %749 : vector<3x256xf32>
    %c238_i32 = arith.constant 238 : i32
    %751 = tpu.dynamic_rotate %155 by %c238_i32 dim 1 : vector<1x256xf32>, i32 -> vector<1x256xf32>
    %c238_i32_337 = arith.constant 238 : i32
    %752 = tpu.dynamic_rotate %157 by %c238_i32_337 dim 1 : vector<1x256xf32>, i32 -> vector<1x256xf32>
    %c33 = arith.constant 33 : index
    %c0_338 = arith.constant 0 : index
    %c0_339 = arith.constant 0 : index
    %753 = vector.load %arg9[%c33, %c0_338, %c0_339] : memref<49x1x256xf32, #tpu.memory_space<vmem>>, vector<1x1x256xf32>
    %754 = vector.shape_cast %753 : vector<1x1x256xf32> to vector<1x256xf32>
    %c33_340 = arith.constant 33 : index
    %c0_341 = arith.constant 0 : index
    %c0_342 = arith.constant 0 : index
    %755 = vector.load %arg7[%c33_340, %c0_341, %c0_342] : memref<49x3x2xf32, #tpu.memory_space<vmem>>, vector<1x3x2xf32>
    %756 = vector.shape_cast %755 : vector<1x3x2xf32> to vector<3x2xf32>
    %757 = vector.extract_strided_slice %756 {offsets = [0, 0], sizes = [3, 1], strides = [1, 1]} : vector<3x2xf32> to vector<3x1xf32>
    %758 = arith.mulf %751, %754 : vector<1x256xf32>
    %759 = vector.broadcast %757 : vector<3x1xf32> to vector<3x256xf32>
    %760 = vector.broadcast %758 : vector<1x256xf32> to vector<3x256xf32>
    %761 = arith.mulf %759, %760 : vector<3x256xf32>
    %762 = arith.addf %750, %761 : vector<3x256xf32>
    %763 = vector.extract_strided_slice %756 {offsets = [0, 1], sizes = [3, 1], strides = [1, 1]} : vector<3x2xf32> to vector<3x1xf32>
    %764 = arith.mulf %752, %754 : vector<1x256xf32>
    %765 = vector.broadcast %763 : vector<3x1xf32> to vector<3x256xf32>
    %766 = vector.broadcast %764 : vector<1x256xf32> to vector<3x256xf32>
    %767 = arith.mulf %765, %766 : vector<3x256xf32>
    %768 = arith.addf %762, %767 : vector<3x256xf32>
    %c237_i32 = arith.constant 237 : i32
    %769 = tpu.dynamic_rotate %155 by %c237_i32 dim 1 : vector<1x256xf32>, i32 -> vector<1x256xf32>
    %c237_i32_343 = arith.constant 237 : i32
    %770 = tpu.dynamic_rotate %157 by %c237_i32_343 dim 1 : vector<1x256xf32>, i32 -> vector<1x256xf32>
    %c34 = arith.constant 34 : index
    %c0_344 = arith.constant 0 : index
    %c0_345 = arith.constant 0 : index
    %771 = vector.load %arg9[%c34, %c0_344, %c0_345] : memref<49x1x256xf32, #tpu.memory_space<vmem>>, vector<1x1x256xf32>
    %772 = vector.shape_cast %771 : vector<1x1x256xf32> to vector<1x256xf32>
    %c34_346 = arith.constant 34 : index
    %c0_347 = arith.constant 0 : index
    %c0_348 = arith.constant 0 : index
    %773 = vector.load %arg7[%c34_346, %c0_347, %c0_348] : memref<49x3x2xf32, #tpu.memory_space<vmem>>, vector<1x3x2xf32>
    %774 = vector.shape_cast %773 : vector<1x3x2xf32> to vector<3x2xf32>
    %775 = vector.extract_strided_slice %774 {offsets = [0, 0], sizes = [3, 1], strides = [1, 1]} : vector<3x2xf32> to vector<3x1xf32>
    %776 = arith.mulf %769, %772 : vector<1x256xf32>
    %777 = vector.broadcast %775 : vector<3x1xf32> to vector<3x256xf32>
    %778 = vector.broadcast %776 : vector<1x256xf32> to vector<3x256xf32>
    %779 = arith.mulf %777, %778 : vector<3x256xf32>
    %780 = arith.addf %768, %779 : vector<3x256xf32>
    %781 = vector.extract_strided_slice %774 {offsets = [0, 1], sizes = [3, 1], strides = [1, 1]} : vector<3x2xf32> to vector<3x1xf32>
    %782 = arith.mulf %770, %772 : vector<1x256xf32>
    %783 = vector.broadcast %781 : vector<3x1xf32> to vector<3x256xf32>
    %784 = vector.broadcast %782 : vector<1x256xf32> to vector<3x256xf32>
    %785 = arith.mulf %783, %784 : vector<3x256xf32>
    %786 = arith.addf %780, %785 : vector<3x256xf32>
    %c227_i32 = arith.constant 227 : i32
    %787 = tpu.dynamic_rotate %155 by %c227_i32 dim 1 : vector<1x256xf32>, i32 -> vector<1x256xf32>
    %c227_i32_349 = arith.constant 227 : i32
    %788 = tpu.dynamic_rotate %157 by %c227_i32_349 dim 1 : vector<1x256xf32>, i32 -> vector<1x256xf32>
    %c35 = arith.constant 35 : index
    %c0_350 = arith.constant 0 : index
    %c0_351 = arith.constant 0 : index
    %789 = vector.load %arg9[%c35, %c0_350, %c0_351] : memref<49x1x256xf32, #tpu.memory_space<vmem>>, vector<1x1x256xf32>
    %790 = vector.shape_cast %789 : vector<1x1x256xf32> to vector<1x256xf32>
    %c35_352 = arith.constant 35 : index
    %c0_353 = arith.constant 0 : index
    %c0_354 = arith.constant 0 : index
    %791 = vector.load %arg7[%c35_352, %c0_353, %c0_354] : memref<49x3x2xf32, #tpu.memory_space<vmem>>, vector<1x3x2xf32>
    %792 = vector.shape_cast %791 : vector<1x3x2xf32> to vector<3x2xf32>
    %793 = vector.extract_strided_slice %792 {offsets = [0, 0], sizes = [3, 1], strides = [1, 1]} : vector<3x2xf32> to vector<3x1xf32>
    %794 = arith.mulf %787, %790 : vector<1x256xf32>
    %795 = vector.broadcast %793 : vector<3x1xf32> to vector<3x256xf32>
    %796 = vector.broadcast %794 : vector<1x256xf32> to vector<3x256xf32>
    %797 = arith.mulf %795, %796 : vector<3x256xf32>
    %798 = arith.addf %786, %797 : vector<3x256xf32>
    %799 = vector.extract_strided_slice %792 {offsets = [0, 1], sizes = [3, 1], strides = [1, 1]} : vector<3x2xf32> to vector<3x1xf32>
    %800 = arith.mulf %788, %790 : vector<1x256xf32>
    %801 = vector.broadcast %799 : vector<3x1xf32> to vector<3x256xf32>
    %802 = vector.broadcast %800 : vector<1x256xf32> to vector<3x256xf32>
    %803 = arith.mulf %801, %802 : vector<3x256xf32>
    %804 = arith.addf %798, %803 : vector<3x256xf32>
    %c226_i32 = arith.constant 226 : i32
    %805 = tpu.dynamic_rotate %155 by %c226_i32 dim 1 : vector<1x256xf32>, i32 -> vector<1x256xf32>
    %c226_i32_355 = arith.constant 226 : i32
    %806 = tpu.dynamic_rotate %157 by %c226_i32_355 dim 1 : vector<1x256xf32>, i32 -> vector<1x256xf32>
    %c36 = arith.constant 36 : index
    %c0_356 = arith.constant 0 : index
    %c0_357 = arith.constant 0 : index
    %807 = vector.load %arg9[%c36, %c0_356, %c0_357] : memref<49x1x256xf32, #tpu.memory_space<vmem>>, vector<1x1x256xf32>
    %808 = vector.shape_cast %807 : vector<1x1x256xf32> to vector<1x256xf32>
    %c36_358 = arith.constant 36 : index
    %c0_359 = arith.constant 0 : index
    %c0_360 = arith.constant 0 : index
    %809 = vector.load %arg7[%c36_358, %c0_359, %c0_360] : memref<49x3x2xf32, #tpu.memory_space<vmem>>, vector<1x3x2xf32>
    %810 = vector.shape_cast %809 : vector<1x3x2xf32> to vector<3x2xf32>
    %811 = vector.extract_strided_slice %810 {offsets = [0, 0], sizes = [3, 1], strides = [1, 1]} : vector<3x2xf32> to vector<3x1xf32>
    %812 = arith.mulf %805, %808 : vector<1x256xf32>
    %813 = vector.broadcast %811 : vector<3x1xf32> to vector<3x256xf32>
    %814 = vector.broadcast %812 : vector<1x256xf32> to vector<3x256xf32>
    %815 = arith.mulf %813, %814 : vector<3x256xf32>
    %816 = arith.addf %804, %815 : vector<3x256xf32>
    %817 = vector.extract_strided_slice %810 {offsets = [0, 1], sizes = [3, 1], strides = [1, 1]} : vector<3x2xf32> to vector<3x1xf32>
    %818 = arith.mulf %806, %808 : vector<1x256xf32>
    %819 = vector.broadcast %817 : vector<3x1xf32> to vector<3x256xf32>
    %820 = vector.broadcast %818 : vector<1x256xf32> to vector<3x256xf32>
    %821 = arith.mulf %819, %820 : vector<3x256xf32>
    %822 = arith.addf %816, %821 : vector<3x256xf32>
    %c225_i32 = arith.constant 225 : i32
    %823 = tpu.dynamic_rotate %155 by %c225_i32 dim 1 : vector<1x256xf32>, i32 -> vector<1x256xf32>
    %c225_i32_361 = arith.constant 225 : i32
    %824 = tpu.dynamic_rotate %157 by %c225_i32_361 dim 1 : vector<1x256xf32>, i32 -> vector<1x256xf32>
    %c37 = arith.constant 37 : index
    %c0_362 = arith.constant 0 : index
    %c0_363 = arith.constant 0 : index
    %825 = vector.load %arg9[%c37, %c0_362, %c0_363] : memref<49x1x256xf32, #tpu.memory_space<vmem>>, vector<1x1x256xf32>
    %826 = vector.shape_cast %825 : vector<1x1x256xf32> to vector<1x256xf32>
    %c37_364 = arith.constant 37 : index
    %c0_365 = arith.constant 0 : index
    %c0_366 = arith.constant 0 : index
    %827 = vector.load %arg7[%c37_364, %c0_365, %c0_366] : memref<49x3x2xf32, #tpu.memory_space<vmem>>, vector<1x3x2xf32>
    %828 = vector.shape_cast %827 : vector<1x3x2xf32> to vector<3x2xf32>
    %829 = vector.extract_strided_slice %828 {offsets = [0, 0], sizes = [3, 1], strides = [1, 1]} : vector<3x2xf32> to vector<3x1xf32>
    %830 = arith.mulf %823, %826 : vector<1x256xf32>
    %831 = vector.broadcast %829 : vector<3x1xf32> to vector<3x256xf32>
    %832 = vector.broadcast %830 : vector<1x256xf32> to vector<3x256xf32>
    %833 = arith.mulf %831, %832 : vector<3x256xf32>
    %834 = arith.addf %822, %833 : vector<3x256xf32>
    %835 = vector.extract_strided_slice %828 {offsets = [0, 1], sizes = [3, 1], strides = [1, 1]} : vector<3x2xf32> to vector<3x1xf32>
    %836 = arith.mulf %824, %826 : vector<1x256xf32>
    %837 = vector.broadcast %835 : vector<3x1xf32> to vector<3x256xf32>
    %838 = vector.broadcast %836 : vector<1x256xf32> to vector<3x256xf32>
    %839 = arith.mulf %837, %838 : vector<3x256xf32>
    %840 = arith.addf %834, %839 : vector<3x256xf32>
    %c224_i32 = arith.constant 224 : i32
    %841 = tpu.dynamic_rotate %155 by %c224_i32 dim 1 : vector<1x256xf32>, i32 -> vector<1x256xf32>
    %c224_i32_367 = arith.constant 224 : i32
    %842 = tpu.dynamic_rotate %157 by %c224_i32_367 dim 1 : vector<1x256xf32>, i32 -> vector<1x256xf32>
    %c38 = arith.constant 38 : index
    %c0_368 = arith.constant 0 : index
    %c0_369 = arith.constant 0 : index
    %843 = vector.load %arg9[%c38, %c0_368, %c0_369] : memref<49x1x256xf32, #tpu.memory_space<vmem>>, vector<1x1x256xf32>
    %844 = vector.shape_cast %843 : vector<1x1x256xf32> to vector<1x256xf32>
    %c38_370 = arith.constant 38 : index
    %c0_371 = arith.constant 0 : index
    %c0_372 = arith.constant 0 : index
    %845 = vector.load %arg7[%c38_370, %c0_371, %c0_372] : memref<49x3x2xf32, #tpu.memory_space<vmem>>, vector<1x3x2xf32>
    %846 = vector.shape_cast %845 : vector<1x3x2xf32> to vector<3x2xf32>
    %847 = vector.extract_strided_slice %846 {offsets = [0, 0], sizes = [3, 1], strides = [1, 1]} : vector<3x2xf32> to vector<3x1xf32>
    %848 = arith.mulf %841, %844 : vector<1x256xf32>
    %849 = vector.broadcast %847 : vector<3x1xf32> to vector<3x256xf32>
    %850 = vector.broadcast %848 : vector<1x256xf32> to vector<3x256xf32>
    %851 = arith.mulf %849, %850 : vector<3x256xf32>
    %852 = arith.addf %840, %851 : vector<3x256xf32>
    %853 = vector.extract_strided_slice %846 {offsets = [0, 1], sizes = [3, 1], strides = [1, 1]} : vector<3x2xf32> to vector<3x1xf32>
    %854 = arith.mulf %842, %844 : vector<1x256xf32>
    %855 = vector.broadcast %853 : vector<3x1xf32> to vector<3x256xf32>
    %856 = vector.broadcast %854 : vector<1x256xf32> to vector<3x256xf32>
    %857 = arith.mulf %855, %856 : vector<3x256xf32>
    %858 = arith.addf %852, %857 : vector<3x256xf32>
    %c223_i32 = arith.constant 223 : i32
    %859 = tpu.dynamic_rotate %155 by %c223_i32 dim 1 : vector<1x256xf32>, i32 -> vector<1x256xf32>
    %c223_i32_373 = arith.constant 223 : i32
    %860 = tpu.dynamic_rotate %157 by %c223_i32_373 dim 1 : vector<1x256xf32>, i32 -> vector<1x256xf32>
    %c39 = arith.constant 39 : index
    %c0_374 = arith.constant 0 : index
    %c0_375 = arith.constant 0 : index
    %861 = vector.load %arg9[%c39, %c0_374, %c0_375] : memref<49x1x256xf32, #tpu.memory_space<vmem>>, vector<1x1x256xf32>
    %862 = vector.shape_cast %861 : vector<1x1x256xf32> to vector<1x256xf32>
    %c39_376 = arith.constant 39 : index
    %c0_377 = arith.constant 0 : index
    %c0_378 = arith.constant 0 : index
    %863 = vector.load %arg7[%c39_376, %c0_377, %c0_378] : memref<49x3x2xf32, #tpu.memory_space<vmem>>, vector<1x3x2xf32>
    %864 = vector.shape_cast %863 : vector<1x3x2xf32> to vector<3x2xf32>
    %865 = vector.extract_strided_slice %864 {offsets = [0, 0], sizes = [3, 1], strides = [1, 1]} : vector<3x2xf32> to vector<3x1xf32>
    %866 = arith.mulf %859, %862 : vector<1x256xf32>
    %867 = vector.broadcast %865 : vector<3x1xf32> to vector<3x256xf32>
    %868 = vector.broadcast %866 : vector<1x256xf32> to vector<3x256xf32>
    %869 = arith.mulf %867, %868 : vector<3x256xf32>
    %870 = arith.addf %858, %869 : vector<3x256xf32>
    %871 = vector.extract_strided_slice %864 {offsets = [0, 1], sizes = [3, 1], strides = [1, 1]} : vector<3x2xf32> to vector<3x1xf32>
    %872 = arith.mulf %860, %862 : vector<1x256xf32>
    %873 = vector.broadcast %871 : vector<3x1xf32> to vector<3x256xf32>
    %874 = vector.broadcast %872 : vector<1x256xf32> to vector<3x256xf32>
    %875 = arith.mulf %873, %874 : vector<3x256xf32>
    %876 = arith.addf %870, %875 : vector<3x256xf32>
    %c222_i32 = arith.constant 222 : i32
    %877 = tpu.dynamic_rotate %155 by %c222_i32 dim 1 : vector<1x256xf32>, i32 -> vector<1x256xf32>
    %c222_i32_379 = arith.constant 222 : i32
    %878 = tpu.dynamic_rotate %157 by %c222_i32_379 dim 1 : vector<1x256xf32>, i32 -> vector<1x256xf32>
    %c40 = arith.constant 40 : index
    %c0_380 = arith.constant 0 : index
    %c0_381 = arith.constant 0 : index
    %879 = vector.load %arg9[%c40, %c0_380, %c0_381] : memref<49x1x256xf32, #tpu.memory_space<vmem>>, vector<1x1x256xf32>
    %880 = vector.shape_cast %879 : vector<1x1x256xf32> to vector<1x256xf32>
    %c40_382 = arith.constant 40 : index
    %c0_383 = arith.constant 0 : index
    %c0_384 = arith.constant 0 : index
    %881 = vector.load %arg7[%c40_382, %c0_383, %c0_384] : memref<49x3x2xf32, #tpu.memory_space<vmem>>, vector<1x3x2xf32>
    %882 = vector.shape_cast %881 : vector<1x3x2xf32> to vector<3x2xf32>
    %883 = vector.extract_strided_slice %882 {offsets = [0, 0], sizes = [3, 1], strides = [1, 1]} : vector<3x2xf32> to vector<3x1xf32>
    %884 = arith.mulf %877, %880 : vector<1x256xf32>
    %885 = vector.broadcast %883 : vector<3x1xf32> to vector<3x256xf32>
    %886 = vector.broadcast %884 : vector<1x256xf32> to vector<3x256xf32>
    %887 = arith.mulf %885, %886 : vector<3x256xf32>
    %888 = arith.addf %876, %887 : vector<3x256xf32>
    %889 = vector.extract_strided_slice %882 {offsets = [0, 1], sizes = [3, 1], strides = [1, 1]} : vector<3x2xf32> to vector<3x1xf32>
    %890 = arith.mulf %878, %880 : vector<1x256xf32>
    %891 = vector.broadcast %889 : vector<3x1xf32> to vector<3x256xf32>
    %892 = vector.broadcast %890 : vector<1x256xf32> to vector<3x256xf32>
    %893 = arith.mulf %891, %892 : vector<3x256xf32>
    %894 = arith.addf %888, %893 : vector<3x256xf32>
    %c221_i32 = arith.constant 221 : i32
    %895 = tpu.dynamic_rotate %155 by %c221_i32 dim 1 : vector<1x256xf32>, i32 -> vector<1x256xf32>
    %c221_i32_385 = arith.constant 221 : i32
    %896 = tpu.dynamic_rotate %157 by %c221_i32_385 dim 1 : vector<1x256xf32>, i32 -> vector<1x256xf32>
    %c41 = arith.constant 41 : index
    %c0_386 = arith.constant 0 : index
    %c0_387 = arith.constant 0 : index
    %897 = vector.load %arg9[%c41, %c0_386, %c0_387] : memref<49x1x256xf32, #tpu.memory_space<vmem>>, vector<1x1x256xf32>
    %898 = vector.shape_cast %897 : vector<1x1x256xf32> to vector<1x256xf32>
    %c41_388 = arith.constant 41 : index
    %c0_389 = arith.constant 0 : index
    %c0_390 = arith.constant 0 : index
    %899 = vector.load %arg7[%c41_388, %c0_389, %c0_390] : memref<49x3x2xf32, #tpu.memory_space<vmem>>, vector<1x3x2xf32>
    %900 = vector.shape_cast %899 : vector<1x3x2xf32> to vector<3x2xf32>
    %901 = vector.extract_strided_slice %900 {offsets = [0, 0], sizes = [3, 1], strides = [1, 1]} : vector<3x2xf32> to vector<3x1xf32>
    %902 = arith.mulf %895, %898 : vector<1x256xf32>
    %903 = vector.broadcast %901 : vector<3x1xf32> to vector<3x256xf32>
    %904 = vector.broadcast %902 : vector<1x256xf32> to vector<3x256xf32>
    %905 = arith.mulf %903, %904 : vector<3x256xf32>
    %906 = arith.addf %894, %905 : vector<3x256xf32>
    %907 = vector.extract_strided_slice %900 {offsets = [0, 1], sizes = [3, 1], strides = [1, 1]} : vector<3x2xf32> to vector<3x1xf32>
    %908 = arith.mulf %896, %898 : vector<1x256xf32>
    %909 = vector.broadcast %907 : vector<3x1xf32> to vector<3x256xf32>
    %910 = vector.broadcast %908 : vector<1x256xf32> to vector<3x256xf32>
    %911 = arith.mulf %909, %910 : vector<3x256xf32>
    %912 = arith.addf %906, %911 : vector<3x256xf32>
    %c211_i32 = arith.constant 211 : i32
    %913 = tpu.dynamic_rotate %155 by %c211_i32 dim 1 : vector<1x256xf32>, i32 -> vector<1x256xf32>
    %c211_i32_391 = arith.constant 211 : i32
    %914 = tpu.dynamic_rotate %157 by %c211_i32_391 dim 1 : vector<1x256xf32>, i32 -> vector<1x256xf32>
    %c42 = arith.constant 42 : index
    %c0_392 = arith.constant 0 : index
    %c0_393 = arith.constant 0 : index
    %915 = vector.load %arg9[%c42, %c0_392, %c0_393] : memref<49x1x256xf32, #tpu.memory_space<vmem>>, vector<1x1x256xf32>
    %916 = vector.shape_cast %915 : vector<1x1x256xf32> to vector<1x256xf32>
    %c42_394 = arith.constant 42 : index
    %c0_395 = arith.constant 0 : index
    %c0_396 = arith.constant 0 : index
    %917 = vector.load %arg7[%c42_394, %c0_395, %c0_396] : memref<49x3x2xf32, #tpu.memory_space<vmem>>, vector<1x3x2xf32>
    %918 = vector.shape_cast %917 : vector<1x3x2xf32> to vector<3x2xf32>
    %919 = vector.extract_strided_slice %918 {offsets = [0, 0], sizes = [3, 1], strides = [1, 1]} : vector<3x2xf32> to vector<3x1xf32>
    %920 = arith.mulf %913, %916 : vector<1x256xf32>
    %921 = vector.broadcast %919 : vector<3x1xf32> to vector<3x256xf32>
    %922 = vector.broadcast %920 : vector<1x256xf32> to vector<3x256xf32>
    %923 = arith.mulf %921, %922 : vector<3x256xf32>
    %924 = arith.addf %912, %923 : vector<3x256xf32>
    %925 = vector.extract_strided_slice %918 {offsets = [0, 1], sizes = [3, 1], strides = [1, 1]} : vector<3x2xf32> to vector<3x1xf32>
    %926 = arith.mulf %914, %916 : vector<1x256xf32>
    %927 = vector.broadcast %925 : vector<3x1xf32> to vector<3x256xf32>
    %928 = vector.broadcast %926 : vector<1x256xf32> to vector<3x256xf32>
    %929 = arith.mulf %927, %928 : vector<3x256xf32>
    %930 = arith.addf %924, %929 : vector<3x256xf32>
    %c210_i32 = arith.constant 210 : i32
    %931 = tpu.dynamic_rotate %155 by %c210_i32 dim 1 : vector<1x256xf32>, i32 -> vector<1x256xf32>
    %c210_i32_397 = arith.constant 210 : i32
    %932 = tpu.dynamic_rotate %157 by %c210_i32_397 dim 1 : vector<1x256xf32>, i32 -> vector<1x256xf32>
    %c43 = arith.constant 43 : index
    %c0_398 = arith.constant 0 : index
    %c0_399 = arith.constant 0 : index
    %933 = vector.load %arg9[%c43, %c0_398, %c0_399] : memref<49x1x256xf32, #tpu.memory_space<vmem>>, vector<1x1x256xf32>
    %934 = vector.shape_cast %933 : vector<1x1x256xf32> to vector<1x256xf32>
    %c43_400 = arith.constant 43 : index
    %c0_401 = arith.constant 0 : index
    %c0_402 = arith.constant 0 : index
    %935 = vector.load %arg7[%c43_400, %c0_401, %c0_402] : memref<49x3x2xf32, #tpu.memory_space<vmem>>, vector<1x3x2xf32>
    %936 = vector.shape_cast %935 : vector<1x3x2xf32> to vector<3x2xf32>
    %937 = vector.extract_strided_slice %936 {offsets = [0, 0], sizes = [3, 1], strides = [1, 1]} : vector<3x2xf32> to vector<3x1xf32>
    %938 = arith.mulf %931, %934 : vector<1x256xf32>
    %939 = vector.broadcast %937 : vector<3x1xf32> to vector<3x256xf32>
    %940 = vector.broadcast %938 : vector<1x256xf32> to vector<3x256xf32>
    %941 = arith.mulf %939, %940 : vector<3x256xf32>
    %942 = arith.addf %930, %941 : vector<3x256xf32>
    %943 = vector.extract_strided_slice %936 {offsets = [0, 1], sizes = [3, 1], strides = [1, 1]} : vector<3x2xf32> to vector<3x1xf32>
    %944 = arith.mulf %932, %934 : vector<1x256xf32>
    %945 = vector.broadcast %943 : vector<3x1xf32> to vector<3x256xf32>
    %946 = vector.broadcast %944 : vector<1x256xf32> to vector<3x256xf32>
    %947 = arith.mulf %945, %946 : vector<3x256xf32>
    %948 = arith.addf %942, %947 : vector<3x256xf32>
    %c209_i32 = arith.constant 209 : i32
    %949 = tpu.dynamic_rotate %155 by %c209_i32 dim 1 : vector<1x256xf32>, i32 -> vector<1x256xf32>
    %c209_i32_403 = arith.constant 209 : i32
    %950 = tpu.dynamic_rotate %157 by %c209_i32_403 dim 1 : vector<1x256xf32>, i32 -> vector<1x256xf32>
    %c44 = arith.constant 44 : index
    %c0_404 = arith.constant 0 : index
    %c0_405 = arith.constant 0 : index
    %951 = vector.load %arg9[%c44, %c0_404, %c0_405] : memref<49x1x256xf32, #tpu.memory_space<vmem>>, vector<1x1x256xf32>
    %952 = vector.shape_cast %951 : vector<1x1x256xf32> to vector<1x256xf32>
    %c44_406 = arith.constant 44 : index
    %c0_407 = arith.constant 0 : index
    %c0_408 = arith.constant 0 : index
    %953 = vector.load %arg7[%c44_406, %c0_407, %c0_408] : memref<49x3x2xf32, #tpu.memory_space<vmem>>, vector<1x3x2xf32>
    %954 = vector.shape_cast %953 : vector<1x3x2xf32> to vector<3x2xf32>
    %955 = vector.extract_strided_slice %954 {offsets = [0, 0], sizes = [3, 1], strides = [1, 1]} : vector<3x2xf32> to vector<3x1xf32>
    %956 = arith.mulf %949, %952 : vector<1x256xf32>
    %957 = vector.broadcast %955 : vector<3x1xf32> to vector<3x256xf32>
    %958 = vector.broadcast %956 : vector<1x256xf32> to vector<3x256xf32>
    %959 = arith.mulf %957, %958 : vector<3x256xf32>
    %960 = arith.addf %948, %959 : vector<3x256xf32>
    %961 = vector.extract_strided_slice %954 {offsets = [0, 1], sizes = [3, 1], strides = [1, 1]} : vector<3x2xf32> to vector<3x1xf32>
    %962 = arith.mulf %950, %952 : vector<1x256xf32>
    %963 = vector.broadcast %961 : vector<3x1xf32> to vector<3x256xf32>
    %964 = vector.broadcast %962 : vector<1x256xf32> to vector<3x256xf32>
    %965 = arith.mulf %963, %964 : vector<3x256xf32>
    %966 = arith.addf %960, %965 : vector<3x256xf32>
    %c208_i32 = arith.constant 208 : i32
    %967 = tpu.dynamic_rotate %155 by %c208_i32 dim 1 : vector<1x256xf32>, i32 -> vector<1x256xf32>
    %c208_i32_409 = arith.constant 208 : i32
    %968 = tpu.dynamic_rotate %157 by %c208_i32_409 dim 1 : vector<1x256xf32>, i32 -> vector<1x256xf32>
    %c45 = arith.constant 45 : index
    %c0_410 = arith.constant 0 : index
    %c0_411 = arith.constant 0 : index
    %969 = vector.load %arg9[%c45, %c0_410, %c0_411] : memref<49x1x256xf32, #tpu.memory_space<vmem>>, vector<1x1x256xf32>
    %970 = vector.shape_cast %969 : vector<1x1x256xf32> to vector<1x256xf32>
    %c45_412 = arith.constant 45 : index
    %c0_413 = arith.constant 0 : index
    %c0_414 = arith.constant 0 : index
    %971 = vector.load %arg7[%c45_412, %c0_413, %c0_414] : memref<49x3x2xf32, #tpu.memory_space<vmem>>, vector<1x3x2xf32>
    %972 = vector.shape_cast %971 : vector<1x3x2xf32> to vector<3x2xf32>
    %973 = vector.extract_strided_slice %972 {offsets = [0, 0], sizes = [3, 1], strides = [1, 1]} : vector<3x2xf32> to vector<3x1xf32>
    %974 = arith.mulf %967, %970 : vector<1x256xf32>
    %975 = vector.broadcast %973 : vector<3x1xf32> to vector<3x256xf32>
    %976 = vector.broadcast %974 : vector<1x256xf32> to vector<3x256xf32>
    %977 = arith.mulf %975, %976 : vector<3x256xf32>
    %978 = arith.addf %966, %977 : vector<3x256xf32>
    %979 = vector.extract_strided_slice %972 {offsets = [0, 1], sizes = [3, 1], strides = [1, 1]} : vector<3x2xf32> to vector<3x1xf32>
    %980 = arith.mulf %968, %970 : vector<1x256xf32>
    %981 = vector.broadcast %979 : vector<3x1xf32> to vector<3x256xf32>
    %982 = vector.broadcast %980 : vector<1x256xf32> to vector<3x256xf32>
    %983 = arith.mulf %981, %982 : vector<3x256xf32>
    %984 = arith.addf %978, %983 : vector<3x256xf32>
    %c207_i32 = arith.constant 207 : i32
    %985 = tpu.dynamic_rotate %155 by %c207_i32 dim 1 : vector<1x256xf32>, i32 -> vector<1x256xf32>
    %c207_i32_415 = arith.constant 207 : i32
    %986 = tpu.dynamic_rotate %157 by %c207_i32_415 dim 1 : vector<1x256xf32>, i32 -> vector<1x256xf32>
    %c46 = arith.constant 46 : index
    %c0_416 = arith.constant 0 : index
    %c0_417 = arith.constant 0 : index
    %987 = vector.load %arg9[%c46, %c0_416, %c0_417] : memref<49x1x256xf32, #tpu.memory_space<vmem>>, vector<1x1x256xf32>
    %988 = vector.shape_cast %987 : vector<1x1x256xf32> to vector<1x256xf32>
    %c46_418 = arith.constant 46 : index
    %c0_419 = arith.constant 0 : index
    %c0_420 = arith.constant 0 : index
    %989 = vector.load %arg7[%c46_418, %c0_419, %c0_420] : memref<49x3x2xf32, #tpu.memory_space<vmem>>, vector<1x3x2xf32>
    %990 = vector.shape_cast %989 : vector<1x3x2xf32> to vector<3x2xf32>
    %991 = vector.extract_strided_slice %990 {offsets = [0, 0], sizes = [3, 1], strides = [1, 1]} : vector<3x2xf32> to vector<3x1xf32>
    %992 = arith.mulf %985, %988 : vector<1x256xf32>
    %993 = vector.broadcast %991 : vector<3x1xf32> to vector<3x256xf32>
    %994 = vector.broadcast %992 : vector<1x256xf32> to vector<3x256xf32>
    %995 = arith.mulf %993, %994 : vector<3x256xf32>
    %996 = arith.addf %984, %995 : vector<3x256xf32>
    %997 = vector.extract_strided_slice %990 {offsets = [0, 1], sizes = [3, 1], strides = [1, 1]} : vector<3x2xf32> to vector<3x1xf32>
    %998 = arith.mulf %986, %988 : vector<1x256xf32>
    %999 = vector.broadcast %997 : vector<3x1xf32> to vector<3x256xf32>
    %1000 = vector.broadcast %998 : vector<1x256xf32> to vector<3x256xf32>
    %1001 = arith.mulf %999, %1000 : vector<3x256xf32>
    %1002 = arith.addf %996, %1001 : vector<3x256xf32>
    %c206_i32 = arith.constant 206 : i32
    %1003 = tpu.dynamic_rotate %155 by %c206_i32 dim 1 : vector<1x256xf32>, i32 -> vector<1x256xf32>
    %c206_i32_421 = arith.constant 206 : i32
    %1004 = tpu.dynamic_rotate %157 by %c206_i32_421 dim 1 : vector<1x256xf32>, i32 -> vector<1x256xf32>
    %c47 = arith.constant 47 : index
    %c0_422 = arith.constant 0 : index
    %c0_423 = arith.constant 0 : index
    %1005 = vector.load %arg9[%c47, %c0_422, %c0_423] : memref<49x1x256xf32, #tpu.memory_space<vmem>>, vector<1x1x256xf32>
    %1006 = vector.shape_cast %1005 : vector<1x1x256xf32> to vector<1x256xf32>
    %c47_424 = arith.constant 47 : index
    %c0_425 = arith.constant 0 : index
    %c0_426 = arith.constant 0 : index
    %1007 = vector.load %arg7[%c47_424, %c0_425, %c0_426] : memref<49x3x2xf32, #tpu.memory_space<vmem>>, vector<1x3x2xf32>
    %1008 = vector.shape_cast %1007 : vector<1x3x2xf32> to vector<3x2xf32>
    %1009 = vector.extract_strided_slice %1008 {offsets = [0, 0], sizes = [3, 1], strides = [1, 1]} : vector<3x2xf32> to vector<3x1xf32>
    %1010 = arith.mulf %1003, %1006 : vector<1x256xf32>
    %1011 = vector.broadcast %1009 : vector<3x1xf32> to vector<3x256xf32>
    %1012 = vector.broadcast %1010 : vector<1x256xf32> to vector<3x256xf32>
    %1013 = arith.mulf %1011, %1012 : vector<3x256xf32>
    %1014 = arith.addf %1002, %1013 : vector<3x256xf32>
    %1015 = vector.extract_strided_slice %1008 {offsets = [0, 1], sizes = [3, 1], strides = [1, 1]} : vector<3x2xf32> to vector<3x1xf32>
    %1016 = arith.mulf %1004, %1006 : vector<1x256xf32>
    %1017 = vector.broadcast %1015 : vector<3x1xf32> to vector<3x256xf32>
    %1018 = vector.broadcast %1016 : vector<1x256xf32> to vector<3x256xf32>
    %1019 = arith.mulf %1017, %1018 : vector<3x256xf32>
    %1020 = arith.addf %1014, %1019 : vector<3x256xf32>
    %c205_i32 = arith.constant 205 : i32
    %1021 = tpu.dynamic_rotate %155 by %c205_i32 dim 1 : vector<1x256xf32>, i32 -> vector<1x256xf32>
    %c205_i32_427 = arith.constant 205 : i32
    %1022 = tpu.dynamic_rotate %157 by %c205_i32_427 dim 1 : vector<1x256xf32>, i32 -> vector<1x256xf32>
    %c48 = arith.constant 48 : index
    %c0_428 = arith.constant 0 : index
    %c0_429 = arith.constant 0 : index
    %1023 = vector.load %arg9[%c48, %c0_428, %c0_429] : memref<49x1x256xf32, #tpu.memory_space<vmem>>, vector<1x1x256xf32>
    %1024 = vector.shape_cast %1023 : vector<1x1x256xf32> to vector<1x256xf32>
    %c48_430 = arith.constant 48 : index
    %c0_431 = arith.constant 0 : index
    %c0_432 = arith.constant 0 : index
    %1025 = vector.load %arg7[%c48_430, %c0_431, %c0_432] : memref<49x3x2xf32, #tpu.memory_space<vmem>>, vector<1x3x2xf32>
    %1026 = vector.shape_cast %1025 : vector<1x3x2xf32> to vector<3x2xf32>
    %1027 = vector.extract_strided_slice %1026 {offsets = [0, 0], sizes = [3, 1], strides = [1, 1]} : vector<3x2xf32> to vector<3x1xf32>
    %1028 = arith.mulf %1021, %1024 : vector<1x256xf32>
    %1029 = vector.broadcast %1027 : vector<3x1xf32> to vector<3x256xf32>
    %1030 = vector.broadcast %1028 : vector<1x256xf32> to vector<3x256xf32>
    %1031 = arith.mulf %1029, %1030 : vector<3x256xf32>
    %1032 = arith.addf %1020, %1031 : vector<3x256xf32>
    %1033 = vector.extract_strided_slice %1026 {offsets = [0, 1], sizes = [3, 1], strides = [1, 1]} : vector<3x2xf32> to vector<3x1xf32>
    %1034 = arith.mulf %1022, %1024 : vector<1x256xf32>
    %1035 = vector.broadcast %1033 : vector<3x1xf32> to vector<3x256xf32>
    %1036 = vector.broadcast %1034 : vector<1x256xf32> to vector<3x256xf32>
    %1037 = arith.mulf %1035, %1036 : vector<3x256xf32>
    %1038 = arith.addf %1032, %1037 : vector<3x256xf32>
    %1039 = vector.extract_strided_slice %1038 {offsets = [0, 0], sizes = [1, 256], strides = [1, 1]} : vector<3x256xf32> to vector<1x256xf32>
    %c0_433 = arith.constant 0 : index
    %1040 = memref.load %arg10[%c0_433] : memref<7xf32, #tpu.memory_space<smem>>
    %1041 = vector.broadcast %1040 : f32 to vector<1x256xf32>
    %1042 = arith.addf %1039, %1041 : vector<1x256xf32>
    %cst_434 = arith.constant 0.000000e+00 : f32
    %1043 = vector.broadcast %cst_434 : f32 to vector<1x256xf32>
    %1044 = arith.maximumf %1042, %1043 : vector<1x256xf32>
    %1045 = vector.extract_strided_slice %1038 {offsets = [1, 0], sizes = [1, 256], strides = [1, 1]} : vector<3x256xf32> to vector<1x256xf32>
    %c1_435 = arith.constant 1 : index
    %1046 = memref.load %arg10[%c1_435] : memref<7xf32, #tpu.memory_space<smem>>
    %1047 = vector.broadcast %1046 : f32 to vector<1x256xf32>
    %1048 = arith.addf %1045, %1047 : vector<1x256xf32>
    %cst_436 = arith.constant 0.000000e+00 : f32
    %1049 = vector.broadcast %cst_436 : f32 to vector<1x256xf32>
    %1050 = arith.maximumf %1048, %1049 : vector<1x256xf32>
    %1051 = vector.extract_strided_slice %1038 {offsets = [2, 0], sizes = [1, 256], strides = [1, 1]} : vector<3x256xf32> to vector<1x256xf32>
    %c2_437 = arith.constant 2 : index
    %1052 = memref.load %arg10[%c2_437] : memref<7xf32, #tpu.memory_space<smem>>
    %1053 = vector.broadcast %1052 : f32 to vector<1x256xf32>
    %1054 = arith.addf %1051, %1053 : vector<1x256xf32>
    %cst_438 = arith.constant 0.000000e+00 : f32
    %1055 = vector.broadcast %cst_438 : f32 to vector<1x256xf32>
    %1056 = arith.maximumf %1054, %1055 : vector<1x256xf32>
    %c3_439 = arith.constant 3 : index
    %1057 = memref.load %arg10[%c3_439] : memref<7xf32, #tpu.memory_space<smem>>
    %1058 = vector.broadcast %1057 : f32 to vector<1x256xf32>
    %1059 = arith.mulf %1058, %1044 : vector<1x256xf32>
    %c4_440 = arith.constant 4 : index
    %1060 = memref.load %arg10[%c4_440] : memref<7xf32, #tpu.memory_space<smem>>
    %1061 = vector.broadcast %1060 : f32 to vector<1x256xf32>
    %1062 = arith.mulf %1061, %1050 : vector<1x256xf32>
    %1063 = arith.addf %1059, %1062 : vector<1x256xf32>
    %c5_441 = arith.constant 5 : index
    %1064 = memref.load %arg10[%c5_441] : memref<7xf32, #tpu.memory_space<smem>>
    %1065 = vector.broadcast %1064 : f32 to vector<1x256xf32>
    %1066 = arith.mulf %1065, %1056 : vector<1x256xf32>
    %1067 = arith.addf %1063, %1066 : vector<1x256xf32>
    %c6_442 = arith.constant 6 : index
    %1068 = memref.load %arg10[%c6_442] : memref<7xf32, #tpu.memory_space<smem>>
    %1069 = vector.broadcast %1068 : f32 to vector<1x256xf32>
    %1070 = arith.addf %1067, %1069 : vector<1x256xf32>
    %cst_443 = arith.constant 0.000000e+00 : f32
    %1071 = vector.broadcast %cst_443 : f32 to vector<1x256xf32>
    %1072 = arith.subf %1071, %1070 : vector<1x256xf32>
    %1073 = math.exp %1072 : vector<1x256xf32>
    %cst_444 = arith.constant 1.000000e+00 : f32
    %1074 = vector.broadcast %cst_444 : f32 to vector<1x256xf32>
    %1075 = arith.addf %1074, %1073 : vector<1x256xf32>
    %cst_445 = arith.constant 1.000000e+00 : f32
    %1076 = vector.broadcast %cst_445 : f32 to vector<1x256xf32>
    %1077 = arith.divf %1076, %1075 : vector<1x256xf32>
    %1078 = vector.broadcast %1077 : vector<1x256xf32> to vector<32x256xf32>
    %1079 = arith.mulf %151, %1078 : vector<32x256xf32>
    %1080 = arith.addf %1079, %1 : vector<32x256xf32>
    %cst_446 = arith.constant 0.000000e+00 : f32
    %1081 = vector.broadcast %cst_446 : f32 to vector<32x256xf32>
    %1082 = arith.maximumf %1080, %1081 : vector<32x256xf32>
    %c0_447 = arith.constant 0 : index
    %c0_448 = arith.constant 0 : index
    %c0_449 = arith.constant 0 : index
    %1083 = vector.load %arg11[%c0_447, %c0_448, %c0_449] : memref<1x32x256xf32, #tpu.memory_space<vmem>>, vector<1x32x256xf32>
    %1084 = vector.shape_cast %1083 : vector<1x32x256xf32> to vector<32x256xf32>
    %1085 = vector.shape_cast %1082 : vector<32x256xf32> to vector<1x32x256xf32>
    tpu.vector_store %arg11[%c0_447, %c0_448, %c0_449], %1085 {strides = array<i32>} : memref<1x32x256xf32, #tpu.memory_space<vmem>>, vector<1x32x256xf32>,
    return
  }
  func.func @transform_0(%arg0: i32) -> (i32, i32, i32) {
    %c0_i32 = arith.constant 0 : i32
    %c0_i32_0 = arith.constant 0 : i32
    %c0_i32_1 = arith.constant 0 : i32
    return %arg0, %c0_i32, %c0_i32_0 : i32, i32, i32
  }
  func.func @transform_1(%arg0: i32) -> (i32, i32) {
    %c0_i32 = arith.constant 0 : i32
    %c0_i32_0 = arith.constant 0 : i32
    %c0_i32_1 = arith.constant 0 : i32
    return %c0_i32, %c0_i32_0 : i32, i32
  }
  func.func @transform_2(%arg0: i32) -> (i32, i32) {
    %c0_i32 = arith.constant 0 : i32
    %c0_i32_0 = arith.constant 0 : i32
    %c0_i32_1 = arith.constant 0 : i32
    return %c0_i32, %c0_i32_0 : i32, i32
  }
  func.func @transform_3(%arg0: i32) -> (i32, i32, i32) {
    %c0_i32 = arith.constant 0 : i32
    %c0_i32_0 = arith.constant 0 : i32
    %c0_i32_1 = arith.constant 0 : i32
    %c0_i32_2 = arith.constant 0 : i32
    return %c0_i32, %c0_i32_0, %c0_i32_1 : i32, i32, i32
  }
  func.func @transform_4(%arg0: i32) -> (i32, i32) {
    %c0_i32 = arith.constant 0 : i32
    %c0_i32_0 = arith.constant 0 : i32
    %c0_i32_1 = arith.constant 0 : i32
    return %c0_i32, %c0_i32_0 : i32, i32
  }
  func.func @transform_5(%arg0: i32) -> (i32, i32) {
    %c0_i32 = arith.constant 0 : i32
    %c0_i32_0 = arith.constant 0 : i32
    %c0_i32_1 = arith.constant 0 : i32
    return %c0_i32, %c0_i32_0 : i32, i32
  }
  func.func @transform_6(%arg0: i32) -> (i32, i32, i32) {
    %c0_i32 = arith.constant 0 : i32
    %c0_i32_0 = arith.constant 0 : i32
    %c0_i32_1 = arith.constant 0 : i32
    %c0_i32_2 = arith.constant 0 : i32
    return %c0_i32, %c0_i32_0, %c0_i32_1 : i32, i32, i32
  }
  func.func @transform_7(%arg0: i32) -> (i32, i32, i32) {
    %c0_i32 = arith.constant 0 : i32
    %c0_i32_0 = arith.constant 0 : i32
    %c0_i32_1 = arith.constant 0 : i32
    %c0_i32_2 = arith.constant 0 : i32
    return %c0_i32, %c0_i32_0, %c0_i32_1 : i32, i32, i32
  }
  func.func @transform_8(%arg0: i32) -> (i32, i32, i32) {
    %c0_i32 = arith.constant 0 : i32
    %c0_i32_0 = arith.constant 0 : i32
    %c0_i32_1 = arith.constant 0 : i32
    %c0_i32_2 = arith.constant 0 : i32
    return %c0_i32, %c0_i32_0, %c0_i32_1 : i32, i32, i32
  }
  func.func @transform_9(%arg0: i32) -> i32 {
    %c0_i32 = arith.constant 0 : i32
    %c0_i32_0 = arith.constant 0 : i32
    return %c0_i32 : i32
  }
  func.func @transform_10(%arg0: i32) -> (i32, i32, i32) {
    %c0_i32 = arith.constant 0 : i32
    %c0_i32_0 = arith.constant 0 : i32
    %c0_i32_1 = arith.constant 0 : i32
    return %arg0, %c0_i32, %c0_i32_0 : i32, i32, i32
  }
}

</mosaic_0001>

<llo_original>
// kernel: tpu_custom_call.1
$region0: #{tpu_custom_call.1}
  #allocation0 [shape = 'u32[]', space=smem, size = 0x4, offset = 0x4, fixed_abs, tag = 'smem constant byte address 0x4 - core index']
  #allocation1 [shape = 'u32[72,128]{1,0:T(1,128)}', space=vmem, size = 0x9000, scoped, tag = 'internal scratch']
  #allocation2 [shape = 'f32[288,256]{1,0:T(8,128)}', space=vmem, size = 0x48000, scoped, tag = 'scratch operand']
  %s0 = inlined_call_operand.vmem [shape: f32[2,32,256], index: 0, kind: input, shape index: {}]
  %s1 = inlined_call_operand.vmem [shape: f32[32,288], index: 1, kind: input, shape index: {}]
  %s2 = inlined_call_operand.hbm [shape: f32[32,288], index: 2, kind: input, shape index: {}]
  %s3 = inlined_call_operand.vmem [shape: f32[4,32,1], index: 3, kind: input, shape index: {}]
  %s4 = inlined_call_operand.vmem [shape: f32[2,32], index: 4, kind: input, shape index: {}]
  %s5 = inlined_call_operand.vmem [shape: f32[32,2], index: 5, kind: input, shape index: {}]
  %s6 = inlined_call_operand.vmem [shape: f32[49,3,2], index: 6, kind: input, shape index: {}]
  %s7 = inlined_call_operand.vmem [shape: f32[9,1,256], index: 7, kind: input, shape index: {}]
  %s8 = inlined_call_operand.vmem [shape: f32[49,1,256], index: 8, kind: input, shape index: {}]
  %s9 = inlined_call_operand.vmem [shape: f32[7], index: 9, kind: input, shape index: {}]
  %s10 = inlined_call_operand.hbm [shape: f32[2,32,256], index: 10, kind: output, shape index: {}]
  %s11 = sld [smem:[#allocation0]]
  $region81: #{tpu_custom_call.1} parent=0
    _
  %s13 = ssub.s32 1, %s11
  %s14 = scalar_select 0, %s13, %s11
  $region1: #{tpu_custom_call.1} parent=0
    #allocation3 [shape = 'u8[49152]{0}', space=vmem, size = 0xc000, scoped, tag = 'input window, operand 2, single buffered']
    #allocation4 [shape = 's32[2]{0}', space=sflag, size = 0x8, scoped, tag = 'scoped memory for tpu_custom_call.1']
    #allocation5 [shape = 's32[2]{0}', space=sflag, size = 0x8, scoped, tag = 'scoped memory for tpu_custom_call.1']
    #allocation6 [shape = 's32[2]{0}', space=sflag, size = 0x8, scoped, tag = 'scoped memory for tpu_custom_call.1']
    #allocation7 [shape = 'u8[512]{0}', space=smem, size = 0x200, scoped, tag = 'input window, operand 9, single buffered']
    #allocation8 [shape = 'u8[65536]{0}', space=vmem, size = 0x10000, scoped, tag = 'output window, operand 0']
    %15 = vsyncpa [#allocation4], 0
    %16 = vsyncpa [#allocation6], 0
    %17 = vsyncpa [#allocation5], 0
    %s18 = scalar_lea.sflag [#allocation5], 1
    %19 = vsyncpa %s18, 0
    loop: start=0, step=1, limit=4
    $region2: #{tpu_custom_call.1} parent=1 // loop_pre_header
      _
    $region3: #{tpu_custom_call.1} parent=1 // loop_header
      %s21 = sphi 0, %s25
      %p22 = scmp.ge.s32.totalorder %s21, 4
      %s31 = sphi 0, %s33
      %s34 = sphi 0, %s31
      %s35 = sphi 0, %s34
      %s51 = sphi 0, %s35
      %s55 = sphi 0, %s55
      %s57 = sphi 0, %s55
      %s58 = sphi 0, %s57
      %s72 = sphi 0, %s58
      %s76 = sphi 0, %s76
      %s78 = sphi 0, %s76
      %s79 = sphi 0, %s78
      %s93 = sphi 0, %s79
      %s97 = sphi 0, %s97
      %s99 = sphi 0, %s97
      %s100 = sphi 0, %s99
      %s114 = sphi 0, %s100
      %s118 = sphi 0, %s118
      %s120 = sphi 0, %s118
      %s121 = sphi 0, %s120
      %s135 = sphi 0, %s121
      %s139 = sphi 0, %s139
      %s141 = sphi 0, %s139
      %s142 = sphi 0, %s141
      %s156 = sphi 0, %s142
      %s160 = sphi 0, %s160
      %s162 = sphi 0, %s160
      %s163 = sphi 0, %s162
      %s177 = sphi 0, %s163
      %s181 = sphi 0, %s181
      %s183 = sphi 0, %s181
      %s184 = sphi 0, %s183
      %s198 = sphi 0, %s184
      %s202 = sphi 0, %s202
      %s204 = sphi 0, %s202
      %s205 = sphi 0, %s204
      %s219 = sphi 0, %s205
      %s223 = sphi 0, %s223
      %s225 = sphi 0, %s223
      %s226 = sphi 0, %s225
      %s240 = sphi 0, %s226
      %s246 = sphi 0, %s248
      %s249 = sphi 0, %s246
      %s250 = sphi 0, %s249
      %s266 = sphi 0, %s250
    $region4: #{tpu_custom_call.1} parent=1 // loop_header_branch
      %24 = sbr.rel (%p22) target = $region8
    $region5: #{tpu_custom_call.1} parent=1 // loop_body
      %s26 = ssub.s32 %s21, 1
      %s27 = ssub.s32 %s21, 2
      %s28 = sadd.s32 %s21, 1
      %s29 = ssub.s32 %s21, %s28
      %p30 = scmp.eq.s32.totalorder %s29, 0
      %s32 = sadd.s32 %s31, 1
      %s33 = scalar_select %p30, %s31, %s32
      %p36 = pneg %p30
      %p37 = scmp.eq.s32.totalorder %s21, 1
      %p38 = por %p36, %p37
      %p39 = scmp.ne.s32.totalorder %s31, %s34
      %p40 = scmp.eq.s32.totalorder %s21, 0
      %p41 = por %p39, %p40
      %p42 = scmp.ne.s32.totalorder %s31, %s34
      %p43 = scmp.eq.s32.totalorder %s26, 1
      %p44 = por %p42, %p43
      %p45 = scmp.ne.s32.totalorder %s34, %s35
      %p46 = scmp.eq.s32.totalorder %s26, 0
      %p47 = por %p45, %p46
      %p48 = scmp.ne.s32.totalorder %s34, %s35
      %p49 = scmp.eq.s32.totalorder %s27, 1
      %p50 = por %p48, %p49
      %p52 = scmp.ne.s32.totalorder %s35, %s51
      %p53 = scmp.eq.s32.totalorder %s27, 0
      %p54 = por %p52, %p53
      %s56 = sadd.s32 %s55, 1
      %p59 = scmp.eq.s32.totalorder %s21, 1
      %p60 = scmp.ne.s32.totalorder %s55, %s57
      %p61 = scmp.eq.s32.totalorder %s21, 0
      %p62 = por %p60, %p61
      %p63 = scmp.ne.s32.totalorder %s55, %s57
      %p64 = scmp.eq.s32.totalorder %s26, 1
      %p65 = por %p63, %p64
      %p66 = scmp.ne.s32.totalorder %s57, %s58
      %p67 = scmp.eq.s32.totalorder %s26, 0
      %p68 = por %p66, %p67
      %p69 = scmp.ne.s32.totalorder %s57, %s58
      %p70 = scmp.eq.s32.totalorder %s27, 1
      %p71 = por %p69, %p70
      %p73 = scmp.ne.s32.totalorder %s58, %s72
      %p74 = scmp.eq.s32.totalorder %s27, 0
      %p75 = por %p73, %p74
      %s77 = sadd.s32 %s76, 1
      %p80 = scmp.eq.s32.totalorder %s21, 1
      %p81 = scmp.ne.s32.totalorder %s76, %s78
      %p82 = scmp.eq.s32.totalorder %s21, 0
      %p83 = por %p81, %p82
      %p84 = scmp.ne.s32.totalorder %s76, %s78
      %p85 = scmp.eq.s32.totalorder %s26, 1
      %p86 = por %p84, %p85
      %p87 = scmp.ne.s32.totalorder %s78, %s79
      %p88 = scmp.eq.s32.totalorder %s26, 0
      %p89 = por %p87, %p88
      %p90 = scmp.ne.s32.totalorder %s78, %s79
      %p91 = scmp.eq.s32.totalorder %s27, 1
      %p92 = por %p90, %p91
      %p94 = scmp.ne.s32.totalorder %s79, %s93
      %p95 = scmp.eq.s32.totalorder %s27, 0
      %p96 = por %p94, %p95
      %s98 = sadd.s32 %s97, 1
      %p101 = scmp.eq.s32.totalorder %s21, 1
      %p102 = scmp.ne.s32.totalorder %s97, %s99
      %p103 = scmp.eq.s32.totalorder %s21, 0
      %p104 = por %p102, %p103
      %p105 = scmp.ne.s32.totalorder %s97, %s99
      %p106 = scmp.eq.s32.totalorder %s26, 1
      %p107 = por %p105, %p106
      %p108 = scmp.ne.s32.totalorder %s99, %s100
      %p109 = scmp.eq.s32.totalorder %s26, 0
      %p110 = por %p108, %p109
      %p111 = scmp.ne.s32.totalorder %s99, %s100
      %p112 = scmp.eq.s32.totalorder %s27, 1
      %p113 = por %p111, %p112
      %p115 = scmp.ne.s32.totalorder %s100, %s114
      %p116 = scmp.eq.s32.totalorder %s27, 0
      %p117 = por %p115, %p116
      %s119 = sadd.s32 %s118, 1
      %p122 = scmp.eq.s32.totalorder %s21, 1
      %p123 = scmp.ne.s32.totalorder %s118, %s120
      %p124 = scmp.eq.s32.totalorder %s21, 0
      %p125 = por %p123, %p124
      %p126 = scmp.ne.s32.totalorder %s118, %s120
      %p127 = scmp.eq.s32.totalorder %s26, 1
      %p128 = por %p126, %p127
      %p129 = scmp.ne.s32.totalorder %s120, %s121
      %p130 = scmp.eq.s32.totalorder %s26, 0
      %p131 = por %p129, %p130
      %p132 = scmp.ne.s32.totalorder %s120, %s121
      %p133 = scmp.eq.s32.totalorder %s27, 1
      %p134 = por %p132, %p133
      %p136 = scmp.ne.s32.totalorder %s121, %s135
      %p137 = scmp.eq.s32.totalorder %s27, 0
      %p138 = por %p136, %p137
      %s140 = sadd.s32 %s139, 1
      %p143 = scmp.eq.s32.totalorder %s21, 1
      %p144 = scmp.ne.s32.totalorder %s139, %s141
      %p145 = scmp.eq.s32.totalorder %s21, 0
      %p146 = por %p144, %p145
      %p147 = scmp.ne.s32.totalorder %s139, %s141
      %p148 = scmp.eq.s32.totalorder %s26, 1
      %p149 = por %p147, %p148
      %p150 = scmp.ne.s32.totalorder %s141, %s142
      %p151 = scmp.eq.s32.totalorder %s26, 0
      %p152 = por %p150, %p151
      %p153 = scmp.ne.s32.totalorder %s141, %s142
      %p154 = scmp.eq.s32.totalorder %s27, 1
      %p155 = por %p153, %p154
      %p157 = scmp.ne.s32.totalorder %s142, %s156
      %p158 = scmp.eq.s32.totalorder %s27, 0
      %p159 = por %p157, %p158
      %s161 = sadd.s32 %s160, 1
      %p164 = scmp.eq.s32.totalorder %s21, 1
      %p165 = scmp.ne.s32.totalorder %s160, %s162
      %p166 = scmp.eq.s32.totalorder %s21, 0
      %p167 = por %p165, %p166
      %p168 = scmp.ne.s32.totalorder %s160, %s162
      %p169 = scmp.eq.s32.totalorder %s26, 1
      %p170 = por %p168, %p169
      %p171 = scmp.ne.s32.totalorder %s162, %s163
      %p172 = scmp.eq.s32.totalorder %s26, 0
      %p173 = por %p171, %p172
      %p174 = scmp.ne.s32.totalorder %s162, %s163
      %p175 = scmp.eq.s32.totalorder %s27, 1
      %p176 = por %p174, %p175
      %p178 = scmp.ne.s32.totalorder %s163, %s177
      %p179 = scmp.eq.s32.totalorder %s27, 0
      %p180 = por %p178, %p179
      %s182 = sadd.s32 %s181, 1
      %p185 = scmp.eq.s32.totalorder %s21, 1
      %p186 = scmp.ne.s32.totalorder %s181, %s183
      %p187 = scmp.eq.s32.totalorder %s21, 0
      %p188 = por %p186, %p187
      %p189 = scmp.ne.s32.totalorder %s181, %s183
      %p190 = scmp.eq.s32.totalorder %s26, 1
      %p191 = por %p189, %p190
      %p192 = scmp.ne.s32.totalorder %s183, %s184
      %p193 = scmp.eq.s32.totalorder %s26, 0
      %p194 = por %p192, %p193
      %p195 = scmp.ne.s32.totalorder %s183, %s184
      %p196 = scmp.eq.s32.totalorder %s27, 1
      %p197 = por %p195, %p196
      %p199 = scmp.ne.s32.totalorder %s184, %s198
      %p200 = scmp.eq.s32.totalorder %s27, 0
      %p201 = por %p199, %p200
      %s203 = sadd.s32 %s202, 1
      %p206 = scmp.eq.s32.totalorder %s21, 1
      %p207 = scmp.ne.s32.totalorder %s202, %s204
      %p208 = scmp.eq.s32.totalorder %s21, 0
      %p209 = por %p207, %p208
      %p210 = scmp.ne.s32.totalorder %s202, %s204
      %p211 = scmp.eq.s32.totalorder %s26, 1
      %p212 = por %p210, %p211
      %p213 = scmp.ne.s32.totalorder %s204, %s205
      %p214 = scmp.eq.s32.totalorder %s26, 0
      %p215 = por %p213, %p214
      %p216 = scmp.ne.s32.totalorder %s204, %s205
      %p217 = scmp.eq.s32.totalorder %s27, 1
      %p218 = por %p216, %p217
      %p220 = scmp.ne.s32.totalorder %s205, %s219
      %p221 = scmp.eq.s32.totalorder %s27, 0
      %p222 = por %p220, %p221
      %s224 = sadd.s32 %s223, 1
      %p227 = scmp.eq.s32.totalorder %s21, 1
      %p228 = scmp.ne.s32.totalorder %s223, %s225
      %p229 = scmp.eq.s32.totalorder %s21, 0
      %p230 = por %p228, %p229
      %p231 = scmp.ne.s32.totalorder %s223, %s225
      %p232 = scmp.eq.s32.totalorder %s26, 1
      %p233 = por %p231, %p232
      %p234 = scmp.ne.s32.totalorder %s225, %s226
      %p235 = scmp.eq.s32.totalorder %s26, 0
      %p236 = por %p234, %p235
      %p237 = scmp.ne.s32.totalorder %s225, %s226
      %p238 = scmp.eq.s32.totalorder %s27, 1
      %p239 = por %p237, %p238
      %p241 = scmp.ne.s32.totalorder %s226, %s240
      %p242 = scmp.eq.s32.totalorder %s27, 0
      %p243 = por %p241, %p242
      %s244 = ssub.s32 %s21, %s28
      %p245 = scmp.eq.s32.totalorder %s244, 0
      %s247 = sadd.s32 %s246, 1
      %s248 = scalar_select %p245, %s246, %s247
      %p251 = pneg %p245
      %p252 = scmp.eq.s32.totalorder %s21, 1
      %p253 = por %p251, %p252
      %p254 = scmp.ne.s32.totalorder %s246, %s249
      %p255 = scmp.eq.s32.totalorder %s21, 0
      %p256 = por %p254, %p255
      %p257 = scmp.ne.s32.totalorder %s246, %s249
      %p258 = scmp.eq.s32.totalorder %s26, 1
      %p259 = por %p257, %p258
      %p260 = scmp.ne.s32.totalorder %s249, %s250
      %p261 = scmp.eq.s32.totalorder %s26, 0
      %p262 = por %p260, %p261
      %p263 = scmp.ne.s32.totalorder %s249, %s250
      %p264 = scmp.eq.s32.totalorder %s27, 1
      %p265 = por %p263, %p264
      %p267 = scmp.ne.s32.totalorder %s250, %s266
      %p268 = scmp.eq.s32.totalorder %s27, 0
      %p269 = por %p267, %p268
      %p270 = scmp.le.s32.totalorder 1, %s21
      %p271 = scmp.lt.s32.totalorder %s21, 3
      %p272 = pnand %p270, %p271
      %p273 = pneg %p272
      // Predicated region
      $region9: #{tpu_custom_call.1} parent=5 // pred_check
        _
      $region10: #{tpu_custom_call.1} parent=5 // pred_check_branch
        %275 = sbr.rel (%p272) target = $region12
      $region11: #{tpu_custom_call.1} parent=5 // pred_region
        %s276 = ssub.s32 %s21, 1
        // Predicated region
        $region13: #{tpu_custom_call.1} parent=11 // pred_check
          %p277 = pneg %p68
        $region14: #{tpu_custom_call.1} parent=11 // pred_check_branch
          %279 = sbr.rel (%p277) target = $region16
        $region15: #{tpu_custom_call.1} parent=11 // pred_region
          _
        $region16: #{tpu_custom_call.1} parent=11 // pred_fallthru
          _
        // Predicated region
        $region17: #{tpu_custom_call.1} parent=11 // pred_check
          %p280 = pneg %p89
        $region18: #{tpu_custom_call.1} parent=11 // pred_check_branch
          %282 = sbr.rel (%p280) target = $region20
        $region19: #{tpu_custom_call.1} parent=11 // pred_region
          %284 = vsyncadd [#allocation4], 0
          %s285 = sshll.u32 %s2, 4
          %s286 = int_to_ptr.hbm [resolvable:$true] %s285
          %s287 = sshll.u32 [#allocation3], 4
          %s288 = int_to_ptr.vmem [resolvable:$true] %s287
          %293 = dma.hbm_to_vmem [thread:$0]  %s286, 1536, %s288, [#allocation4], 384, 384, 24
        $region20: #{tpu_custom_call.1} parent=11 // pred_fallthru
          _
        // Predicated region
        $region21: #{tpu_custom_call.1} parent=11 // pred_check
          %p294 = pneg %p110
        $region22: #{tpu_custom_call.1} parent=11 // pred_check_branch
          %296 = sbr.rel (%p294) target = $region24
        $region23: #{tpu_custom_call.1} parent=11 // pred_region
          _
        $region24: #{tpu_custom_call.1} parent=11 // pred_fallthru
          _
        // Predicated region
        $region25: #{tpu_custom_call.1} parent=11 // pred_check
          %p297 = pneg %p131
        $region26: #{tpu_custom_call.1} parent=11 // pred_check_branch
          %299 = sbr.rel (%p297) target = $region28
        $region27: #{tpu_custom_call.1} parent=11 // pred_region
          _
        $region28: #{tpu_custom_call.1} parent=11 // pred_fallthru
          _
        // Predicated region
        $region29: #{tpu_custom_call.1} parent=11 // pred_check
          %p300 = pneg %p152
        $region30: #{tpu_custom_call.1} parent=11 // pred_check_branch
          %302 = sbr.rel (%p300) target = $region32
        $region31: #{tpu_custom_call.1} parent=11 // pred_region
          _
        $region32: #{tpu_custom_call.1} parent=11 // pred_fallthru
          _
        // Predicated region
        $region33: #{tpu_custom_call.1} parent=11 // pred_check
          %p303 = pneg %p173
        $region34: #{tpu_custom_call.1} parent=11 // pred_check_branch
          %305 = sbr.rel (%p303) target = $region36
        $region35: #{tpu_custom_call.1} parent=11 // pred_region
          _
        $region36: #{tpu_custom_call.1} parent=11 // pred_fallthru
          _
        // Predicated region
        $region37: #{tpu_custom_call.1} parent=11 // pred_check
          %p306 = pneg %p194
        $region38: #{tpu_custom_call.1} parent=11 // pred_check_branch
          %308 = sbr.rel (%p306) target = $region40
        $region39: #{tpu_custom_call.1} parent=11 // pred_region
          _
        $region40: #{tpu_custom_call.1} parent=11 // pred_fallthru
          _
        // Predicated region
        $region41: #{tpu_custom_call.1} parent=11 // pred_check
          %p309 = pneg %p215
        $region42: #{tpu_custom_call.1} parent=11 // pred_check_branch
          %311 = sbr.rel (%p309) target = $region44
        $region43: #{tpu_custom_call.1} parent=11 // pred_region
          _
        $region44: #{tpu_custom_call.1} parent=11 // pred_fallthru
          _
        // Predicated region
        $region45: #{tpu_custom_call.1} parent=11 // pred_check
          %p312 = pneg %p236
        $region46: #{tpu_custom_call.1} parent=11 // pred_check_branch
          %314 = sbr.rel (%p312) target = $region48
        $region47: #{tpu_custom_call.1} parent=11 // pred_region
          %316 = vsyncadd [#allocation6], 0
          %s318 = sshll.u32 %s9, 4
          %s319 = int_to_ptr.vmem [resolvable:$true] %s318
          %321 = dma.vmem_to_smem %s319, 16, [#allocation7], [#allocation6]
        $region48: #{tpu_custom_call.1} parent=11 // pred_fallthru
          _
      $region12: #{tpu_custom_call.1} parent=5 // pred_fallthru
        _
      %p322 = scmp.lt.s32.totalorder %s21, 2
      // Predicated region
      $region49: #{tpu_custom_call.1} parent=5 // pred_check
        %p323 = pneg %p322
      $region50: #{tpu_custom_call.1} parent=5 // pred_check_branch
        %325 = sbr.rel (%p323) target = $region52
      $region51: #{tpu_custom_call.1} parent=5 // pred_region
        // Predicated region
        $region53: #{tpu_custom_call.1} parent=51 // pred_check
          %p326 = pneg %p41
        $region54: #{tpu_custom_call.1} parent=51 // pred_check_branch
          %328 = sbr.rel (%p326) target = $region56
        $region55: #{tpu_custom_call.1} parent=51 // pred_region
          %p329 = scmp.lt.s32.totalorder %s21, 1
          %s330 = scalar_select %p329, %s21, 1
          %s331 = smul.addr %s330, 8
          %s332 = smul.addr %s331, 8
          %s333 = scalar_lea.vmem %s0, %s332
        $region56: #{tpu_custom_call.1} parent=51 // pred_fallthru
          _
      $region52: #{tpu_custom_call.1} parent=5 // pred_fallthru
        _
      %p334 = scmp.le.s32.totalorder 1, %s21
      %p335 = scmp.lt.s32.totalorder %s21, 3
      %p336 = pnand %p334, %p335
      %p337 = pneg %p336
      // Predicated region
      $region57: #{tpu_custom_call.1} parent=5 // pred_check
        _
      $region58: #{tpu_custom_call.1} parent=5 // pred_check_branch
        %339 = sbr.rel (%p336) target = $region60
      $region59: #{tpu_custom_call.1} parent=5 // pred_region
        %s340 = ssub.s32 %s21, 1
        // Predicated region
        $region61: #{tpu_custom_call.1} parent=59 // pred_check
          %p341 = pneg %p89
        $region62: #{tpu_custom_call.1} parent=59 // pred_check_branch
          %343 = sbr.rel (%p341) target = $region64
        $region63: #{tpu_custom_call.1} parent=59 // pred_region
          %345 = dma.done [#allocation4], 1536
        $region64: #{tpu_custom_call.1} parent=59 // pred_fallthru
          _
        // Predicated region
        $region65: #{tpu_custom_call.1} parent=59 // pred_check
          %p346 = pneg %p236
        $region66: #{tpu_custom_call.1} parent=59 // pred_check_branch
          %348 = sbr.rel (%p346) target = $region68
        $region67: #{tpu_custom_call.1} parent=59 // pred_region
          %350 = dma.done [#allocation6], 16
        $region68: #{tpu_custom_call.1} parent=59 // pred_fallthru
          _
        %351 = sfence
        %p352 = scmp.lt.s32.totalorder %s26, 1
        %s353 = scalar_select %p352, %s26, 1
        %s354 = smul.addr %s353, 8
        %s355 = smul.addr %s354, 8
        %s356 = scalar_lea.vmem %s0, %s355
        %p357 = pneg %p47
        %p358 = pneg %p44
        %p359 = pneg %p68
        %p360 = pneg %p65
        %p361 = pneg %p89
        %p362 = pneg %p86
        %p363 = pneg %p110
        %p364 = pneg %p107
        %p365 = pneg %p131
        %p366 = pneg %p128
        %p367 = pneg %p152
        %p368 = pneg %p149
        %p369 = pneg %p173
        %p370 = pneg %p170
        %p371 = pneg %p194
        %p372 = pneg %p191
        %p373 = pneg %p215
        %p374 = pneg %p212
        %p375 = pneg %p236
        %p376 = pneg %p233
        %p377 = pneg %p262
        %p378 = pneg %p259
        %s379 = sand.u32 %s249, 1
        %s380 = scalar_lea.sflag [#allocation5], %s379
        %s381 = sand.u32 %s249, 1
        %s382 = smul.addr %s381, 64
        %s383 = scalar_lea.vmem [#allocation8], %s382
        %p384 = scmp.lt.s32.totalorder %s26, 1
        %s385 = scalar_select %p384, %s26, 1
        %s386 = smul.addr %s385, 8
        %s387 = smul.addr %s386, 8
        %s388 = scalar_lea.vmem %s0, %s387
        %v389 = vld [vmem:[%s388] sm:$0xff]
        %v390 = vld [vmem:[%s388 + $0x8] sm:$0xff]
        %v391 = vld [vmem:[%s388 + $0x10] sm:$0xff]
        %v392 = vld [vmem:[%s388 + $0x18] sm:$0xff]
        %v393 = vld [vmem:[%s388 + $0x20] sm:$0xff]
        %v394 = vld [vmem:[%s388 + $0x28] sm:$0xff]
        %v395 = vld [vmem:[%s388 + $0x30] sm:$0xff]
        %v396 = vld [vmem:[%s388 + $0x38] sm:$0xff]
        %397 = vrot.lane.b32.xlu0 %v389, 17
        %v398 = vpop.permute.xlu0 %397
        %399 = vrot.lane.b32.xlu0 %v391, 17
        %v400 = vpop.permute.xlu0 %399
        %401 = vrot.lane.b32.xlu0 %v393, 17
        %v402 = vpop.permute.xlu0 %401
        %403 = vrot.lane.b32.xlu0 %v395, 17
        %v404 = vpop.permute.xlu0 %403
        %405 = vrot.lane.b32.xlu0 %v390, 17
        %v406 = vpop.permute.xlu0 %405
        %407 = vrot.lane.b32.xlu0 %v392, 17
        %v408 = vpop.permute.xlu0 %407
        %409 = vrot.lane.b32.xlu0 %v394, 17
        %v410 = vpop.permute.xlu0 %409
        %411 = vrot.lane.b32.xlu0 %v396, 17
        %v412 = vpop.permute.xlu0 %411
        %v413 = vlaneseq
        %v414 = vand.u32 %v413, 127
        %vm415 = vcmp.lt.s32.totalorder %v414, 17
        %v416 = vsel %vm415, %v398, %v406
        %v417 = vsel %vm415, %v400, %v408
        %v418 = vsel %vm415, %v402, %v410
        %v419 = vsel %vm415, %v404, %v412
        %v420 = vsel %vm415, %v406, %v398
        %v421 = vsel %vm415, %v408, %v400
        %v422 = vsel %vm415, %v410, %v402
        %v423 = vsel %vm415, %v412, %v404
        %v424 = vld [vmem:[%s7] sm:$0x3]
        %v426 = vperm.slane %v424, 0
        %v427 = vperm.slane %v424, 1
        %v430 = vmul.f32 %v420, %v426
        %v431 = vmul.f32 %v416, %v427
        %v432 = vmul.f32 %v421, %v426
        %v433 = vmul.f32 %v417, %v427
        %v434 = vmul.f32 %v422, %v426
        %v435 = vmul.f32 %v418, %v427
        %v436 = vmul.f32 %v423, %v426
        %v437 = vmul.f32 %v419, %v427
        %438 = vst [vmem:[#allocation2] sm:$0xff] %v430
        %439 = vst [vmem:[#allocation2 + $0x8] sm:$0xff] %v431
        %440 = vst [vmem:[#allocation2 + $0x10] sm:$0xff] %v432
        %441 = vst [vmem:[#allocation2 + $0x18] sm:$0xff] %v433
        %442 = vst [vmem:[#allocation2 + $0x20] sm:$0xff] %v434
        %443 = vst [vmem:[#allocation2 + $0x28] sm:$0xff] %v435
        %444 = vst [vmem:[#allocation2 + $0x30] sm:$0xff] %v436
        %445 = vst [vmem:[#allocation2 + $0x38] sm:$0xff] %v437
        %446 = vrot.lane.b32.xlu0 %v389, 16
        %v447 = vpop.permute.xlu0 %446
        %448 = vrot.lane.b32.xlu0 %v391, 16
        %v449 = vpop.permute.xlu0 %448
        %450 = vrot.lane.b32.xlu0 %v393, 16
        %v451 = vpop.permute.xlu0 %450
        %452 = vrot.lane.b32.xlu0 %v395, 16
        %v453 = vpop.permute.xlu0 %452
        %454 = vrot.lane.b32.xlu0 %v390, 16
        %v455 = vpop.permute.xlu0 %454
        %456 = vrot.lane.b32.xlu0 %v392, 16
        %v457 = vpop.permute.xlu0 %456
        %458 = vrot.lane.b32.xlu0 %v394, 16
        %v459 = vpop.permute.xlu0 %458
        %460 = vrot.lane.b32.xlu0 %v396, 16
        %v461 = vpop.permute.xlu0 %460
        %vm462 = vcmp.lt.s32.totalorder %v414, 16
        %v463 = vsel %vm462, %v447, %v455
        %v464 = vsel %vm462, %v449, %v457
        %v465 = vsel %vm462, %v451, %v459
        %v466 = vsel %vm462, %v453, %v461
        %v467 = vsel %vm462, %v455, %v447
        %v468 = vsel %vm462, %v457, %v449
        %v469 = vsel %vm462, %v459, %v451
        %v470 = vsel %vm462, %v461, %v453
        %s471 = scalar_lea.vmem %s7, 2
        %v472 = vld [vmem:[%s471] sm:$0x3]
        %v474 = vperm.slane %v472, 0
        %v475 = vperm.slane %v472, 1
        %v478 = vmul.f32 %v467, %v474
        %v479 = vmul.f32 %v463, %v475
        %v480 = vmul.f32 %v468, %v474
        %v481 = vmul.f32 %v464, %v475
        %v482 = vmul.f32 %v469, %v474
        %v483 = vmul.f32 %v465, %v475
        %v484 = vmul.f32 %v470, %v474
        %v485 = vmul.f32 %v466, %v475
        %486 = vst [vmem:[#allocation2 + $0x40] sm:$0xff] %v478
        %487 = vst [vmem:[#allocation2 + $0x48] sm:$0xff] %v479
        %488 = vst [vmem:[#allocation2 + $0x50] sm:$0xff] %v480
        %489 = vst [vmem:[#allocation2 + $0x58] sm:$0xff] %v481
        %490 = vst [vmem:[#allocation2 + $0x60] sm:$0xff] %v482
        %491 = vst [vmem:[#allocation2 + $0x68] sm:$0xff] %v483
        %492 = vst [vmem:[#allocation2 + $0x70] sm:$0xff] %v484
        %493 = vst [vmem:[#allocation2 + $0x78] sm:$0xff] %v485
        %494 = vrot.lane.b32.xlu0 %v389, 15
        %v495 = vpop.permute.xlu0 %494
        %496 = vrot.lane.b32.xlu0 %v391, 15
        %v497 = vpop.permute.xlu0 %496
        %498 = vrot.lane.b32.xlu0 %v393, 15
        %v499 = vpop.permute.xlu0 %498
        %500 = vrot.lane.b32.xlu0 %v395, 15
        %v501 = vpop.permute.xlu0 %500
        %502 = vrot.lane.b32.xlu0 %v390, 15
        %v503 = vpop.permute.xlu0 %502
        %504 = vrot.lane.b32.xlu0 %v392, 15
        %v505 = vpop.permute.xlu0 %504
        %506 = vrot.lane.b32.xlu0 %v394, 15
        %v507 = vpop.permute.xlu0 %506
        %508 = vrot.lane.b32.xlu0 %v396, 15
        %v509 = vpop.permute.xlu0 %508
        %vm510 = vcmp.lt.s32.totalorder %v414, 15
        %v511 = vsel %vm510, %v495, %v503
        %v512 = vsel %vm510, %v497, %v505
        %v513 = vsel %vm510, %v499, %v507
        %v514 = vsel %vm510, %v501, %v509
        %v515 = vsel %vm510, %v503, %v495
        %v516 = vsel %vm510, %v505, %v497
        %v517 = vsel %vm510, %v507, %v499
        %v518 = vsel %vm510, %v509, %v501
        %s519 = scalar_lea.vmem %s7, 4
        %v520 = vld [vmem:[%s519] sm:$0x3]
        %v522 = vperm.slane %v520, 0
        %v523 = vperm.slane %v520, 1
        %v526 = vmul.f32 %v515, %v522
        %v527 = vmul.f32 %v511, %v523
        %v528 = vmul.f32 %v516, %v522
        %v529 = vmul.f32 %v512, %v523
        %v530 = vmul.f32 %v517, %v522
        %v531 = vmul.f32 %v513, %v523
        %v532 = vmul.f32 %v518, %v522
        %v533 = vmul.f32 %v514, %v523
        %534 = vst [vmem:[#allocation2 + $0x80] sm:$0xff] %v526
        %535 = vst [vmem:[#allocation2 + $0x88] sm:$0xff] %v527
        %536 = vst [vmem:[#allocation2 + $0x90] sm:$0xff] %v528
        %537 = vst [vmem:[#allocation2 + $0x98] sm:$0xff] %v529
        %538 = vst [vmem:[#allocation2 + $0xa0] sm:$0xff] %v530
        %539 = vst [vmem:[#allocation2 + $0xa8] sm:$0xff] %v531
        %540 = vst [vmem:[#allocation2 + $0xb0] sm:$0xff] %v532
        %541 = vst [vmem:[#allocation2 + $0xb8] sm:$0xff] %v533
        %542 = vrot.lane.b32.xlu0 %v389, 1
        %v543 = vpop.permute.xlu0 %542
        %544 = vrot.lane.b32.xlu0 %v391, 1
        %v545 = vpop.permute.xlu0 %544
        %546 = vrot.lane.b32.xlu0 %v393, 1
        %v547 = vpop.permute.xlu0 %546
        %548 = vrot.lane.b32.xlu0 %v395, 1
        %v549 = vpop.permute.xlu0 %548
        %550 = vrot.lane.b32.xlu0 %v390, 1
        %v551 = vpop.permute.xlu0 %550
        %552 = vrot.lane.b32.xlu0 %v392, 1
        %v553 = vpop.permute.xlu0 %552
        %554 = vrot.lane.b32.xlu0 %v394, 1
        %v555 = vpop.permute.xlu0 %554
        %556 = vrot.lane.b32.xlu0 %v396, 1
        %v557 = vpop.permute.xlu0 %556
        %vm558 = vcmp.lt.s32.totalorder %v414, 1
        %v559 = vsel %vm558, %v543, %v551
        %v560 = vsel %vm558, %v545, %v553
        %v561 = vsel %vm558, %v547, %v555
        %v562 = vsel %vm558, %v549, %v557
        %v563 = vsel %vm558, %v551, %v543
        %v564 = vsel %vm558, %v553, %v545
        %v565 = vsel %vm558, %v555, %v547
        %v566 = vsel %vm558, %v557, %v549
        %s567 = scalar_lea.vmem %s7, 6
        %v568 = vld [vmem:[%s567] sm:$0x3]
        %v570 = vperm.slane %v568, 0
        %v571 = vperm.slane %v568, 1
        %v574 = vmul.f32 %v563, %v570
        %v575 = vmul.f32 %v559, %v571
        %v576 = vmul.f32 %v564, %v570
        %v577 = vmul.f32 %v560, %v571
        %v578 = vmul.f32 %v565, %v570
        %v579 = vmul.f32 %v561, %v571
        %v580 = vmul.f32 %v566, %v570
        %v581 = vmul.f32 %v562, %v571
        %582 = vst [vmem:[#allocation2 + $0xc0] sm:$0xff] %v574
        %583 = vst [vmem:[#allocation2 + $0xc8] sm:$0xff] %v575
        %584 = vst [vmem:[#allocation2 + $0xd0] sm:$0xff] %v576
        %585 = vst [vmem:[#allocation2 + $0xd8] sm:$0xff] %v577
        %586 = vst [vmem:[#allocation2 + $0xe0] sm:$0xff] %v578
        %587 = vst [vmem:[#allocation2 + $0xe8] sm:$0xff] %v579
        %588 = vst [vmem:[#allocation2 + $0xf0] sm:$0xff] %v580
        %589 = vst [vmem:[#allocation2 + $0xf8] sm:$0xff] %v581
        %s590 = scalar_lea.vmem %s7, 8
        %v591 = vld [vmem:[%s590] sm:$0x3]
        %v593 = vperm.slane %v591, 0
        %v594 = vperm.slane %v591, 1
        %v597 = vmul.f32 %v389, %v593
        %v598 = vmul.f32 %v390, %v594
        %v599 = vmul.f32 %v391, %v593
        %v600 = vmul.f32 %v392, %v594
        %v601 = vmul.f32 %v393, %v593
        %v602 = vmul.f32 %v394, %v594
        %v603 = vmul.f32 %v395, %v593
        %v604 = vmul.f32 %v396, %v594
        %605 = vst [vmem:[#allocation2 + $0x100] sm:$0xff] %v597
        %606 = vst [vmem:[#allocation2 + $0x108] sm:$0xff] %v598
        %607 = vst [vmem:[#allocation2 + $0x110] sm:$0xff] %v599
        %608 = vst [vmem:[#allocation2 + $0x118] sm:$0xff] %v600
        %609 = vst [vmem:[#allocation2 + $0x120] sm:$0xff] %v601
        %610 = vst [vmem:[#allocation2 + $0x128] sm:$0xff] %v602
        %611 = vst [vmem:[#allocation2 + $0x130] sm:$0xff] %v603
        %612 = vst [vmem:[#allocation2 + $0x138] sm:$0xff] %v604
        %613 = vrot.lane.b32.xlu0 %v389, 127
        %v614 = vpop.permute.xlu0 %613
        %615 = vrot.lane.b32.xlu0 %v391, 127
        %v616 = vpop.permute.xlu0 %615
        %617 = vrot.lane.b32.xlu0 %v393, 127
        %v618 = vpop.permute.xlu0 %617
        %619 = vrot.lane.b32.xlu0 %v395, 127
        %v620 = vpop.permute.xlu0 %619
        %621 = vrot.lane.b32.xlu0 %v390, 127
        %v622 = vpop.permute.xlu0 %621
        %623 = vrot.lane.b32.xlu0 %v392, 127
        %v624 = vpop.permute.xlu0 %623
        %625 = vrot.lane.b32.xlu0 %v394, 127
        %v626 = vpop.permute.xlu0 %625
        %627 = vrot.lane.b32.xlu0 %v396, 127
        %v628 = vpop.permute.xlu0 %627
        %vm629 = vcmp.lt.s32.totalorder %v414, 127
        %v630 = vsel %vm629, %v614, %v622
        %v631 = vsel %vm629, %v616, %v624
        %v632 = vsel %vm629, %v618, %v626
        %v633 = vsel %vm629, %v620, %v628
        %v634 = vsel %vm629, %v622, %v614
        %v635 = vsel %vm629, %v624, %v616
        %v636 = vsel %vm629, %v626, %v618
        %v637 = vsel %vm629, %v628, %v620
        %s638 = scalar_lea.vmem %s7, 10
        %v639 = vld [vmem:[%s638] sm:$0x3]
        %v641 = vperm.slane %v639, 0
        %v642 = vperm.slane %v639, 1
        %v645 = vmul.f32 %v630, %v641
        %v646 = vmul.f32 %v634, %v642
        %v647 = vmul.f32 %v631, %v641
        %v648 = vmul.f32 %v635, %v642
        %v649 = vmul.f32 %v632, %v641
        %v650 = vmul.f32 %v636, %v642
        %v651 = vmul.f32 %v633, %v641
        %v652 = vmul.f32 %v637, %v642
        %653 = vst [vmem:[#allocation2 + $0x140] sm:$0xff] %v645
        %654 = vst [vmem:[#allocation2 + $0x148] sm:$0xff] %v646
        %655 = vst [vmem:[#allocation2 + $0x150] sm:$0xff] %v647
        %656 = vst [vmem:[#allocation2 + $0x158] sm:$0xff] %v648
        %657 = vst [vmem:[#allocation2 + $0x160] sm:$0xff] %v649
        %658 = vst [vmem:[#allocation2 + $0x168] sm:$0xff] %v650
        %659 = vst [vmem:[#allocation2 + $0x170] sm:$0xff] %v651
        %660 = vst [vmem:[#allocation2 + $0x178] sm:$0xff] %v652
        %661 = vrot.lane.b32.xlu0 %v389, 113
        %v662 = vpop.permute.xlu0 %661
        %663 = vrot.lane.b32.xlu0 %v391, 113
        %v664 = vpop.permute.xlu0 %663
        %665 = vrot.lane.b32.xlu0 %v393, 113
        %v666 = vpop.permute.xlu0 %665
        %667 = vrot.lane.b32.xlu0 %v395, 113
        %v668 = vpop.permute.xlu0 %667
        %669 = vrot.lane.b32.xlu0 %v390, 113
        %v670 = vpop.permute.xlu0 %669
        %671 = vrot.lane.b32.xlu0 %v392, 113
        %v672 = vpop.permute.xlu0 %671
        %673 = vrot.lane.b32.xlu0 %v394, 113
        %v674 = vpop.permute.xlu0 %673
        %675 = vrot.lane.b32.xlu0 %v396, 113
        %v676 = vpop.permute.xlu0 %675
        %vm677 = vcmp.lt.s32.totalorder %v414, 113
        %v678 = vsel %vm677, %v662, %v670
        %v679 = vsel %vm677, %v664, %v672
        %v680 = vsel %vm677, %v666, %v674
        %v681 = vsel %vm677, %v668, %v676
        %v682 = vsel %vm677, %v670, %v662
        %v683 = vsel %vm677, %v672, %v664
        %v684 = vsel %vm677, %v674, %v666
        %v685 = vsel %vm677, %v676, %v668
        %s686 = scalar_lea.vmem %s7, 12
        %v687 = vld [vmem:[%s686] sm:$0x3]
        %v689 = vperm.slane %v687, 0
        %v690 = vperm.slane %v687, 1
        %v693 = vmul.f32 %v678, %v689
        %v694 = vmul.f32 %v682, %v690
        %v695 = vmul.f32 %v679, %v689
        %v696 = vmul.f32 %v683, %v690
        %v697 = vmul.f32 %v680, %v689
        %v698 = vmul.f32 %v684, %v690
        %v699 = vmul.f32 %v681, %v689
        %v700 = vmul.f32 %v685, %v690
        %701 = vst [vmem:[#allocation2 + $0x180] sm:$0xff] %v693
        %702 = vst [vmem:[#allocation2 + $0x188] sm:$0xff] %v694
        %703 = vst [vmem:[#allocation2 + $0x190] sm:$0xff] %v695
        %704 = vst [vmem:[#allocation2 + $0x198] sm:$0xff] %v696
        %705 = vst [vmem:[#allocation2 + $0x1a0] sm:$0xff] %v697
        %706 = vst [vmem:[#allocation2 + $0x1a8] sm:$0xff] %v698
        %707 = vst [vmem:[#allocation2 + $0x1b0] sm:$0xff] %v699
        %708 = vst [vmem:[#allocation2 + $0x1b8] sm:$0xff] %v700
        %709 = vrot.lane.b32.xlu0 %v389, 112
        %v710 = vpop.permute.xlu0 %709
        %711 = vrot.lane.b32.xlu0 %v391, 112
        %v712 = vpop.permute.xlu0 %711
        %713 = vrot.lane.b32.xlu0 %v393, 112
        %v714 = vpop.permute.xlu0 %713
        %715 = vrot.lane.b32.xlu0 %v395, 112
        %v716 = vpop.permute.xlu0 %715
        %717 = vrot.lane.b32.xlu0 %v390, 112
        %v718 = vpop.permute.xlu0 %717
        %719 = vrot.lane.b32.xlu0 %v392, 112
        %v720 = vpop.permute.xlu0 %719
        %721 = vrot.lane.b32.xlu0 %v394, 112
        %v722 = vpop.permute.xlu0 %721
        %723 = vrot.lane.b32.xlu0 %v396, 112
        %v724 = vpop.permute.xlu0 %723
        %vm725 = vcmp.lt.s32.totalorder %v414, 112
        %v726 = vsel %vm725, %v710, %v718
        %v727 = vsel %vm725, %v712, %v720
        %v728 = vsel %vm725, %v714, %v722
        %v729 = vsel %vm725, %v716, %v724
        %v730 = vsel %vm725, %v718, %v710
        %v731 = vsel %vm725, %v720, %v712
        %v732 = vsel %vm725, %v722, %v714
        %v733 = vsel %vm725, %v724, %v716
        %s734 = scalar_lea.vmem %s7, 14
        %v735 = vld [vmem:[%s734] sm:$0x3]
        %v737 = vperm.slane %v735, 0
        %v738 = vperm.slane %v735, 1
        %v741 = vmul.f32 %v726, %v737
        %v742 = vmul.f32 %v730, %v738
        %v743 = vmul.f32 %v727, %v737
        %v744 = vmul.f32 %v731, %v738
        %v745 = vmul.f32 %v728, %v737
        %v746 = vmul.f32 %v732, %v738
        %v747 = vmul.f32 %v729, %v737
        %v748 = vmul.f32 %v733, %v738
        %749 = vst [vmem:[#allocation2 + $0x1c0] sm:$0xff] %v741
        %750 = vst [vmem:[#allocation2 + $0x1c8] sm:$0xff] %v742
        %751 = vst [vmem:[#allocation2 + $0x1d0] sm:$0xff] %v743
        %752 = vst [vmem:[#allocation2 + $0x1d8] sm:$0xff] %v744
        %753 = vst [vmem:[#allocation2 + $0x1e0] sm:$0xff] %v745
        %754 = vst [vmem:[#allocation2 + $0x1e8] sm:$0xff] %v746
        %755 = vst [vmem:[#allocation2 + $0x1f0] sm:$0xff] %v747
        %756 = vst [vmem:[#allocation2 + $0x1f8] sm:$0xff] %v748
        %757 = vrot.lane.b32.xlu0 %v389, 111
        %v758 = vpop.permute.xlu0 %757
        %759 = vrot.lane.b32.xlu0 %v391, 111
        %v760 = vpop.permute.xlu0 %759
        %761 = vrot.lane.b32.xlu0 %v393, 111
        %v762 = vpop.permute.xlu0 %761
        %763 = vrot.lane.b32.xlu0 %v395, 111
        %v764 = vpop.permute.xlu0 %763
        %765 = vrot.lane.b32.xlu0 %v390, 111
        %v766 = vpop.permute.xlu0 %765
        %767 = vrot.lane.b32.xlu0 %v392, 111
        %v768 = vpop.permute.xlu0 %767
        %769 = vrot.lane.b32.xlu0 %v394, 111
        %v770 = vpop.permute.xlu0 %769
        %771 = vrot.lane.b32.xlu0 %v396, 111
        %v772 = vpop.permute.xlu0 %771
        %vm773 = vcmp.lt.s32.totalorder %v414, 111
        %v774 = vsel %vm773, %v758, %v766
        %v775 = vsel %vm773, %v760, %v768
        %v776 = vsel %vm773, %v762, %v770
        %v777 = vsel %vm773, %v764, %v772
        %v778 = vsel %vm773, %v766, %v758
        %v779 = vsel %vm773, %v768, %v760
        %v780 = vsel %vm773, %v770, %v762
        %v781 = vsel %vm773, %v772, %v764
        %s782 = scalar_lea.vmem %s7, 16
        %v783 = vld [vmem:[%s782] sm:$0x3]
        %v785 = vperm.slane %v783, 0
        %v786 = vperm.slane %v783, 1
        %v789 = vmul.f32 %v774, %v785
        %v790 = vmul.f32 %v778, %v786
        %v791 = vmul.f32 %v775, %v785
        %v792 = vmul.f32 %v779, %v786
        %v793 = vmul.f32 %v776, %v785
        %v794 = vmul.f32 %v780, %v786
        %v795 = vmul.f32 %v777, %v785
        %v796 = vmul.f32 %v781, %v786
        %797 = vst [vmem:[#allocation2 + $0x200] sm:$0xff] %v789
        %798 = vst [vmem:[#allocation2 + $0x208] sm:$0xff] %v790
        %799 = vst [vmem:[#allocation2 + $0x210] sm:$0xff] %v791
        %800 = vst [vmem:[#allocation2 + $0x218] sm:$0xff] %v792
        %801 = vst [vmem:[#allocation2 + $0x220] sm:$0xff] %v793
        %802 = vst [vmem:[#allocation2 + $0x228] sm:$0xff] %v794
        %803 = vst [vmem:[#allocation2 + $0x230] sm:$0xff] %v795
        %804 = vst [vmem:[#allocation2 + $0x238] sm:$0xff] %v796
        %v805 = vld [vmem:[%s1] sm:$0xff]
        %v806 = vld [vmem:[%s1 + $0x8] sm:$0xff]
        %v807 = vld [vmem:[%s1 + $0x10] sm:$0xff]
        %v808 = vld [vmem:[%s1 + $0x18] sm:$0xff]
        %v809 = vld [vmem:[%s1 + $0x20] sm:$0xff]
        %v810 = vld [vmem:[%s1 + $0x28] sm:$0xff]
        %v811 = vld [vmem:[%s1 + $0x30] sm:$0xff]
        %v812 = vld [vmem:[%s1 + $0x38] sm:$0xff]
        %v813 = vld [vmem:[%s1 + $0x40] sm:$0xff]
        %v814 = vld [vmem:[%s1 + $0x48] sm:$0xff]
        %v815 = vld [vmem:[%s1 + $0x50] sm:$0xff]
        %v816 = vld [vmem:[%s1 + $0x58] sm:$0xff]
        %v817 = vld [vmem:[#allocation2] sm:$0xff]
        %v818 = vld [vmem:[#allocation2 + $0x8] sm:$0xff]
        %v819 = vld [vmem:[#allocation2 + $0x10] sm:$0xff]
        %v820 = vld [vmem:[#allocation2 + $0x18] sm:$0xff]
        %v821 = vld [vmem:[#allocation2 + $0x20] sm:$0xff]
        %v822 = vld [vmem:[#allocation2 + $0x28] sm:$0xff]
        %v823 = vld [vmem:[#allocation2 + $0x30] sm:$0xff]
        %v824 = vld [vmem:[#allocation2 + $0x38] sm:$0xff]
        %v825 = vld [vmem:[#allocation2 + $0x40] sm:$0xff]
        %v826 = vld [vmem:[#allocation2 + $0x48] sm:$0xff]
        %v827 = vld [vmem:[#allocation2 + $0x50] sm:$0xff]
        %v828 = vld [vmem:[#allocation2 + $0x58] sm:$0xff]
        %v829 = vld [vmem:[#allocation2 + $0x60] sm:$0xff]
        %v830 = vld [vmem:[#allocation2 + $0x68] sm:$0xff]
        %v831 = vld [vmem:[#allocation2 + $0x70] sm:$0xff]
        %v832 = vld [vmem:[#allocation2 + $0x78] sm:$0xff]
        %v833 = vld [vmem:[#allocation2 + $0x80] sm:$0xff]
        %v834 = vld [vmem:[#allocation2 + $0x88] sm:$0xff]
        %v835 = vld [vmem:[#allocation2 + $0x90] sm:$0xff]
        %v836 = vld [vmem:[#allocation2 + $0x98] sm:$0xff]
        %v837 = vld [vmem:[#allocation2 + $0xa0] sm:$0xff]
        %v838 = vld [vmem:[#allocation2 + $0xa8] sm:$0xff]
        %v839 = vld [vmem:[#allocation2 + $0xb0] sm:$0xff]
        %v840 = vld [vmem:[#allocation2 + $0xb8] sm:$0xff]
        %v841 = vld [vmem:[#allocation2 + $0xc0] sm:$0xff]
        %v842 = vld [vmem:[#allocation2 + $0xc8] sm:$0xff]
        %v843 = vld [vmem:[#allocation2 + $0xd0] sm:$0xff]
        %v844 = vld [vmem:[#allocation2 + $0xd8] sm:$0xff]
        %v845 = vld [vmem:[#allocation2 + $0xe0] sm:$0xff]
        %v846 = vld [vmem:[#allocation2 + $0xe8] sm:$0xff]
        %v847 = vld [vmem:[#allocation2 + $0xf0] sm:$0xff]
        %v848 = vld [vmem:[#allocation2 + $0xf8] sm:$0xff]
        %v849 = vld [vmem:[#allocation2 + $0x100] sm:$0xff]
        %v850 = vld [vmem:[#allocation2 + $0x108] sm:$0xff]
        %v851 = vld [vmem:[#allocation2 + $0x110] sm:$0xff]
        %v852 = vld [vmem:[#allocation2 + $0x118] sm:$0xff]
        %v853 = vld [vmem:[#allocation2 + $0x120] sm:$0xff]
        %v854 = vld [vmem:[#allocation2 + $0x128] sm:$0xff]
        %v855 = vld [vmem:[#allocation2 + $0x130] sm:$0xff]
        %v856 = vld [vmem:[#allocation2 + $0x138] sm:$0xff]
        %v857 = vld [vmem:[#allocation2 + $0x140] sm:$0xff]
        %v858 = vld [vmem:[#allocation2 + $0x148] sm:$0xff]
        %v859 = vld [vmem:[#allocation2 + $0x150] sm:$0xff]
        %v860 = vld [vmem:[#allocation2 + $0x158] sm:$0xff]
        %v861 = vld [vmem:[#allocation2 + $0x160] sm:$0xff]
        %v862 = vld [vmem:[#allocation2 + $0x168] sm:$0xff]
        %v863 = vld [vmem:[#allocation2 + $0x170] sm:$0xff]
        %v864 = vld [vmem:[#allocation2 + $0x178] sm:$0xff]
        %v865 = vld [vmem:[#allocation2 + $0x180] sm:$0xff]
        %v866 = vld [vmem:[#allocation2 + $0x188] sm:$0xff]
        %v867 = vld [vmem:[#allocation2 + $0x190] sm:$0xff]
        %v868 = vld [vmem:[#allocation2 + $0x198] sm:$0xff]
        %v869 = vld [vmem:[#allocation2 + $0x1a0] sm:$0xff]
        %v870 = vld [vmem:[#allocation2 + $0x1a8] sm:$0xff]
        %v871 = vld [vmem:[#allocation2 + $0x1b0] sm:$0xff]
        %v872 = vld [vmem:[#allocation2 + $0x1b8] sm:$0xff]
        %v873 = vld [vmem:[#allocation2 + $0x1c0] sm:$0xff]
        %v874 = vld [vmem:[#allocation2 + $0x1c8] sm:$0xff]
        %v875 = vld [vmem:[#allocation2 + $0x1d0] sm:$0xff]
        %v876 = vld [vmem:[#allocation2 + $0x1d8] sm:$0xff]
        %v877 = vld [vmem:[#allocation2 + $0x1e0] sm:$0xff]
        %v878 = vld [vmem:[#allocation2 + $0x1e8] sm:$0xff]
        %v879 = vld [vmem:[#allocation2 + $0x1f0] sm:$0xff]
        %v880 = vld [vmem:[#allocation2 + $0x1f8] sm:$0xff]
        %v881 = vld [vmem:[#allocation2 + $0x200] sm:$0xff]
        %v882 = vld [vmem:[#allocation2 + $0x208] sm:$0xff]
        %v883 = vld [vmem:[#allocation2 + $0x210] sm:$0xff]
        %v884 = vld [vmem:[#allocation2 + $0x218] sm:$0xff]
        %v885 = vld [vmem:[#allocation2 + $0x220] sm:$0xff]
        %v886 = vld [vmem:[#allocation2 + $0x228] sm:$0xff]
        %v887 = vld [vmem:[#allocation2 + $0x230] sm:$0xff]
        %v888 = vld [vmem:[#allocation2 + $0x238] sm:$0xff]
        %vm889 = vcmask 261120
        %v891 = vsel %vm889, %v807, 0
        %v894 = vsel %vm889, %v810, 0
        %v897 = vsel %vm889, %v813, 0
        %v900 = vsel %vm889, %v816, 0
        %902 = vmatpush.msra.mxu0 %v847
        %903 = vmatpush.msra.mxu0 %v845
        %904 = vmatpush.msra.mxu0 %v843
        %905 = vmatpush.msra.mxu0 %v841
        %906 = vmatpush.msra.mxu0 %v839
        %907 = vmatpush.msra.mxu0 %v837
        %908 = vmatpush.msra.mxu0 %v835
        %909 = vmatpush.msra.mxu0 %v833
        %910 = vmatpush.msra.mxu0 %v831
        %911 = vmatpush.msra.mxu0 %v829
        %912 = vmatpush.msra.mxu0 %v827
        %913 = vmatpush.msra.mxu0 %v825
        %914 = vmatpush.msra.mxu0 %v823
        %915 = vmatpush.msra.mxu0 %v821
        %916 = vmatpush.msra.mxu0 %v819
        %917 = vmatpush.msra.mxu0 %v817
        %918 = vmatmul.f32.gmra.mxu0 %v805
        %v919 = vpop.f32.mrf.mxu0
        %v920 = vadd.f32 0.0, %v919
        %921 = vmatmul.f32.gmra.mxu0 %v808
        %v922 = vpop.f32.mrf.mxu0
        %v923 = vadd.f32 0.0, %v922
        %924 = vmatmul.f32.gmra.mxu0 %v811
        %v925 = vpop.f32.mrf.mxu0
        %v926 = vadd.f32 0.0, %v925
        %927 = vmatmul.f32.gmra.mxu0 %v814
        %v928 = vpop.f32.mrf.mxu0
        %v929 = vadd.f32 0.0, %v928
        %930 = vdwg.mxu0
        %931 = vmatpush.msra.mxu0 %v879
        %932 = vmatpush.msra.mxu0 %v877
        %933 = vmatpush.msra.mxu0 %v875
        %934 = vmatpush.msra.mxu0 %v873
        %935 = vmatpush.msra.mxu0 %v871
        %936 = vmatpush.msra.mxu0 %v869
        %937 = vmatpush.msra.mxu0 %v867
        %938 = vmatpush.msra.mxu0 %v865
        %939 = vmatpush.msra.mxu0 %v863
        %940 = vmatpush.msra.mxu0 %v861
        %941 = vmatpush.msra.mxu0 %v859
        %942 = vmatpush.msra.mxu0 %v857
        %943 = vmatpush.msra.mxu0 %v855
        %944 = vmatpush.msra.mxu0 %v853
        %945 = vmatpush.msra.mxu0 %v851
        %946 = vmatpush.msra.mxu0 %v849
        %947 = vmatmul.f32.gmra.mxu0 %v806
        %v948 = vpop.f32.mrf.mxu0
        %v949 = vadd.f32 %v920, %v948
        %950 = vmatmul.f32.gmra.mxu0 %v809
        %v951 = vpop.f32.mrf.mxu0
        %v952 = vadd.f32 %v923, %v951
        %953 = vmatmul.f32.gmra.mxu0 %v812
        %v954 = vpop.f32.mrf.mxu0
        %v955 = vadd.f32 %v926, %v954
        %956 = vmatmul.f32.gmra.mxu0 %v815
        %v957 = vpop.f32.mrf.mxu0
        %v958 = vadd.f32 %v929, %v957
        %959 = vdwg.mxu0
        %960 = vmatpush.msra.mxu0 0.0
        %961 = vmatpush.msra.mxu0 0.0
        %962 = vmatpush.msra.mxu0 0.0
        %963 = vmatpush.msra.mxu0 0.0
        %964 = vmatpush.msra.mxu0 0.0
        %965 = vmatpush.msra.mxu0 0.0
        %966 = vmatpush.msra.mxu0 0.0
        %967 = vmatpush.msra.mxu0 0.0
        %968 = vmatpush.msra.mxu0 0.0
        %969 = vmatpush.msra.mxu0 0.0
        %970 = vmatpush.msra.mxu0 0.0
        %971 = vmatpush.msra.mxu0 0.0
        %972 = vmatpush.msra.mxu0 %v887
        %973 = vmatpush.msra.mxu0 %v885
        %974 = vmatpush.msra.mxu0 %v883
        %975 = vmatpush.msra.mxu0 %v881
        %976 = vmatmul.f32.gmra.mxu0 %v891
        %v977 = vpop.f32.mrf.mxu0
        %v978 = vadd.f32 %v949, %v977
        %979 = vmatmul.f32.gmra.mxu0 %v894
        %v980 = vpop.f32.mrf.mxu0
        %v981 = vadd.f32 %v952, %v980
        %982 = vmatmul.f32.gmra.mxu0 %v897
        %v983 = vpop.f32.mrf.mxu0
        %v984 = vadd.f32 %v955, %v983
        %985 = vmatmul.f32.gmra.mxu0 %v900
        %v986 = vpop.f32.mrf.mxu0
        %v987 = vadd.f32 %v958, %v986
        %988 = vdwg.mxu0
        %989 = vmatpush.msra.mxu0 %v848
        %990 = vmatpush.msra.mxu0 %v846
        %991 = vmatpush.msra.mxu0 %v844
        %992 = vmatpush.msra.mxu0 %v842
        %993 = vmatpush.msra.mxu0 %v840
        %994 = vmatpush.msra.mxu0 %v838
        %995 = vmatpush.msra.mxu0 %v836
        %996 = vmatpush.msra.mxu0 %v834
        %997 = vmatpush.msra.mxu0 %v832
        %998 = vmatpush.msra.mxu0 %v830
        %999 = vmatpush.msra.mxu0 %v828
        %1000 = vmatpush.msra.mxu0 %v826
        %1001 = vmatpush.msra.mxu0 %v824
        %1002 = vmatpush.msra.mxu0 %v822
        %1003 = vmatpush.msra.mxu0 %v820
        %1004 = vmatpush.msra.mxu0 %v818
        %1005 = vmatmul.f32.gmra.mxu0 %v805
        %v1006 = vpop.f32.mrf.mxu0
        %v1007 = vadd.f32 0.0, %v1006
        %1008 = vmatmul.f32.gmra.mxu0 %v808
        %v1009 = vpop.f32.mrf.mxu0
        %v1010 = vadd.f32 0.0, %v1009
        %1011 = vmatmul.f32.gmra.mxu0 %v811
        %v1012 = vpop.f32.mrf.mxu0
        %v1013 = vadd.f32 0.0, %v1012
        %1014 = vmatmul.f32.gmra.mxu0 %v814
        %v1015 = vpop.f32.mrf.mxu0
        %v1016 = vadd.f32 0.0, %v1015
        %1017 = vdwg.mxu0
        %1018 = vmatpush.msra.mxu0 %v880
        %1019 = vmatpush.msra.mxu0 %v878
        %1020 = vmatpush.msra.mxu0 %v876
        %1021 = vmatpush.msra.mxu0 %v874
        %1022 = vmatpush.msra.mxu0 %v872
        %1023 = vmatpush.msra.mxu0 %v870
        %1024 = vmatpush.msra.mxu0 %v868
        %1025 = vmatpush.msra.mxu0 %v866
        %1026 = vmatpush.msra.mxu0 %v864
        %1027 = vmatpush.msra.mxu0 %v862
        %1028 = vmatpush.msra.mxu0 %v860
        %1029 = vmatpush.msra.mxu0 %v858
        %1030 = vmatpush.msra.mxu0 %v856
        %1031 = vmatpush.msra.mxu0 %v854
        %1032 = vmatpush.msra.mxu0 %v852
        %1033 = vmatpush.msra.mxu0 %v850
        %1034 = vmatmul.f32.gmra.mxu0 %v806
        %v1035 = vpop.f32.mrf.mxu0
        %v1036 = vadd.f32 %v1007, %v1035
        %1037 = vmatmul.f32.gmra.mxu0 %v809
        %v1038 = vpop.f32.mrf.mxu0
        %v1039 = vadd.f32 %v1010, %v1038
        %1040 = vmatmul.f32.gmra.mxu0 %v812
        %v1041 = vpop.f32.mrf.mxu0
        %v1042 = vadd.f32 %v1013, %v1041
        %1043 = vmatmul.f32.gmra.mxu0 %v815
        %v1044 = vpop.f32.mrf.mxu0
        %v1045 = vadd.f32 %v1016, %v1044
        %1046 = vdwg.mxu0
        %1047 = vmatpush.msra.mxu0 0.0
        %1048 = vmatpush.msra.mxu0 0.0
        %1049 = vmatpush.msra.mxu0 0.0
        %1050 = vmatpush.msra.mxu0 0.0
        %1051 = vmatpush.msra.mxu0 0.0
        %1052 = vmatpush.msra.mxu0 0.0
        %1053 = vmatpush.msra.mxu0 0.0
        %1054 = vmatpush.msra.mxu0 0.0
        %1055 = vmatpush.msra.mxu0 0.0
        %1056 = vmatpush.msra.mxu0 0.0
        %1057 = vmatpush.msra.mxu0 0.0
        %1058 = vmatpush.msra.mxu0 0.0
        %1059 = vmatpush.msra.mxu0 %v888
        %1060 = vmatpush.msra.mxu0 %v886
        %1061 = vmatpush.msra.mxu0 %v884
        %1062 = vmatpush.msra.mxu0 %v882
        %1063 = vmatmul.f32.gmra.mxu0 %v891
        %v1064 = vpop.f32.mrf.mxu0
        %v1065 = vadd.f32 %v1036, %v1064
        %1066 = vmatmul.f32.gmra.mxu0 %v894
        %v1067 = vpop.f32.mrf.mxu0
        %v1068 = vadd.f32 %v1039, %v1067
        %1069 = vmatmul.f32.gmra.mxu0 %v897
        %v1070 = vpop.f32.mrf.mxu0
        %v1071 = vadd.f32 %v1042, %v1070
        %1072 = vmatmul.f32.gmra.mxu0 %v900
        %v1073 = vpop.f32.mrf.mxu0
        %v1074 = vadd.f32 %v1045, %v1073
        %1075 = vdwg.mxu0
        %v1076 = vld [vmem:[%s3] sm:$0xff]
        %v1077 = vld [vmem:[%s3 + $0x8] sm:$0xff]
        %v1078 = vld [vmem:[%s3 + $0x10] sm:$0xff]
        %v1079 = vld [vmem:[%s3 + $0x18] sm:$0xff]
        %1081 = vset.pattern.permute.xlu0 0
        %1082 = vperm.xlu0 %1081, %v1076
        %v1083 = vpop.permute.xlu0 %1082
        %1086 = vset.pattern.permute.xlu0 0
        %1087 = vperm.xlu0 %1086, %v1077
        %v1088 = vpop.permute.xlu0 %1087
        %1091 = vset.pattern.permute.xlu0 0
        %1092 = vperm.xlu0 %1091, %v1078
        %v1093 = vpop.permute.xlu0 %1092
        %1096 = vset.pattern.permute.xlu0 0
        %1097 = vperm.xlu0 %1096, %v1079
        %v1098 = vpop.permute.xlu0 %1097
        %v1100 = vmul.f32 %v978, %v1083
        %v1101 = vmul.f32 %v1065, %v1083
        %v1102 = vmul.f32 %v981, %v1088
        %v1103 = vmul.f32 %v1068, %v1088
        %v1104 = vmul.f32 %v984, %v1093
        %v1105 = vmul.f32 %v1071, %v1093
        %v1106 = vmul.f32 %v987, %v1098
        %v1107 = vmul.f32 %v1074, %v1098
        %s1108 = scalar_lea.vmem %s3, 32
        %v1109 = vld [vmem:[%s1108] sm:$0xff]
        %v1110 = vld [vmem:[%s1108 + $0x8] sm:$0xff]
        %v1111 = vld [vmem:[%s1108 + $0x10] sm:$0xff]
        %v1112 = vld [vmem:[%s1108 + $0x18] sm:$0xff]
        %1114 = vset.pattern.permute.xlu0 0
        %1115 = vperm.xlu0 %1114, %v1109
        %v1116 = vpop.permute.xlu0 %1115
        %1119 = vset.pattern.permute.xlu0 0
        %1120 = vperm.xlu0 %1119, %v1110
        %v1121 = vpop.permute.xlu0 %1120
        %1124 = vset.pattern.permute.xlu0 0
        %1125 = vperm.xlu0 %1124, %v1111
        %v1126 = vpop.permute.xlu0 %1125
        %1129 = vset.pattern.permute.xlu0 0
        %1130 = vperm.xlu0 %1129, %v1112
        %v1131 = vpop.permute.xlu0 %1130
        %v1133 = vadd.f32 %v1100, %v1116
        %v1134 = vadd.f32 %v1101, %v1116
        %v1135 = vadd.f32 %v1102, %v1121
        %v1136 = vadd.f32 %v1103, %v1121
        %v1137 = vadd.f32 %v1104, %v1126
        %v1138 = vadd.f32 %v1105, %v1126
        %v1139 = vadd.f32 %v1106, %v1131
        %v1140 = vadd.f32 %v1107, %v1131
        %v1141 = vmax.f32 %v1133, 0.0
        %v1142 = vmax.f32 %v1134, 0.0
        %v1143 = vmax.f32 %v1135, 0.0
        %v1144 = vmax.f32 %v1136, 0.0
        %v1145 = vmax.f32 %v1137, 0.0
        %v1146 = vmax.f32 %v1138, 0.0
        %v1147 = vmax.f32 %v1139, 0.0
        %v1148 = vmax.f32 %v1140, 0.0
        %1149 = vrot.lane.b32.xlu0 %v1141, 17
        %v1150 = vpop.permute.xlu0 %1149
        %1151 = vrot.lane.b32.xlu0 %v1143, 17
        %v1152 = vpop.permute.xlu0 %1151
        %1153 = vrot.lane.b32.xlu0 %v1145, 17
        %v1154 = vpop.permute.xlu0 %1153
        %1155 = vrot.lane.b32.xlu0 %v1147, 17
        %v1156 = vpop.permute.xlu0 %1155
        %1157 = vrot.lane.b32.xlu0 %v1142, 17
        %v1158 = vpop.permute.xlu0 %1157
        %1159 = vrot.lane.b32.xlu0 %v1144, 17
        %v1160 = vpop.permute.xlu0 %1159
        %1161 = vrot.lane.b32.xlu0 %v1146, 17
        %v1162 = vpop.permute.xlu0 %1161
        %1163 = vrot.lane.b32.xlu0 %v1148, 17
        %v1164 = vpop.permute.xlu0 %1163
        %v1165 = vsel %vm415, %v1150, %v1158
        %v1166 = vsel %vm415, %v1152, %v1160
        %v1167 = vsel %vm415, %v1154, %v1162
        %v1168 = vsel %vm415, %v1156, %v1164
        %v1169 = vsel %vm415, %v1158, %v1150
        %v1170 = vsel %vm415, %v1160, %v1152
        %v1171 = vsel %vm415, %v1162, %v1154
        %v1172 = vsel %vm415, %v1164, %v1156
        %v1173 = vld [vmem:[%s7] sm:$0x3]
        %v1175 = vperm.slane %v1173, 0
        %v1176 = vperm.slane %v1173, 1
        %v1179 = vmul.f32 %v1169, %v1175
        %v1180 = vmul.f32 %v1165, %v1176
        %v1181 = vmul.f32 %v1170, %v1175
        %v1182 = vmul.f32 %v1166, %v1176
        %v1183 = vmul.f32 %v1171, %v1175
        %v1184 = vmul.f32 %v1167, %v1176
        %v1185 = vmul.f32 %v1172, %v1175
        %v1186 = vmul.f32 %v1168, %v1176
        %1187 = vst [vmem:[#allocation2] sm:$0xff] %v1179
        %1188 = vst [vmem:[#allocation2 + $0x8] sm:$0xff] %v1180
        %1189 = vst [vmem:[#allocation2 + $0x10] sm:$0xff] %v1181
        %1190 = vst [vmem:[#allocation2 + $0x18] sm:$0xff] %v1182
        %1191 = vst [vmem:[#allocation2 + $0x20] sm:$0xff] %v1183
        %1192 = vst [vmem:[#allocation2 + $0x28] sm:$0xff] %v1184
        %1193 = vst [vmem:[#allocation2 + $0x30] sm:$0xff] %v1185
        %1194 = vst [vmem:[#allocation2 + $0x38] sm:$0xff] %v1186
        %1195 = vrot.lane.b32.xlu0 %v1141, 16
        %v1196 = vpop.permute.xlu0 %1195
        %1197 = vrot.lane.b32.xlu0 %v1143, 16
        %v1198 = vpop.permute.xlu0 %1197
        %1199 = vrot.lane.b32.xlu0 %v1145, 16
        %v1200 = vpop.permute.xlu0 %1199
        %1201 = vrot.lane.b32.xlu0 %v1147, 16
        %v1202 = vpop.permute.xlu0 %1201
        %1203 = vrot.lane.b32.xlu0 %v1142, 16
        %v1204 = vpop.permute.xlu0 %1203
        %1205 = vrot.lane.b32.xlu0 %v1144, 16
        %v1206 = vpop.permute.xlu0 %1205
        %1207 = vrot.lane.b32.xlu0 %v1146, 16
        %v1208 = vpop.permute.xlu0 %1207
        %1209 = vrot.lane.b32.xlu0 %v1148, 16
        %v1210 = vpop.permute.xlu0 %1209
        %v1211 = vsel %vm462, %v1196, %v1204
        %v1212 = vsel %vm462, %v1198, %v1206
        %v1213 = vsel %vm462, %v1200, %v1208
        %v1214 = vsel %vm462, %v1202, %v1210
        %v1215 = vsel %vm462, %v1204, %v1196
        %v1216 = vsel %vm462, %v1206, %v1198
        %v1217 = vsel %vm462, %v1208, %v1200
        %v1218 = vsel %vm462, %v1210, %v1202
        %v1219 = vld [vmem:[%s471] sm:$0x3]
        %v1221 = vperm.slane %v1219, 0
        %v1222 = vperm.slane %v1219, 1
        %v1225 = vmul.f32 %v1215, %v1221
        %v1226 = vmul.f32 %v1211, %v1222
        %v1227 = vmul.f32 %v1216, %v1221
        %v1228 = vmul.f32 %v1212, %v1222
        %v1229 = vmul.f32 %v1217, %v1221
        %v1230 = vmul.f32 %v1213, %v1222
        %v1231 = vmul.f32 %v1218, %v1221
        %v1232 = vmul.f32 %v1214, %v1222
        %1233 = vst [vmem:[#allocation2 + $0x40] sm:$0xff] %v1225
        %1234 = vst [vmem:[#allocation2 + $0x48] sm:$0xff] %v1226
        %1235 = vst [vmem:[#allocation2 + $0x50] sm:$0xff] %v1227
        %1236 = vst [vmem:[#allocation2 + $0x58] sm:$0xff] %v1228
        %1237 = vst [vmem:[#allocation2 + $0x60] sm:$0xff] %v1229
        %1238 = vst [vmem:[#allocation2 + $0x68] sm:$0xff] %v1230
        %1239 = vst [vmem:[#allocation2 + $0x70] sm:$0xff] %v1231
        %1240 = vst [vmem:[#allocation2 + $0x78] sm:$0xff] %v1232
        %1241 = vrot.lane.b32.xlu0 %v1141, 15
        %v1242 = vpop.permute.xlu0 %1241
        %1243 = vrot.lane.b32.xlu0 %v1143, 15
        %v1244 = vpop.permute.xlu0 %1243
        %1245 = vrot.lane.b32.xlu0 %v1145, 15
        %v1246 = vpop.permute.xlu0 %1245
        %1247 = vrot.lane.b32.xlu0 %v1147, 15
        %v1248 = vpop.permute.xlu0 %1247
        %1249 = vrot.lane.b32.xlu0 %v1142, 15
        %v1250 = vpop.permute.xlu0 %1249
        %1251 = vrot.lane.b32.xlu0 %v1144, 15
        %v1252 = vpop.permute.xlu0 %1251
        %1253 = vrot.lane.b32.xlu0 %v1146, 15
        %v1254 = vpop.permute.xlu0 %1253
        %1255 = vrot.lane.b32.xlu0 %v1148, 15
        %v1256 = vpop.permute.xlu0 %1255
        %v1257 = vsel %vm510, %v1242, %v1250
        %v1258 = vsel %vm510, %v1244, %v1252
        %v1259 = vsel %vm510, %v1246, %v1254
        %v1260 = vsel %vm510, %v1248, %v1256
        %v1261 = vsel %vm510, %v1250, %v1242
        %v1262 = vsel %vm510, %v1252, %v1244
        %v1263 = vsel %vm510, %v1254, %v1246
        %v1264 = vsel %vm510, %v1256, %v1248
        %v1265 = vld [vmem:[%s519] sm:$0x3]
        %v1267 = vperm.slane %v1265, 0
        %v1268 = vperm.slane %v1265, 1
        %v1271 = vmul.f32 %v1261, %v1267
        %v1272 = vmul.f32 %v1257, %v1268
        %v1273 = vmul.f32 %v1262, %v1267
        %v1274 = vmul.f32 %v1258, %v1268
        %v1275 = vmul.f32 %v1263, %v1267
        %v1276 = vmul.f32 %v1259, %v1268
        %v1277 = vmul.f32 %v1264, %v1267
        %v1278 = vmul.f32 %v1260, %v1268
        %1279 = vst [vmem:[#allocation2 + $0x80] sm:$0xff] %v1271
        %1280 = vst [vmem:[#allocation2 + $0x88] sm:$0xff] %v1272
        %1281 = vst [vmem:[#allocation2 + $0x90] sm:$0xff] %v1273
        %1282 = vst [vmem:[#allocation2 + $0x98] sm:$0xff] %v1274
        %1283 = vst [vmem:[#allocation2 + $0xa0] sm:$0xff] %v1275
        %1284 = vst [vmem:[#allocation2 + $0xa8] sm:$0xff] %v1276
        %1285 = vst [vmem:[#allocation2 + $0xb0] sm:$0xff] %v1277
        %1286 = vst [vmem:[#allocation2 + $0xb8] sm:$0xff] %v1278
        %1287 = vrot.lane.b32.xlu0 %v1141, 1
        %v1288 = vpop.permute.xlu0 %1287
        %1289 = vrot.lane.b32.xlu0 %v1143, 1
        %v1290 = vpop.permute.xlu0 %1289
        %1291 = vrot.lane.b32.xlu0 %v1145, 1
        %v1292 = vpop.permute.xlu0 %1291
        %1293 = vrot.lane.b32.xlu0 %v1147, 1
        %v1294 = vpop.permute.xlu0 %1293
        %1295 = vrot.lane.b32.xlu0 %v1142, 1
        %v1296 = vpop.permute.xlu0 %1295
        %1297 = vrot.lane.b32.xlu0 %v1144, 1
        %v1298 = vpop.permute.xlu0 %1297
        %1299 = vrot.lane.b32.xlu0 %v1146, 1
        %v1300 = vpop.permute.xlu0 %1299
        %1301 = vrot.lane.b32.xlu0 %v1148, 1
        %v1302 = vpop.permute.xlu0 %1301
        %v1303 = vsel %vm558, %v1288, %v1296
        %v1304 = vsel %vm558, %v1290, %v1298
        %v1305 = vsel %vm558, %v1292, %v1300
        %v1306 = vsel %vm558, %v1294, %v1302
        %v1307 = vsel %vm558, %v1296, %v1288
        %v1308 = vsel %vm558, %v1298, %v1290
        %v1309 = vsel %vm558, %v1300, %v1292
        %v1310 = vsel %vm558, %v1302, %v1294
        %v1311 = vld [vmem:[%s567] sm:$0x3]
        %v1313 = vperm.slane %v1311, 0
        %v1314 = vperm.slane %v1311, 1
        %v1317 = vmul.f32 %v1307, %v1313
        %v1318 = vmul.f32 %v1303, %v1314
        %v1319 = vmul.f32 %v1308, %v1313
        %v1320 = vmul.f32 %v1304, %v1314
        %v1321 = vmul.f32 %v1309, %v1313
        %v1322 = vmul.f32 %v1305, %v1314
        %v1323 = vmul.f32 %v1310, %v1313
        %v1324 = vmul.f32 %v1306, %v1314
        %1325 = vst [vmem:[#allocation2 + $0xc0] sm:$0xff] %v1317
        %1326 = vst [vmem:[#allocation2 + $0xc8] sm:$0xff] %v1318
        %1327 = vst [vmem:[#allocation2 + $0xd0] sm:$0xff] %v1319
        %1328 = vst [vmem:[#allocation2 + $0xd8] sm:$0xff] %v1320
        %1329 = vst [vmem:[#allocation2 + $0xe0] sm:$0xff] %v1321
        %1330 = vst [vmem:[#allocation2 + $0xe8] sm:$0xff] %v1322
        %1331 = vst [vmem:[#allocation2 + $0xf0] sm:$0xff] %v1323
        %1332 = vst [vmem:[#allocation2 + $0xf8] sm:$0xff] %v1324
        %v1333 = vld [vmem:[%s590] sm:$0x3]
        %v1335 = vperm.slane %v1333, 0
        %v1336 = vperm.slane %v1333, 1
        %v1339 = vmul.f32 %v1141, %v1335
        %v1340 = vmul.f32 %v1142, %v1336
        %v1341 = vmul.f32 %v1143, %v1335
        %v1342 = vmul.f32 %v1144, %v1336
        %v1343 = vmul.f32 %v1145, %v1335
        %v1344 = vmul.f32 %v1146, %v1336
        %v1345 = vmul.f32 %v1147, %v1335
        %v1346 = vmul.f32 %v1148, %v1336
        %1347 = vst [vmem:[#allocation2 + $0x100] sm:$0xff] %v1339
        %1348 = vst [vmem:[#allocation2 + $0x108] sm:$0xff] %v1340
        %1349 = vst [vmem:[#allocation2 + $0x110] sm:$0xff] %v1341
        %1350 = vst [vmem:[#allocation2 + $0x118] sm:$0xff] %v1342
        %1351 = vst [vmem:[#allocation2 + $0x120] sm:$0xff] %v1343
        %1352 = vst [vmem:[#allocation2 + $0x128] sm:$0xff] %v1344
        %1353 = vst [vmem:[#allocation2 + $0x130] sm:$0xff] %v1345
        %1354 = vst [vmem:[#allocation2 + $0x138] sm:$0xff] %v1346
        %1355 = vrot.lane.b32.xlu0 %v1141, 127
        %v1356 = vpop.permute.xlu0 %1355
        %1357 = vrot.lane.b32.xlu0 %v1143, 127
        %v1358 = vpop.permute.xlu0 %1357
        %1359 = vrot.lane.b32.xlu0 %v1145, 127
        %v1360 = vpop.permute.xlu0 %1359
        %1361 = vrot.lane.b32.xlu0 %v1147, 127
        %v1362 = vpop.permute.xlu0 %1361
        %1363 = vrot.lane.b32.xlu0 %v1142, 127
        %v1364 = vpop.permute.xlu0 %1363
        %1365 = vrot.lane.b32.xlu0 %v1144, 127
        %v1366 = vpop.permute.xlu0 %1365
        %1367 = vrot.lane.b32.xlu0 %v1146, 127
        %v1368 = vpop.permute.xlu0 %1367
        %1369 = vrot.lane.b32.xlu0 %v1148, 127
        %v1370 = vpop.permute.xlu0 %1369
        %v1371 = vsel %vm629, %v1356, %v1364
        %v1372 = vsel %vm629, %v1358, %v1366
        %v1373 = vsel %vm629, %v1360, %v1368
        %v1374 = vsel %vm629, %v1362, %v1370
        %v1375 = vsel %vm629, %v1364, %v1356
        %v1376 = vsel %vm629, %v1366, %v1358
        %v1377 = vsel %vm629, %v1368, %v1360
        %v1378 = vsel %vm629, %v1370, %v1362
        %v1379 = vld [vmem:[%s638] sm:$0x3]
        %v1381 = vperm.slane %v1379, 0
        %v1382 = vperm.slane %v1379, 1
        %v1385 = vmul.f32 %v1371, %v1381
        %v1386 = vmul.f32 %v1375, %v1382
        %v1387 = vmul.f32 %v1372, %v1381
        %v1388 = vmul.f32 %v1376, %v1382
        %v1389 = vmul.f32 %v1373, %v1381
        %v1390 = vmul.f32 %v1377, %v1382
        %v1391 = vmul.f32 %v1374, %v1381
        %v1392 = vmul.f32 %v1378, %v1382
        %1393 = vst [vmem:[#allocation2 + $0x140] sm:$0xff] %v1385
        %1394 = vst [vmem:[#allocation2 + $0x148] sm:$0xff] %v1386
        %1395 = vst [vmem:[#allocation2 + $0x150] sm:$0xff] %v1387
        %1396 = vst [vmem:[#allocation2 + $0x158] sm:$0xff] %v1388
        %1397 = vst [vmem:[#allocation2 + $0x160] sm:$0xff] %v1389
        %1398 = vst [vmem:[#allocation2 + $0x168] sm:$0xff] %v1390
        %1399 = vst [vmem:[#allocation2 + $0x170] sm:$0xff] %v1391
        %1400 = vst [vmem:[#allocation2 + $0x178] sm:$0xff] %v1392
        %1401 = vrot.lane.b32.xlu0 %v1141, 113
        %v1402 = vpop.permute.xlu0 %1401
        %1403 = vrot.lane.b32.xlu0 %v1143, 113
        %v1404 = vpop.permute.xlu0 %1403
        %1405 = vrot.lane.b32.xlu0 %v1145, 113
        %v1406 = vpop.permute.xlu0 %1405
        %1407 = vrot.lane.b32.xlu0 %v1147, 113
        %v1408 = vpop.permute.xlu0 %1407
        %1409 = vrot.lane.b32.xlu0 %v1142, 113
        %v1410 = vpop.permute.xlu0 %1409
        %1411 = vrot.lane.b32.xlu0 %v1144, 113
        %v1412 = vpop.permute.xlu0 %1411
        %1413 = vrot.lane.b32.xlu0 %v1146, 113
        %v1414 = vpop.permute.xlu0 %1413
        %1415 = vrot.lane.b32.xlu0 %v1148, 113
        %v1416 = vpop.permute.xlu0 %1415
        %v1417 = vsel %vm677, %v1402, %v1410
        %v1418 = vsel %vm677, %v1404, %v1412
        %v1419 = vsel %vm677, %v1406, %v1414
        %v1420 = vsel %vm677, %v1408, %v1416
        %v1421 = vsel %vm677, %v1410, %v1402
        %v1422 = vsel %vm677, %v1412, %v1404
        %v1423 = vsel %vm677, %v1414, %v1406
        %v1424 = vsel %vm677, %v1416, %v1408
        %v1425 = vld [vmem:[%s686] sm:$0x3]
        %v1427 = vperm.slane %v1425, 0
        %v1428 = vperm.slane %v1425, 1
        %v1431 = vmul.f32 %v1417, %v1427
        %v1432 = vmul.f32 %v1421, %v1428
        %v1433 = vmul.f32 %v1418, %v1427
        %v1434 = vmul.f32 %v1422, %v1428
        %v1435 = vmul.f32 %v1419, %v1427
        %v1436 = vmul.f32 %v1423, %v1428
        %v1437 = vmul.f32 %v1420, %v1427
        %v1438 = vmul.f32 %v1424, %v1428
        %1439 = vst [vmem:[#allocation2 + $0x180] sm:$0xff] %v1431
        %1440 = vst [vmem:[#allocation2 + $0x188] sm:$0xff] %v1432
        %1441 = vst [vmem:[#allocation2 + $0x190] sm:$0xff] %v1433
        %1442 = vst [vmem:[#allocation2 + $0x198] sm:$0xff] %v1434
        %1443 = vst [vmem:[#allocation2 + $0x1a0] sm:$0xff] %v1435
        %1444 = vst [vmem:[#allocation2 + $0x1a8] sm:$0xff] %v1436
        %1445 = vst [vmem:[#allocation2 + $0x1b0] sm:$0xff] %v1437
        %1446 = vst [vmem:[#allocation2 + $0x1b8] sm:$0xff] %v1438
        %1447 = vrot.lane.b32.xlu0 %v1141, 112
        %v1448 = vpop.permute.xlu0 %1447
        %1449 = vrot.lane.b32.xlu0 %v1143, 112
        %v1450 = vpop.permute.xlu0 %1449
        %1451 = vrot.lane.b32.xlu0 %v1145, 112
        %v1452 = vpop.permute.xlu0 %1451
        %1453 = vrot.lane.b32.xlu0 %v1147, 112
        %v1454 = vpop.permute.xlu0 %1453
        %1455 = vrot.lane.b32.xlu0 %v1142, 112
        %v1456 = vpop.permute.xlu0 %1455
        %1457 = vrot.lane.b32.xlu0 %v1144, 112
        %v1458 = vpop.permute.xlu0 %1457
        %1459 = vrot.lane.b32.xlu0 %v1146, 112
        %v1460 = vpop.permute.xlu0 %1459
        %1461 = vrot.lane.b32.xlu0 %v1148, 112
        %v1462 = vpop.permute.xlu0 %1461
        %v1463 = vsel %vm725, %v1448, %v1456
        %v1464 = vsel %vm725, %v1450, %v1458
        %v1465 = vsel %vm725, %v1452, %v1460
        %v1466 = vsel %vm725, %v1454, %v1462
        %v1467 = vsel %vm725, %v1456, %v1448
        %v1468 = vsel %vm725, %v1458, %v1450
        %v1469 = vsel %vm725, %v1460, %v1452
        %v1470 = vsel %vm725, %v1462, %v1454
        %v1471 = vld [vmem:[%s734] sm:$0x3]
        %v1473 = vperm.slane %v1471, 0
        %v1474 = vperm.slane %v1471, 1
        %v1477 = vmul.f32 %v1463, %v1473
        %v1478 = vmul.f32 %v1467, %v1474
        %v1479 = vmul.f32 %v1464, %v1473
        %v1480 = vmul.f32 %v1468, %v1474
        %v1481 = vmul.f32 %v1465, %v1473
        %v1482 = vmul.f32 %v1469, %v1474
        %v1483 = vmul.f32 %v1466, %v1473
        %v1484 = vmul.f32 %v1470, %v1474
        %1485 = vst [vmem:[#allocation2 + $0x1c0] sm:$0xff] %v1477
        %1486 = vst [vmem:[#allocation2 + $0x1c8] sm:$0xff] %v1478
        %1487 = vst [vmem:[#allocation2 + $0x1d0] sm:$0xff] %v1479
        %1488 = vst [vmem:[#allocation2 + $0x1d8] sm:$0xff] %v1480
        %1489 = vst [vmem:[#allocation2 + $0x1e0] sm:$0xff] %v1481
        %1490 = vst [vmem:[#allocation2 + $0x1e8] sm:$0xff] %v1482
        %1491 = vst [vmem:[#allocation2 + $0x1f0] sm:$0xff] %v1483
        %1492 = vst [vmem:[#allocation2 + $0x1f8] sm:$0xff] %v1484
        %1493 = vrot.lane.b32.xlu0 %v1141, 111
        %v1494 = vpop.permute.xlu0 %1493
        %1495 = vrot.lane.b32.xlu0 %v1143, 111
        %v1496 = vpop.permute.xlu0 %1495
        %1497 = vrot.lane.b32.xlu0 %v1145, 111
        %v1498 = vpop.permute.xlu0 %1497
        %1499 = vrot.lane.b32.xlu0 %v1147, 111
        %v1500 = vpop.permute.xlu0 %1499
        %1501 = vrot.lane.b32.xlu0 %v1142, 111
        %v1502 = vpop.permute.xlu0 %1501
        %1503 = vrot.lane.b32.xlu0 %v1144, 111
        %v1504 = vpop.permute.xlu0 %1503
        %1505 = vrot.lane.b32.xlu0 %v1146, 111
        %v1506 = vpop.permute.xlu0 %1505
        %1507 = vrot.lane.b32.xlu0 %v1148, 111
        %v1508 = vpop.permute.xlu0 %1507
        %v1509 = vsel %vm773, %v1494, %v1502
        %v1510 = vsel %vm773, %v1496, %v1504
        %v1511 = vsel %vm773, %v1498, %v1506
        %v1512 = vsel %vm773, %v1500, %v1508
        %v1513 = vsel %vm773, %v1502, %v1494
        %v1514 = vsel %vm773, %v1504, %v1496
        %v1515 = vsel %vm773, %v1506, %v1498
        %v1516 = vsel %vm773, %v1508, %v1500
        %v1517 = vld [vmem:[%s782] sm:$0x3]
        %v1519 = vperm.slane %v1517, 0
        %v1520 = vperm.slane %v1517, 1
        %v1523 = vmul.f32 %v1509, %v1519
        %v1524 = vmul.f32 %v1513, %v1520
        %v1525 = vmul.f32 %v1510, %v1519
        %v1526 = vmul.f32 %v1514, %v1520
        %v1527 = vmul.f32 %v1511, %v1519
        %v1528 = vmul.f32 %v1515, %v1520
        %v1529 = vmul.f32 %v1512, %v1519
        %v1530 = vmul.f32 %v1516, %v1520
        %1531 = vst [vmem:[#allocation2 + $0x200] sm:$0xff] %v1523
        %1532 = vst [vmem:[#allocation2 + $0x208] sm:$0xff] %v1524
        %1533 = vst [vmem:[#allocation2 + $0x210] sm:$0xff] %v1525
        %1534 = vst [vmem:[#allocation2 + $0x218] sm:$0xff] %v1526
        %1535 = vst [vmem:[#allocation2 + $0x220] sm:$0xff] %v1527
        %1536 = vst [vmem:[#allocation2 + $0x228] sm:$0xff] %v1528
        %1537 = vst [vmem:[#allocation2 + $0x230] sm:$0xff] %v1529
        %1538 = vst [vmem:[#allocation2 + $0x238] sm:$0xff] %v1530
        %v1539 = vld [vmem:[#allocation3] sm:$0xff]
        %v1540 = vld [vmem:[#allocation3 + $0x8] sm:$0xff]
        %v1541 = vld [vmem:[#allocation3 + $0x10] sm:$0xff]
        %v1542 = vld [vmem:[#allocation3 + $0x18] sm:$0xff]
        %v1543 = vld [vmem:[#allocation3 + $0x20] sm:$0xff]
        %v1544 = vld [vmem:[#allocation3 + $0x28] sm:$0xff]
        %v1545 = vld [vmem:[#allocation3 + $0x30] sm:$0xff]
        %v1546 = vld [vmem:[#allocation3 + $0x38] sm:$0xff]
        %v1547 = vld [vmem:[#allocation3 + $0x40] sm:$0xff]
        %v1548 = vld [vmem:[#allocation3 + $0x48] sm:$0xff]
        %v1549 = vld [vmem:[#allocation3 + $0x50] sm:$0xff]
        %v1550 = vld [vmem:[#allocation3 + $0x58] sm:$0xff]
        %v1551 = vld [vmem:[#allocation2] sm:$0xff]
        %v1552 = vld [vmem:[#allocation2 + $0x8] sm:$0xff]
        %v1553 = vld [vmem:[#allocation2 + $0x10] sm:$0xff]
        %v1554 = vld [vmem:[#allocation2 + $0x18] sm:$0xff]
        %v1555 = vld [vmem:[#allocation2 + $0x20] sm:$0xff]
        %v1556 = vld [vmem:[#allocation2 + $0x28] sm:$0xff]
        %v1557 = vld [vmem:[#allocation2 + $0x30] sm:$0xff]
        %v1558 = vld [vmem:[#allocation2 + $0x38] sm:$0xff]
        %v1559 = vld [vmem:[#allocation2 + $0x40] sm:$0xff]
        %v1560 = vld [vmem:[#allocation2 + $0x48] sm:$0xff]
        %v1561 = vld [vmem:[#allocation2 + $0x50] sm:$0xff]
        %v1562 = vld [vmem:[#allocation2 + $0x58] sm:$0xff]
        %v1563 = vld [vmem:[#allocation2 + $0x60] sm:$0xff]
        %v1564 = vld [vmem:[#allocation2 + $0x68] sm:$0xff]
        %v1565 = vld [vmem:[#allocation2 + $0x70] sm:$0xff]
        %v1566 = vld [vmem:[#allocation2 + $0x78] sm:$0xff]
        %v1567 = vld [vmem:[#allocation2 + $0x80] sm:$0xff]
        %v1568 = vld [vmem:[#allocation2 + $0x88] sm:$0xff]
        %v1569 = vld [vmem:[#allocation2 + $0x90] sm:$0xff]
        %v1570 = vld [vmem:[#allocation2 + $0x98] sm:$0xff]
        %v1571 = vld [vmem:[#allocation2 + $0xa0] sm:$0xff]
        %v1572 = vld [vmem:[#allocation2 + $0xa8] sm:$0xff]
        %v1573 = vld [vmem:[#allocation2 + $0xb0] sm:$0xff]
        %v1574 = vld [vmem:[#allocation2 + $0xb8] sm:$0xff]
        %v1575 = vld [vmem:[#allocation2 + $0xc0] sm:$0xff]
        %v1576 = vld [vmem:[#allocation2 + $0xc8] sm:$0xff]
        %v1577 = vld [vmem:[#allocation2 + $0xd0] sm:$0xff]
        %v1578 = vld [vmem:[#allocation2 + $0xd8] sm:$0xff]
        %v1579 = vld [vmem:[#allocation2 + $0xe0] sm:$0xff]
        %v1580 = vld [vmem:[#allocation2 + $0xe8] sm:$0xff]
        %v1581 = vld [vmem:[#allocation2 + $0xf0] sm:$0xff]
        %v1582 = vld [vmem:[#allocation2 + $0xf8] sm:$0xff]
        %v1583 = vld [vmem:[#allocation2 + $0x100] sm:$0xff]
        %v1584 = vld [vmem:[#allocation2 + $0x108] sm:$0xff]
        %v1585 = vld [vmem:[#allocation2 + $0x110] sm:$0xff]
        %v1586 = vld [vmem:[#allocation2 + $0x118] sm:$0xff]
        %v1587 = vld [vmem:[#allocation2 + $0x120] sm:$0xff]
        %v1588 = vld [vmem:[#allocation2 + $0x128] sm:$0xff]
        %v1589 = vld [vmem:[#allocation2 + $0x130] sm:$0xff]
        %v1590 = vld [vmem:[#allocation2 + $0x138] sm:$0xff]
        %v1591 = vld [vmem:[#allocation2 + $0x140] sm:$0xff]
        %v1592 = vld [vmem:[#allocation2 + $0x148] sm:$0xff]
        %v1593 = vld [vmem:[#allocation2 + $0x150] sm:$0xff]
        %v1594 = vld [vmem:[#allocation2 + $0x158] sm:$0xff]
        %v1595 = vld [vmem:[#allocation2 + $0x160] sm:$0xff]
        %v1596 = vld [vmem:[#allocation2 + $0x168] sm:$0xff]
        %v1597 = vld [vmem:[#allocation2 + $0x170] sm:$0xff]
        %v1598 = vld [vmem:[#allocation2 + $0x178] sm:$0xff]
        %v1599 = vld [vmem:[#allocation2 + $0x180] sm:$0xff]
        %v1600 = vld [vmem:[#allocation2 + $0x188] sm:$0xff]
        %v1601 = vld [vmem:[#allocation2 + $0x190] sm:$0xff]
        %v1602 = vld [vmem:[#allocation2 + $0x198] sm:$0xff]
        %v1603 = vld [vmem:[#allocation2 + $0x1a0] sm:$0xff]
        %v1604 = vld [vmem:[#allocation2 + $0x1a8] sm:$0xff]
        %v1605 = vld [vmem:[#allocation2 + $0x1b0] sm:$0xff]
        %v1606 = vld [vmem:[#allocation2 + $0x1b8] sm:$0xff]
        %v1607 = vld [vmem:[#allocation2 + $0x1c0] sm:$0xff]
        %v1608 = vld [vmem:[#allocation2 + $0x1c8] sm:$0xff]
        %v1609 = vld [vmem:[#allocation2 + $0x1d0] sm:$0xff]
        %v1610 = vld [vmem:[#allocation2 + $0x1d8] sm:$0xff]
        %v1611 = vld [vmem:[#allocation2 + $0x1e0] sm:$0xff]
        %v1612 = vld [vmem:[#allocation2 + $0x1e8] sm:$0xff]
        %v1613 = vld [vmem:[#allocation2 + $0x1f0] sm:$0xff]
        %v1614 = vld [vmem:[#allocation2 + $0x1f8] sm:$0xff]
        %v1615 = vld [vmem:[#allocation2 + $0x200] sm:$0xff]
        %v1616 = vld [vmem:[#allocation2 + $0x208] sm:$0xff]
        %v1617 = vld [vmem:[#allocation2 + $0x210] sm:$0xff]
        %v1618 = vld [vmem:[#allocation2 + $0x218] sm:$0xff]
        %v1619 = vld [vmem:[#allocation2 + $0x220] sm:$0xff]
        %v1620 = vld [vmem:[#allocation2 + $0x228] sm:$0xff]
        %v1621 = vld [vmem:[#allocation2 + $0x230] sm:$0xff]
        %v1622 = vld [vmem:[#allocation2 + $0x238] sm:$0xff]
        %v1624 = vsel %vm889, %v1541, 0
        %v1627 = vsel %vm889, %v1544, 0
        %v1630 = vsel %vm889, %v1547, 0
        %v1633 = vsel %vm889, %v1550, 0
        %1635 = vmatpush.msra.mxu0 %v1581
        %1636 = vmatpush.msra.mxu0 %v1579
        %1637 = vmatpush.msra.mxu0 %v1577
        %1638 = vmatpush.msra.mxu0 %v1575
        %1639 = vmatpush.msra.mxu0 %v1573
        %1640 = vmatpush.msra.mxu0 %v1571
        %1641 = vmatpush.msra.mxu0 %v1569
        %1642 = vmatpush.msra.mxu0 %v1567
        %1643 = vmatpush.msra.mxu0 %v1565
        %1644 = vmatpush.msra.mxu0 %v1563
        %1645 = vmatpush.msra.mxu0 %v1561
        %1646 = vmatpush.msra.mxu0 %v1559
        %1647 = vmatpush.msra.mxu0 %v1557
        %1648 = vmatpush.msra.mxu0 %v1555
        %1649 = vmatpush.msra.mxu0 %v1553
        %1650 = vmatpush.msra.mxu0 %v1551
        %1651 = vmatmul.f32.gmra.mxu0 %v1539
        %v1652 = vpop.f32.mrf.mxu0
        %v1653 = vadd.f32 0.0, %v1652
        %1654 = vmatmul.f32.gmra.mxu0 %v1542
        %v1655 = vpop.f32.mrf.mxu0
        %v1656 = vadd.f32 0.0, %v1655
        %1657 = vmatmul.f32.gmra.mxu0 %v1545
        %v1658 = vpop.f32.mrf.mxu0
        %v1659 = vadd.f32 0.0, %v1658
        %1660 = vmatmul.f32.gmra.mxu0 %v1548
        %v1661 = vpop.f32.mrf.mxu0
        %v1662 = vadd.f32 0.0, %v1661
        %1663 = vdwg.mxu0
        %1664 = vmatpush.msra.mxu0 %v1613
        %1665 = vmatpush.msra.mxu0 %v1611
        %1666 = vmatpush.msra.mxu0 %v1609
        %1667 = vmatpush.msra.mxu0 %v1607
        %1668 = vmatpush.msra.mxu0 %v1605
        %1669 = vmatpush.msra.mxu0 %v1603
        %1670 = vmatpush.msra.mxu0 %v1601
        %1671 = vmatpush.msra.mxu0 %v1599
        %1672 = vmatpush.msra.mxu0 %v1597
        %1673 = vmatpush.msra.mxu0 %v1595
        %1674 = vmatpush.msra.mxu0 %v1593
        %1675 = vmatpush.msra.mxu0 %v1591
        %1676 = vmatpush.msra.mxu0 %v1589
        %1677 = vmatpush.msra.mxu0 %v1587
        %1678 = vmatpush.msra.mxu0 %v1585
        %1679 = vmatpush.msra.mxu0 %v1583
        %1680 = vmatmul.f32.gmra.mxu0 %v1540
        %v1681 = vpop.f32.mrf.mxu0
        %v1682 = vadd.f32 %v1653, %v1681
        %1683 = vmatmul.f32.gmra.mxu0 %v1543
        %v1684 = vpop.f32.mrf.mxu0
        %v1685 = vadd.f32 %v1656, %v1684
        %1686 = vmatmul.f32.gmra.mxu0 %v1546
        %v1687 = vpop.f32.mrf.mxu0
        %v1688 = vadd.f32 %v1659, %v1687
        %1689 = vmatmul.f32.gmra.mxu0 %v1549
        %v1690 = vpop.f32.mrf.mxu0
        %v1691 = vadd.f32 %v1662, %v1690
        %1692 = vdwg.mxu0
        %1693 = vmatpush.msra.mxu0 0.0
        %1694 = vmatpush.msra.mxu0 0.0
        %1695 = vmatpush.msra.mxu0 0.0
        %1696 = vmatpush.msra.mxu0 0.0
        %1697 = vmatpush.msra.mxu0 0.0
        %1698 = vmatpush.msra.mxu0 0.0
        %1699 = vmatpush.msra.mxu0 0.0
        %1700 = vmatpush.msra.mxu0 0.0
        %1701 = vmatpush.msra.mxu0 0.0
        %1702 = vmatpush.msra.mxu0 0.0
        %1703 = vmatpush.msra.mxu0 0.0
        %1704 = vmatpush.msra.mxu0 0.0
        %1705 = vmatpush.msra.mxu0 %v1621
        %1706 = vmatpush.msra.mxu0 %v1619
        %1707 = vmatpush.msra.mxu0 %v1617
        %1708 = vmatpush.msra.mxu0 %v1615
        %1709 = vmatmul.f32.gmra.mxu0 %v1624
        %v1710 = vpop.f32.mrf.mxu0
        %v1711 = vadd.f32 %v1682, %v1710
        %1712 = vmatmul.f32.gmra.mxu0 %v1627
        %v1713 = vpop.f32.mrf.mxu0
        %v1714 = vadd.f32 %v1685, %v1713
        %1715 = vmatmul.f32.gmra.mxu0 %v1630
        %v1716 = vpop.f32.mrf.mxu0
        %v1717 = vadd.f32 %v1688, %v1716
        %1718 = vmatmul.f32.gmra.mxu0 %v1633
        %v1719 = vpop.f32.mrf.mxu0
        %v1720 = vadd.f32 %v1691, %v1719
        %1721 = vdwg.mxu0
        %1722 = vmatpush.msra.mxu0 %v1582
        %1723 = vmatpush.msra.mxu0 %v1580
        %1724 = vmatpush.msra.mxu0 %v1578
        %1725 = vmatpush.msra.mxu0 %v1576
        %1726 = vmatpush.msra.mxu0 %v1574
        %1727 = vmatpush.msra.mxu0 %v1572
        %1728 = vmatpush.msra.mxu0 %v1570
        %1729 = vmatpush.msra.mxu0 %v1568
        %1730 = vmatpush.msra.mxu0 %v1566
        %1731 = vmatpush.msra.mxu0 %v1564
        %1732 = vmatpush.msra.mxu0 %v1562
        %1733 = vmatpush.msra.mxu0 %v1560
        %1734 = vmatpush.msra.mxu0 %v1558
        %1735 = vmatpush.msra.mxu0 %v1556
        %1736 = vmatpush.msra.mxu0 %v1554
        %1737 = vmatpush.msra.mxu0 %v1552
        %1738 = vmatmul.f32.gmra.mxu0 %v1539
        %v1739 = vpop.f32.mrf.mxu0
        %v1740 = vadd.f32 0.0, %v1739
        %1741 = vmatmul.f32.gmra.mxu0 %v1542
        %v1742 = vpop.f32.mrf.mxu0
        %v1743 = vadd.f32 0.0, %v1742
        %1744 = vmatmul.f32.gmra.mxu0 %v1545
        %v1745 = vpop.f32.mrf.mxu0
        %v1746 = vadd.f32 0.0, %v1745
        %1747 = vmatmul.f32.gmra.mxu0 %v1548
        %v1748 = vpop.f32.mrf.mxu0
        %v1749 = vadd.f32 0.0, %v1748
        %1750 = vdwg.mxu0
        %1751 = vmatpush.msra.mxu0 %v1614
        %1752 = vmatpush.msra.mxu0 %v1612
        %1753 = vmatpush.msra.mxu0 %v1610
        %1754 = vmatpush.msra.mxu0 %v1608
        %1755 = vmatpush.msra.mxu0 %v1606
        %1756 = vmatpush.msra.mxu0 %v1604
        %1757 = vmatpush.msra.mxu0 %v1602
        %1758 = vmatpush.msra.mxu0 %v1600
        %1759 = vmatpush.msra.mxu0 %v1598
        %1760 = vmatpush.msra.mxu0 %v1596
        %1761 = vmatpush.msra.mxu0 %v1594
        %1762 = vmatpush.msra.mxu0 %v1592
        %1763 = vmatpush.msra.mxu0 %v1590
        %1764 = vmatpush.msra.mxu0 %v1588
        %1765 = vmatpush.msra.mxu0 %v1586
        %1766 = vmatpush.msra.mxu0 %v1584
        %1767 = vmatmul.f32.gmra.mxu0 %v1540
        %v1768 = vpop.f32.mrf.mxu0
        %v1769 = vadd.f32 %v1740, %v1768
        %1770 = vmatmul.f32.gmra.mxu0 %v1543
        %v1771 = vpop.f32.mrf.mxu0
        %v1772 = vadd.f32 %v1743, %v1771
        %1773 = vmatmul.f32.gmra.mxu0 %v1546
        %v1774 = vpop.f32.mrf.mxu0
        %v1775 = vadd.f32 %v1746, %v1774
        %1776 = vmatmul.f32.gmra.mxu0 %v1549
        %v1777 = vpop.f32.mrf.mxu0
        %v1778 = vadd.f32 %v1749, %v1777
        %1779 = vdwg.mxu0
        %1780 = vmatpush.msra.mxu0 0.0
        %1781 = vmatpush.msra.mxu0 0.0
        %1782 = vmatpush.msra.mxu0 0.0
        %1783 = vmatpush.msra.mxu0 0.0
        %1784 = vmatpush.msra.mxu0 0.0
        %1785 = vmatpush.msra.mxu0 0.0
        %1786 = vmatpush.msra.mxu0 0.0
        %1787 = vmatpush.msra.mxu0 0.0
        %1788 = vmatpush.msra.mxu0 0.0
        %1789 = vmatpush.msra.mxu0 0.0
        %1790 = vmatpush.msra.mxu0 0.0
        %1791 = vmatpush.msra.mxu0 0.0
        %1792 = vmatpush.msra.mxu0 %v1622
        %1793 = vmatpush.msra.mxu0 %v1620
        %1794 = vmatpush.msra.mxu0 %v1618
        %1795 = vmatpush.msra.mxu0 %v1616
        %1796 = vmatmul.f32.gmra.mxu0 %v1624
        %v1797 = vpop.f32.mrf.mxu0
        %v1798 = vadd.f32 %v1769, %v1797
        %1799 = vmatmul.f32.gmra.mxu0 %v1627
        %v1800 = vpop.f32.mrf.mxu0
        %v1801 = vadd.f32 %v1772, %v1800
        %1802 = vmatmul.f32.gmra.mxu0 %v1630
        %v1803 = vpop.f32.mrf.mxu0
        %v1804 = vadd.f32 %v1775, %v1803
        %1805 = vmatmul.f32.gmra.mxu0 %v1633
        %v1806 = vpop.f32.mrf.mxu0
        %v1807 = vadd.f32 %v1778, %v1806
        %1808 = vdwg.mxu0
        %s1809 = scalar_lea.vmem %s3, 64
        %v1810 = vld [vmem:[%s1809] sm:$0xff]
        %v1811 = vld [vmem:[%s1809 + $0x8] sm:$0xff]
        %v1812 = vld [vmem:[%s1809 + $0x10] sm:$0xff]
        %v1813 = vld [vmem:[%s1809 + $0x18] sm:$0xff]
        %1815 = vset.pattern.permute.xlu0 0
        %1816 = vperm.xlu0 %1815, %v1810
        %v1817 = vpop.permute.xlu0 %1816
        %1820 = vset.pattern.permute.xlu0 0
        %1821 = vperm.xlu0 %1820, %v1811
        %v1822 = vpop.permute.xlu0 %1821
        %1825 = vset.pattern.permute.xlu0 0
        %1826 = vperm.xlu0 %1825, %v1812
        %v1827 = vpop.permute.xlu0 %1826
        %1830 = vset.pattern.permute.xlu0 0
        %1831 = vperm.xlu0 %1830, %v1813
        %v1832 = vpop.permute.xlu0 %1831
        %v1834 = vmul.f32 %v1711, %v1817
        %v1835 = vmul.f32 %v1798, %v1817
        %v1836 = vmul.f32 %v1714, %v1822
        %v1837 = vmul.f32 %v1801, %v1822
        %v1838 = vmul.f32 %v1717, %v1827
        %v1839 = vmul.f32 %v1804, %v1827
        %v1840 = vmul.f32 %v1720, %v1832
        %v1841 = vmul.f32 %v1807, %v1832
        %s1842 = scalar_lea.vmem %s3, 96
        %v1843 = vld [vmem:[%s1842] sm:$0xff]
        %v1844 = vld [vmem:[%s1842 + $0x8] sm:$0xff]
        %v1845 = vld [vmem:[%s1842 + $0x10] sm:$0xff]
        %v1846 = vld [vmem:[%s1842 + $0x18] sm:$0xff]
        %1848 = vset.pattern.permute.xlu0 0
        %1849 = vperm.xlu0 %1848, %v1843
        %v1850 = vpop.permute.xlu0 %1849
        %1853 = vset.pattern.permute.xlu0 0
        %1854 = vperm.xlu0 %1853, %v1844
        %v1855 = vpop.permute.xlu0 %1854
        %1858 = vset.pattern.permute.xlu0 0
        %1859 = vperm.xlu0 %1858, %v1845
        %v1860 = vpop.permute.xlu0 %1859
        %1863 = vset.pattern.permute.xlu0 0
        %1864 = vperm.xlu0 %1863, %v1846
        %v1865 = vpop.permute.xlu0 %1864
        %v1867 = vadd.f32 %v1834, %v1850
        %v1868 = vadd.f32 %v1835, %v1850
        %v1869 = vadd.f32 %v1836, %v1855
        %v1870 = vadd.f32 %v1837, %v1855
        %v1871 = vadd.f32 %v1838, %v1860
        %v1872 = vadd.f32 %v1839, %v1860
        %v1873 = vadd.f32 %v1840, %v1865
        %v1874 = vadd.f32 %v1841, %v1865
        %v1875 = vadd.f32 %v1867, %v1868
        %1876 = vadd.xlane.f32.xlu0 %v1875
        %v1877 = vpop.xlane.xlu0 %1876
        %v1878 = vadd.f32 %v1869, %v1870
        %1879 = vadd.xlane.f32.xlu0 %v1878
        %v1880 = vpop.xlane.xlu0 %1879
        %v1881 = vadd.f32 %v1871, %v1872
        %1882 = vadd.xlane.f32.xlu0 %v1881
        %v1883 = vpop.xlane.xlu0 %1882
        %v1884 = vadd.f32 %v1873, %v1874
        %1885 = vadd.xlane.f32.xlu0 %v1884
        %v1886 = vpop.xlane.xlu0 %1885
        %v1887 = vrcp.pop 256.0
        %v1888 = vmul.f32 256.0, %v1887
        %v1889 = vsub.f32 1.0, %v1888
        %v1890 = vmul.f32 %v1887, %v1889
        %v1891 = vadd.f32 %v1887, %v1890
        %vm1892 = vweird.f32 %v1887
        %v1893 = vsel %vm1892, %v1887, %v1891
        %v1894 = vmul.f32 %v1877, %v1893
        %v1895 = vmul.f32 %v1880, %v1893
        %v1896 = vmul.f32 %v1883, %v1893
        %v1897 = vmul.f32 %v1886, %v1893
        %v1898 = vld [vmem:[%s4] sm:$0x3]
        %v1900 = vsel %vm889, %v1898, 0
        %1902 = vmatpush.msra.mxu0 0.0
        %1903 = vmatpush.msra.mxu0 0.0
        %1904 = vmatpush.msra.mxu0 0.0
        %1905 = vmatpush.msra.mxu0 0.0
        %1906 = vmatpush.msra.mxu0 0.0
        %1907 = vmatpush.msra.mxu0 0.0
        %1908 = vmatpush.msra.mxu0 0.0
        %1909 = vmatpush.msra.mxu0 0.0
        %1910 = vmatpush.msra.mxu0 0.0
        %1911 = vmatpush.msra.mxu0 0.0
        %1912 = vmatpush.msra.mxu0 0.0
        %1913 = vmatpush.msra.mxu0 0.0
        %1914 = vmatpush.msra.mxu0 %v1897
        %1915 = vmatpush.msra.mxu0 %v1896
        %1916 = vmatpush.msra.mxu0 %v1895
        %1917 = vmatpush.msra.mxu0 %v1894
        %1918 = vmatmul.f32.gmra.mxu0 %v1900
        %v1919 = vpop.f32.mrf.mxu0
        %v1920 = vadd.f32 0.0, %v1919
        %1921 = vdwg.mxu0
        %v1922 = vmax.f32 %v1920, 0.0
        %v1923 = vld [vmem:[%s5] sm:$0xff]
        %v1924 = vld [vmem:[%s5 + $0x8] sm:$0xff]
        %v1925 = vld [vmem:[%s5 + $0x10] sm:$0xff]
        %v1926 = vld [vmem:[%s5 + $0x18] sm:$0xff]
        %vm1927 = vcmask 15360
        %v1929 = vsel %vm1927, %v1923, 0
        %v1932 = vsel %vm1927, %v1924, 0
        %v1935 = vsel %vm1927, %v1925, 0
        %v1938 = vsel %vm1927, %v1926, 0
        %vm1940 = vcmask 1041408
        %v1942 = vsel %vm1940, %v1922, 0
        %1944 = vmatpush.msra.mxu0 0.0
        %1945 = vmatpush.msra.mxu0 0.0
        %1946 = vmatpush.msra.mxu0 0.0
        %1947 = vmatpush.msra.mxu0 0.0
        %1948 = vmatpush.msra.mxu0 0.0
        %1949 = vmatpush.msra.mxu0 0.0
        %1950 = vmatpush.msra.mxu0 0.0
        %1951 = vmatpush.msra.mxu0 0.0
        %1952 = vmatpush.msra.mxu0 0.0
        %1953 = vmatpush.msra.mxu0 0.0
        %1954 = vmatpush.msra.mxu0 0.0
        %1955 = vmatpush.msra.mxu0 0.0
        %1956 = vmatpush.msra.mxu0 0.0
        %1957 = vmatpush.msra.mxu0 0.0
        %1958 = vmatpush.msra.mxu0 0.0
        %1959 = vmatpush.msra.mxu0 %v1942
        %1960 = vmatmul.f32.gmra.mxu0 %v1929
        %v1961 = vpop.f32.mrf.mxu0
        %v1962 = vadd.f32 0.0, %v1961
        %1963 = vmatmul.f32.gmra.mxu0 %v1932
        %v1964 = vpop.f32.mrf.mxu0
        %v1965 = vadd.f32 0.0, %v1964
        %1966 = vmatmul.f32.gmra.mxu0 %v1935
        %v1967 = vpop.f32.mrf.mxu0
        %v1968 = vadd.f32 0.0, %v1967
        %1969 = vmatmul.f32.gmra.mxu0 %v1938
        %v1970 = vpop.f32.mrf.mxu0
        %v1971 = vadd.f32 0.0, %v1970
        %1972 = vdwg.mxu0
        %v1973 = vadd.f32 %v1962, %v1962
        %v1974 = vadd.f32 %v1965, %v1965
        %v1975 = vadd.f32 %v1968, %v1968
        %v1976 = vadd.f32 %v1971, %v1971
        %v1977 = vsub.f32 0.0, %v1973
        %v1978 = vsub.f32 0.0, %v1974
        %v1979 = vsub.f32 0.0, %v1975
        %v1980 = vsub.f32 0.0, %v1976
        %v1981 = vmul.f32 %v1977, 1.442695
        %v1982 = vpow.pop %v1981
        %v1983 = vmul.f32 %v1978, 1.442695
        %v1984 = vpow.pop %v1983
        %v1985 = vmul.f32 %v1979, 1.442695
        %v1986 = vpow.pop %v1985
        %v1987 = vmul.f32 %v1980, 1.442695
        %v1988 = vpow.pop %v1987
        %v1989 = vadd.f32 %v1982, 1.0
        %v1990 = vadd.f32 %v1984, 1.0
        %v1991 = vadd.f32 %v1986, 1.0
        %v1992 = vadd.f32 %v1988, 1.0
        %v1993 = vrcp.pop %v1989
        %v1994 = vmul.f32 %v1989, %v1993
        %v1995 = vsub.f32 1.0, %v1994
        %v1996 = vmul.f32 %v1993, %v1995
        %v1997 = vadd.f32 %v1993, %v1996
        %vm1998 = vweird.f32 %v1989
        %vm1999 = vweird.f32 %v1993
        %vm2000 = vmor %vm1998, %vm1999
        %v2001 = vsel %vm2000, %v1993, %v1997
        %v2002 = vand.u32 2147483647, %v1989
        %vm2003 = vcmp.eq.f32.partialorder %v2002, 8.507059e+37
        %v2004 = vand.u32 %v1989, 2147483648
        %v2005 = vor.u32 1.1754944e-38, %v2004
        %v2006 = vsel %vm2003, %v2005, %v2001
        %v2007 = vmul.f32 1.0, %v2006
        %v2008 = vrcp.pop %v1990
        %v2009 = vmul.f32 %v1990, %v2008
        %v2010 = vsub.f32 1.0, %v2009
        %v2011 = vmul.f32 %v2008, %v2010
        %v2012 = vadd.f32 %v2008, %v2011
        %vm2013 = vweird.f32 %v1990
        %vm2014 = vweird.f32 %v2008
        %vm2015 = vmor %vm2013, %vm2014
        %v2016 = vsel %vm2015, %v2008, %v2012
        %v2017 = vand.u32 2147483647, %v1990
        %vm2018 = vcmp.eq.f32.partialorder %v2017, 8.507059e+37
        %v2019 = vand.u32 %v1990, 2147483648
        %v2020 = vor.u32 1.1754944e-38, %v2019
        %v2021 = vsel %vm2018, %v2020, %v2016
        %v2022 = vmul.f32 1.0, %v2021
        %v2023 = vrcp.pop %v1991
        %v2024 = vmul.f32 %v1991, %v2023
        %v2025 = vsub.f32 1.0, %v2024
        %v2026 = vmul.f32 %v2023, %v2025
        %v2027 = vadd.f32 %v2023, %v2026
        %vm2028 = vweird.f32 %v1991
        %vm2029 = vweird.f32 %v2023
        %vm2030 = vmor %vm2028, %vm2029
        %v2031 = vsel %vm2030, %v2023, %v2027
        %v2032 = vand.u32 2147483647, %v1991
        %vm2033 = vcmp.eq.f32.partialorder %v2032, 8.507059e+37
        %v2034 = vand.u32 %v1991, 2147483648
        %v2035 = vor.u32 1.1754944e-38, %v2034
        %v2036 = vsel %vm2033, %v2035, %v2031
        %v2037 = vmul.f32 1.0, %v2036
        %v2038 = vrcp.pop %v1992
        %v2039 = vmul.f32 %v1992, %v2038
        %v2040 = vsub.f32 1.0, %v2039
        %v2041 = vmul.f32 %v2038, %v2040
        %v2042 = vadd.f32 %v2038, %v2041
        %vm2043 = vweird.f32 %v1992
        %vm2044 = vweird.f32 %v2038
        %vm2045 = vmor %vm2043, %vm2044
        %v2046 = vsel %vm2045, %v2038, %v2042
        %v2047 = vand.u32 2147483647, %v1992
        %vm2048 = vcmp.eq.f32.partialorder %v2047, 8.507059e+37
        %v2049 = vand.u32 %v1992, 2147483648
        %v2050 = vor.u32 1.1754944e-38, %v2049
        %v2051 = vsel %vm2048, %v2050, %v2046
        %v2052 = vmul.f32 1.0, %v2051
        %2054 = vset.pattern.permute.xlu0 0
        %2055 = vperm.xlu0 %2054, %v2007
        %v2056 = vpop.permute.xlu0 %2055
        %2059 = vset.pattern.permute.xlu0 0
        %2060 = vperm.xlu0 %2059, %v2022
        %v2061 = vpop.permute.xlu0 %2060
        %2064 = vset.pattern.permute.xlu0 0
        %2065 = vperm.xlu0 %2064, %v2037
        %v2066 = vpop.permute.xlu0 %2065
        %2069 = vset.pattern.permute.xlu0 0
        %2070 = vperm.xlu0 %2069, %v2052
        %v2071 = vpop.permute.xlu0 %2070
        %v2073 = vmul.f32 %v1867, %v2056
        %v2074 = vmul.f32 %v1868, %v2056
        %v2075 = vmul.f32 %v1869, %v2061
        %v2076 = vmul.f32 %v1870, %v2061
        %v2077 = vmul.f32 %v1871, %v2066
        %v2078 = vmul.f32 %v1872, %v2066
        %v2079 = vmul.f32 %v1873, %v2071
        %v2080 = vmul.f32 %v1874, %v2071
        %v2081 = vadd.f32 %v2073, %v2075
        %v2082 = vadd.f32 %v2081, %v2077
        %v2083 = vadd.f32 %v2082, %v2079
        %v2084 = vrot.slane %v2083, 4
        %v2085 = vadd.f32 %v2083, %v2084
        %v2086 = vrot.slane %v2085, 2
        %v2087 = vadd.f32 %v2085, %v2086
        %v2088 = vrot.slane %v2087, 1
        %v2089 = vadd.f32 %v2087, %v2088
        %v2090 = vadd.f32 %v2074, %v2076
        %v2091 = vadd.f32 %v2090, %v2078
        %v2092 = vadd.f32 %v2091, %v2080
        %v2093 = vrot.slane %v2092, 4
        %v2094 = vadd.f32 %v2092, %v2093
        %v2095 = vrot.slane %v2094, 2
        %v2096 = vadd.f32 %v2094, %v2095
        %v2097 = vrot.slane %v2096, 1
        %v2098 = vadd.f32 %v2096, %v2097
        %v2099 = vrcp.pop 32.0
        %v2100 = vmul.f32 32.0, %v2099
        %v2101 = vsub.f32 1.0, %v2100
        %v2102 = vmul.f32 %v2099, %v2101
        %v2103 = vadd.f32 %v2099, %v2102
        %vm2104 = vweird.f32 %v2099
        %v2105 = vsel %vm2104, %v2099, %v2103
        %v2106 = vmul.f32 %v2089, %v2105
        %v2107 = vmul.f32 %v2098, %v2105
        %v2108 = vmax.f32 %v2073, %v2077
        %v2109 = vmax.f32 %v2075, %v2079
        %v2110 = vmax.f32 %v2108, %v2109
        %v2111 = vrot.slane %v2110, 4
        %v2112 = vmax.f32 %v2110, %v2111
        %v2113 = vrot.slane %v2112, 2
        %v2114 = vmax.f32 %v2112, %v2113
        %v2115 = vrot.slane %v2114, 1
        %v2116 = vmax.f32 %v2114, %v2115
        %v2117 = vmax.f32 %v2074, %v2078
        %v2118 = vmax.f32 %v2076, %v2080
        %v2119 = vmax.f32 %v2117, %v2118
        %v2120 = vrot.slane %v2119, 4
        %v2121 = vmax.f32 %v2119, %v2120
        %v2122 = vrot.slane %v2121, 2
        %v2123 = vmax.f32 %v2121, %v2122
        %v2124 = vrot.slane %v2123, 1
        %v2125 = vmax.f32 %v2123, %v2124
        %2126 = vrot.lane.b32.xlu0 %v2106, 51
        %v2127 = vpop.permute.xlu0 %2126
        %2128 = vrot.lane.b32.xlu0 %v2107, 51
        %v2129 = vpop.permute.xlu0 %2128
        %vm2130 = vcmp.lt.s32.totalorder %v414, 51
        %v2131 = vsel %vm2130, %v2127, %v2129
        %v2132 = vsel %vm2130, %v2129, %v2127
        %2133 = vrot.lane.b32.xlu0 %v2116, 51
        %v2134 = vpop.permute.xlu0 %2133
        %2135 = vrot.lane.b32.xlu0 %v2125, 51
        %v2136 = vpop.permute.xlu0 %2135
        %v2137 = vsel %vm2130, %v2134, %v2136
        %v2138 = vsel %vm2130, %v2136, %v2134
        %v2139 = vld [vmem:[%s8] sm:$0x3]
        %v2140 = vld [vmem:[%s6] sm:$0x7]
        %v2142 = vperm.slane %v2139, 0
        %v2143 = vperm.slane %v2139, 1
        %v2146 = vmul.f32 %v2132, %v2142
        %v2147 = vmul.f32 %v2131, %v2143
        %2149 = vset.pattern.permute.xlu0 0
        %2150 = vperm.xlu0 %2149, %v2140
        %v2151 = vpop.permute.xlu0 %2150
        %v2153 = vperm.slane %v2146, 0
        %v2154 = vperm.slane %v2147, 0
        %v2155 = vmul.f32 %v2151, %v2153
        %v2156 = vmul.f32 %v2151, %v2154
        %v2157 = vadd.f32 %v2155, 0.0
        %v2158 = vadd.f32 %v2156, 0.0
        %v2159 = vmul.f32 %v2138, %v2142
        %v2160 = vmul.f32 %v2137, %v2143
        %2161 = vset.pattern.permute.xlu0 1
        %2162 = vperm.xlu0 %2161, %v2140
        %v2163 = vpop.permute.xlu0 %2162
        %v2165 = vperm.slane %v2159, 0
        %v2166 = vperm.slane %v2160, 0
        %v2167 = vmul.f32 %v2163, %v2165
        %v2168 = vmul.f32 %v2163, %v2166
        %v2169 = vadd.f32 %v2157, %v2167
        %v2170 = vadd.f32 %v2158, %v2168
        %2171 = vrot.lane.b32.xlu0 %v2106, 50
        %v2172 = vpop.permute.xlu0 %2171
        %2173 = vrot.lane.b32.xlu0 %v2107, 50
        %v2174 = vpop.permute.xlu0 %2173
        %vm2175 = vcmp.lt.s32.totalorder %v414, 50
        %v2176 = vsel %vm2175, %v2172, %v2174
        %v2177 = vsel %vm2175, %v2174, %v2172
        %2178 = vrot.lane.b32.xlu0 %v2116, 50
        %v2179 = vpop.permute.xlu0 %2178
        %2180 = vrot.lane.b32.xlu0 %v2125, 50
        %v2181 = vpop.permute.xlu0 %2180
        %v2182 = vsel %vm2175, %v2179, %v2181
        %v2183 = vsel %vm2175, %v2181, %v2179
        %s2184 = scalar_lea.vmem %s8, 2
        %v2185 = vld [vmem:[%s2184] sm:$0x3]
        %s2186 = scalar_lea.vmem %s6, 4
        %v2187 = vld [vmem:[%s2186] sm:$0x7]
        %v2189 = vperm.slane %v2185, 0
        %v2190 = vperm.slane %v2185, 1
        %v2193 = vmul.f32 %v2177, %v2189
        %v2194 = vmul.f32 %v2176, %v2190
        %2196 = vset.pattern.permute.xlu0 0
        %2197 = vperm.xlu0 %2196, %v2187
        %v2198 = vpop.permute.xlu0 %2197
        %v2200 = vperm.slane %v2193, 0
        %v2201 = vperm.slane %v2194, 0
        %v2202 = vmul.f32 %v2198, %v2200
        %v2203 = vmul.f32 %v2198, %v2201
        %v2204 = vadd.f32 %v2169, %v2202
        %v2205 = vadd.f32 %v2170, %v2203
        %v2206 = vmul.f32 %v2183, %v2189
        %v2207 = vmul.f32 %v2182, %v2190
        %2208 = vset.pattern.permute.xlu0 1
        %2209 = vperm.xlu0 %2208, %v2187
        %v2210 = vpop.permute.xlu0 %2209
        %v2212 = vperm.slane %v2206, 0
        %v2213 = vperm.slane %v2207, 0
        %v2214 = vmul.f32 %v2210, %v2212
        %v2215 = vmul.f32 %v2210, %v2213
        %v2216 = vadd.f32 %v2204, %v2214
        %v2217 = vadd.f32 %v2205, %v2215
        %2218 = vrot.lane.b32.xlu0 %v2106, 49
        %v2219 = vpop.permute.xlu0 %2218
        %2220 = vrot.lane.b32.xlu0 %v2107, 49
        %v2221 = vpop.permute.xlu0 %2220
        %vm2222 = vcmp.lt.s32.totalorder %v414, 49
        %v2223 = vsel %vm2222, %v2219, %v2221
        %v2224 = vsel %vm2222, %v2221, %v2219
        %2225 = vrot.lane.b32.xlu0 %v2116, 49
        %v2226 = vpop.permute.xlu0 %2225
        %2227 = vrot.lane.b32.xlu0 %v2125, 49
        %v2228 = vpop.permute.xlu0 %2227
        %v2229 = vsel %vm2222, %v2226, %v2228
        %v2230 = vsel %vm2222, %v2228, %v2226
        %s2231 = scalar_lea.vmem %s8, 4
        %v2232 = vld [vmem:[%s2231] sm:$0x3]
        %s2233 = scalar_lea.vmem %s6, 8
        %v2234 = vld [vmem:[%s2233] sm:$0x7]
        %v2236 = vperm.slane %v2232, 0
        %v2237 = vperm.slane %v2232, 1
        %v2240 = vmul.f32 %v2224, %v2236
        %v2241 = vmul.f32 %v2223, %v2237
        %2243 = vset.pattern.permute.xlu0 0
        %2244 = vperm.xlu0 %2243, %v2234
        %v2245 = vpop.permute.xlu0 %2244
        %v2247 = vperm.slane %v2240, 0
        %v2248 = vperm.slane %v2241, 0
        %v2249 = vmul.f32 %v2245, %v2247
        %v2250 = vmul.f32 %v2245, %v2248
        %v2251 = vadd.f32 %v2216, %v2249
        %v2252 = vadd.f32 %v2217, %v2250
        %v2253 = vmul.f32 %v2230, %v2236
        %v2254 = vmul.f32 %v2229, %v2237
        %2255 = vset.pattern.permute.xlu0 1
        %2256 = vperm.xlu0 %2255, %v2234
        %v2257 = vpop.permute.xlu0 %2256
        %v2259 = vperm.slane %v2253, 0
        %v2260 = vperm.slane %v2254, 0
        %v2261 = vmul.f32 %v2257, %v2259
        %v2262 = vmul.f32 %v2257, %v2260
        %v2263 = vadd.f32 %v2251, %v2261
        %v2264 = vadd.f32 %v2252, %v2262
        %2265 = vrot.lane.b32.xlu0 %v2106, 48
        %v2266 = vpop.permute.xlu0 %2265
        %2267 = vrot.lane.b32.xlu0 %v2107, 48
        %v2268 = vpop.permute.xlu0 %2267
        %vm2269 = vcmp.lt.s32.totalorder %v414, 48
        %v2270 = vsel %vm2269, %v2266, %v2268
        %v2271 = vsel %vm2269, %v2268, %v2266
        %2272 = vrot.lane.b32.xlu0 %v2116, 48
        %v2273 = vpop.permute.xlu0 %2272
        %2274 = vrot.lane.b32.xlu0 %v2125, 48
        %v2275 = vpop.permute.xlu0 %2274
        %v2276 = vsel %vm2269, %v2273, %v2275
        %v2277 = vsel %vm2269, %v2275, %v2273
        %s2278 = scalar_lea.vmem %s8, 6
        %v2279 = vld [vmem:[%s2278] sm:$0x3]
        %s2280 = scalar_lea.vmem %s6, 12
        %v2281 = vld [vmem:[%s2280] sm:$0x7]
        %v2283 = vperm.slane %v2279, 0
        %v2284 = vperm.slane %v2279, 1
        %v2287 = vmul.f32 %v2271, %v2283
        %v2288 = vmul.f32 %v2270, %v2284
        %2290 = vset.pattern.permute.xlu0 0
        %2291 = vperm.xlu0 %2290, %v2281
        %v2292 = vpop.permute.xlu0 %2291
        %v2294 = vperm.slane %v2287, 0
        %v2295 = vperm.slane %v2288, 0
        %v2296 = vmul.f32 %v2292, %v2294
        %v2297 = vmul.f32 %v2292, %v2295
        %v2298 = vadd.f32 %v2263, %v2296
        %v2299 = vadd.f32 %v2264, %v2297
        %v2300 = vmul.f32 %v2277, %v2283
        %v2301 = vmul.f32 %v2276, %v2284
        %2302 = vset.pattern.permute.xlu0 1
        %2303 = vperm.xlu0 %2302, %v2281
        %v2304 = vpop.permute.xlu0 %2303
        %v2306 = vperm.slane %v2300, 0
        %v2307 = vperm.slane %v2301, 0
        %v2308 = vmul.f32 %v2304, %v2306
        %v2309 = vmul.f32 %v2304, %v2307
        %v2310 = vadd.f32 %v2298, %v2308
        %v2311 = vadd.f32 %v2299, %v2309
        %2312 = vrot.lane.b32.xlu0 %v2106, 47
        %v2313 = vpop.permute.xlu0 %2312
        %2314 = vrot.lane.b32.xlu0 %v2107, 47
        %v2315 = vpop.permute.xlu0 %2314
        %vm2316 = vcmp.lt.s32.totalorder %v414, 47
        %v2317 = vsel %vm2316, %v2313, %v2315
        %v2318 = vsel %vm2316, %v2315, %v2313
        %2319 = vrot.lane.b32.xlu0 %v2116, 47
        %v2320 = vpop.permute.xlu0 %2319
        %2321 = vrot.lane.b32.xlu0 %v2125, 47
        %v2322 = vpop.permute.xlu0 %2321
        %v2323 = vsel %vm2316, %v2320, %v2322
        %v2324 = vsel %vm2316, %v2322, %v2320
        %s2325 = scalar_lea.vmem %s8, 8
        %v2326 = vld [vmem:[%s2325] sm:$0x3]
        %s2327 = scalar_lea.vmem %s6, 16
        %v2328 = vld [vmem:[%s2327] sm:$0x7]
        %v2330 = vperm.slane %v2326, 0
        %v2331 = vperm.slane %v2326, 1
        %v2334 = vmul.f32 %v2318, %v2330
        %v2335 = vmul.f32 %v2317, %v2331
        %2337 = vset.pattern.permute.xlu0 0
        %2338 = vperm.xlu0 %2337, %v2328
        %v2339 = vpop.permute.xlu0 %2338
        %v2341 = vperm.slane %v2334, 0
        %v2342 = vperm.slane %v2335, 0
        %v2343 = vmul.f32 %v2339, %v2341
        %v2344 = vmul.f32 %v2339, %v2342
        %v2345 = vadd.f32 %v2310, %v2343
        %v2346 = vadd.f32 %v2311, %v2344
        %v2347 = vmul.f32 %v2324, %v2330
        %v2348 = vmul.f32 %v2323, %v2331
        %2349 = vset.pattern.permute.xlu0 1
        %2350 = vperm.xlu0 %2349, %v2328
        %v2351 = vpop.permute.xlu0 %2350
        %v2353 = vperm.slane %v2347, 0
        %v2354 = vperm.slane %v2348, 0
        %v2355 = vmul.f32 %v2351, %v2353
        %v2356 = vmul.f32 %v2351, %v2354
        %v2357 = vadd.f32 %v2345, %v2355
        %v2358 = vadd.f32 %v2346, %v2356
        %2359 = vrot.lane.b32.xlu0 %v2106, 46
        %v2360 = vpop.permute.xlu0 %2359
        %2361 = vrot.lane.b32.xlu0 %v2107, 46
        %v2362 = vpop.permute.xlu0 %2361
        %vm2363 = vcmp.lt.s32.totalorder %v414, 46
        %v2364 = vsel %vm2363, %v2360, %v2362
        %v2365 = vsel %vm2363, %v2362, %v2360
        %2366 = vrot.lane.b32.xlu0 %v2116, 46
        %v2367 = vpop.permute.xlu0 %2366
        %2368 = vrot.lane.b32.xlu0 %v2125, 46
        %v2369 = vpop.permute.xlu0 %2368
        %v2370 = vsel %vm2363, %v2367, %v2369
        %v2371 = vsel %vm2363, %v2369, %v2367
        %s2372 = scalar_lea.vmem %s8, 10
        %v2373 = vld [vmem:[%s2372] sm:$0x3]
        %s2374 = scalar_lea.vmem %s6, 20
        %v2375 = vld [vmem:[%s2374] sm:$0x7]
        %v2377 = vperm.slane %v2373, 0
        %v2378 = vperm.slane %v2373, 1
        %v2381 = vmul.f32 %v2365, %v2377
        %v2382 = vmul.f32 %v2364, %v2378
        %2384 = vset.pattern.permute.xlu0 0
        %2385 = vperm.xlu0 %2384, %v2375
        %v2386 = vpop.permute.xlu0 %2385
        %v2388 = vperm.slane %v2381, 0
        %v2389 = vperm.slane %v2382, 0
        %v2390 = vmul.f32 %v2386, %v2388
        %v2391 = vmul.f32 %v2386, %v2389
        %v2392 = vadd.f32 %v2357, %v2390
        %v2393 = vadd.f32 %v2358, %v2391
        %v2394 = vmul.f32 %v2371, %v2377
        %v2395 = vmul.f32 %v2370, %v2378
        %2396 = vset.pattern.permute.xlu0 1
        %2397 = vperm.xlu0 %2396, %v2375
        %v2398 = vpop.permute.xlu0 %2397
        %v2400 = vperm.slane %v2394, 0
        %v2401 = vperm.slane %v2395, 0
        %v2402 = vmul.f32 %v2398, %v2400
        %v2403 = vmul.f32 %v2398, %v2401
        %v2404 = vadd.f32 %v2392, %v2402
        %v2405 = vadd.f32 %v2393, %v2403
        %2406 = vrot.lane.b32.xlu0 %v2106, 45
        %v2407 = vpop.permute.xlu0 %2406
        %2408 = vrot.lane.b32.xlu0 %v2107, 45
        %v2409 = vpop.permute.xlu0 %2408
        %vm2410 = vcmp.lt.s32.totalorder %v414, 45
        %v2411 = vsel %vm2410, %v2407, %v2409
        %v2412 = vsel %vm2410, %v2409, %v2407
        %2413 = vrot.lane.b32.xlu0 %v2116, 45
        %v2414 = vpop.permute.xlu0 %2413
        %2415 = vrot.lane.b32.xlu0 %v2125, 45
        %v2416 = vpop.permute.xlu0 %2415
        %v2417 = vsel %vm2410, %v2414, %v2416
        %v2418 = vsel %vm2410, %v2416, %v2414
        %s2419 = scalar_lea.vmem %s8, 12
        %v2420 = vld [vmem:[%s2419] sm:$0x3]
        %s2421 = scalar_lea.vmem %s6, 24
        %v2422 = vld [vmem:[%s2421] sm:$0x7]
        %v2424 = vperm.slane %v2420, 0
        %v2425 = vperm.slane %v2420, 1
        %v2428 = vmul.f32 %v2412, %v2424
        %v2429 = vmul.f32 %v2411, %v2425
        %2431 = vset.pattern.permute.xlu0 0
        %2432 = vperm.xlu0 %2431, %v2422
        %v2433 = vpop.permute.xlu0 %2432
        %v2435 = vperm.slane %v2428, 0
        %v2436 = vperm.slane %v2429, 0
        %v2437 = vmul.f32 %v2433, %v2435
        %v2438 = vmul.f32 %v2433, %v2436
        %v2439 = vadd.f32 %v2404, %v2437
        %v2440 = vadd.f32 %v2405, %v2438
        %v2441 = vmul.f32 %v2418, %v2424
        %v2442 = vmul.f32 %v2417, %v2425
        %2443 = vset.pattern.permute.xlu0 1
        %2444 = vperm.xlu0 %2443, %v2422
        %v2445 = vpop.permute.xlu0 %2444
        %v2447 = vperm.slane %v2441, 0
        %v2448 = vperm.slane %v2442, 0
        %v2449 = vmul.f32 %v2445, %v2447
        %v2450 = vmul.f32 %v2445, %v2448
        %v2451 = vadd.f32 %v2439, %v2449
        %v2452 = vadd.f32 %v2440, %v2450
        %2453 = vrot.lane.b32.xlu0 %v2106, 35
        %v2454 = vpop.permute.xlu0 %2453
        %2455 = vrot.lane.b32.xlu0 %v2107, 35
        %v2456 = vpop.permute.xlu0 %2455
        %vm2457 = vcmp.lt.s32.totalorder %v414, 35
        %v2458 = vsel %vm2457, %v2454, %v2456
        %v2459 = vsel %vm2457, %v2456, %v2454
        %2460 = vrot.lane.b32.xlu0 %v2116, 35
        %v2461 = vpop.permute.xlu0 %2460
        %2462 = vrot.lane.b32.xlu0 %v2125, 35
        %v2463 = vpop.permute.xlu0 %2462
        %v2464 = vsel %vm2457, %v2461, %v2463
        %v2465 = vsel %vm2457, %v2463, %v2461
        %s2466 = scalar_lea.vmem %s8, 14
        %v2467 = vld [vmem:[%s2466] sm:$0x3]
        %s2468 = scalar_lea.vmem %s6, 28
        %v2469 = vld [vmem:[%s2468] sm:$0x7]
        %v2471 = vperm.slane %v2467, 0
        %v2472 = vperm.slane %v2467, 1
        %v2475 = vmul.f32 %v2459, %v2471
        %v2476 = vmul.f32 %v2458, %v2472
        %2478 = vset.pattern.permute.xlu0 0
        %2479 = vperm.xlu0 %2478, %v2469
        %v2480 = vpop.permute.xlu0 %2479
        %v2482 = vperm.slane %v2475, 0
        %v2483 = vperm.slane %v2476, 0
        %v2484 = vmul.f32 %v2480, %v2482
        %v2485 = vmul.f32 %v2480, %v2483
        %v2486 = vadd.f32 %v2451, %v2484
        %v2487 = vadd.f32 %v2452, %v2485
        %v2488 = vmul.f32 %v2465, %v2471
        %v2489 = vmul.f32 %v2464, %v2472
        %2490 = vset.pattern.permute.xlu0 1
        %2491 = vperm.xlu0 %2490, %v2469
        %v2492 = vpop.permute.xlu0 %2491
        %v2494 = vperm.slane %v2488, 0
        %v2495 = vperm.slane %v2489, 0
        %v2496 = vmul.f32 %v2492, %v2494
        %v2497 = vmul.f32 %v2492, %v2495
        %v2498 = vadd.f32 %v2486, %v2496
        %v2499 = vadd.f32 %v2487, %v2497
        %2500 = vrot.lane.b32.xlu0 %v2106, 34
        %v2501 = vpop.permute.xlu0 %2500
        %2502 = vrot.lane.b32.xlu0 %v2107, 34
        %v2503 = vpop.permute.xlu0 %2502
        %vm2504 = vcmp.lt.s32.totalorder %v414, 34
        %v2505 = vsel %vm2504, %v2501, %v2503
        %v2506 = vsel %vm2504, %v2503, %v2501
        %2507 = vrot.lane.b32.xlu0 %v2116, 34
        %v2508 = vpop.permute.xlu0 %2507
        %2509 = vrot.lane.b32.xlu0 %v2125, 34
        %v2510 = vpop.permute.xlu0 %2509
        %v2511 = vsel %vm2504, %v2508, %v2510
        %v2512 = vsel %vm2504, %v2510, %v2508
        %s2513 = scalar_lea.vmem %s8, 16
        %v2514 = vld [vmem:[%s2513] sm:$0x3]
        %s2515 = scalar_lea.vmem %s6, 32
        %v2516 = vld [vmem:[%s2515] sm:$0x7]
        %v2518 = vperm.slane %v2514, 0
        %v2519 = vperm.slane %v2514, 1
        %v2522 = vmul.f32 %v2506, %v2518
        %v2523 = vmul.f32 %v2505, %v2519
        %2525 = vset.pattern.permute.xlu0 0
        %2526 = vperm.xlu0 %2525, %v2516
        %v2527 = vpop.permute.xlu0 %2526
        %v2529 = vperm.slane %v2522, 0
        %v2530 = vperm.slane %v2523, 0
        %v2531 = vmul.f32 %v2527, %v2529
        %v2532 = vmul.f32 %v2527, %v2530
        %v2533 = vadd.f32 %v2498, %v2531
        %v2534 = vadd.f32 %v2499, %v2532
        %v2535 = vmul.f32 %v2512, %v2518
        %v2536 = vmul.f32 %v2511, %v2519
        %2537 = vset.pattern.permute.xlu0 1
        %2538 = vperm.xlu0 %2537, %v2516
        %v2539 = vpop.permute.xlu0 %2538
        %v2541 = vperm.slane %v2535, 0
        %v2542 = vperm.slane %v2536, 0
        %v2543 = vmul.f32 %v2539, %v2541
        %v2544 = vmul.f32 %v2539, %v2542
        %v2545 = vadd.f32 %v2533, %v2543
        %v2546 = vadd.f32 %v2534, %v2544
        %2547 = vrot.lane.b32.xlu0 %v2106, 33
        %v2548 = vpop.permute.xlu0 %2547
        %2549 = vrot.lane.b32.xlu0 %v2107, 33
        %v2550 = vpop.permute.xlu0 %2549
        %vm2551 = vcmp.lt.s32.totalorder %v414, 33
        %v2552 = vsel %vm2551, %v2548, %v2550
        %v2553 = vsel %vm2551, %v2550, %v2548
        %2554 = vrot.lane.b32.xlu0 %v2116, 33
        %v2555 = vpop.permute.xlu0 %2554
        %2556 = vrot.lane.b32.xlu0 %v2125, 33
        %v2557 = vpop.permute.xlu0 %2556
        %v2558 = vsel %vm2551, %v2555, %v2557
        %v2559 = vsel %vm2551, %v2557, %v2555
        %s2560 = scalar_lea.vmem %s8, 18
        %v2561 = vld [vmem:[%s2560] sm:$0x3]
        %s2562 = scalar_lea.vmem %s6, 36
        %v2563 = vld [vmem:[%s2562] sm:$0x7]
        %v2565 = vperm.slane %v2561, 0
        %v2566 = vperm.slane %v2561, 1
        %v2569 = vmul.f32 %v2553, %v2565
        %v2570 = vmul.f32 %v2552, %v2566
        %2572 = vset.pattern.permute.xlu0 0
        %2573 = vperm.xlu0 %2572, %v2563
        %v2574 = vpop.permute.xlu0 %2573
        %v2576 = vperm.slane %v2569, 0
        %v2577 = vperm.slane %v2570, 0
        %v2578 = vmul.f32 %v2574, %v2576
        %v2579 = vmul.f32 %v2574, %v2577
        %v2580 = vadd.f32 %v2545, %v2578
        %v2581 = vadd.f32 %v2546, %v2579
        %v2582 = vmul.f32 %v2559, %v2565
        %v2583 = vmul.f32 %v2558, %v2566
        %2584 = vset.pattern.permute.xlu0 1
        %2585 = vperm.xlu0 %2584, %v2563
        %v2586 = vpop.permute.xlu0 %2585
        %v2588 = vperm.slane %v2582, 0
        %v2589 = vperm.slane %v2583, 0
        %v2590 = vmul.f32 %v2586, %v2588
        %v2591 = vmul.f32 %v2586, %v2589
        %v2592 = vadd.f32 %v2580, %v2590
        %v2593 = vadd.f32 %v2581, %v2591
        %2594 = vrot.lane.b32.xlu0 %v2106, 32
        %v2595 = vpop.permute.xlu0 %2594
        %2596 = vrot.lane.b32.xlu0 %v2107, 32
        %v2597 = vpop.permute.xlu0 %2596
        %vm2598 = vcmp.lt.s32.totalorder %v414, 32
        %v2599 = vsel %vm2598, %v2595, %v2597
        %v2600 = vsel %vm2598, %v2597, %v2595
        %2601 = vrot.lane.b32.xlu0 %v2116, 32
        %v2602 = vpop.permute.xlu0 %2601
        %2603 = vrot.lane.b32.xlu0 %v2125, 32
        %v2604 = vpop.permute.xlu0 %2603
        %v2605 = vsel %vm2598, %v2602, %v2604
        %v2606 = vsel %vm2598, %v2604, %v2602
        %s2607 = scalar_lea.vmem %s8, 20
        %v2608 = vld [vmem:[%s2607] sm:$0x3]
        %s2609 = scalar_lea.vmem %s6, 40
        %v2610 = vld [vmem:[%s2609] sm:$0x7]
        %v2612 = vperm.slane %v2608, 0
        %v2613 = vperm.slane %v2608, 1
        %v2616 = vmul.f32 %v2600, %v2612
        %v2617 = vmul.f32 %v2599, %v2613
        %2619 = vset.pattern.permute.xlu0 0
        %2620 = vperm.xlu0 %2619, %v2610
        %v2621 = vpop.permute.xlu0 %2620
        %v2623 = vperm.slane %v2616, 0
        %v2624 = vperm.slane %v2617, 0
        %v2625 = vmul.f32 %v2621, %v2623
        %v2626 = vmul.f32 %v2621, %v2624
        %v2627 = vadd.f32 %v2592, %v2625
        %v2628 = vadd.f32 %v2593, %v2626
        %v2629 = vmul.f32 %v2606, %v2612
        %v2630 = vmul.f32 %v2605, %v2613
        %2631 = vset.pattern.permute.xlu0 1
        %2632 = vperm.xlu0 %2631, %v2610
        %v2633 = vpop.permute.xlu0 %2632
        %v2635 = vperm.slane %v2629, 0
        %v2636 = vperm.slane %v2630, 0
        %v2637 = vmul.f32 %v2633, %v2635
        %v2638 = vmul.f32 %v2633, %v2636
        %v2639 = vadd.f32 %v2627, %v2637
        %v2640 = vadd.f32 %v2628, %v2638
        %2641 = vrot.lane.b32.xlu0 %v2106, 31
        %v2642 = vpop.permute.xlu0 %2641
        %2643 = vrot.lane.b32.xlu0 %v2107, 31
        %v2644 = vpop.permute.xlu0 %2643
        %vm2645 = vcmp.lt.s32.totalorder %v414, 31
        %v2646 = vsel %vm2645, %v2642, %v2644
        %v2647 = vsel %vm2645, %v2644, %v2642
        %2648 = vrot.lane.b32.xlu0 %v2116, 31
        %v2649 = vpop.permute.xlu0 %2648
        %2650 = vrot.lane.b32.xlu0 %v2125, 31
        %v2651 = vpop.permute.xlu0 %2650
        %v2652 = vsel %vm2645, %v2649, %v2651
        %v2653 = vsel %vm2645, %v2651, %v2649
        %s2654 = scalar_lea.vmem %s8, 22
        %v2655 = vld [vmem:[%s2654] sm:$0x3]
        %s2656 = scalar_lea.vmem %s6, 44
        %v2657 = vld [vmem:[%s2656] sm:$0x7]
        %v2659 = vperm.slane %v2655, 0
        %v2660 = vperm.slane %v2655, 1
        %v2663 = vmul.f32 %v2647, %v2659
        %v2664 = vmul.f32 %v2646, %v2660
        %2666 = vset.pattern.permute.xlu0 0
        %2667 = vperm.xlu0 %2666, %v2657
        %v2668 = vpop.permute.xlu0 %2667
        %v2670 = vperm.slane %v2663, 0
        %v2671 = vperm.slane %v2664, 0
        %v2672 = vmul.f32 %v2668, %v2670
        %v2673 = vmul.f32 %v2668, %v2671
        %v2674 = vadd.f32 %v2639, %v2672
        %v2675 = vadd.f32 %v2640, %v2673
        %v2676 = vmul.f32 %v2653, %v2659
        %v2677 = vmul.f32 %v2652, %v2660
        %2678 = vset.pattern.permute.xlu0 1
        %2679 = vperm.xlu0 %2678, %v2657
        %v2680 = vpop.permute.xlu0 %2679
        %v2682 = vperm.slane %v2676, 0
        %v2683 = vperm.slane %v2677, 0
        %v2684 = vmul.f32 %v2680, %v2682
        %v2685 = vmul.f32 %v2680, %v2683
        %v2686 = vadd.f32 %v2674, %v2684
        %v2687 = vadd.f32 %v2675, %v2685
        %2688 = vrot.lane.b32.xlu0 %v2106, 30
        %v2689 = vpop.permute.xlu0 %2688
        %2690 = vrot.lane.b32.xlu0 %v2107, 30
        %v2691 = vpop.permute.xlu0 %2690
        %vm2692 = vcmp.lt.s32.totalorder %v414, 30
        %v2693 = vsel %vm2692, %v2689, %v2691
        %v2694 = vsel %vm2692, %v2691, %v2689
        %2695 = vrot.lane.b32.xlu0 %v2116, 30
        %v2696 = vpop.permute.xlu0 %2695
        %2697 = vrot.lane.b32.xlu0 %v2125, 30
        %v2698 = vpop.permute.xlu0 %2697
        %v2699 = vsel %vm2692, %v2696, %v2698
        %v2700 = vsel %vm2692, %v2698, %v2696
        %s2701 = scalar_lea.vmem %s8, 24
        %v2702 = vld [vmem:[%s2701] sm:$0x3]
        %s2703 = scalar_lea.vmem %s6, 48
        %v2704 = vld [vmem:[%s2703] sm:$0x7]
        %v2706 = vperm.slane %v2702, 0
        %v2707 = vperm.slane %v2702, 1
        %v2710 = vmul.f32 %v2694, %v2706
        %v2711 = vmul.f32 %v2693, %v2707
        %2713 = vset.pattern.permute.xlu0 0
        %2714 = vperm.xlu0 %2713, %v2704
        %v2715 = vpop.permute.xlu0 %2714
        %v2717 = vperm.slane %v2710, 0
        %v2718 = vperm.slane %v2711, 0
        %v2719 = vmul.f32 %v2715, %v2717
        %v2720 = vmul.f32 %v2715, %v2718
        %v2721 = vadd.f32 %v2686, %v2719
        %v2722 = vadd.f32 %v2687, %v2720
        %v2723 = vmul.f32 %v2700, %v2706
        %v2724 = vmul.f32 %v2699, %v2707
        %2725 = vset.pattern.permute.xlu0 1
        %2726 = vperm.xlu0 %2725, %v2704
        %v2727 = vpop.permute.xlu0 %2726
        %v2729 = vperm.slane %v2723, 0
        %v2730 = vperm.slane %v2724, 0
        %v2731 = vmul.f32 %v2727, %v2729
        %v2732 = vmul.f32 %v2727, %v2730
        %v2733 = vadd.f32 %v2721, %v2731
        %v2734 = vadd.f32 %v2722, %v2732
        %2735 = vrot.lane.b32.xlu0 %v2106, 29
        %v2736 = vpop.permute.xlu0 %2735
        %2737 = vrot.lane.b32.xlu0 %v2107, 29
        %v2738 = vpop.permute.xlu0 %2737
        %vm2739 = vcmp.lt.s32.totalorder %v414, 29
        %v2740 = vsel %vm2739, %v2736, %v2738
        %v2741 = vsel %vm2739, %v2738, %v2736
        %2742 = vrot.lane.b32.xlu0 %v2116, 29
        %v2743 = vpop.permute.xlu0 %2742
        %2744 = vrot.lane.b32.xlu0 %v2125, 29
        %v2745 = vpop.permute.xlu0 %2744
        %v2746 = vsel %vm2739, %v2743, %v2745
        %v2747 = vsel %vm2739, %v2745, %v2743
        %s2748 = scalar_lea.vmem %s8, 26
        %v2749 = vld [vmem:[%s2748] sm:$0x3]
        %s2750 = scalar_lea.vmem %s6, 52
        %v2751 = vld [vmem:[%s2750] sm:$0x7]
        %v2753 = vperm.slane %v2749, 0
        %v2754 = vperm.slane %v2749, 1
        %v2757 = vmul.f32 %v2741, %v2753
        %v2758 = vmul.f32 %v2740, %v2754
        %2760 = vset.pattern.permute.xlu0 0
        %2761 = vperm.xlu0 %2760, %v2751
        %v2762 = vpop.permute.xlu0 %2761
        %v2764 = vperm.slane %v2757, 0
        %v2765 = vperm.slane %v2758, 0
        %v2766 = vmul.f32 %v2762, %v2764
        %v2767 = vmul.f32 %v2762, %v2765
        %v2768 = vadd.f32 %v2733, %v2766
        %v2769 = vadd.f32 %v2734, %v2767
        %v2770 = vmul.f32 %v2747, %v2753
        %v2771 = vmul.f32 %v2746, %v2754
        %2772 = vset.pattern.permute.xlu0 1
        %2773 = vperm.xlu0 %2772, %v2751
        %v2774 = vpop.permute.xlu0 %2773
        %v2776 = vperm.slane %v2770, 0
        %v2777 = vperm.slane %v2771, 0
        %v2778 = vmul.f32 %v2774, %v2776
        %v2779 = vmul.f32 %v2774, %v2777
        %v2780 = vadd.f32 %v2768, %v2778
        %v2781 = vadd.f32 %v2769, %v2779
        %2782 = vrot.lane.b32.xlu0 %v2106, 19
        %v2783 = vpop.permute.xlu0 %2782
        %2784 = vrot.lane.b32.xlu0 %v2107, 19
        %v2785 = vpop.permute.xlu0 %2784
        %vm2786 = vcmp.lt.s32.totalorder %v414, 19
        %v2787 = vsel %vm2786, %v2783, %v2785
        %v2788 = vsel %vm2786, %v2785, %v2783
        %2789 = vrot.lane.b32.xlu0 %v2116, 19
        %v2790 = vpop.permute.xlu0 %2789
        %2791 = vrot.lane.b32.xlu0 %v2125, 19
        %v2792 = vpop.permute.xlu0 %2791
        %v2793 = vsel %vm2786, %v2790, %v2792
        %v2794 = vsel %vm2786, %v2792, %v2790
        %s2795 = scalar_lea.vmem %s8, 28
        %v2796 = vld [vmem:[%s2795] sm:$0x3]
        %s2797 = scalar_lea.vmem %s6, 56
        %v2798 = vld [vmem:[%s2797] sm:$0x7]
        %v2800 = vperm.slane %v2796, 0
        %v2801 = vperm.slane %v2796, 1
        %v2804 = vmul.f32 %v2788, %v2800
        %v2805 = vmul.f32 %v2787, %v2801
        %2807 = vset.pattern.permute.xlu0 0
        %2808 = vperm.xlu0 %2807, %v2798
        %v2809 = vpop.permute.xlu0 %2808
        %v2811 = vperm.slane %v2804, 0
        %v2812 = vperm.slane %v2805, 0
        %v2813 = vmul.f32 %v2809, %v2811
        %v2814 = vmul.f32 %v2809, %v2812
        %v2815 = vadd.f32 %v2780, %v2813
        %v2816 = vadd.f32 %v2781, %v2814
        %v2817 = vmul.f32 %v2794, %v2800
        %v2818 = vmul.f32 %v2793, %v2801
        %2819 = vset.pattern.permute.xlu0 1
        %2820 = vperm.xlu0 %2819, %v2798
        %v2821 = vpop.permute.xlu0 %2820
        %v2823 = vperm.slane %v2817, 0
        %v2824 = vperm.slane %v2818, 0
        %v2825 = vmul.f32 %v2821, %v2823
        %v2826 = vmul.f32 %v2821, %v2824
        %v2827 = vadd.f32 %v2815, %v2825
        %v2828 = vadd.f32 %v2816, %v2826
        %2829 = vrot.lane.b32.xlu0 %v2106, 18
        %v2830 = vpop.permute.xlu0 %2829
        %2831 = vrot.lane.b32.xlu0 %v2107, 18
        %v2832 = vpop.permute.xlu0 %2831
        %vm2833 = vcmp.lt.s32.totalorder %v414, 18
        %v2834 = vsel %vm2833, %v2830, %v2832
        %v2835 = vsel %vm2833, %v2832, %v2830
        %2836 = vrot.lane.b32.xlu0 %v2116, 18
        %v2837 = vpop.permute.xlu0 %2836
        %2838 = vrot.lane.b32.xlu0 %v2125, 18
        %v2839 = vpop.permute.xlu0 %2838
        %v2840 = vsel %vm2833, %v2837, %v2839
        %v2841 = vsel %vm2833, %v2839, %v2837
        %s2842 = scalar_lea.vmem %s8, 30
        %v2843 = vld [vmem:[%s2842] sm:$0x3]
        %s2844 = scalar_lea.vmem %s6, 60
        %v2845 = vld [vmem:[%s2844] sm:$0x7]
        %v2847 = vperm.slane %v2843, 0
        %v2848 = vperm.slane %v2843, 1
        %v2851 = vmul.f32 %v2835, %v2847
        %v2852 = vmul.f32 %v2834, %v2848
        %2854 = vset.pattern.permute.xlu0 0
        %2855 = vperm.xlu0 %2854, %v2845
        %v2856 = vpop.permute.xlu0 %2855
        %v2858 = vperm.slane %v2851, 0
        %v2859 = vperm.slane %v2852, 0
        %v2860 = vmul.f32 %v2856, %v2858
        %v2861 = vmul.f32 %v2856, %v2859
        %v2862 = vadd.f32 %v2827, %v2860
        %v2863 = vadd.f32 %v2828, %v2861
        %v2864 = vmul.f32 %v2841, %v2847
        %v2865 = vmul.f32 %v2840, %v2848
        %2866 = vset.pattern.permute.xlu0 1
        %2867 = vperm.xlu0 %2866, %v2845
        %v2868 = vpop.permute.xlu0 %2867
        %v2870 = vperm.slane %v2864, 0
        %v2871 = vperm.slane %v2865, 0
        %v2872 = vmul.f32 %v2868, %v2870
        %v2873 = vmul.f32 %v2868, %v2871
        %v2874 = vadd.f32 %v2862, %v2872
        %v2875 = vadd.f32 %v2863, %v2873
        %2876 = vrot.lane.b32.xlu0 %v2106, 17
        %v2877 = vpop.permute.xlu0 %2876
        %2878 = vrot.lane.b32.xlu0 %v2107, 17
        %v2879 = vpop.permute.xlu0 %2878
        %v2880 = vsel %vm415, %v2877, %v2879
        %v2881 = vsel %vm415, %v2879, %v2877
        %2882 = vrot.lane.b32.xlu0 %v2116, 17
        %v2883 = vpop.permute.xlu0 %2882
        %2884 = vrot.lane.b32.xlu0 %v2125, 17
        %v2885 = vpop.permute.xlu0 %2884
        %v2886 = vsel %vm415, %v2883, %v2885
        %v2887 = vsel %vm415, %v2885, %v2883
        %s2888 = scalar_lea.vmem %s8, 32
        %v2889 = vld [vmem:[%s2888] sm:$0x3]
        %s2890 = scalar_lea.vmem %s6, 64
        %v2891 = vld [vmem:[%s2890] sm:$0x7]
        %v2893 = vperm.slane %v2889, 0
        %v2894 = vperm.slane %v2889, 1
        %v2897 = vmul.f32 %v2881, %v2893
        %v2898 = vmul.f32 %v2880, %v2894
        %2900 = vset.pattern.permute.xlu0 0
        %2901 = vperm.xlu0 %2900, %v2891
        %v2902 = vpop.permute.xlu0 %2901
        %v2904 = vperm.slane %v2897, 0
        %v2905 = vperm.slane %v2898, 0
        %v2906 = vmul.f32 %v2902, %v2904
        %v2907 = vmul.f32 %v2902, %v2905
        %v2908 = vadd.f32 %v2874, %v2906
        %v2909 = vadd.f32 %v2875, %v2907
        %v2910 = vmul.f32 %v2887, %v2893
        %v2911 = vmul.f32 %v2886, %v2894
        %2912 = vset.pattern.permute.xlu0 1
        %2913 = vperm.xlu0 %2912, %v2891
        %v2914 = vpop.permute.xlu0 %2913
        %v2916 = vperm.slane %v2910, 0
        %v2917 = vperm.slane %v2911, 0
        %v2918 = vmul.f32 %v2914, %v2916
        %v2919 = vmul.f32 %v2914, %v2917
        %v2920 = vadd.f32 %v2908, %v2918
        %v2921 = vadd.f32 %v2909, %v2919
        %2922 = vrot.lane.b32.xlu0 %v2106, 16
        %v2923 = vpop.permute.xlu0 %2922
        %2924 = vrot.lane.b32.xlu0 %v2107, 16
        %v2925 = vpop.permute.xlu0 %2924
        %v2926 = vsel %vm462, %v2923, %v2925
        %v2927 = vsel %vm462, %v2925, %v2923
        %2928 = vrot.lane.b32.xlu0 %v2116, 16
        %v2929 = vpop.permute.xlu0 %2928
        %2930 = vrot.lane.b32.xlu0 %v2125, 16
        %v2931 = vpop.permute.xlu0 %2930
        %v2932 = vsel %vm462, %v2929, %v2931
        %v2933 = vsel %vm462, %v2931, %v2929
        %s2934 = scalar_lea.vmem %s8, 34
        %v2935 = vld [vmem:[%s2934] sm:$0x3]
        %s2936 = scalar_lea.vmem %s6, 68
        %v2937 = vld [vmem:[%s2936] sm:$0x7]
        %v2939 = vperm.slane %v2935, 0
        %v2940 = vperm.slane %v2935, 1
        %v2943 = vmul.f32 %v2927, %v2939
        %v2944 = vmul.f32 %v2926, %v2940
        %2946 = vset.pattern.permute.xlu0 0
        %2947 = vperm.xlu0 %2946, %v2937
        %v2948 = vpop.permute.xlu0 %2947
        %v2950 = vperm.slane %v2943, 0
        %v2951 = vperm.slane %v2944, 0
        %v2952 = vmul.f32 %v2948, %v2950
        %v2953 = vmul.f32 %v2948, %v2951
        %v2954 = vadd.f32 %v2920, %v2952
        %v2955 = vadd.f32 %v2921, %v2953
        %v2956 = vmul.f32 %v2933, %v2939
        %v2957 = vmul.f32 %v2932, %v2940
        %2958 = vset.pattern.permute.xlu0 1
        %2959 = vperm.xlu0 %2958, %v2937
        %v2960 = vpop.permute.xlu0 %2959
        %v2962 = vperm.slane %v2956, 0
        %v2963 = vperm.slane %v2957, 0
        %v2964 = vmul.f32 %v2960, %v2962
        %v2965 = vmul.f32 %v2960, %v2963
        %v2966 = vadd.f32 %v2954, %v2964
        %v2967 = vadd.f32 %v2955, %v2965
        %2968 = vrot.lane.b32.xlu0 %v2106, 15
        %v2969 = vpop.permute.xlu0 %2968
        %2970 = vrot.lane.b32.xlu0 %v2107, 15
        %v2971 = vpop.permute.xlu0 %2970
        %v2972 = vsel %vm510, %v2969, %v2971
        %v2973 = vsel %vm510, %v2971, %v2969
        %2974 = vrot.lane.b32.xlu0 %v2116, 15
        %v2975 = vpop.permute.xlu0 %2974
        %2976 = vrot.lane.b32.xlu0 %v2125, 15
        %v2977 = vpop.permute.xlu0 %2976
        %v2978 = vsel %vm510, %v2975, %v2977
        %v2979 = vsel %vm510, %v2977, %v2975
        %s2980 = scalar_lea.vmem %s8, 36
        %v2981 = vld [vmem:[%s2980] sm:$0x3]
        %s2982 = scalar_lea.vmem %s6, 72
        %v2983 = vld [vmem:[%s2982] sm:$0x7]
        %v2985 = vperm.slane %v2981, 0
        %v2986 = vperm.slane %v2981, 1
        %v2989 = vmul.f32 %v2973, %v2985
        %v2990 = vmul.f32 %v2972, %v2986
        %2992 = vset.pattern.permute.xlu0 0
        %2993 = vperm.xlu0 %2992, %v2983
        %v2994 = vpop.permute.xlu0 %2993
        %v2996 = vperm.slane %v2989, 0
        %v2997 = vperm.slane %v2990, 0
        %v2998 = vmul.f32 %v2994, %v2996
        %v2999 = vmul.f32 %v2994, %v2997
        %v3000 = vadd.f32 %v2966, %v2998
        %v3001 = vadd.f32 %v2967, %v2999
        %v3002 = vmul.f32 %v2979, %v2985
        %v3003 = vmul.f32 %v2978, %v2986
        %3004 = vset.pattern.permute.xlu0 1
        %3005 = vperm.xlu0 %3004, %v2983
        %v3006 = vpop.permute.xlu0 %3005
        %v3008 = vperm.slane %v3002, 0
        %v3009 = vperm.slane %v3003, 0
        %v3010 = vmul.f32 %v3006, %v3008
        %v3011 = vmul.f32 %v3006, %v3009
        %v3012 = vadd.f32 %v3000, %v3010
        %v3013 = vadd.f32 %v3001, %v3011
        %3014 = vrot.lane.b32.xlu0 %v2106, 14
        %v3015 = vpop.permute.xlu0 %3014
        %3016 = vrot.lane.b32.xlu0 %v2107, 14
        %v3017 = vpop.permute.xlu0 %3016
        %vm3018 = vcmp.lt.s32.totalorder %v414, 14
        %v3019 = vsel %vm3018, %v3015, %v3017
        %v3020 = vsel %vm3018, %v3017, %v3015
        %3021 = vrot.lane.b32.xlu0 %v2116, 14
        %v3022 = vpop.permute.xlu0 %3021
        %3023 = vrot.lane.b32.xlu0 %v2125, 14
        %v3024 = vpop.permute.xlu0 %3023
        %v3025 = vsel %vm3018, %v3022, %v3024
        %v3026 = vsel %vm3018, %v3024, %v3022
        %s3027 = scalar_lea.vmem %s8, 38
        %v3028 = vld [vmem:[%s3027] sm:$0x3]
        %s3029 = scalar_lea.vmem %s6, 76
        %v3030 = vld [vmem:[%s3029] sm:$0x7]
        %v3032 = vperm.slane %v3028, 0
        %v3033 = vperm.slane %v3028, 1
        %v3036 = vmul.f32 %v3020, %v3032
        %v3037 = vmul.f32 %v3019, %v3033
        %3039 = vset.pattern.permute.xlu0 0
        %3040 = vperm.xlu0 %3039, %v3030
        %v3041 = vpop.permute.xlu0 %3040
        %v3043 = vperm.slane %v3036, 0
        %v3044 = vperm.slane %v3037, 0
        %v3045 = vmul.f32 %v3041, %v3043
        %v3046 = vmul.f32 %v3041, %v3044
        %v3047 = vadd.f32 %v3012, %v3045
        %v3048 = vadd.f32 %v3013, %v3046
        %v3049 = vmul.f32 %v3026, %v3032
        %v3050 = vmul.f32 %v3025, %v3033
        %3051 = vset.pattern.permute.xlu0 1
        %3052 = vperm.xlu0 %3051, %v3030
        %v3053 = vpop.permute.xlu0 %3052
        %v3055 = vperm.slane %v3049, 0
        %v3056 = vperm.slane %v3050, 0
        %v3057 = vmul.f32 %v3053, %v3055
        %v3058 = vmul.f32 %v3053, %v3056
        %v3059 = vadd.f32 %v3047, %v3057
        %v3060 = vadd.f32 %v3048, %v3058
        %3061 = vrot.lane.b32.xlu0 %v2106, 13
        %v3062 = vpop.permute.xlu0 %3061
        %3063 = vrot.lane.b32.xlu0 %v2107, 13
        %v3064 = vpop.permute.xlu0 %3063
        %vm3065 = vcmp.lt.s32.totalorder %v414, 13
        %v3066 = vsel %vm3065, %v3062, %v3064
        %v3067 = vsel %vm3065, %v3064, %v3062
        %3068 = vrot.lane.b32.xlu0 %v2116, 13
        %v3069 = vpop.permute.xlu0 %3068
        %3070 = vrot.lane.b32.xlu0 %v2125, 13
        %v3071 = vpop.permute.xlu0 %3070
        %v3072 = vsel %vm3065, %v3069, %v3071
        %v3073 = vsel %vm3065, %v3071, %v3069
        %s3074 = scalar_lea.vmem %s8, 40
        %v3075 = vld [vmem:[%s3074] sm:$0x3]
        %s3076 = scalar_lea.vmem %s6, 80
        %v3077 = vld [vmem:[%s3076] sm:$0x7]
        %v3079 = vperm.slane %v3075, 0
        %v3080 = vperm.slane %v3075, 1
        %v3083 = vmul.f32 %v3067, %v3079
        %v3084 = vmul.f32 %v3066, %v3080
        %3086 = vset.pattern.permute.xlu0 0
        %3087 = vperm.xlu0 %3086, %v3077
        %v3088 = vpop.permute.xlu0 %3087
        %v3090 = vperm.slane %v3083, 0
        %v3091 = vperm.slane %v3084, 0
        %v3092 = vmul.f32 %v3088, %v3090
        %v3093 = vmul.f32 %v3088, %v3091
        %v3094 = vadd.f32 %v3059, %v3092
        %v3095 = vadd.f32 %v3060, %v3093
        %v3096 = vmul.f32 %v3073, %v3079
        %v3097 = vmul.f32 %v3072, %v3080
        %3098 = vset.pattern.permute.xlu0 1
        %3099 = vperm.xlu0 %3098, %v3077
        %v3100 = vpop.permute.xlu0 %3099
        %v3102 = vperm.slane %v3096, 0
        %v3103 = vperm.slane %v3097, 0
        %v3104 = vmul.f32 %v3100, %v3102
        %v3105 = vmul.f32 %v3100, %v3103
        %v3106 = vadd.f32 %v3094, %v3104
        %v3107 = vadd.f32 %v3095, %v3105
        %3108 = vrot.lane.b32.xlu0 %v2106, 3
        %v3109 = vpop.permute.xlu0 %3108
        %3110 = vrot.lane.b32.xlu0 %v2107, 3
        %v3111 = vpop.permute.xlu0 %3110
        %vm3112 = vcmp.lt.s32.totalorder %v414, 3
        %v3113 = vsel %vm3112, %v3109, %v3111
        %v3114 = vsel %vm3112, %v3111, %v3109
        %3115 = vrot.lane.b32.xlu0 %v2116, 3
        %v3116 = vpop.permute.xlu0 %3115
        %3117 = vrot.lane.b32.xlu0 %v2125, 3
        %v3118 = vpop.permute.xlu0 %3117
        %v3119 = vsel %vm3112, %v3116, %v3118
        %v3120 = vsel %vm3112, %v3118, %v3116
        %s3121 = scalar_lea.vmem %s8, 42
        %v3122 = vld [vmem:[%s3121] sm:$0x3]
        %s3123 = scalar_lea.vmem %s6, 84
        %v3124 = vld [vmem:[%s3123] sm:$0x7]
        %v3126 = vperm.slane %v3122, 0
        %v3127 = vperm.slane %v3122, 1
        %v3130 = vmul.f32 %v3114, %v3126
        %v3131 = vmul.f32 %v3113, %v3127
        %3133 = vset.pattern.permute.xlu0 0
        %3134 = vperm.xlu0 %3133, %v3124
        %v3135 = vpop.permute.xlu0 %3134
        %v3137 = vperm.slane %v3130, 0
        %v3138 = vperm.slane %v3131, 0
        %v3139 = vmul.f32 %v3135, %v3137
        %v3140 = vmul.f32 %v3135, %v3138
        %v3141 = vadd.f32 %v3106, %v3139
        %v3142 = vadd.f32 %v3107, %v3140
        %v3143 = vmul.f32 %v3120, %v3126
        %v3144 = vmul.f32 %v3119, %v3127
        %3145 = vset.pattern.permute.xlu0 1
        %3146 = vperm.xlu0 %3145, %v3124
        %v3147 = vpop.permute.xlu0 %3146
        %v3149 = vperm.slane %v3143, 0
        %v3150 = vperm.slane %v3144, 0
        %v3151 = vmul.f32 %v3147, %v3149
        %v3152 = vmul.f32 %v3147, %v3150
        %v3153 = vadd.f32 %v3141, %v3151
        %v3154 = vadd.f32 %v3142, %v3152
        %3155 = vrot.lane.b32.xlu0 %v2106, 2
        %v3156 = vpop.permute.xlu0 %3155
        %3157 = vrot.lane.b32.xlu0 %v2107, 2
        %v3158 = vpop.permute.xlu0 %3157
        %vm3159 = vcmp.lt.s32.totalorder %v414, 2
        %v3160 = vsel %vm3159, %v3156, %v3158
        %v3161 = vsel %vm3159, %v3158, %v3156
        %3162 = vrot.lane.b32.xlu0 %v2116, 2
        %v3163 = vpop.permute.xlu0 %3162
        %3164 = vrot.lane.b32.xlu0 %v2125, 2
        %v3165 = vpop.permute.xlu0 %3164
        %v3166 = vsel %vm3159, %v3163, %v3165
        %v3167 = vsel %vm3159, %v3165, %v3163
        %s3168 = scalar_lea.vmem %s8, 44
        %v3169 = vld [vmem:[%s3168] sm:$0x3]
        %s3170 = scalar_lea.vmem %s6, 88
        %v3171 = vld [vmem:[%s3170] sm:$0x7]
        %v3173 = vperm.slane %v3169, 0
        %v3174 = vperm.slane %v3169, 1
        %v3177 = vmul.f32 %v3161, %v3173
        %v3178 = vmul.f32 %v3160, %v3174
        %3180 = vset.pattern.permute.xlu0 0
        %3181 = vperm.xlu0 %3180, %v3171
        %v3182 = vpop.permute.xlu0 %3181
        %v3184 = vperm.slane %v3177, 0
        %v3185 = vperm.slane %v3178, 0
        %v3186 = vmul.f32 %v3182, %v3184
        %v3187 = vmul.f32 %v3182, %v3185
        %v3188 = vadd.f32 %v3153, %v3186
        %v3189 = vadd.f32 %v3154, %v3187
        %v3190 = vmul.f32 %v3167, %v3173
        %v3191 = vmul.f32 %v3166, %v3174
        %3192 = vset.pattern.permute.xlu0 1
        %3193 = vperm.xlu0 %3192, %v3171
        %v3194 = vpop.permute.xlu0 %3193
        %v3196 = vperm.slane %v3190, 0
        %v3197 = vperm.slane %v3191, 0
        %v3198 = vmul.f32 %v3194, %v3196
        %v3199 = vmul.f32 %v3194, %v3197
        %v3200 = vadd.f32 %v3188, %v3198
        %v3201 = vadd.f32 %v3189, %v3199
        %3202 = vrot.lane.b32.xlu0 %v2106, 1
        %v3203 = vpop.permute.xlu0 %3202
        %3204 = vrot.lane.b32.xlu0 %v2107, 1
        %v3205 = vpop.permute.xlu0 %3204
        %v3206 = vsel %vm558, %v3203, %v3205
        %v3207 = vsel %vm558, %v3205, %v3203
        %3208 = vrot.lane.b32.xlu0 %v2116, 1
        %v3209 = vpop.permute.xlu0 %3208
        %3210 = vrot.lane.b32.xlu0 %v2125, 1
        %v3211 = vpop.permute.xlu0 %3210
        %v3212 = vsel %vm558, %v3209, %v3211
        %v3213 = vsel %vm558, %v3211, %v3209
        %s3214 = scalar_lea.vmem %s8, 46
        %v3215 = vld [vmem:[%s3214] sm:$0x3]
        %s3216 = scalar_lea.vmem %s6, 92
        %v3217 = vld [vmem:[%s3216] sm:$0x7]
        %v3219 = vperm.slane %v3215, 0
        %v3220 = vperm.slane %v3215, 1
        %v3223 = vmul.f32 %v3207, %v3219
        %v3224 = vmul.f32 %v3206, %v3220
        %3226 = vset.pattern.permute.xlu0 0
        %3227 = vperm.xlu0 %3226, %v3217
        %v3228 = vpop.permute.xlu0 %3227
        %v3230 = vperm.slane %v3223, 0
        %v3231 = vperm.slane %v3224, 0
        %v3232 = vmul.f32 %v3228, %v3230
        %v3233 = vmul.f32 %v3228, %v3231
        %v3234 = vadd.f32 %v3200, %v3232
        %v3235 = vadd.f32 %v3201, %v3233
        %v3236 = vmul.f32 %v3213, %v3219
        %v3237 = vmul.f32 %v3212, %v3220
        %3238 = vset.pattern.permute.xlu0 1
        %3239 = vperm.xlu0 %3238, %v3217
        %v3240 = vpop.permute.xlu0 %3239
        %v3242 = vperm.slane %v3236, 0
        %v3243 = vperm.slane %v3237, 0
        %v3244 = vmul.f32 %v3240, %v3242
        %v3245 = vmul.f32 %v3240, %v3243
        %v3246 = vadd.f32 %v3234, %v3244
        %v3247 = vadd.f32 %v3235, %v3245
        %s3248 = scalar_lea.vmem %s8, 48
        %v3249 = vld [vmem:[%s3248] sm:$0x3]
        %s3250 = scalar_lea.vmem %s6, 96
        %v3251 = vld [vmem:[%s3250] sm:$0x7]
        %v3253 = vperm.slane %v3249, 0
        %v3254 = vperm.slane %v3249, 1
        %v3257 = vmul.f32 %v2106, %v3253
        %v3258 = vmul.f32 %v2107, %v3254
        %3260 = vset.pattern.permute.xlu0 0
        %3261 = vperm.xlu0 %3260, %v3251
        %v3262 = vpop.permute.xlu0 %3261
        %v3264 = vperm.slane %v3257, 0
        %v3265 = vperm.slane %v3258, 0
        %v3266 = vmul.f32 %v3262, %v3264
        %v3267 = vmul.f32 %v3262, %v3265
        %v3268 = vadd.f32 %v3246, %v3266
        %v3269 = vadd.f32 %v3247, %v3267
        %v3270 = vmul.f32 %v2116, %v3253
        %v3271 = vmul.f32 %v2125, %v3254
        %3272 = vset.pattern.permute.xlu0 1
        %3273 = vperm.xlu0 %3272, %v3251
        %v3274 = vpop.permute.xlu0 %3273
        %v3276 = vperm.slane %v3270, 0
        %v3277 = vperm.slane %v3271, 0
        %v3278 = vmul.f32 %v3274, %v3276
        %v3279 = vmul.f32 %v3274, %v3277
        %v3280 = vadd.f32 %v3268, %v3278
        %v3281 = vadd.f32 %v3269, %v3279
        %3282 = vrot.lane.b32.xlu0 %v2106, 127
        %v3283 = vpop.permute.xlu0 %3282
        %3284 = vrot.lane.b32.xlu0 %v2107, 127
        %v3285 = vpop.permute.xlu0 %3284
        %v3286 = vsel %vm629, %v3283, %v3285
        %v3287 = vsel %vm629, %v3285, %v3283
        %3288 = vrot.lane.b32.xlu0 %v2116, 127
        %v3289 = vpop.permute.xlu0 %3288
        %3290 = vrot.lane.b32.xlu0 %v2125, 127
        %v3291 = vpop.permute.xlu0 %3290
        %v3292 = vsel %vm629, %v3289, %v3291
        %v3293 = vsel %vm629, %v3291, %v3289
        %s3294 = scalar_lea.vmem %s8, 50
        %v3295 = vld [vmem:[%s3294] sm:$0x3]
        %s3296 = scalar_lea.vmem %s6, 100
        %v3297 = vld [vmem:[%s3296] sm:$0x7]
        %v3299 = vperm.slane %v3295, 0
        %v3300 = vperm.slane %v3295, 1
        %v3303 = vmul.f32 %v3286, %v3299
        %v3304 = vmul.f32 %v3287, %v3300
        %3306 = vset.pattern.permute.xlu0 0
        %3307 = vperm.xlu0 %3306, %v3297
        %v3308 = vpop.permute.xlu0 %3307
        %v3310 = vperm.slane %v3303, 0
        %v3311 = vperm.slane %v3304, 0
        %v3312 = vmul.f32 %v3308, %v3310
        %v3313 = vmul.f32 %v3308, %v3311
        %v3314 = vadd.f32 %v3280, %v3312
        %v3315 = vadd.f32 %v3281, %v3313
        %v3316 = vmul.f32 %v3292, %v3299
        %v3317 = vmul.f32 %v3293, %v3300
        %3318 = vset.pattern.permute.xlu0 1
        %3319 = vperm.xlu0 %3318, %v3297
        %v3320 = vpop.permute.xlu0 %3319
        %v3322 = vperm.slane %v3316, 0
        %v3323 = vperm.slane %v3317, 0
        %v3324 = vmul.f32 %v3320, %v3322
        %v3325 = vmul.f32 %v3320, %v3323
        %v3326 = vadd.f32 %v3314, %v3324
        %v3327 = vadd.f32 %v3315, %v3325
        %3328 = vrot.lane.b32.xlu0 %v2106, 126
        %v3329 = vpop.permute.xlu0 %3328
        %3330 = vrot.lane.b32.xlu0 %v2107, 126
        %v3331 = vpop.permute.xlu0 %3330
        %vm3332 = vcmp.lt.s32.totalorder %v414, 126
        %v3333 = vsel %vm3332, %v3329, %v3331
        %v3334 = vsel %vm3332, %v3331, %v3329
        %3335 = vrot.lane.b32.xlu0 %v2116, 126
        %v3336 = vpop.permute.xlu0 %3335
        %3337 = vrot.lane.b32.xlu0 %v2125, 126
        %v3338 = vpop.permute.xlu0 %3337
        %v3339 = vsel %vm3332, %v3336, %v3338
        %v3340 = vsel %vm3332, %v3338, %v3336
        %s3341 = scalar_lea.vmem %s8, 52
        %v3342 = vld [vmem:[%s3341] sm:$0x3]
        %s3343 = scalar_lea.vmem %s6, 104
        %v3344 = vld [vmem:[%s3343] sm:$0x7]
        %v3346 = vperm.slane %v3342, 0
        %v3347 = vperm.slane %v3342, 1
        %v3350 = vmul.f32 %v3333, %v3346
        %v3351 = vmul.f32 %v3334, %v3347
        %3353 = vset.pattern.permute.xlu0 0
        %3354 = vperm.xlu0 %3353, %v3344
        %v3355 = vpop.permute.xlu0 %3354
        %v3357 = vperm.slane %v3350, 0
        %v3358 = vperm.slane %v3351, 0
        %v3359 = vmul.f32 %v3355, %v3357
        %v3360 = vmul.f32 %v3355, %v3358
        %v3361 = vadd.f32 %v3326, %v3359
        %v3362 = vadd.f32 %v3327, %v3360
        %v3363 = vmul.f32 %v3339, %v3346
        %v3364 = vmul.f32 %v3340, %v3347
        %3365 = vset.pattern.permute.xlu0 1
        %3366 = vperm.xlu0 %3365, %v3344
        %v3367 = vpop.permute.xlu0 %3366
        %v3369 = vperm.slane %v3363, 0
        %v3370 = vperm.slane %v3364, 0
        %v3371 = vmul.f32 %v3367, %v3369
        %v3372 = vmul.f32 %v3367, %v3370
        %v3373 = vadd.f32 %v3361, %v3371
        %v3374 = vadd.f32 %v3362, %v3372
        %3375 = vrot.lane.b32.xlu0 %v2106, 125
        %v3376 = vpop.permute.xlu0 %3375
        %3377 = vrot.lane.b32.xlu0 %v2107, 125
        %v3378 = vpop.permute.xlu0 %3377
        %vm3379 = vcmp.lt.s32.totalorder %v414, 125
        %v3380 = vsel %vm3379, %v3376, %v3378
        %v3381 = vsel %vm3379, %v3378, %v3376
        %3382 = vrot.lane.b32.xlu0 %v2116, 125
        %v3383 = vpop.permute.xlu0 %3382
        %3384 = vrot.lane.b32.xlu0 %v2125, 125
        %v3385 = vpop.permute.xlu0 %3384
        %v3386 = vsel %vm3379, %v3383, %v3385
        %v3387 = vsel %vm3379, %v3385, %v3383
        %s3388 = scalar_lea.vmem %s8, 54
        %v3389 = vld [vmem:[%s3388] sm:$0x3]
        %s3390 = scalar_lea.vmem %s6, 108
        %v3391 = vld [vmem:[%s3390] sm:$0x7]
        %v3393 = vperm.slane %v3389, 0
        %v3394 = vperm.slane %v3389, 1
        %v3397 = vmul.f32 %v3380, %v3393
        %v3398 = vmul.f32 %v3381, %v3394
        %3400 = vset.pattern.permute.xlu0 0
        %3401 = vperm.xlu0 %3400, %v3391
        %v3402 = vpop.permute.xlu0 %3401
        %v3404 = vperm.slane %v3397, 0
        %v3405 = vperm.slane %v3398, 0
        %v3406 = vmul.f32 %v3402, %v3404
        %v3407 = vmul.f32 %v3402, %v3405
        %v3408 = vadd.f32 %v3373, %v3406
        %v3409 = vadd.f32 %v3374, %v3407
        %v3410 = vmul.f32 %v3386, %v3393
        %v3411 = vmul.f32 %v3387, %v3394
        %3412 = vset.pattern.permute.xlu0 1
        %3413 = vperm.xlu0 %3412, %v3391
        %v3414 = vpop.permute.xlu0 %3413
        %v3416 = vperm.slane %v3410, 0
        %v3417 = vperm.slane %v3411, 0
        %v3418 = vmul.f32 %v3414, %v3416
        %v3419 = vmul.f32 %v3414, %v3417
        %v3420 = vadd.f32 %v3408, %v3418
        %v3421 = vadd.f32 %v3409, %v3419
        %3422 = vrot.lane.b32.xlu0 %v2106, 115
        %v3423 = vpop.permute.xlu0 %3422
        %3424 = vrot.lane.b32.xlu0 %v2107, 115
        %v3425 = vpop.permute.xlu0 %3424
        %vm3426 = vcmp.lt.s32.totalorder %v414, 115
        %v3427 = vsel %vm3426, %v3423, %v3425
        %v3428 = vsel %vm3426, %v3425, %v3423
        %3429 = vrot.lane.b32.xlu0 %v2116, 115
        %v3430 = vpop.permute.xlu0 %3429
        %3431 = vrot.lane.b32.xlu0 %v2125, 115
        %v3432 = vpop.permute.xlu0 %3431
        %v3433 = vsel %vm3426, %v3430, %v3432
        %v3434 = vsel %vm3426, %v3432, %v3430
        %s3435 = scalar_lea.vmem %s8, 56
        %v3436 = vld [vmem:[%s3435] sm:$0x3]
        %s3437 = scalar_lea.vmem %s6, 112
        %v3438 = vld [vmem:[%s3437] sm:$0x7]
        %v3440 = vperm.slane %v3436, 0
        %v3441 = vperm.slane %v3436, 1
        %v3444 = vmul.f32 %v3427, %v3440
        %v3445 = vmul.f32 %v3428, %v3441
        %3447 = vset.pattern.permute.xlu0 0
        %3448 = vperm.xlu0 %3447, %v3438
        %v3449 = vpop.permute.xlu0 %3448
        %v3451 = vperm.slane %v3444, 0
        %v3452 = vperm.slane %v3445, 0
        %v3453 = vmul.f32 %v3449, %v3451
        %v3454 = vmul.f32 %v3449, %v3452
        %v3455 = vadd.f32 %v3420, %v3453
        %v3456 = vadd.f32 %v3421, %v3454
        %v3457 = vmul.f32 %v3433, %v3440
        %v3458 = vmul.f32 %v3434, %v3441
        %3459 = vset.pattern.permute.xlu0 1
        %3460 = vperm.xlu0 %3459, %v3438
        %v3461 = vpop.permute.xlu0 %3460
        %v3463 = vperm.slane %v3457, 0
        %v3464 = vperm.slane %v3458, 0
        %v3465 = vmul.f32 %v3461, %v3463
        %v3466 = vmul.f32 %v3461, %v3464
        %v3467 = vadd.f32 %v3455, %v3465
        %v3468 = vadd.f32 %v3456, %v3466
        %3469 = vrot.lane.b32.xlu0 %v2106, 114
        %v3470 = vpop.permute.xlu0 %3469
        %3471 = vrot.lane.b32.xlu0 %v2107, 114
        %v3472 = vpop.permute.xlu0 %3471
        %vm3473 = vcmp.lt.s32.totalorder %v414, 114
        %v3474 = vsel %vm3473, %v3470, %v3472
        %v3475 = vsel %vm3473, %v3472, %v3470
        %3476 = vrot.lane.b32.xlu0 %v2116, 114
        %v3477 = vpop.permute.xlu0 %3476
        %3478 = vrot.lane.b32.xlu0 %v2125, 114
        %v3479 = vpop.permute.xlu0 %3478
        %v3480 = vsel %vm3473, %v3477, %v3479
        %v3481 = vsel %vm3473, %v3479, %v3477
        %s3482 = scalar_lea.vmem %s8, 58
        %v3483 = vld [vmem:[%s3482] sm:$0x3]
        %s3484 = scalar_lea.vmem %s6, 116
        %v3485 = vld [vmem:[%s3484] sm:$0x7]
        %v3487 = vperm.slane %v3483, 0
        %v3488 = vperm.slane %v3483, 1
        %v3491 = vmul.f32 %v3474, %v3487
        %v3492 = vmul.f32 %v3475, %v3488
        %3494 = vset.pattern.permute.xlu0 0
        %3495 = vperm.xlu0 %3494, %v3485
        %v3496 = vpop.permute.xlu0 %3495
        %v3498 = vperm.slane %v3491, 0
        %v3499 = vperm.slane %v3492, 0
        %v3500 = vmul.f32 %v3496, %v3498
        %v3501 = vmul.f32 %v3496, %v3499
        %v3502 = vadd.f32 %v3467, %v3500
        %v3503 = vadd.f32 %v3468, %v3501
        %v3504 = vmul.f32 %v3480, %v3487
        %v3505 = vmul.f32 %v3481, %v3488
        %3506 = vset.pattern.permute.xlu0 1
        %3507 = vperm.xlu0 %3506, %v3485
        %v3508 = vpop.permute.xlu0 %3507
        %v3510 = vperm.slane %v3504, 0
        %v3511 = vperm.slane %v3505, 0
        %v3512 = vmul.f32 %v3508, %v3510
        %v3513 = vmul.f32 %v3508, %v3511
        %v3514 = vadd.f32 %v3502, %v3512
        %v3515 = vadd.f32 %v3503, %v3513
        %3516 = vrot.lane.b32.xlu0 %v2106, 113
        %v3517 = vpop.permute.xlu0 %3516
        %3518 = vrot.lane.b32.xlu0 %v2107, 113
        %v3519 = vpop.permute.xlu0 %3518
        %v3520 = vsel %vm677, %v3517, %v3519
        %v3521 = vsel %vm677, %v3519, %v3517
        %3522 = vrot.lane.b32.xlu0 %v2116, 113
        %v3523 = vpop.permute.xlu0 %3522
        %3524 = vrot.lane.b32.xlu0 %v2125, 113
        %v3525 = vpop.permute.xlu0 %3524
        %v3526 = vsel %vm677, %v3523, %v3525
        %v3527 = vsel %vm677, %v3525, %v3523
        %s3528 = scalar_lea.vmem %s8, 60
        %v3529 = vld [vmem:[%s3528] sm:$0x3]
        %s3530 = scalar_lea.vmem %s6, 120
        %v3531 = vld [vmem:[%s3530] sm:$0x7]
        %v3533 = vperm.slane %v3529, 0
        %v3534 = vperm.slane %v3529, 1
        %v3537 = vmul.f32 %v3520, %v3533
        %v3538 = vmul.f32 %v3521, %v3534
        %3540 = vset.pattern.permute.xlu0 0
        %3541 = vperm.xlu0 %3540, %v3531
        %v3542 = vpop.permute.xlu0 %3541
        %v3544 = vperm.slane %v3537, 0
        %v3545 = vperm.slane %v3538, 0
        %v3546 = vmul.f32 %v3542, %v3544
        %v3547 = vmul.f32 %v3542, %v3545
        %v3548 = vadd.f32 %v3514, %v3546
        %v3549 = vadd.f32 %v3515, %v3547
        %v3550 = vmul.f32 %v3526, %v3533
        %v3551 = vmul.f32 %v3527, %v3534
        %3552 = vset.pattern.permute.xlu0 1
        %3553 = vperm.xlu0 %3552, %v3531
        %v3554 = vpop.permute.xlu0 %3553
        %v3556 = vperm.slane %v3550, 0
        %v3557 = vperm.slane %v3551, 0
        %v3558 = vmul.f32 %v3554, %v3556
        %v3559 = vmul.f32 %v3554, %v3557
        %v3560 = vadd.f32 %v3548, %v3558
        %v3561 = vadd.f32 %v3549, %v3559
        %3562 = vrot.lane.b32.xlu0 %v2106, 112
        %v3563 = vpop.permute.xlu0 %3562
        %3564 = vrot.lane.b32.xlu0 %v2107, 112
        %v3565 = vpop.permute.xlu0 %3564
        %v3566 = vsel %vm725, %v3563, %v3565
        %v3567 = vsel %vm725, %v3565, %v3563
        %3568 = vrot.lane.b32.xlu0 %v2116, 112
        %v3569 = vpop.permute.xlu0 %3568
        %3570 = vrot.lane.b32.xlu0 %v2125, 112
        %v3571 = vpop.permute.xlu0 %3570
        %v3572 = vsel %vm725, %v3569, %v3571
        %v3573 = vsel %vm725, %v3571, %v3569
        %s3574 = scalar_lea.vmem %s8, 62
        %v3575 = vld [vmem:[%s3574] sm:$0x3]
        %s3576 = scalar_lea.vmem %s6, 124
        %v3577 = vld [vmem:[%s3576] sm:$0x7]
        %v3579 = vperm.slane %v3575, 0
        %v3580 = vperm.slane %v3575, 1
        %v3583 = vmul.f32 %v3566, %v3579
        %v3584 = vmul.f32 %v3567, %v3580
        %3586 = vset.pattern.permute.xlu0 0
        %3587 = vperm.xlu0 %3586, %v3577
        %v3588 = vpop.permute.xlu0 %3587
        %v3590 = vperm.slane %v3583, 0
        %v3591 = vperm.slane %v3584, 0
        %v3592 = vmul.f32 %v3588, %v3590
        %v3593 = vmul.f32 %v3588, %v3591
        %v3594 = vadd.f32 %v3560, %v3592
        %v3595 = vadd.f32 %v3561, %v3593
        %v3596 = vmul.f32 %v3572, %v3579
        %v3597 = vmul.f32 %v3573, %v3580
        %3598 = vset.pattern.permute.xlu0 1
        %3599 = vperm.xlu0 %3598, %v3577
        %v3600 = vpop.permute.xlu0 %3599
        %v3602 = vperm.slane %v3596, 0
        %v3603 = vperm.slane %v3597, 0
        %v3604 = vmul.f32 %v3600, %v3602
        %v3605 = vmul.f32 %v3600, %v3603
        %v3606 = vadd.f32 %v3594, %v3604
        %v3607 = vadd.f32 %v3595, %v3605
        %3608 = vrot.lane.b32.xlu0 %v2106, 111
        %v3609 = vpop.permute.xlu0 %3608
        %3610 = vrot.lane.b32.xlu0 %v2107, 111
        %v3611 = vpop.permute.xlu0 %3610
        %v3612 = vsel %vm773, %v3609, %v3611
        %v3613 = vsel %vm773, %v3611, %v3609
        %3614 = vrot.lane.b32.xlu0 %v2116, 111
        %v3615 = vpop.permute.xlu0 %3614
        %3616 = vrot.lane.b32.xlu0 %v2125, 111
        %v3617 = vpop.permute.xlu0 %3616
        %v3618 = vsel %vm773, %v3615, %v3617
        %v3619 = vsel %vm773, %v3617, %v3615
        %s3620 = scalar_lea.vmem %s8, 64
        %v3621 = vld [vmem:[%s3620] sm:$0x3]
        %s3622 = scalar_lea.vmem %s6, 128
        %v3623 = vld [vmem:[%s3622] sm:$0x7]
        %v3625 = vperm.slane %v3621, 0
        %v3626 = vperm.slane %v3621, 1
        %v3629 = vmul.f32 %v3612, %v3625
        %v3630 = vmul.f32 %v3613, %v3626
        %3632 = vset.pattern.permute.xlu0 0
        %3633 = vperm.xlu0 %3632, %v3623
        %v3634 = vpop.permute.xlu0 %3633
        %v3636 = vperm.slane %v3629, 0
        %v3637 = vperm.slane %v3630, 0
        %v3638 = vmul.f32 %v3634, %v3636
        %v3639 = vmul.f32 %v3634, %v3637
        %v3640 = vadd.f32 %v3606, %v3638
        %v3641 = vadd.f32 %v3607, %v3639
        %v3642 = vmul.f32 %v3618, %v3625
        %v3643 = vmul.f32 %v3619, %v3626
        %3644 = vset.pattern.permute.xlu0 1
        %3645 = vperm.xlu0 %3644, %v3623
        %v3646 = vpop.permute.xlu0 %3645
        %v3648 = vperm.slane %v3642, 0
        %v3649 = vperm.slane %v3643, 0
        %v3650 = vmul.f32 %v3646, %v3648
        %v3651 = vmul.f32 %v3646, %v3649
        %v3652 = vadd.f32 %v3640, %v3650
        %v3653 = vadd.f32 %v3641, %v3651
        %3654 = vrot.lane.b32.xlu0 %v2106, 110
        %v3655 = vpop.permute.xlu0 %3654
        %3656 = vrot.lane.b32.xlu0 %v2107, 110
        %v3657 = vpop.permute.xlu0 %3656
        %vm3658 = vcmp.lt.s32.totalorder %v414, 110
        %v3659 = vsel %vm3658, %v3655, %v3657
        %v3660 = vsel %vm3658, %v3657, %v3655
        %3661 = vrot.lane.b32.xlu0 %v2116, 110
        %v3662 = vpop.permute.xlu0 %3661
        %3663 = vrot.lane.b32.xlu0 %v2125, 110
        %v3664 = vpop.permute.xlu0 %3663
        %v3665 = vsel %vm3658, %v3662, %v3664
        %v3666 = vsel %vm3658, %v3664, %v3662
        %s3667 = scalar_lea.vmem %s8, 66
        %v3668 = vld [vmem:[%s3667] sm:$0x3]
        %s3669 = scalar_lea.vmem %s6, 132
        %v3670 = vld [vmem:[%s3669] sm:$0x7]
        %v3672 = vperm.slane %v3668, 0
        %v3673 = vperm.slane %v3668, 1
        %v3676 = vmul.f32 %v3659, %v3672
        %v3677 = vmul.f32 %v3660, %v3673
        %3679 = vset.pattern.permute.xlu0 0
        %3680 = vperm.xlu0 %3679, %v3670
        %v3681 = vpop.permute.xlu0 %3680
        %v3683 = vperm.slane %v3676, 0
        %v3684 = vperm.slane %v3677, 0
        %v3685 = vmul.f32 %v3681, %v3683
        %v3686 = vmul.f32 %v3681, %v3684
        %v3687 = vadd.f32 %v3652, %v3685
        %v3688 = vadd.f32 %v3653, %v3686
        %v3689 = vmul.f32 %v3665, %v3672
        %v3690 = vmul.f32 %v3666, %v3673
        %3691 = vset.pattern.permute.xlu0 1
        %3692 = vperm.xlu0 %3691, %v3670
        %v3693 = vpop.permute.xlu0 %3692
        %v3695 = vperm.slane %v3689, 0
        %v3696 = vperm.slane %v3690, 0
        %v3697 = vmul.f32 %v3693, %v3695
        %v3698 = vmul.f32 %v3693, %v3696
        %v3699 = vadd.f32 %v3687, %v3697
        %v3700 = vadd.f32 %v3688, %v3698
        %3701 = vrot.lane.b32.xlu0 %v2106, 109
        %v3702 = vpop.permute.xlu0 %3701
        %3703 = vrot.lane.b32.xlu0 %v2107, 109
        %v3704 = vpop.permute.xlu0 %3703
        %vm3705 = vcmp.lt.s32.totalorder %v414, 109
        %v3706 = vsel %vm3705, %v3702, %v3704
        %v3707 = vsel %vm3705, %v3704, %v3702
        %3708 = vrot.lane.b32.xlu0 %v2116, 109
        %v3709 = vpop.permute.xlu0 %3708
        %3710 = vrot.lane.b32.xlu0 %v2125, 109
        %v3711 = vpop.permute.xlu0 %3710
        %v3712 = vsel %vm3705, %v3709, %v3711
        %v3713 = vsel %vm3705, %v3711, %v3709
        %s3714 = scalar_lea.vmem %s8, 68
        %v3715 = vld [vmem:[%s3714] sm:$0x3]
        %s3716 = scalar_lea.vmem %s6, 136
        %v3717 = vld [vmem:[%s3716] sm:$0x7]
        %v3719 = vperm.slane %v3715, 0
        %v3720 = vperm.slane %v3715, 1
        %v3723 = vmul.f32 %v3706, %v3719
        %v3724 = vmul.f32 %v3707, %v3720
        %3726 = vset.pattern.permute.xlu0 0
        %3727 = vperm.xlu0 %3726, %v3717
        %v3728 = vpop.permute.xlu0 %3727
        %v3730 = vperm.slane %v3723, 0
        %v3731 = vperm.slane %v3724, 0
        %v3732 = vmul.f32 %v3728, %v3730
        %v3733 = vmul.f32 %v3728, %v3731
        %v3734 = vadd.f32 %v3699, %v3732
        %v3735 = vadd.f32 %v3700, %v3733
        %v3736 = vmul.f32 %v3712, %v3719
        %v3737 = vmul.f32 %v3713, %v3720
        %3738 = vset.pattern.permute.xlu0 1
        %3739 = vperm.xlu0 %3738, %v3717
        %v3740 = vpop.permute.xlu0 %3739
        %v3742 = vperm.slane %v3736, 0
        %v3743 = vperm.slane %v3737, 0
        %v3744 = vmul.f32 %v3740, %v3742
        %v3745 = vmul.f32 %v3740, %v3743
        %v3746 = vadd.f32 %v3734, %v3744
        %v3747 = vadd.f32 %v3735, %v3745
        %3748 = vrot.lane.b32.xlu0 %v2106, 99
        %v3749 = vpop.permute.xlu0 %3748
        %3750 = vrot.lane.b32.xlu0 %v2107, 99
        %v3751 = vpop.permute.xlu0 %3750
        %vm3752 = vcmp.lt.s32.totalorder %v414, 99
        %v3753 = vsel %vm3752, %v3749, %v3751
        %v3754 = vsel %vm3752, %v3751, %v3749
        %3755 = vrot.lane.b32.xlu0 %v2116, 99
        %v3756 = vpop.permute.xlu0 %3755
        %3757 = vrot.lane.b32.xlu0 %v2125, 99
        %v3758 = vpop.permute.xlu0 %3757
        %v3759 = vsel %vm3752, %v3756, %v3758
        %v3760 = vsel %vm3752, %v3758, %v3756
        %s3761 = scalar_lea.vmem %s8, 70
        %v3762 = vld [vmem:[%s3761] sm:$0x3]
        %s3763 = scalar_lea.vmem %s6, 140
        %v3764 = vld [vmem:[%s3763] sm:$0x7]
        %v3766 = vperm.slane %v3762, 0
        %v3767 = vperm.slane %v3762, 1
        %v3770 = vmul.f32 %v3753, %v3766
        %v3771 = vmul.f32 %v3754, %v3767
        %3773 = vset.pattern.permute.xlu0 0
        %3774 = vperm.xlu0 %3773, %v3764
        %v3775 = vpop.permute.xlu0 %3774
        %v3777 = vperm.slane %v3770, 0
        %v3778 = vperm.slane %v3771, 0
        %v3779 = vmul.f32 %v3775, %v3777
        %v3780 = vmul.f32 %v3775, %v3778
        %v3781 = vadd.f32 %v3746, %v3779
        %v3782 = vadd.f32 %v3747, %v3780
        %v3783 = vmul.f32 %v3759, %v3766
        %v3784 = vmul.f32 %v3760, %v3767
        %3785 = vset.pattern.permute.xlu0 1
        %3786 = vperm.xlu0 %3785, %v3764
        %v3787 = vpop.permute.xlu0 %3786
        %v3789 = vperm.slane %v3783, 0
        %v3790 = vperm.slane %v3784, 0
        %v3791 = vmul.f32 %v3787, %v3789
        %v3792 = vmul.f32 %v3787, %v3790
        %v3793 = vadd.f32 %v3781, %v3791
        %v3794 = vadd.f32 %v3782, %v3792
        %3795 = vrot.lane.b32.xlu0 %v2106, 98
        %v3796 = vpop.permute.xlu0 %3795
        %3797 = vrot.lane.b32.xlu0 %v2107, 98
        %v3798 = vpop.permute.xlu0 %3797
        %vm3799 = vcmp.lt.s32.totalorder %v414, 98
        %v3800 = vsel %vm3799, %v3796, %v3798
        %v3801 = vsel %vm3799, %v3798, %v3796
        %3802 = vrot.lane.b32.xlu0 %v2116, 98
        %v3803 = vpop.permute.xlu0 %3802
        %3804 = vrot.lane.b32.xlu0 %v2125, 98
        %v3805 = vpop.permute.xlu0 %3804
        %v3806 = vsel %vm3799, %v3803, %v3805
        %v3807 = vsel %vm3799, %v3805, %v3803
        %s3808 = scalar_lea.vmem %s8, 72
        %v3809 = vld [vmem:[%s3808] sm:$0x3]
        %s3810 = scalar_lea.vmem %s6, 144
        %v3811 = vld [vmem:[%s3810] sm:$0x7]
        %v3813 = vperm.slane %v3809, 0
        %v3814 = vperm.slane %v3809, 1
        %v3817 = vmul.f32 %v3800, %v3813
        %v3818 = vmul.f32 %v3801, %v3814
        %3820 = vset.pattern.permute.xlu0 0
        %3821 = vperm.xlu0 %3820, %v3811
        %v3822 = vpop.permute.xlu0 %3821
        %v3824 = vperm.slane %v3817, 0
        %v3825 = vperm.slane %v3818, 0
        %v3826 = vmul.f32 %v3822, %v3824
        %v3827 = vmul.f32 %v3822, %v3825
        %v3828 = vadd.f32 %v3793, %v3826
        %v3829 = vadd.f32 %v3794, %v3827
        %v3830 = vmul.f32 %v3806, %v3813
        %v3831 = vmul.f32 %v3807, %v3814
        %3832 = vset.pattern.permute.xlu0 1
        %3833 = vperm.xlu0 %3832, %v3811
        %v3834 = vpop.permute.xlu0 %3833
        %v3836 = vperm.slane %v3830, 0
        %v3837 = vperm.slane %v3831, 0
        %v3838 = vmul.f32 %v3834, %v3836
        %v3839 = vmul.f32 %v3834, %v3837
        %v3840 = vadd.f32 %v3828, %v3838
        %v3841 = vadd.f32 %v3829, %v3839
        %3842 = vrot.lane.b32.xlu0 %v2106, 97
        %v3843 = vpop.permute.xlu0 %3842
        %3844 = vrot.lane.b32.xlu0 %v2107, 97
        %v3845 = vpop.permute.xlu0 %3844
        %vm3846 = vcmp.lt.s32.totalorder %v414, 97
        %v3847 = vsel %vm3846, %v3843, %v3845
        %v3848 = vsel %vm3846, %v3845, %v3843
        %3849 = vrot.lane.b32.xlu0 %v2116, 97
        %v3850 = vpop.permute.xlu0 %3849
        %3851 = vrot.lane.b32.xlu0 %v2125, 97
        %v3852 = vpop.permute.xlu0 %3851
        %v3853 = vsel %vm3846, %v3850, %v3852
        %v3854 = vsel %vm3846, %v3852, %v3850
        %s3855 = scalar_lea.vmem %s8, 74
        %v3856 = vld [vmem:[%s3855] sm:$0x3]
        %s3857 = scalar_lea.vmem %s6, 148
        %v3858 = vld [vmem:[%s3857] sm:$0x7]
        %v3860 = vperm.slane %v3856, 0
        %v3861 = vperm.slane %v3856, 1
        %v3864 = vmul.f32 %v3847, %v3860
        %v3865 = vmul.f32 %v3848, %v3861
        %3867 = vset.pattern.permute.xlu0 0
        %3868 = vperm.xlu0 %3867, %v3858
        %v3869 = vpop.permute.xlu0 %3868
        %v3871 = vperm.slane %v3864, 0
        %v3872 = vperm.slane %v3865, 0
        %v3873 = vmul.f32 %v3869, %v3871
        %v3874 = vmul.f32 %v3869, %v3872
        %v3875 = vadd.f32 %v3840, %v3873
        %v3876 = vadd.f32 %v3841, %v3874
        %v3877 = vmul.f32 %v3853, %v3860
        %v3878 = vmul.f32 %v3854, %v3861
        %3879 = vset.pattern.permute.xlu0 1
        %3880 = vperm.xlu0 %3879, %v3858
        %v3881 = vpop.permute.xlu0 %3880
        %v3883 = vperm.slane %v3877, 0
        %v3884 = vperm.slane %v3878, 0
        %v3885 = vmul.f32 %v3881, %v3883
        %v3886 = vmul.f32 %v3881, %v3884
        %v3887 = vadd.f32 %v3875, %v3885
        %v3888 = vadd.f32 %v3876, %v3886
        %3889 = vrot.lane.b32.xlu0 %v2106, 96
        %v3890 = vpop.permute.xlu0 %3889
        %3891 = vrot.lane.b32.xlu0 %v2107, 96
        %v3892 = vpop.permute.xlu0 %3891
        %vm3893 = vcmp.lt.s32.totalorder %v414, 96
        %v3894 = vsel %vm3893, %v3890, %v3892
        %v3895 = vsel %vm3893, %v3892, %v3890
        %3896 = vrot.lane.b32.xlu0 %v2116, 96
        %v3897 = vpop.permute.xlu0 %3896
        %3898 = vrot.lane.b32.xlu0 %v2125, 96
        %v3899 = vpop.permute.xlu0 %3898
        %v3900 = vsel %vm3893, %v3897, %v3899
        %v3901 = vsel %vm3893, %v3899, %v3897
        %s3902 = scalar_lea.vmem %s8, 76
        %v3903 = vld [vmem:[%s3902] sm:$0x3]
        %s3904 = scalar_lea.vmem %s6, 152
        %v3905 = vld [vmem:[%s3904] sm:$0x7]
        %v3907 = vperm.slane %v3903, 0
        %v3908 = vperm.slane %v3903, 1
        %v3911 = vmul.f32 %v3894, %v3907
        %v3912 = vmul.f32 %v3895, %v3908
        %3914 = vset.pattern.permute.xlu0 0
        %3915 = vperm.xlu0 %3914, %v3905
        %v3916 = vpop.permute.xlu0 %3915
        %v3918 = vperm.slane %v3911, 0
        %v3919 = vperm.slane %v3912, 0
        %v3920 = vmul.f32 %v3916, %v3918
        %v3921 = vmul.f32 %v3916, %v3919
        %v3922 = vadd.f32 %v3887, %v3920
        %v3923 = vadd.f32 %v3888, %v3921
        %v3924 = vmul.f32 %v3900, %v3907
        %v3925 = vmul.f32 %v3901, %v3908
        %3926 = vset.pattern.permute.xlu0 1
        %3927 = vperm.xlu0 %3926, %v3905
        %v3928 = vpop.permute.xlu0 %3927
        %v3930 = vperm.slane %v3924, 0
        %v3931 = vperm.slane %v3925, 0
        %v3932 = vmul.f32 %v3928, %v3930
        %v3933 = vmul.f32 %v3928, %v3931
        %v3934 = vadd.f32 %v3922, %v3932
        %v3935 = vadd.f32 %v3923, %v3933
        %3936 = vrot.lane.b32.xlu0 %v2106, 95
        %v3937 = vpop.permute.xlu0 %3936
        %3938 = vrot.lane.b32.xlu0 %v2107, 95
        %v3939 = vpop.permute.xlu0 %3938
        %vm3940 = vcmp.lt.s32.totalorder %v414, 95
        %v3941 = vsel %vm3940, %v3937, %v3939
        %v3942 = vsel %vm3940, %v3939, %v3937
        %3943 = vrot.lane.b32.xlu0 %v2116, 95
        %v3944 = vpop.permute.xlu0 %3943
        %3945 = vrot.lane.b32.xlu0 %v2125, 95
        %v3946 = vpop.permute.xlu0 %3945
        %v3947 = vsel %vm3940, %v3944, %v3946
        %v3948 = vsel %vm3940, %v3946, %v3944
        %s3949 = scalar_lea.vmem %s8, 78
        %v3950 = vld [vmem:[%s3949] sm:$0x3]
        %s3951 = scalar_lea.vmem %s6, 156
        %v3952 = vld [vmem:[%s3951] sm:$0x7]
        %v3954 = vperm.slane %v3950, 0
        %v3955 = vperm.slane %v3950, 1
        %v3958 = vmul.f32 %v3941, %v3954
        %v3959 = vmul.f32 %v3942, %v3955
        %3961 = vset.pattern.permute.xlu0 0
        %3962 = vperm.xlu0 %3961, %v3952
        %v3963 = vpop.permute.xlu0 %3962
        %v3965 = vperm.slane %v3958, 0
        %v3966 = vperm.slane %v3959, 0
        %v3967 = vmul.f32 %v3963, %v3965
        %v3968 = vmul.f32 %v3963, %v3966
        %v3969 = vadd.f32 %v3934, %v3967
        %v3970 = vadd.f32 %v3935, %v3968
        %v3971 = vmul.f32 %v3947, %v3954
        %v3972 = vmul.f32 %v3948, %v3955
        %3973 = vset.pattern.permute.xlu0 1
        %3974 = vperm.xlu0 %3973, %v3952
        %v3975 = vpop.permute.xlu0 %3974
        %v3977 = vperm.slane %v3971, 0
        %v3978 = vperm.slane %v3972, 0
        %v3979 = vmul.f32 %v3975, %v3977
        %v3980 = vmul.f32 %v3975, %v3978
        %v3981 = vadd.f32 %v3969, %v3979
        %v3982 = vadd.f32 %v3970, %v3980
        %3983 = vrot.lane.b32.xlu0 %v2106, 94
        %v3984 = vpop.permute.xlu0 %3983
        %3985 = vrot.lane.b32.xlu0 %v2107, 94
        %v3986 = vpop.permute.xlu0 %3985
        %vm3987 = vcmp.lt.s32.totalorder %v414, 94
        %v3988 = vsel %vm3987, %v3984, %v3986
        %v3989 = vsel %vm3987, %v3986, %v3984
        %3990 = vrot.lane.b32.xlu0 %v2116, 94
        %v3991 = vpop.permute.xlu0 %3990
        %3992 = vrot.lane.b32.xlu0 %v2125, 94
        %v3993 = vpop.permute.xlu0 %3992
        %v3994 = vsel %vm3987, %v3991, %v3993
        %v3995 = vsel %vm3987, %v3993, %v3991
        %s3996 = scalar_lea.vmem %s8, 80
        %v3997 = vld [vmem:[%s3996] sm:$0x3]
        %s3998 = scalar_lea.vmem %s6, 160
        %v3999 = vld [vmem:[%s3998] sm:$0x7]
        %v4001 = vperm.slane %v3997, 0
        %v4002 = vperm.slane %v3997, 1
        %v4005 = vmul.f32 %v3988, %v4001
        %v4006 = vmul.f32 %v3989, %v4002
        %4008 = vset.pattern.permute.xlu0 0
        %4009 = vperm.xlu0 %4008, %v3999
        %v4010 = vpop.permute.xlu0 %4009
        %v4012 = vperm.slane %v4005, 0
        %v4013 = vperm.slane %v4006, 0
        %v4014 = vmul.f32 %v4010, %v4012
        %v4015 = vmul.f32 %v4010, %v4013
        %v4016 = vadd.f32 %v3981, %v4014
        %v4017 = vadd.f32 %v3982, %v4015
        %v4018 = vmul.f32 %v3994, %v4001
        %v4019 = vmul.f32 %v3995, %v4002
        %4020 = vset.pattern.permute.xlu0 1
        %4021 = vperm.xlu0 %4020, %v3999
        %v4022 = vpop.permute.xlu0 %4021
        %v4024 = vperm.slane %v4018, 0
        %v4025 = vperm.slane %v4019, 0
        %v4026 = vmul.f32 %v4022, %v4024
        %v4027 = vmul.f32 %v4022, %v4025
        %v4028 = vadd.f32 %v4016, %v4026
        %v4029 = vadd.f32 %v4017, %v4027
        %4030 = vrot.lane.b32.xlu0 %v2106, 93
        %v4031 = vpop.permute.xlu0 %4030
        %4032 = vrot.lane.b32.xlu0 %v2107, 93
        %v4033 = vpop.permute.xlu0 %4032
        %vm4034 = vcmp.lt.s32.totalorder %v414, 93
        %v4035 = vsel %vm4034, %v4031, %v4033
        %v4036 = vsel %vm4034, %v4033, %v4031
        %4037 = vrot.lane.b32.xlu0 %v2116, 93
        %v4038 = vpop.permute.xlu0 %4037
        %4039 = vrot.lane.b32.xlu0 %v2125, 93
        %v4040 = vpop.permute.xlu0 %4039
        %v4041 = vsel %vm4034, %v4038, %v4040
        %v4042 = vsel %vm4034, %v4040, %v4038
        %s4043 = scalar_lea.vmem %s8, 82
        %v4044 = vld [vmem:[%s4043] sm:$0x3]
        %s4045 = scalar_lea.vmem %s6, 164
        %v4046 = vld [vmem:[%s4045] sm:$0x7]
        %v4048 = vperm.slane %v4044, 0
        %v4049 = vperm.slane %v4044, 1
        %v4052 = vmul.f32 %v4035, %v4048
        %v4053 = vmul.f32 %v4036, %v4049
        %4055 = vset.pattern.permute.xlu0 0
        %4056 = vperm.xlu0 %4055, %v4046
        %v4057 = vpop.permute.xlu0 %4056
        %v4059 = vperm.slane %v4052, 0
        %v4060 = vperm.slane %v4053, 0
        %v4061 = vmul.f32 %v4057, %v4059
        %v4062 = vmul.f32 %v4057, %v4060
        %v4063 = vadd.f32 %v4028, %v4061
        %v4064 = vadd.f32 %v4029, %v4062
        %v4065 = vmul.f32 %v4041, %v4048
        %v4066 = vmul.f32 %v4042, %v4049
        %4067 = vset.pattern.permute.xlu0 1
        %4068 = vperm.xlu0 %4067, %v4046
        %v4069 = vpop.permute.xlu0 %4068
        %v4071 = vperm.slane %v4065, 0
        %v4072 = vperm.slane %v4066, 0
        %v4073 = vmul.f32 %v4069, %v4071
        %v4074 = vmul.f32 %v4069, %v4072
        %v4075 = vadd.f32 %v4063, %v4073
        %v4076 = vadd.f32 %v4064, %v4074
        %4077 = vrot.lane.b32.xlu0 %v2106, 83
        %v4078 = vpop.permute.xlu0 %4077
        %4079 = vrot.lane.b32.xlu0 %v2107, 83
        %v4080 = vpop.permute.xlu0 %4079
        %vm4081 = vcmp.lt.s32.totalorder %v414, 83
        %v4082 = vsel %vm4081, %v4078, %v4080
        %v4083 = vsel %vm4081, %v4080, %v4078
        %4084 = vrot.lane.b32.xlu0 %v2116, 83
        %v4085 = vpop.permute.xlu0 %4084
        %4086 = vrot.lane.b32.xlu0 %v2125, 83
        %v4087 = vpop.permute.xlu0 %4086
        %v4088 = vsel %vm4081, %v4085, %v4087
        %v4089 = vsel %vm4081, %v4087, %v4085
        %s4090 = scalar_lea.vmem %s8, 84
        %v4091 = vld [vmem:[%s4090] sm:$0x3]
        %s4092 = scalar_lea.vmem %s6, 168
        %v4093 = vld [vmem:[%s4092] sm:$0x7]
        %v4095 = vperm.slane %v4091, 0
        %v4096 = vperm.slane %v4091, 1
        %v4099 = vmul.f32 %v4082, %v4095
        %v4100 = vmul.f32 %v4083, %v4096
        %4102 = vset.pattern.permute.xlu0 0
        %4103 = vperm.xlu0 %4102, %v4093
        %v4104 = vpop.permute.xlu0 %4103
        %v4106 = vperm.slane %v4099, 0
        %v4107 = vperm.slane %v4100, 0
        %v4108 = vmul.f32 %v4104, %v4106
        %v4109 = vmul.f32 %v4104, %v4107
        %v4110 = vadd.f32 %v4075, %v4108
        %v4111 = vadd.f32 %v4076, %v4109
        %v4112 = vmul.f32 %v4088, %v4095
        %v4113 = vmul.f32 %v4089, %v4096
        %4114 = vset.pattern.permute.xlu0 1
        %4115 = vperm.xlu0 %4114, %v4093
        %v4116 = vpop.permute.xlu0 %4115
        %v4118 = vperm.slane %v4112, 0
        %v4119 = vperm.slane %v4113, 0
        %v4120 = vmul.f32 %v4116, %v4118
        %v4121 = vmul.f32 %v4116, %v4119
        %v4122 = vadd.f32 %v4110, %v4120
        %v4123 = vadd.f32 %v4111, %v4121
        %4124 = vrot.lane.b32.xlu0 %v2106, 82
        %v4125 = vpop.permute.xlu0 %4124
        %4126 = vrot.lane.b32.xlu0 %v2107, 82
        %v4127 = vpop.permute.xlu0 %4126
        %vm4128 = vcmp.lt.s32.totalorder %v414, 82
        %v4129 = vsel %vm4128, %v4125, %v4127
        %v4130 = vsel %vm4128, %v4127, %v4125
        %4131 = vrot.lane.b32.xlu0 %v2116, 82
        %v4132 = vpop.permute.xlu0 %4131
        %4133 = vrot.lane.b32.xlu0 %v2125, 82
        %v4134 = vpop.permute.xlu0 %4133
        %v4135 = vsel %vm4128, %v4132, %v4134
        %v4136 = vsel %vm4128, %v4134, %v4132
        %s4137 = scalar_lea.vmem %s8, 86
        %v4138 = vld [vmem:[%s4137] sm:$0x3]
        %s4139 = scalar_lea.vmem %s6, 172
        %v4140 = vld [vmem:[%s4139] sm:$0x7]
        %v4142 = vperm.slane %v4138, 0
        %v4143 = vperm.slane %v4138, 1
        %v4146 = vmul.f32 %v4129, %v4142
        %v4147 = vmul.f32 %v4130, %v4143
        %4149 = vset.pattern.permute.xlu0 0
        %4150 = vperm.xlu0 %4149, %v4140
        %v4151 = vpop.permute.xlu0 %4150
        %v4153 = vperm.slane %v4146, 0
        %v4154 = vperm.slane %v4147, 0
        %v4155 = vmul.f32 %v4151, %v4153
        %v4156 = vmul.f32 %v4151, %v4154
        %v4157 = vadd.f32 %v4122, %v4155
        %v4158 = vadd.f32 %v4123, %v4156
        %v4159 = vmul.f32 %v4135, %v4142
        %v4160 = vmul.f32 %v4136, %v4143
        %4161 = vset.pattern.permute.xlu0 1
        %4162 = vperm.xlu0 %4161, %v4140
        %v4163 = vpop.permute.xlu0 %4162
        %v4165 = vperm.slane %v4159, 0
        %v4166 = vperm.slane %v4160, 0
        %v4167 = vmul.f32 %v4163, %v4165
        %v4168 = vmul.f32 %v4163, %v4166
        %v4169 = vadd.f32 %v4157, %v4167
        %v4170 = vadd.f32 %v4158, %v4168
        %4171 = vrot.lane.b32.xlu0 %v2106, 81
        %v4172 = vpop.permute.xlu0 %4171
        %4173 = vrot.lane.b32.xlu0 %v2107, 81
        %v4174 = vpop.permute.xlu0 %4173
        %vm4175 = vcmp.lt.s32.totalorder %v414, 81
        %v4176 = vsel %vm4175, %v4172, %v4174
        %v4177 = vsel %vm4175, %v4174, %v4172
        %4178 = vrot.lane.b32.xlu0 %v2116, 81
        %v4179 = vpop.permute.xlu0 %4178
        %4180 = vrot.lane.b32.xlu0 %v2125, 81
        %v4181 = vpop.permute.xlu0 %4180
        %v4182 = vsel %vm4175, %v4179, %v4181
        %v4183 = vsel %vm4175, %v4181, %v4179
        %s4184 = scalar_lea.vmem %s8, 88
        %v4185 = vld [vmem:[%s4184] sm:$0x3]
        %s4186 = scalar_lea.vmem %s6, 176
        %v4187 = vld [vmem:[%s4186] sm:$0x7]
        %v4189 = vperm.slane %v4185, 0
        %v4190 = vperm.slane %v4185, 1
        %v4193 = vmul.f32 %v4176, %v4189
        %v4194 = vmul.f32 %v4177, %v4190
        %4196 = vset.pattern.permute.xlu0 0
        %4197 = vperm.xlu0 %4196, %v4187
        %v4198 = vpop.permute.xlu0 %4197
        %v4200 = vperm.slane %v4193, 0
        %v4201 = vperm.slane %v4194, 0
        %v4202 = vmul.f32 %v4198, %v4200
        %v4203 = vmul.f32 %v4198, %v4201
        %v4204 = vadd.f32 %v4169, %v4202
        %v4205 = vadd.f32 %v4170, %v4203
        %v4206 = vmul.f32 %v4182, %v4189
        %v4207 = vmul.f32 %v4183, %v4190
        %4208 = vset.pattern.permute.xlu0 1
        %4209 = vperm.xlu0 %4208, %v4187
        %v4210 = vpop.permute.xlu0 %4209
        %v4212 = vperm.slane %v4206, 0
        %v4213 = vperm.slane %v4207, 0
        %v4214 = vmul.f32 %v4210, %v4212
        %v4215 = vmul.f32 %v4210, %v4213
        %v4216 = vadd.f32 %v4204, %v4214
        %v4217 = vadd.f32 %v4205, %v4215
        %4218 = vrot.lane.b32.xlu0 %v2106, 80
        %v4219 = vpop.permute.xlu0 %4218
        %4220 = vrot.lane.b32.xlu0 %v2107, 80
        %v4221 = vpop.permute.xlu0 %4220
        %vm4222 = vcmp.lt.s32.totalorder %v414, 80
        %v4223 = vsel %vm4222, %v4219, %v4221
        %v4224 = vsel %vm4222, %v4221, %v4219
        %4225 = vrot.lane.b32.xlu0 %v2116, 80
        %v4226 = vpop.permute.xlu0 %4225
        %4227 = vrot.lane.b32.xlu0 %v2125, 80
        %v4228 = vpop.permute.xlu0 %4227
        %v4229 = vsel %vm4222, %v4226, %v4228
        %v4230 = vsel %vm4222, %v4228, %v4226
        %s4231 = scalar_lea.vmem %s8, 90
        %v4232 = vld [vmem:[%s4231] sm:$0x3]
        %s4233 = scalar_lea.vmem %s6, 180
        %v4234 = vld [vmem:[%s4233] sm:$0x7]
        %v4236 = vperm.slane %v4232, 0
        %v4237 = vperm.slane %v4232, 1
        %v4240 = vmul.f32 %v4223, %v4236
        %v4241 = vmul.f32 %v4224, %v4237
        %4243 = vset.pattern.permute.xlu0 0
        %4244 = vperm.xlu0 %4243, %v4234
        %v4245 = vpop.permute.xlu0 %4244
        %v4247 = vperm.slane %v4240, 0
        %v4248 = vperm.slane %v4241, 0
        %v4249 = vmul.f32 %v4245, %v4247
        %v4250 = vmul.f32 %v4245, %v4248
        %v4251 = vadd.f32 %v4216, %v4249
        %v4252 = vadd.f32 %v4217, %v4250
        %v4253 = vmul.f32 %v4229, %v4236
        %v4254 = vmul.f32 %v4230, %v4237
        %4255 = vset.pattern.permute.xlu0 1
        %4256 = vperm.xlu0 %4255, %v4234
        %v4257 = vpop.permute.xlu0 %4256
        %v4259 = vperm.slane %v4253, 0
        %v4260 = vperm.slane %v4254, 0
        %v4261 = vmul.f32 %v4257, %v4259
        %v4262 = vmul.f32 %v4257, %v4260
        %v4263 = vadd.f32 %v4251, %v4261
        %v4264 = vadd.f32 %v4252, %v4262
        %4265 = vrot.lane.b32.xlu0 %v2106, 79
        %v4266 = vpop.permute.xlu0 %4265
        %4267 = vrot.lane.b32.xlu0 %v2107, 79
        %v4268 = vpop.permute.xlu0 %4267
        %vm4269 = vcmp.lt.s32.totalorder %v414, 79
        %v4270 = vsel %vm4269, %v4266, %v4268
        %v4271 = vsel %vm4269, %v4268, %v4266
        %4272 = vrot.lane.b32.xlu0 %v2116, 79
        %v4273 = vpop.permute.xlu0 %4272
        %4274 = vrot.lane.b32.xlu0 %v2125, 79
        %v4275 = vpop.permute.xlu0 %4274
        %v4276 = vsel %vm4269, %v4273, %v4275
        %v4277 = vsel %vm4269, %v4275, %v4273
        %s4278 = scalar_lea.vmem %s8, 92
        %v4279 = vld [vmem:[%s4278] sm:$0x3]
        %s4280 = scalar_lea.vmem %s6, 184
        %v4281 = vld [vmem:[%s4280] sm:$0x7]
        %v4283 = vperm.slane %v4279, 0
        %v4284 = vperm.slane %v4279, 1
        %v4287 = vmul.f32 %v4270, %v4283
        %v4288 = vmul.f32 %v4271, %v4284
        %4290 = vset.pattern.permute.xlu0 0
        %4291 = vperm.xlu0 %4290, %v4281
        %v4292 = vpop.permute.xlu0 %4291
        %v4294 = vperm.slane %v4287, 0
        %v4295 = vperm.slane %v4288, 0
        %v4296 = vmul.f32 %v4292, %v4294
        %v4297 = vmul.f32 %v4292, %v4295
        %v4298 = vadd.f32 %v4263, %v4296
        %v4299 = vadd.f32 %v4264, %v4297
        %v4300 = vmul.f32 %v4276, %v4283
        %v4301 = vmul.f32 %v4277, %v4284
        %4302 = vset.pattern.permute.xlu0 1
        %4303 = vperm.xlu0 %4302, %v4281
        %v4304 = vpop.permute.xlu0 %4303
        %v4306 = vperm.slane %v4300, 0
        %v4307 = vperm.slane %v4301, 0
        %v4308 = vmul.f32 %v4304, %v4306
        %v4309 = vmul.f32 %v4304, %v4307
        %v4310 = vadd.f32 %v4298, %v4308
        %v4311 = vadd.f32 %v4299, %v4309
        %4312 = vrot.lane.b32.xlu0 %v2106, 78
        %v4313 = vpop.permute.xlu0 %4312
        %4314 = vrot.lane.b32.xlu0 %v2107, 78
        %v4315 = vpop.permute.xlu0 %4314
        %vm4316 = vcmp.lt.s32.totalorder %v414, 78
        %v4317 = vsel %vm4316, %v4313, %v4315
        %v4318 = vsel %vm4316, %v4315, %v4313
        %4319 = vrot.lane.b32.xlu0 %v2116, 78
        %v4320 = vpop.permute.xlu0 %4319
        %4321 = vrot.lane.b32.xlu0 %v2125, 78
        %v4322 = vpop.permute.xlu0 %4321
        %v4323 = vsel %vm4316, %v4320, %v4322
        %v4324 = vsel %vm4316, %v4322, %v4320
        %s4325 = scalar_lea.vmem %s8, 94
        %v4326 = vld [vmem:[%s4325] sm:$0x3]
        %s4327 = scalar_lea.vmem %s6, 188
        %v4328 = vld [vmem:[%s4327] sm:$0x7]
        %v4330 = vperm.slane %v4326, 0
        %v4331 = vperm.slane %v4326, 1
        %v4334 = vmul.f32 %v4317, %v4330
        %v4335 = vmul.f32 %v4318, %v4331
        %4337 = vset.pattern.permute.xlu0 0
        %4338 = vperm.xlu0 %4337, %v4328
        %v4339 = vpop.permute.xlu0 %4338
        %v4341 = vperm.slane %v4334, 0
        %v4342 = vperm.slane %v4335, 0
        %v4343 = vmul.f32 %v4339, %v4341
        %v4344 = vmul.f32 %v4339, %v4342
        %v4345 = vadd.f32 %v4310, %v4343
        %v4346 = vadd.f32 %v4311, %v4344
        %v4347 = vmul.f32 %v4323, %v4330
        %v4348 = vmul.f32 %v4324, %v4331
        %4349 = vset.pattern.permute.xlu0 1
        %4350 = vperm.xlu0 %4349, %v4328
        %v4351 = vpop.permute.xlu0 %4350
        %v4353 = vperm.slane %v4347, 0
        %v4354 = vperm.slane %v4348, 0
        %v4355 = vmul.f32 %v4351, %v4353
        %v4356 = vmul.f32 %v4351, %v4354
        %v4357 = vadd.f32 %v4345, %v4355
        %v4358 = vadd.f32 %v4346, %v4356
        %4359 = vrot.lane.b32.xlu0 %v2106, 77
        %v4360 = vpop.permute.xlu0 %4359
        %4361 = vrot.lane.b32.xlu0 %v2107, 77
        %v4362 = vpop.permute.xlu0 %4361
        %vm4363 = vcmp.lt.s32.totalorder %v414, 77
        %v4364 = vsel %vm4363, %v4360, %v4362
        %v4365 = vsel %vm4363, %v4362, %v4360
        %4366 = vrot.lane.b32.xlu0 %v2116, 77
        %v4367 = vpop.permute.xlu0 %4366
        %4368 = vrot.lane.b32.xlu0 %v2125, 77
        %v4369 = vpop.permute.xlu0 %4368
        %v4370 = vsel %vm4363, %v4367, %v4369
        %v4371 = vsel %vm4363, %v4369, %v4367
        %s4372 = scalar_lea.vmem %s8, 96
        %v4373 = vld [vmem:[%s4372] sm:$0x3]
        %s4374 = scalar_lea.vmem %s6, 192
        %v4375 = vld [vmem:[%s4374] sm:$0x7]
        %v4377 = vperm.slane %v4373, 0
        %v4378 = vperm.slane %v4373, 1
        %v4381 = vmul.f32 %v4364, %v4377
        %v4382 = vmul.f32 %v4365, %v4378
        %4384 = vset.pattern.permute.xlu0 0
        %4385 = vperm.xlu0 %4384, %v4375
        %v4386 = vpop.permute.xlu0 %4385
        %v4388 = vperm.slane %v4381, 0
        %v4389 = vperm.slane %v4382, 0
        %v4390 = vmul.f32 %v4386, %v4388
        %v4391 = vmul.f32 %v4386, %v4389
        %v4392 = vadd.f32 %v4357, %v4390
        %v4393 = vadd.f32 %v4358, %v4391
        %v4394 = vmul.f32 %v4370, %v4377
        %v4395 = vmul.f32 %v4371, %v4378
        %4396 = vset.pattern.permute.xlu0 1
        %4397 = vperm.xlu0 %4396, %v4375
        %v4398 = vpop.permute.xlu0 %4397
        %v4400 = vperm.slane %v4394, 0
        %v4401 = vperm.slane %v4395, 0
        %v4402 = vmul.f32 %v4398, %v4400
        %v4403 = vmul.f32 %v4398, %v4401
        %v4404 = vadd.f32 %v4392, %v4402
        %v4405 = vadd.f32 %v4393, %v4403
        %s4406 = sld [smem:[#allocation7]]
        %v4407 = vstv %s4406
        %v4408 = vadd.f32 %v4404, %v4407
        %v4409 = vadd.f32 %v4405, %v4407
        %v4410 = vmax.f32 %v4408, 0.0
        %v4411 = vmax.f32 %v4409, 0.0
        %s4412 = sld [smem:[#allocation7 + $0x1]]
        %v4413 = vstv %s4412
        %v4414 = vadd.f32 %v4404, %v4413
        %v4415 = vadd.f32 %v4405, %v4413
        %v4416 = vmax.f32 %v4414, 0.0
        %v4417 = vmax.f32 %v4415, 0.0
        %s4418 = sld [smem:[#allocation7 + $0x2]]
        %v4419 = vstv %s4418
        %v4420 = vadd.f32 %v4404, %v4419
        %v4421 = vadd.f32 %v4405, %v4419
        %v4422 = vmax.f32 %v4420, 0.0
        %v4423 = vmax.f32 %v4421, 0.0
        %s4424 = sld [smem:[#allocation7 + $0x3]]
        %v4425 = vstv %s4424
        %v4426 = vmul.f32 %v4425, %v4410
        %v4427 = vmul.f32 %v4425, %v4411
        %s4428 = sld [smem:[#allocation7 + $0x4]]
        %v4429 = vstv %s4428
        %v4430 = vmul.f32 %v4429, %v4416
        %v4431 = vmul.f32 %v4429, %v4417
        %v4434 = vrot.slane %v4430, 1
        %v4435 = vrot.slane %v4431, 1
        %v4438 = vadd.f32 %v4426, %v4434
        %v4439 = vadd.f32 %v4427, %v4435
        %s4440 = sld [smem:[#allocation7 + $0x5]]
        %v4441 = vstv %s4440
        %v4442 = vmul.f32 %v4441, %v4422
        %v4443 = vmul.f32 %v4441, %v4423
        %v4446 = vrot.slane %v4442, 2
        %v4447 = vrot.slane %v4443, 2
        %v4450 = vadd.f32 %v4438, %v4446
        %v4451 = vadd.f32 %v4439, %v4447
        %s4452 = sld [smem:[#allocation7 + $0x6]]
        %v4453 = vstv %s4452
        %v4454 = vadd.f32 %v4450, %v4453
        %v4455 = vadd.f32 %v4451, %v4453
        %v4456 = vsub.f32 0.0, %v4454
        %v4457 = vsub.f32 0.0, %v4455
        %v4458 = vmul.f32 %v4456, 1.442695
        %v4459 = vpow.pop %v4458
        %v4460 = vmul.f32 %v4457, 1.442695
        %v4461 = vpow.pop %v4460
        %v4462 = vadd.f32 %v4459, 1.0
        %v4463 = vadd.f32 %v4461, 1.0
        %v4464 = vrcp.pop %v4462
        %v4465 = vmul.f32 %v4462, %v4464
        %v4466 = vsub.f32 1.0, %v4465
        %v4467 = vmul.f32 %v4464, %v4466
        %v4468 = vadd.f32 %v4464, %v4467
        %vm4469 = vweird.f32 %v4462
        %vm4470 = vweird.f32 %v4464
        %vm4471 = vmor %vm4469, %vm4470
        %v4472 = vsel %vm4471, %v4464, %v4468
        %v4473 = vand.u32 2147483647, %v4462
        %vm4474 = vcmp.eq.f32.partialorder %v4473, 8.507059e+37
        %v4475 = vand.u32 %v4462, 2147483648
        %v4476 = vor.u32 1.1754944e-38, %v4475
        %v4477 = vsel %vm4474, %v4476, %v4472
        %v4478 = vmul.f32 1.0, %v4477
        %v4479 = vrcp.pop %v4463
        %v4480 = vmul.f32 %v4463, %v4479
        %v4481 = vsub.f32 1.0, %v4480
        %v4482 = vmul.f32 %v4479, %v4481
        %v4483 = vadd.f32 %v4479, %v4482
        %vm4484 = vweird.f32 %v4463
        %vm4485 = vweird.f32 %v4479
        %vm4486 = vmor %vm4484, %vm4485
        %v4487 = vsel %vm4486, %v4479, %v4483
        %v4488 = vand.u32 2147483647, %v4463
        %vm4489 = vcmp.eq.f32.partialorder %v4488, 8.507059e+37
        %v4490 = vand.u32 %v4463, 2147483648
        %v4491 = vor.u32 1.1754944e-38, %v4490
        %v4492 = vsel %vm4489, %v4491, %v4487
        %v4493 = vmul.f32 1.0, %v4492
        %v4494 = vperm.slane %v4478, 0
        %v4495 = vperm.slane %v4493, 0
        %v4496 = vmul.f32 %v2073, %v4494
        %v4497 = vmul.f32 %v2074, %v4495
        %v4498 = vmul.f32 %v2075, %v4494
        %v4499 = vmul.f32 %v2076, %v4495
        %v4500 = vmul.f32 %v2077, %v4494
        %v4501 = vmul.f32 %v2078, %v4495
        %v4502 = vmul.f32 %v2079, %v4494
        %v4503 = vmul.f32 %v2080, %v4495
        %v4504 = vadd.f32 %v4496, %v389
        %v4505 = vadd.f32 %v4497, %v390
        %v4506 = vadd.f32 %v4498, %v391
        %v4507 = vadd.f32 %v4499, %v392
        %v4508 = vadd.f32 %v4500, %v393
        %v4509 = vadd.f32 %v4501, %v394
        %v4510 = vadd.f32 %v4502, %v395
        %v4511 = vadd.f32 %v4503, %v396
        %v4512 = vmax.f32 %v4504, 0.0
        %v4513 = vmax.f32 %v4505, 0.0
        %v4514 = vmax.f32 %v4506, 0.0
        %v4515 = vmax.f32 %v4507, 0.0
        %v4516 = vmax.f32 %v4508, 0.0
        %v4517 = vmax.f32 %v4509, 0.0
        %v4518 = vmax.f32 %v4510, 0.0
        %v4519 = vmax.f32 %v4511, 0.0
        %4520 = vst [vmem:[%s383] sm:$0xff] %v4512
        %4521 = vst [vmem:[%s383 + $0x8] sm:$0xff] %v4513
        %4522 = vst [vmem:[%s383 + $0x10] sm:$0xff] %v4514
        %4523 = vst [vmem:[%s383 + $0x18] sm:$0xff] %v4515
        %4524 = vst [vmem:[%s383 + $0x20] sm:$0xff] %v4516
        %4525 = vst [vmem:[%s383 + $0x28] sm:$0xff] %v4517
        %4526 = vst [vmem:[%s383 + $0x30] sm:$0xff] %v4518
        %4527 = vst [vmem:[%s383 + $0x38] sm:$0xff] %v4519
        %s4528 = sand.u32 %s249, 1
        %s4529 = scalar_lea.sflag [#allocation5], %s4528
        %s4530 = sand.u32 %s249, 1
        %s4531 = smul.addr %s4530, 64
        %s4532 = scalar_lea.vmem [#allocation8], %s4531
        // Predicated region
        $region69: #{tpu_custom_call.1} parent=59 // pred_check
          %p4533 = pneg %p259
        $region70: #{tpu_custom_call.1} parent=59 // pred_check_branch
          %4535 = sbr.rel (%p4533) target = $region72
        $region71: #{tpu_custom_call.1} parent=59 // pred_region
          %4537 = vsyncadd %s4529, 0
          %s4538 = smul.addr %s26, 8
          %s4539 = smul.addr %s4538, 8
          %s4540 = scalar_lea.hbm %s10, %s4539
          %s4541 = sshll.u32 %s4532, 4
          %s4542 = int_to_ptr.vmem [resolvable:$true] %s4541
          %s4543 = sshll.u32 %s4540, 4
          %s4544 = int_to_ptr.hbm [resolvable:$true] %s4543
          %4549 = dma.vmem_to_hbm [thread:$0]  %s4542, 1024, %s4544, %s4529, 256, 256, 16
        $region72: #{tpu_custom_call.1} parent=59 // pred_fallthru
          _
      $region60: #{tpu_custom_call.1} parent=5 // pred_fallthru
        _
      %p4550 = scmp.le.s32.totalorder 2, %s21
      // Predicated region
      $region73: #{tpu_custom_call.1} parent=5 // pred_check
        %p4551 = pneg %p4550
      $region74: #{tpu_custom_call.1} parent=5 // pred_check_branch
        %4553 = sbr.rel (%p4551) target = $region76
      $region75: #{tpu_custom_call.1} parent=5 // pred_region
        %s4554 = ssub.s32 %s21, 2
        // Predicated region
        $region77: #{tpu_custom_call.1} parent=75 // pred_check
          %p4555 = pneg %p265
        $region78: #{tpu_custom_call.1} parent=75 // pred_check_branch
          %4557 = sbr.rel (%p4555) target = $region80
        $region79: #{tpu_custom_call.1} parent=75 // pred_region
          %s4558 = sand.u32 %s250, 1
          %s4559 = scalar_lea.sflag [#allocation5], %s4558
          %s4560 = sand.u32 %s250, 1
          %s4561 = smul.addr %s4560, 64
          %s4562 = scalar_lea.vmem [#allocation8], %s4561
          %4564 = dma.done %s4559, 1024
        $region80: #{tpu_custom_call.1} parent=75 // pred_fallthru
          _
      $region76: #{tpu_custom_call.1} parent=5 // pred_fallthru
        _
    $region6: #{tpu_custom_call.1} parent=1 // loop_footer
      %s25 = sadd.s32 1, %s21
    $region7: #{tpu_custom_call.1} parent=1 // loop_footer_branch
      %20 = sbr.rel target = $region3
    $region8: #{tpu_custom_call.1} parent=1 // loop_exit
      _
    %4565 = vsyncpa [#allocation4], 1
    %s4566 = scalar_lea.sflag [#allocation4], 1
    %4567 = vsyncpa %s4566, 1
    %4568 = vsyncpa [#allocation5], 1
    %s4569 = scalar_lea.sflag [#allocation5], 1
    %4570 = vsyncpa %s4569, 1
    %4571 = vsyncpa [#allocation6], 1
    %s4572 = scalar_lea.sflag [#allocation6], 1
    %4573 = vsyncpa %s4572, 1

</llo_original>
